<compile_context>
chip_gen: v7x
topology: tpu7x:2x2x1
jax: 0.10.0
libtpu: 0.0.40
codegen_flags: <defaults>
</compile_context>

<pallas_src>
import functools
import math

import jax
import jax.numpy as jnp
from jax.experimental import pallas as pl
from jax.experimental.pallas import tpu as pltpu

# ---- model hyperparameters (from the PyTorch module) ----
VOCAB = 22
VOCAB_PAD = 32      # pad one-hot contraction dim to an aligned size (extra cols never match)
D = 128             # d_embedding
H = 8               # num_heads
HD = D // H         # head dim = 16
FF = 1024           # transformer dim_feedforward
MAX_LEN = 45
FC1 = 1024
FC2 = 256
PAD_ID = 21
LN_EPS = 1e-5
BN_EPS = 1e-5
NEG_INF = -1e30


def _layernorm(x, g, b, eps=LN_EPS):
    mu = jnp.mean(x, axis=-1, keepdims=True)
    var = jnp.mean((x - mu) ** 2, axis=-1, keepdims=True)
    return (x - mu) * jax.lax.rsqrt(var + eps) * g + b


# --------------------------------------------------------------------------
# Single fused kernel: embedding -> encoder layer -> final LN -> pool -> MLP head
# --------------------------------------------------------------------------
def _fused_kernel(B, S,
                  tok_ref, padk_ref, pos_ref, emb_ref,
                  wq_ref, bq_ref, wk_ref, bk_ref, wv_ref, bv_ref,
                  wo_ref, bo_ref,
                  ln1g_ref, ln1b_ref, ln2g_ref, ln2b_ref, lnfg_ref, lnfb_ref,
                  wf1_ref, bf1_ref, wf2_ref, bf2_ref,
                  w1_ref, b1_ref, g1_ref, be1_ref, m1_ref, v1_ref,
                  w2_ref, b2_ref, g2_ref, be2_ref, m2_ref, v2_ref,
                  w3_ref, b3_ref,
                  o_ref):
    BS = B * S
    f32 = jnp.float32

    # ---- embedding lookup as a one-hot matmul on the MXU + positional add ----
    tok = tok_ref[...]                                           # (BS, 1) int32
    vocab_iota = jax.lax.broadcasted_iota(jnp.int32, (BS, VOCAB_PAD), 1)
    onehot = (tok == vocab_iota).astype(f32)                     # (BS, VOCAB_PAD)
    x = jnp.dot(onehot, emb_ref[...], preferred_element_type=f32)   # (BS, D)
    x = x + jnp.concatenate([pos_ref[...]] * B, axis=0)          # + positional encodings

    # ---- multi-head self-attention (QKV over the whole (B*S, D) slab) ----
    q = jnp.dot(x, wq_ref[...], preferred_element_type=f32) + bq_ref[...]
    k = jnp.dot(x, wk_ref[...], preferred_element_type=f32) + bk_ref[...]
    v = jnp.dot(x, wv_ref[...], preferred_element_type=f32) + bv_ref[...]
    q3 = q.reshape(B, S, D)
    k3 = k.reshape(B, S, D)
    v3 = v.reshape(B, S, D)

    key_bias = padk_ref[...] * NEG_INF                           # (B, 1, S), hoisted once
    wo = wo_ref[...]                                             # (D, D)
    scale = 1.0 / math.sqrt(HD)

    attn = jnp.zeros((BS, D), f32)
    for h in range(H):                                           # heads batched over B
        sl = slice(h * HD, (h + 1) * HD)
        qh, kh, vh = q3[:, :, sl], k3[:, :, sl], v3[:, :, sl]    # (B, S, HD)
        s = jnp.einsum('bqd,bkd->bqk', qh, kh,
                       preferred_element_type=f32) * scale + key_bias
        s = s - jnp.max(s, axis=-1, keepdims=True)
        p = jnp.exp(s)
        p = p * pl.reciprocal(jnp.sum(p, axis=-1, keepdims=True), approx=True)
        ctx = jnp.einsum('bqk,bkd->bqd', p, vh, preferred_element_type=f32)
        # accumulate output projection head-by-head -> no lane concat needed
        attn = attn + jnp.dot(ctx.reshape(BS, HD), wo[sl, :],
                              preferred_element_type=f32)
    attn = attn + bo_ref[...]

    x1 = _layernorm(x + attn, ln1g_ref[...], ln1b_ref[...])      # post-LN residual 1

    # ---- feed-forward + residual + LayerNorm2 + final encoder LayerNorm ----
    h1 = jnp.maximum(
        jnp.dot(x1, wf1_ref[...], preferred_element_type=f32) + bf1_ref[...], 0.0)
    ff = jnp.dot(h1, wf2_ref[...], preferred_element_type=f32) + bf2_ref[...]
    x2 = _layernorm(x1 + ff, ln2g_ref[...], ln2b_ref[...])
    feat = _layernorm(x2, lnfg_ref[...], lnfb_ref[...])          # (BS, D)

    # ---- masked mean pooling over the sequence ----
    coff = 1.0 - (tok == PAD_ID).astype(f32)                     # (BS, 1)
    weighted = coff * feat                                       # (BS, D)
    reps = []
    for b in range(B):                                           # B is tiny (2)
        rows = slice(b * S, (b + 1) * S)
        num = jnp.sum(weighted[rows, :], axis=0, keepdims=True)  # (1, D)
        den = jnp.sum(coff[rows, :], axis=0, keepdims=True)      # (1, 1)
        reps.append(num * pl.reciprocal(den, approx=True))
    rep = jnp.concatenate(reps, axis=0)                          # (B, D)

    # ---- head MLP: fc1/bn1/relu -> fc2/bn2/relu -> output/sigmoid ----
    z = jnp.dot(rep, w1_ref[...], preferred_element_type=f32) + b1_ref[...]
    z = (z - m1_ref[...]) * jax.lax.rsqrt(v1_ref[...] + BN_EPS) * g1_ref[...] + be1_ref[...]
    z = jnp.maximum(z, 0.0)
    z = jnp.dot(z, w2_ref[...], preferred_element_type=f32) + b2_ref[...]
    z = (z - m2_ref[...]) * jax.lax.rsqrt(v2_ref[...] + BN_EPS) * g2_ref[...] + be2_ref[...]
    z = jnp.maximum(z, 0.0)
    y = jnp.dot(z, w3_ref[...], preferred_element_type=f32) + b3_ref[...]
    o_ref[...] = jax.nn.sigmoid(y)


# --------------------------------------------------------------------------
# Wrapper: one pallas_call, whole arrays resident in VMEM (no grid).
# --------------------------------------------------------------------------
@jax.jit
def baseline_forward(tokens, params):
    B, S = tokens.shape
    BS = B * S
    p = params

    tok2 = tokens.reshape(BS, 1).astype(jnp.int32)                        # token ids, sublane layout
    padk = (tokens == PAD_ID).astype(jnp.float32).reshape(B, 1, S)        # pad mask in key (lane) layout
    pos = p["pos"][:S]                                                    # (S, D)
    emb = jnp.pad(p["emb"], ((0, VOCAB_PAD - VOCAB), (0, 0)))             # (VOCAB_PAD, D)

    args = (tok2, padk, pos, emb,
            p["wq"], p["bq"], p["wk"], p["bk"], p["wv"], p["bv"],
            p["wo"], p["bo"],
            p["ln1g"], p["ln1b"], p["ln2g"], p["ln2b"], p["lnfg"], p["lnfb"],
            p["wf1"], p["bf1"], p["wf2"], p["bf2"],
            p["w1"], p["b1"], p["bn1_g"], p["bn1_b"], p["bn1_m"], p["bn1_v"],
            p["w2"], p["b2"], p["bn2_g"], p["bn2_b"], p["bn2_m"], p["bn2_v"],
            p["w3"], p["b3"])

    flops = (2 * BS * VOCAB_PAD * D                 # embedding one-hot matmul
             + 4 * 2 * BS * D * D                   # q, k, v, output projection
             + H * 4 * B * S * S * HD               # attention scores + context
             + 2 * 2 * BS * D * FF                  # feed-forward
             + 2 * B * (D * FC1 + FC1 * FC2 + FC2)) # head MLP
    transcendentals = B * H * S * S + 4 * BS + B
    bytes_accessed = sum(int(a.size) * a.dtype.itemsize for a in args) + B * 4

    vmem = pltpu.MemorySpace.VMEM
    return pl.pallas_call(
        functools.partial(_fused_kernel, B, S),
        out_shape=jax.ShapeDtypeStruct((B, 1), jnp.float32),
        in_specs=[pl.BlockSpec(memory_space=vmem) for _ in args],
        out_specs=pl.BlockSpec(memory_space=vmem),
        cost_estimate=pl.CostEstimate(flops=flops,
                                      transcendentals=transcendentals,
                                      bytes_accessed=bytes_accessed),
    )(*args)


# --------------------------------------------------------------------------
# Deterministic parameter construction
# --------------------------------------------------------------------------
def init_params(key):
    ks = iter(jax.random.split(key, 40))
    n = lambda shape, s=0.05: s * jax.random.normal(next(ks), shape, jnp.float32)
    p = {}
    p["emb"] = jax.random.uniform(next(ks), (VOCAB, D), jnp.float32)
    p["pos"] = jax.random.uniform(next(ks), (MAX_LEN, D), jnp.float32)
    for name in ("wq", "wk", "wv", "wo"):
        p[name] = n((D, D))
    for name in ("bq", "bk", "bv", "bo"):
        p[name] = n((1, D), 0.02)
    for name in ("ln1", "ln2", "lnf"):
        p[name + "g"] = 1.0 + n((1, D), 0.01)
        p[name + "b"] = n((1, D), 0.01)
    p["wf1"], p["bf1"] = n((D, FF)), n((1, FF), 0.02)
    p["wf2"], p["bf2"] = n((FF, D)), n((1, D), 0.02)
    p["w1"], p["b1"] = n((D, FC1)), n((1, FC1), 0.02)
    p["w2"], p["b2"] = n((FC1, FC2)), n((1, FC2), 0.02)
    p["w3"], p["b3"] = n((FC2, 1)), n((1, 1), 0.02)
    for name, width in (("bn1", FC1), ("bn2", FC2)):
        p[name + "_g"] = 1.0 + n((1, width), 0.01)
        p[name + "_b"] = n((1, width), 0.01)
        p[name + "_m"] = n((1, width), 0.01)
        p[name + "_v"] = 1.0 + 0.01 * jax.random.uniform(next(ks), (1, width), jnp.float32)
    return p


if __name__ == "__main__":
    key = jax.random.PRNGKey(0)
    pkey, tkey = jax.random.split(key)
    params = init_params(pkey)

    B, S = 2, 8
    tokens = jax.random.randint(tkey, (B, S), 0, VOCAB - 1, dtype=jnp.int32)
    tokens = tokens.at[0, -2:].set(PAD_ID)   # some padding in row 0
    tokens = tokens.at[1, -1:].set(PAD_ID)   # some padding in row 1

    # TODO(synk): dropout (p=0.2) and BatchNorm batch-statistics (train mode)
    # are not implemented; this is the eval-mode forward pass.
    y = baseline_forward(tokens, params)
    jax.block_until_ready(y)
    assert y.shape == (B, 1) and bool(jnp.all((y > 0) & (y < 1)))
    print("KERNEL_OK")
</pallas_src>

<mosaic_0001>
module attributes {stable_mosaic.version = 11 : i64} {
  func.func @_fused_kernel(%arg0: memref<16x1xi32, #tpu.memory_space<vmem>>, %arg1: memref<2x1x8xf32, #tpu.memory_space<vmem>>, %arg2: memref<8x128xf32, #tpu.memory_space<vmem>>, %arg3: memref<32x128xf32, #tpu.memory_space<vmem>>, %arg4: memref<128x128xf32, #tpu.memory_space<vmem>>, %arg5: memref<1x128xf32, #tpu.memory_space<vmem>>, %arg6: memref<128x128xf32, #tpu.memory_space<vmem>>, %arg7: memref<1x128xf32, #tpu.memory_space<vmem>>, %arg8: memref<128x128xf32, #tpu.memory_space<vmem>>, %arg9: memref<1x128xf32, #tpu.memory_space<vmem>>, %arg10: memref<128x128xf32, #tpu.memory_space<vmem>>, %arg11: memref<1x128xf32, #tpu.memory_space<vmem>>, %arg12: memref<1x128xf32, #tpu.memory_space<vmem>>, %arg13: memref<1x128xf32, #tpu.memory_space<vmem>>, %arg14: memref<1x128xf32, #tpu.memory_space<vmem>>, %arg15: memref<1x128xf32, #tpu.memory_space<vmem>>, %arg16: memref<1x128xf32, #tpu.memory_space<vmem>>, %arg17: memref<1x128xf32, #tpu.memory_space<vmem>>, %arg18: memref<128x1024xf32, #tpu.memory_space<vmem>>, %arg19: memref<1x1024xf32, #tpu.memory_space<vmem>>, %arg20: memref<1024x128xf32, #tpu.memory_space<vmem>>, %arg21: memref<1x128xf32, #tpu.memory_space<vmem>>, %arg22: memref<128x1024xf32, #tpu.memory_space<vmem>>, %arg23: memref<1x1024xf32, #tpu.memory_space<vmem>>, %arg24: memref<1x1024xf32, #tpu.memory_space<vmem>>, %arg25: memref<1x1024xf32, #tpu.memory_space<vmem>>, %arg26: memref<1x1024xf32, #tpu.memory_space<vmem>>, %arg27: memref<1x1024xf32, #tpu.memory_space<vmem>>, %arg28: memref<1024x256xf32, #tpu.memory_space<vmem>>, %arg29: memref<1x256xf32, #tpu.memory_space<vmem>>, %arg30: memref<1x256xf32, #tpu.memory_space<vmem>>, %arg31: memref<1x256xf32, #tpu.memory_space<vmem>>, %arg32: memref<1x256xf32, #tpu.memory_space<vmem>>, %arg33: memref<1x256xf32, #tpu.memory_space<vmem>>, %arg34: memref<256x1xf32, #tpu.memory_space<vmem>>, %arg35: memref<1x1xf32, #tpu.memory_space<vmem>>, %arg36: memref<2x1xf32, #tpu.memory_space<vmem>>) attributes {dimension_semantics = [], scalar_prefetch = 0 : i64, scratch_operands = 0 : i64, tpu.core_type = #tpu.core_type<tc>} {
    %c0 = arith.constant 0 : index
    %c0_0 = arith.constant 0 : index
    %0 = vector.load %arg0[%c0, %c0_0] : memref<16x1xi32, #tpu.memory_space<vmem>>, vector<16x1xi32>
    %1 = tpu.iota {dimensions = array<i32: 1>} : vector<16x32xi32>
    %2 = vector.broadcast %0 : vector<16x1xi32> to vector<16x32xi32>
    %3 = arith.cmpi eq, %2, %1 : vector<16x32xi32>
    %4 = arith.extui %3 : vector<16x32xi1> to vector<16x32xi32>
    %5 = arith.sitofp %4 : vector<16x32xi32> to vector<16x32xf32>
    %c0_1 = arith.constant 0 : index
    %c0_2 = arith.constant 0 : index
    %6 = vector.load %arg3[%c0_1, %c0_2] : memref<32x128xf32, #tpu.memory_space<vmem>>, vector<32x128xf32>
    %cst = arith.constant dense<0.000000e+00> : vector<16x128xf32>
    %7 = tpu.matmul %5, %6, %cst {dimension_numbers = #tpu.dot_dimension_numbers<[1], [0], [0], [1], [0, 0, 1, 1], [], []>} : vector<16x32xf32>, vector<32x128xf32>, vector<16x128xf32> -> vector<16x128xf32>
    %c0_3 = arith.constant 0 : index
    %c0_4 = arith.constant 0 : index
    %8 = vector.load %arg2[%c0_3, %c0_4] : memref<8x128xf32, #tpu.memory_space<vmem>>, vector<8x128xf32>
    %9 = tpu.concatenate %8, %8 in 0 : vector<8x128xf32>, vector<8x128xf32> -> vector<16x128xf32>
    %10 = arith.addf %7, %9 : vector<16x128xf32>
    %c0_5 = arith.constant 0 : index
    %c0_6 = arith.constant 0 : index
    %11 = vector.load %arg4[%c0_5, %c0_6] : memref<128x128xf32, #tpu.memory_space<vmem>>, vector<128x128xf32>
    %cst_7 = arith.constant dense<0.000000e+00> : vector<16x128xf32>
    %12 = tpu.matmul %10, %11, %cst_7 {dimension_numbers = #tpu.dot_dimension_numbers<[1], [0], [0], [1], [0, 0, 1, 1], [], []>} : vector<16x128xf32>, vector<128x128xf32>, vector<16x128xf32> -> vector<16x128xf32>
    %c0_8 = arith.constant 0 : index
    %c0_9 = arith.constant 0 : index
    %13 = vector.load %arg5[%c0_8, %c0_9] : memref<1x128xf32, #tpu.memory_space<vmem>>, vector<1x128xf32>
    %14 = vector.broadcast %13 : vector<1x128xf32> to vector<16x128xf32>
    %15 = arith.addf %12, %14 : vector<16x128xf32>
    %c0_10 = arith.constant 0 : index
    %c0_11 = arith.constant 0 : index
    %16 = vector.load %arg6[%c0_10, %c0_11] : memref<128x128xf32, #tpu.memory_space<vmem>>, vector<128x128xf32>
    %cst_12 = arith.constant dense<0.000000e+00> : vector<16x128xf32>
    %17 = tpu.matmul %10, %16, %cst_12 {dimension_numbers = #tpu.dot_dimension_numbers<[1], [0], [0], [1], [0, 0, 1, 1], [], []>} : vector<16x128xf32>, vector<128x128xf32>, vector<16x128xf32> -> vector<16x128xf32>
    %c0_13 = arith.constant 0 : index
    %c0_14 = arith.constant 0 : index
    %18 = vector.load %arg7[%c0_13, %c0_14] : memref<1x128xf32, #tpu.memory_space<vmem>>, vector<1x128xf32>
    %19 = vector.broadcast %18 : vector<1x128xf32> to vector<16x128xf32>
    %20 = arith.addf %17, %19 : vector<16x128xf32>
    %c0_15 = arith.constant 0 : index
    %c0_16 = arith.constant 0 : index
    %21 = vector.load %arg8[%c0_15, %c0_16] : memref<128x128xf32, #tpu.memory_space<vmem>>, vector<128x128xf32>
    %cst_17 = arith.constant dense<0.000000e+00> : vector<16x128xf32>
    %22 = tpu.matmul %10, %21, %cst_17 {dimension_numbers = #tpu.dot_dimension_numbers<[1], [0], [0], [1], [0, 0, 1, 1], [], []>} : vector<16x128xf32>, vector<128x128xf32>, vector<16x128xf32> -> vector<16x128xf32>
    %c0_18 = arith.constant 0 : index
    %c0_19 = arith.constant 0 : index
    %23 = vector.load %arg9[%c0_18, %c0_19] : memref<1x128xf32, #tpu.memory_space<vmem>>, vector<1x128xf32>
    %24 = vector.broadcast %23 : vector<1x128xf32> to vector<16x128xf32>
    %25 = arith.addf %22, %24 : vector<16x128xf32>
    %26 = vector.shape_cast %15 : vector<16x128xf32> to vector<2x8x128xf32>
    %27 = vector.shape_cast %20 : vector<16x128xf32> to vector<2x8x128xf32>
    %28 = vector.shape_cast %25 : vector<16x128xf32> to vector<2x8x128xf32>
    %c0_20 = arith.constant 0 : index
    %c0_21 = arith.constant 0 : index
    %c0_22 = arith.constant 0 : index
    %29 = vector.load %arg1[%c0_20, %c0_21, %c0_22] : memref<2x1x8xf32, #tpu.memory_space<vmem>>, vector<2x1x8xf32>
    %cst_23 = arith.constant -1.000000e+30 : f32
    %30 = vector.broadcast %cst_23 : f32 to vector<2x1x8xf32>
    %31 = arith.mulf %29, %30 : vector<2x1x8xf32>
    %c0_24 = arith.constant 0 : index
    %c0_25 = arith.constant 0 : index
    %32 = vector.load %arg10[%c0_24, %c0_25] : memref<128x128xf32, #tpu.memory_space<vmem>>, vector<128x128xf32>
    %cst_26 = arith.constant 0.000000e+00 : f32
    %33 = vector.broadcast %cst_26 : f32 to vector<16x128xf32>
    %34 = vector.extract_strided_slice %26 {offsets = [0, 0, 0], sizes = [2, 8, 16], strides = [1, 1, 1]} : vector<2x8x128xf32> to vector<2x8x16xf32>
    %35 = vector.extract_strided_slice %27 {offsets = [0, 0, 0], sizes = [2, 8, 16], strides = [1, 1, 1]} : vector<2x8x128xf32> to vector<2x8x16xf32>
    %36 = vector.extract_strided_slice %28 {offsets = [0, 0, 0], sizes = [2, 8, 16], strides = [1, 1, 1]} : vector<2x8x128xf32> to vector<2x8x16xf32>
    "tpu.trace_start"() <{level = 10 : i32, message = "bqd,bkd->bqk"}> : () -> ()
    %cst_27 = arith.constant dense<0.000000e+00> : vector<2x8x8xf32>
    %37 = tpu.matmul %34, %35, %cst_27 {dimension_numbers = #tpu.dot_dimension_numbers<[2], [2], [1], [1], [0, 0, 0, 1, 1, 1], [0], [0]>} : vector<2x8x16xf32>, vector<2x8x16xf32>, vector<2x8x8xf32> -> vector<2x8x8xf32>
    "tpu.trace_stop"() : () -> ()
    %cst_28 = arith.constant 2.500000e-01 : f32
    %38 = vector.broadcast %cst_28 : f32 to vector<2x8x8xf32>
    %39 = arith.mulf %37, %38 : vector<2x8x8xf32>
    %40 = vector.broadcast %31 : vector<2x1x8xf32> to vector<2x8x8xf32>
    %41 = arith.addf %39, %40 : vector<2x8x8xf32>
    %cst_29 = arith.constant dense<0xFF800000> : vector<2x8xf32>
    %42 = vector.multi_reduction <maximumf>, %41, %cst_29 [2] : vector<2x8x8xf32> to vector<2x8xf32>
    %43 = vector.shape_cast %42 : vector<2x8xf32> to vector<2x8x1xf32>
    %44 = vector.broadcast %43 : vector<2x8x1xf32> to vector<2x8x8xf32>
    %45 = arith.subf %41, %44 : vector<2x8x8xf32>
    %46 = math.exp %45 : vector<2x8x8xf32>
    %cst_30 = arith.constant dense<0.000000e+00> : vector<2x8xf32>
    %47 = vector.multi_reduction <add>, %46, %cst_30 [2] : vector<2x8x8xf32> to vector<2x8xf32>
    %48 = vector.shape_cast %47 : vector<2x8xf32> to vector<2x8x1xf32>
    %49 = tpu.reciprocal %48 {approx = true} : vector<2x8x1xf32> -> vector<2x8x1xf32>
    %50 = vector.broadcast %49 : vector<2x8x1xf32> to vector<2x8x8xf32>
    %51 = arith.mulf %46, %50 : vector<2x8x8xf32>
    "tpu.trace_start"() <{level = 10 : i32, message = "bqk,bkd->bqd"}> : () -> ()
    %cst_31 = arith.constant dense<0.000000e+00> : vector<2x8x16xf32>
    %52 = tpu.matmul %51, %36, %cst_31 {dimension_numbers = #tpu.dot_dimension_numbers<[2], [1], [1], [2], [0, 0, 0, 1, 1, 2], [0], [0]>} : vector<2x8x8xf32>, vector<2x8x16xf32>, vector<2x8x16xf32> -> vector<2x8x16xf32>
    "tpu.trace_stop"() : () -> ()
    %53 = vector.shape_cast %52 : vector<2x8x16xf32> to vector<16x16xf32>
    %54 = vector.extract_strided_slice %32 {offsets = [0, 0], sizes = [16, 128], strides = [1, 1]} : vector<128x128xf32> to vector<16x128xf32>
    %cst_32 = arith.constant dense<0.000000e+00> : vector<16x128xf32>
    %55 = tpu.matmul %53, %54, %cst_32 {dimension_numbers = #tpu.dot_dimension_numbers<[1], [0], [0], [1], [0, 0, 1, 1], [], []>} : vector<16x16xf32>, vector<16x128xf32>, vector<16x128xf32> -> vector<16x128xf32>
    %56 = arith.addf %33, %55 : vector<16x128xf32>
    %57 = vector.extract_strided_slice %26 {offsets = [0, 0, 16], sizes = [2, 8, 16], strides = [1, 1, 1]} : vector<2x8x128xf32> to vector<2x8x16xf32>
    %58 = vector.extract_strided_slice %27 {offsets = [0, 0, 16], sizes = [2, 8, 16], strides = [1, 1, 1]} : vector<2x8x128xf32> to vector<2x8x16xf32>
    %59 = vector.extract_strided_slice %28 {offsets = [0, 0, 16], sizes = [2, 8, 16], strides = [1, 1, 1]} : vector<2x8x128xf32> to vector<2x8x16xf32>
    "tpu.trace_start"() <{level = 10 : i32, message = "bqd,bkd->bqk"}> : () -> ()
    %cst_33 = arith.constant dense<0.000000e+00> : vector<2x8x8xf32>
    %60 = tpu.matmul %57, %58, %cst_33 {dimension_numbers = #tpu.dot_dimension_numbers<[2], [2], [1], [1], [0, 0, 0, 1, 1, 1], [0], [0]>} : vector<2x8x16xf32>, vector<2x8x16xf32>, vector<2x8x8xf32> -> vector<2x8x8xf32>
    "tpu.trace_stop"() : () -> ()
    %cst_34 = arith.constant 2.500000e-01 : f32
    %61 = vector.broadcast %cst_34 : f32 to vector<2x8x8xf32>
    %62 = arith.mulf %60, %61 : vector<2x8x8xf32>
    %63 = vector.broadcast %31 : vector<2x1x8xf32> to vector<2x8x8xf32>
    %64 = arith.addf %62, %63 : vector<2x8x8xf32>
    %cst_35 = arith.constant dense<0xFF800000> : vector<2x8xf32>
    %65 = vector.multi_reduction <maximumf>, %64, %cst_35 [2] : vector<2x8x8xf32> to vector<2x8xf32>
    %66 = vector.shape_cast %65 : vector<2x8xf32> to vector<2x8x1xf32>
    %67 = vector.broadcast %66 : vector<2x8x1xf32> to vector<2x8x8xf32>
    %68 = arith.subf %64, %67 : vector<2x8x8xf32>
    %69 = math.exp %68 : vector<2x8x8xf32>
    %cst_36 = arith.constant dense<0.000000e+00> : vector<2x8xf32>
    %70 = vector.multi_reduction <add>, %69, %cst_36 [2] : vector<2x8x8xf32> to vector<2x8xf32>
    %71 = vector.shape_cast %70 : vector<2x8xf32> to vector<2x8x1xf32>
    %72 = tpu.reciprocal %71 {approx = true} : vector<2x8x1xf32> -> vector<2x8x1xf32>
    %73 = vector.broadcast %72 : vector<2x8x1xf32> to vector<2x8x8xf32>
    %74 = arith.mulf %69, %73 : vector<2x8x8xf32>
    "tpu.trace_start"() <{level = 10 : i32, message = "bqk,bkd->bqd"}> : () -> ()
    %cst_37 = arith.constant dense<0.000000e+00> : vector<2x8x16xf32>
    %75 = tpu.matmul %74, %59, %cst_37 {dimension_numbers = #tpu.dot_dimension_numbers<[2], [1], [1], [2], [0, 0, 0, 1, 1, 2], [0], [0]>} : vector<2x8x8xf32>, vector<2x8x16xf32>, vector<2x8x16xf32> -> vector<2x8x16xf32>
    "tpu.trace_stop"() : () -> ()
    %76 = vector.shape_cast %75 : vector<2x8x16xf32> to vector<16x16xf32>
    %77 = vector.extract_strided_slice %32 {offsets = [16, 0], sizes = [16, 128], strides = [1, 1]} : vector<128x128xf32> to vector<16x128xf32>
    %cst_38 = arith.constant dense<0.000000e+00> : vector<16x128xf32>
    %78 = tpu.matmul %76, %77, %cst_38 {dimension_numbers = #tpu.dot_dimension_numbers<[1], [0], [0], [1], [0, 0, 1, 1], [], []>} : vector<16x16xf32>, vector<16x128xf32>, vector<16x128xf32> -> vector<16x128xf32>
    %79 = arith.addf %56, %78 : vector<16x128xf32>
    %80 = vector.extract_strided_slice %26 {offsets = [0, 0, 32], sizes = [2, 8, 16], strides = [1, 1, 1]} : vector<2x8x128xf32> to vector<2x8x16xf32>
    %81 = vector.extract_strided_slice %27 {offsets = [0, 0, 32], sizes = [2, 8, 16], strides = [1, 1, 1]} : vector<2x8x128xf32> to vector<2x8x16xf32>
    %82 = vector.extract_strided_slice %28 {offsets = [0, 0, 32], sizes = [2, 8, 16], strides = [1, 1, 1]} : vector<2x8x128xf32> to vector<2x8x16xf32>
    "tpu.trace_start"() <{level = 10 : i32, message = "bqd,bkd->bqk"}> : () -> ()
    %cst_39 = arith.constant dense<0.000000e+00> : vector<2x8x8xf32>
    %83 = tpu.matmul %80, %81, %cst_39 {dimension_numbers = #tpu.dot_dimension_numbers<[2], [2], [1], [1], [0, 0, 0, 1, 1, 1], [0], [0]>} : vector<2x8x16xf32>, vector<2x8x16xf32>, vector<2x8x8xf32> -> vector<2x8x8xf32>
    "tpu.trace_stop"() : () -> ()
    %cst_40 = arith.constant 2.500000e-01 : f32
    %84 = vector.broadcast %cst_40 : f32 to vector<2x8x8xf32>
    %85 = arith.mulf %83, %84 : vector<2x8x8xf32>
    %86 = vector.broadcast %31 : vector<2x1x8xf32> to vector<2x8x8xf32>
    %87 = arith.addf %85, %86 : vector<2x8x8xf32>
    %cst_41 = arith.constant dense<0xFF800000> : vector<2x8xf32>
    %88 = vector.multi_reduction <maximumf>, %87, %cst_41 [2] : vector<2x8x8xf32> to vector<2x8xf32>
    %89 = vector.shape_cast %88 : vector<2x8xf32> to vector<2x8x1xf32>
    %90 = vector.broadcast %89 : vector<2x8x1xf32> to vector<2x8x8xf32>
    %91 = arith.subf %87, %90 : vector<2x8x8xf32>
    %92 = math.exp %91 : vector<2x8x8xf32>
    %cst_42 = arith.constant dense<0.000000e+00> : vector<2x8xf32>
    %93 = vector.multi_reduction <add>, %92, %cst_42 [2] : vector<2x8x8xf32> to vector<2x8xf32>
    %94 = vector.shape_cast %93 : vector<2x8xf32> to vector<2x8x1xf32>
    %95 = tpu.reciprocal %94 {approx = true} : vector<2x8x1xf32> -> vector<2x8x1xf32>
    %96 = vector.broadcast %95 : vector<2x8x1xf32> to vector<2x8x8xf32>
    %97 = arith.mulf %92, %96 : vector<2x8x8xf32>
    "tpu.trace_start"() <{level = 10 : i32, message = "bqk,bkd->bqd"}> : () -> ()
    %cst_43 = arith.constant dense<0.000000e+00> : vector<2x8x16xf32>
    %98 = tpu.matmul %97, %82, %cst_43 {dimension_numbers = #tpu.dot_dimension_numbers<[2], [1], [1], [2], [0, 0, 0, 1, 1, 2], [0], [0]>} : vector<2x8x8xf32>, vector<2x8x16xf32>, vector<2x8x16xf32> -> vector<2x8x16xf32>
    "tpu.trace_stop"() : () -> ()
    %99 = vector.shape_cast %98 : vector<2x8x16xf32> to vector<16x16xf32>
    %100 = vector.extract_strided_slice %32 {offsets = [32, 0], sizes = [16, 128], strides = [1, 1]} : vector<128x128xf32> to vector<16x128xf32>
    %cst_44 = arith.constant dense<0.000000e+00> : vector<16x128xf32>
    %101 = tpu.matmul %99, %100, %cst_44 {dimension_numbers = #tpu.dot_dimension_numbers<[1], [0], [0], [1], [0, 0, 1, 1], [], []>} : vector<16x16xf32>, vector<16x128xf32>, vector<16x128xf32> -> vector<16x128xf32>
    %102 = arith.addf %79, %101 : vector<16x128xf32>
    %103 = vector.extract_strided_slice %26 {offsets = [0, 0, 48], sizes = [2, 8, 16], strides = [1, 1, 1]} : vector<2x8x128xf32> to vector<2x8x16xf32>
    %104 = vector.extract_strided_slice %27 {offsets = [0, 0, 48], sizes = [2, 8, 16], strides = [1, 1, 1]} : vector<2x8x128xf32> to vector<2x8x16xf32>
    %105 = vector.extract_strided_slice %28 {offsets = [0, 0, 48], sizes = [2, 8, 16], strides = [1, 1, 1]} : vector<2x8x128xf32> to vector<2x8x16xf32>
    "tpu.trace_start"() <{level = 10 : i32, message = "bqd,bkd->bqk"}> : () -> ()
    %cst_45 = arith.constant dense<0.000000e+00> : vector<2x8x8xf32>
    %106 = tpu.matmul %103, %104, %cst_45 {dimension_numbers = #tpu.dot_dimension_numbers<[2], [2], [1], [1], [0, 0, 0, 1, 1, 1], [0], [0]>} : vector<2x8x16xf32>, vector<2x8x16xf32>, vector<2x8x8xf32> -> vector<2x8x8xf32>
    "tpu.trace_stop"() : () -> ()
    %cst_46 = arith.constant 2.500000e-01 : f32
    %107 = vector.broadcast %cst_46 : f32 to vector<2x8x8xf32>
    %108 = arith.mulf %106, %107 : vector<2x8x8xf32>
    %109 = vector.broadcast %31 : vector<2x1x8xf32> to vector<2x8x8xf32>
    %110 = arith.addf %108, %109 : vector<2x8x8xf32>
    %cst_47 = arith.constant dense<0xFF800000> : vector<2x8xf32>
    %111 = vector.multi_reduction <maximumf>, %110, %cst_47 [2] : vector<2x8x8xf32> to vector<2x8xf32>
    %112 = vector.shape_cast %111 : vector<2x8xf32> to vector<2x8x1xf32>
    %113 = vector.broadcast %112 : vector<2x8x1xf32> to vector<2x8x8xf32>
    %114 = arith.subf %110, %113 : vector<2x8x8xf32>
    %115 = math.exp %114 : vector<2x8x8xf32>
    %cst_48 = arith.constant dense<0.000000e+00> : vector<2x8xf32>
    %116 = vector.multi_reduction <add>, %115, %cst_48 [2] : vector<2x8x8xf32> to vector<2x8xf32>
    %117 = vector.shape_cast %116 : vector<2x8xf32> to vector<2x8x1xf32>
    %118 = tpu.reciprocal %117 {approx = true} : vector<2x8x1xf32> -> vector<2x8x1xf32>
    %119 = vector.broadcast %118 : vector<2x8x1xf32> to vector<2x8x8xf32>
    %120 = arith.mulf %115, %119 : vector<2x8x8xf32>
    "tpu.trace_start"() <{level = 10 : i32, message = "bqk,bkd->bqd"}> : () -> ()
    %cst_49 = arith.constant dense<0.000000e+00> : vector<2x8x16xf32>
    %121 = tpu.matmul %120, %105, %cst_49 {dimension_numbers = #tpu.dot_dimension_numbers<[2], [1], [1], [2], [0, 0, 0, 1, 1, 2], [0], [0]>} : vector<2x8x8xf32>, vector<2x8x16xf32>, vector<2x8x16xf32> -> vector<2x8x16xf32>
    "tpu.trace_stop"() : () -> ()
    %122 = vector.shape_cast %121 : vector<2x8x16xf32> to vector<16x16xf32>
    %123 = vector.extract_strided_slice %32 {offsets = [48, 0], sizes = [16, 128], strides = [1, 1]} : vector<128x128xf32> to vector<16x128xf32>
    %cst_50 = arith.constant dense<0.000000e+00> : vector<16x128xf32>
    %124 = tpu.matmul %122, %123, %cst_50 {dimension_numbers = #tpu.dot_dimension_numbers<[1], [0], [0], [1], [0, 0, 1, 1], [], []>} : vector<16x16xf32>, vector<16x128xf32>, vector<16x128xf32> -> vector<16x128xf32>
    %125 = arith.addf %102, %124 : vector<16x128xf32>
    %126 = vector.extract_strided_slice %26 {offsets = [0, 0, 64], sizes = [2, 8, 16], strides = [1, 1, 1]} : vector<2x8x128xf32> to vector<2x8x16xf32>
    %127 = vector.extract_strided_slice %27 {offsets = [0, 0, 64], sizes = [2, 8, 16], strides = [1, 1, 1]} : vector<2x8x128xf32> to vector<2x8x16xf32>
    %128 = vector.extract_strided_slice %28 {offsets = [0, 0, 64], sizes = [2, 8, 16], strides = [1, 1, 1]} : vector<2x8x128xf32> to vector<2x8x16xf32>
    "tpu.trace_start"() <{level = 10 : i32, message = "bqd,bkd->bqk"}> : () -> ()
    %cst_51 = arith.constant dense<0.000000e+00> : vector<2x8x8xf32>
    %129 = tpu.matmul %126, %127, %cst_51 {dimension_numbers = #tpu.dot_dimension_numbers<[2], [2], [1], [1], [0, 0, 0, 1, 1, 1], [0], [0]>} : vector<2x8x16xf32>, vector<2x8x16xf32>, vector<2x8x8xf32> -> vector<2x8x8xf32>
    "tpu.trace_stop"() : () -> ()
    %cst_52 = arith.constant 2.500000e-01 : f32
    %130 = vector.broadcast %cst_52 : f32 to vector<2x8x8xf32>
    %131 = arith.mulf %129, %130 : vector<2x8x8xf32>
    %132 = vector.broadcast %31 : vector<2x1x8xf32> to vector<2x8x8xf32>
    %133 = arith.addf %131, %132 : vector<2x8x8xf32>
    %cst_53 = arith.constant dense<0xFF800000> : vector<2x8xf32>
    %134 = vector.multi_reduction <maximumf>, %133, %cst_53 [2] : vector<2x8x8xf32> to vector<2x8xf32>
    %135 = vector.shape_cast %134 : vector<2x8xf32> to vector<2x8x1xf32>
    %136 = vector.broadcast %135 : vector<2x8x1xf32> to vector<2x8x8xf32>
    %137 = arith.subf %133, %136 : vector<2x8x8xf32>
    %138 = math.exp %137 : vector<2x8x8xf32>
    %cst_54 = arith.constant dense<0.000000e+00> : vector<2x8xf32>
    %139 = vector.multi_reduction <add>, %138, %cst_54 [2] : vector<2x8x8xf32> to vector<2x8xf32>
    %140 = vector.shape_cast %139 : vector<2x8xf32> to vector<2x8x1xf32>
    %141 = tpu.reciprocal %140 {approx = true} : vector<2x8x1xf32> -> vector<2x8x1xf32>
    %142 = vector.broadcast %141 : vector<2x8x1xf32> to vector<2x8x8xf32>
    %143 = arith.mulf %138, %142 : vector<2x8x8xf32>
    "tpu.trace_start"() <{level = 10 : i32, message = "bqk,bkd->bqd"}> : () -> ()
    %cst_55 = arith.constant dense<0.000000e+00> : vector<2x8x16xf32>
    %144 = tpu.matmul %143, %128, %cst_55 {dimension_numbers = #tpu.dot_dimension_numbers<[2], [1], [1], [2], [0, 0, 0, 1, 1, 2], [0], [0]>} : vector<2x8x8xf32>, vector<2x8x16xf32>, vector<2x8x16xf32> -> vector<2x8x16xf32>
    "tpu.trace_stop"() : () -> ()
    %145 = vector.shape_cast %144 : vector<2x8x16xf32> to vector<16x16xf32>
    %146 = vector.extract_strided_slice %32 {offsets = [64, 0], sizes = [16, 128], strides = [1, 1]} : vector<128x128xf32> to vector<16x128xf32>
    %cst_56 = arith.constant dense<0.000000e+00> : vector<16x128xf32>
    %147 = tpu.matmul %145, %146, %cst_56 {dimension_numbers = #tpu.dot_dimension_numbers<[1], [0], [0], [1], [0, 0, 1, 1], [], []>} : vector<16x16xf32>, vector<16x128xf32>, vector<16x128xf32> -> vector<16x128xf32>
    %148 = arith.addf %125, %147 : vector<16x128xf32>
    %149 = vector.extract_strided_slice %26 {offsets = [0, 0, 80], sizes = [2, 8, 16], strides = [1, 1, 1]} : vector<2x8x128xf32> to vector<2x8x16xf32>
    %150 = vector.extract_strided_slice %27 {offsets = [0, 0, 80], sizes = [2, 8, 16], strides = [1, 1, 1]} : vector<2x8x128xf32> to vector<2x8x16xf32>
    %151 = vector.extract_strided_slice %28 {offsets = [0, 0, 80], sizes = [2, 8, 16], strides = [1, 1, 1]} : vector<2x8x128xf32> to vector<2x8x16xf32>
    "tpu.trace_start"() <{level = 10 : i32, message = "bqd,bkd->bqk"}> : () -> ()
    %cst_57 = arith.constant dense<0.000000e+00> : vector<2x8x8xf32>
    %152 = tpu.matmul %149, %150, %cst_57 {dimension_numbers = #tpu.dot_dimension_numbers<[2], [2], [1], [1], [0, 0, 0, 1, 1, 1], [0], [0]>} : vector<2x8x16xf32>, vector<2x8x16xf32>, vector<2x8x8xf32> -> vector<2x8x8xf32>
    "tpu.trace_stop"() : () -> ()
    %cst_58 = arith.constant 2.500000e-01 : f32
    %153 = vector.broadcast %cst_58 : f32 to vector<2x8x8xf32>
    %154 = arith.mulf %152, %153 : vector<2x8x8xf32>
    %155 = vector.broadcast %31 : vector<2x1x8xf32> to vector<2x8x8xf32>
    %156 = arith.addf %154, %155 : vector<2x8x8xf32>
    %cst_59 = arith.constant dense<0xFF800000> : vector<2x8xf32>
    %157 = vector.multi_reduction <maximumf>, %156, %cst_59 [2] : vector<2x8x8xf32> to vector<2x8xf32>
    %158 = vector.shape_cast %157 : vector<2x8xf32> to vector<2x8x1xf32>
    %159 = vector.broadcast %158 : vector<2x8x1xf32> to vector<2x8x8xf32>
    %160 = arith.subf %156, %159 : vector<2x8x8xf32>
    %161 = math.exp %160 : vector<2x8x8xf32>
    %cst_60 = arith.constant dense<0.000000e+00> : vector<2x8xf32>
    %162 = vector.multi_reduction <add>, %161, %cst_60 [2] : vector<2x8x8xf32> to vector<2x8xf32>
    %163 = vector.shape_cast %162 : vector<2x8xf32> to vector<2x8x1xf32>
    %164 = tpu.reciprocal %163 {approx = true} : vector<2x8x1xf32> -> vector<2x8x1xf32>
    %165 = vector.broadcast %164 : vector<2x8x1xf32> to vector<2x8x8xf32>
    %166 = arith.mulf %161, %165 : vector<2x8x8xf32>
    "tpu.trace_start"() <{level = 10 : i32, message = "bqk,bkd->bqd"}> : () -> ()
    %cst_61 = arith.constant dense<0.000000e+00> : vector<2x8x16xf32>
    %167 = tpu.matmul %166, %151, %cst_61 {dimension_numbers = #tpu.dot_dimension_numbers<[2], [1], [1], [2], [0, 0, 0, 1, 1, 2], [0], [0]>} : vector<2x8x8xf32>, vector<2x8x16xf32>, vector<2x8x16xf32> -> vector<2x8x16xf32>
    "tpu.trace_stop"() : () -> ()
    %168 = vector.shape_cast %167 : vector<2x8x16xf32> to vector<16x16xf32>
    %169 = vector.extract_strided_slice %32 {offsets = [80, 0], sizes = [16, 128], strides = [1, 1]} : vector<128x128xf32> to vector<16x128xf32>
    %cst_62 = arith.constant dense<0.000000e+00> : vector<16x128xf32>
    %170 = tpu.matmul %168, %169, %cst_62 {dimension_numbers = #tpu.dot_dimension_numbers<[1], [0], [0], [1], [0, 0, 1, 1], [], []>} : vector<16x16xf32>, vector<16x128xf32>, vector<16x128xf32> -> vector<16x128xf32>
    %171 = arith.addf %148, %170 : vector<16x128xf32>
    %172 = vector.extract_strided_slice %26 {offsets = [0, 0, 96], sizes = [2, 8, 16], strides = [1, 1, 1]} : vector<2x8x128xf32> to vector<2x8x16xf32>
    %173 = vector.extract_strided_slice %27 {offsets = [0, 0, 96], sizes = [2, 8, 16], strides = [1, 1, 1]} : vector<2x8x128xf32> to vector<2x8x16xf32>
    %174 = vector.extract_strided_slice %28 {offsets = [0, 0, 96], sizes = [2, 8, 16], strides = [1, 1, 1]} : vector<2x8x128xf32> to vector<2x8x16xf32>
    "tpu.trace_start"() <{level = 10 : i32, message = "bqd,bkd->bqk"}> : () -> ()
    %cst_63 = arith.constant dense<0.000000e+00> : vector<2x8x8xf32>
    %175 = tpu.matmul %172, %173, %cst_63 {dimension_numbers = #tpu.dot_dimension_numbers<[2], [2], [1], [1], [0, 0, 0, 1, 1, 1], [0], [0]>} : vector<2x8x16xf32>, vector<2x8x16xf32>, vector<2x8x8xf32> -> vector<2x8x8xf32>
    "tpu.trace_stop"() : () -> ()
    %cst_64 = arith.constant 2.500000e-01 : f32
    %176 = vector.broadcast %cst_64 : f32 to vector<2x8x8xf32>
    %177 = arith.mulf %175, %176 : vector<2x8x8xf32>
    %178 = vector.broadcast %31 : vector<2x1x8xf32> to vector<2x8x8xf32>
    %179 = arith.addf %177, %178 : vector<2x8x8xf32>
    %cst_65 = arith.constant dense<0xFF800000> : vector<2x8xf32>
    %180 = vector.multi_reduction <maximumf>, %179, %cst_65 [2] : vector<2x8x8xf32> to vector<2x8xf32>
    %181 = vector.shape_cast %180 : vector<2x8xf32> to vector<2x8x1xf32>
    %182 = vector.broadcast %181 : vector<2x8x1xf32> to vector<2x8x8xf32>
    %183 = arith.subf %179, %182 : vector<2x8x8xf32>
    %184 = math.exp %183 : vector<2x8x8xf32>
    %cst_66 = arith.constant dense<0.000000e+00> : vector<2x8xf32>
    %185 = vector.multi_reduction <add>, %184, %cst_66 [2] : vector<2x8x8xf32> to vector<2x8xf32>
    %186 = vector.shape_cast %185 : vector<2x8xf32> to vector<2x8x1xf32>
    %187 = tpu.reciprocal %186 {approx = true} : vector<2x8x1xf32> -> vector<2x8x1xf32>
    %188 = vector.broadcast %187 : vector<2x8x1xf32> to vector<2x8x8xf32>
    %189 = arith.mulf %184, %188 : vector<2x8x8xf32>
    "tpu.trace_start"() <{level = 10 : i32, message = "bqk,bkd->bqd"}> : () -> ()
    %cst_67 = arith.constant dense<0.000000e+00> : vector<2x8x16xf32>
    %190 = tpu.matmul %189, %174, %cst_67 {dimension_numbers = #tpu.dot_dimension_numbers<[2], [1], [1], [2], [0, 0, 0, 1, 1, 2], [0], [0]>} : vector<2x8x8xf32>, vector<2x8x16xf32>, vector<2x8x16xf32> -> vector<2x8x16xf32>
    "tpu.trace_stop"() : () -> ()
    %191 = vector.shape_cast %190 : vector<2x8x16xf32> to vector<16x16xf32>
    %192 = vector.extract_strided_slice %32 {offsets = [96, 0], sizes = [16, 128], strides = [1, 1]} : vector<128x128xf32> to vector<16x128xf32>
    %cst_68 = arith.constant dense<0.000000e+00> : vector<16x128xf32>
    %193 = tpu.matmul %191, %192, %cst_68 {dimension_numbers = #tpu.dot_dimension_numbers<[1], [0], [0], [1], [0, 0, 1, 1], [], []>} : vector<16x16xf32>, vector<16x128xf32>, vector<16x128xf32> -> vector<16x128xf32>
    %194 = arith.addf %171, %193 : vector<16x128xf32>
    %195 = vector.extract_strided_slice %26 {offsets = [0, 0, 112], sizes = [2, 8, 16], strides = [1, 1, 1]} : vector<2x8x128xf32> to vector<2x8x16xf32>
    %196 = vector.extract_strided_slice %27 {offsets = [0, 0, 112], sizes = [2, 8, 16], strides = [1, 1, 1]} : vector<2x8x128xf32> to vector<2x8x16xf32>
    %197 = vector.extract_strided_slice %28 {offsets = [0, 0, 112], sizes = [2, 8, 16], strides = [1, 1, 1]} : vector<2x8x128xf32> to vector<2x8x16xf32>
    "tpu.trace_start"() <{level = 10 : i32, message = "bqd,bkd->bqk"}> : () -> ()
    %cst_69 = arith.constant dense<0.000000e+00> : vector<2x8x8xf32>
    %198 = tpu.matmul %195, %196, %cst_69 {dimension_numbers = #tpu.dot_dimension_numbers<[2], [2], [1], [1], [0, 0, 0, 1, 1, 1], [0], [0]>} : vector<2x8x16xf32>, vector<2x8x16xf32>, vector<2x8x8xf32> -> vector<2x8x8xf32>
    "tpu.trace_stop"() : () -> ()
    %cst_70 = arith.constant 2.500000e-01 : f32
    %199 = vector.broadcast %cst_70 : f32 to vector<2x8x8xf32>
    %200 = arith.mulf %198, %199 : vector<2x8x8xf32>
    %201 = vector.broadcast %31 : vector<2x1x8xf32> to vector<2x8x8xf32>
    %202 = arith.addf %200, %201 : vector<2x8x8xf32>
    %cst_71 = arith.constant dense<0xFF800000> : vector<2x8xf32>
    %203 = vector.multi_reduction <maximumf>, %202, %cst_71 [2] : vector<2x8x8xf32> to vector<2x8xf32>
    %204 = vector.shape_cast %203 : vector<2x8xf32> to vector<2x8x1xf32>
    %205 = vector.broadcast %204 : vector<2x8x1xf32> to vector<2x8x8xf32>
    %206 = arith.subf %202, %205 : vector<2x8x8xf32>
    %207 = math.exp %206 : vector<2x8x8xf32>
    %cst_72 = arith.constant dense<0.000000e+00> : vector<2x8xf32>
    %208 = vector.multi_reduction <add>, %207, %cst_72 [2] : vector<2x8x8xf32> to vector<2x8xf32>
    %209 = vector.shape_cast %208 : vector<2x8xf32> to vector<2x8x1xf32>
    %210 = tpu.reciprocal %209 {approx = true} : vector<2x8x1xf32> -> vector<2x8x1xf32>
    %211 = vector.broadcast %210 : vector<2x8x1xf32> to vector<2x8x8xf32>
    %212 = arith.mulf %207, %211 : vector<2x8x8xf32>
    "tpu.trace_start"() <{level = 10 : i32, message = "bqk,bkd->bqd"}> : () -> ()
    %cst_73 = arith.constant dense<0.000000e+00> : vector<2x8x16xf32>
    %213 = tpu.matmul %212, %197, %cst_73 {dimension_numbers = #tpu.dot_dimension_numbers<[2], [1], [1], [2], [0, 0, 0, 1, 1, 2], [0], [0]>} : vector<2x8x8xf32>, vector<2x8x16xf32>, vector<2x8x16xf32> -> vector<2x8x16xf32>
    "tpu.trace_stop"() : () -> ()
    %214 = vector.shape_cast %213 : vector<2x8x16xf32> to vector<16x16xf32>
    %215 = vector.extract_strided_slice %32 {offsets = [112, 0], sizes = [16, 128], strides = [1, 1]} : vector<128x128xf32> to vector<16x128xf32>
    %cst_74 = arith.constant dense<0.000000e+00> : vector<16x128xf32>
    %216 = tpu.matmul %214, %215, %cst_74 {dimension_numbers = #tpu.dot_dimension_numbers<[1], [0], [0], [1], [0, 0, 1, 1], [], []>} : vector<16x16xf32>, vector<16x128xf32>, vector<16x128xf32> -> vector<16x128xf32>
    %217 = arith.addf %194, %216 : vector<16x128xf32>
    %c0_75 = arith.constant 0 : index
    %c0_76 = arith.constant 0 : index
    %218 = vector.load %arg11[%c0_75, %c0_76] : memref<1x128xf32, #tpu.memory_space<vmem>>, vector<1x128xf32>
    %219 = vector.broadcast %218 : vector<1x128xf32> to vector<16x128xf32>
    %220 = arith.addf %217, %219 : vector<16x128xf32>
    %221 = arith.addf %10, %220 : vector<16x128xf32>
    %c0_77 = arith.constant 0 : index
    %c0_78 = arith.constant 0 : index
    %222 = vector.load %arg12[%c0_77, %c0_78] : memref<1x128xf32, #tpu.memory_space<vmem>>, vector<1x128xf32>
    %c0_79 = arith.constant 0 : index
    %c0_80 = arith.constant 0 : index
    %223 = vector.load %arg13[%c0_79, %c0_80] : memref<1x128xf32, #tpu.memory_space<vmem>>, vector<1x128xf32>
    %cst_81 = arith.constant dense<0.000000e+00> : vector<16xf32>
    %224 = vector.multi_reduction <add>, %221, %cst_81 [1] : vector<16x128xf32> to vector<16xf32>
    %225 = vector.shape_cast %224 : vector<16xf32> to vector<16x1xf32>
    %cst_82 = arith.constant 1.280000e+02 : f32
    %226 = vector.broadcast %cst_82 : f32 to vector<16x1xf32>
    %227 = arith.divf %225, %226 : vector<16x1xf32>
    %228 = vector.broadcast %227 : vector<16x1xf32> to vector<16x128xf32>
    %229 = arith.subf %221, %228 : vector<16x128xf32>
    %230 = arith.mulf %229, %229 : vector<16x128xf32>
    %cst_83 = arith.constant dense<0.000000e+00> : vector<16xf32>
    %231 = vector.multi_reduction <add>, %230, %cst_83 [1] : vector<16x128xf32> to vector<16xf32>
    %232 = vector.shape_cast %231 : vector<16xf32> to vector<16x1xf32>
    %cst_84 = arith.constant 1.280000e+02 : f32
    %233 = vector.broadcast %cst_84 : f32 to vector<16x1xf32>
    %234 = arith.divf %232, %233 : vector<16x1xf32>
    %235 = vector.broadcast %227 : vector<16x1xf32> to vector<16x128xf32>
    %236 = arith.subf %221, %235 : vector<16x128xf32>
    %cst_85 = arith.constant 9.99999974E-6 : f32
    %237 = vector.broadcast %cst_85 : f32 to vector<16x1xf32>
    %238 = arith.addf %234, %237 : vector<16x1xf32>
    %239 = math.rsqrt %238 : vector<16x1xf32>
    %240 = vector.broadcast %239 : vector<16x1xf32> to vector<16x128xf32>
    %241 = arith.mulf %236, %240 : vector<16x128xf32>
    %242 = vector.broadcast %222 : vector<1x128xf32> to vector<16x128xf32>
    %243 = arith.mulf %241, %242 : vector<16x128xf32>
    %244 = vector.broadcast %223 : vector<1x128xf32> to vector<16x128xf32>
    %245 = arith.addf %243, %244 : vector<16x128xf32>
    %c0_86 = arith.constant 0 : index
    %c0_87 = arith.constant 0 : index
    %246 = vector.load %arg18[%c0_86, %c0_87] : memref<128x1024xf32, #tpu.memory_space<vmem>>, vector<128x1024xf32>
    %cst_88 = arith.constant dense<0.000000e+00> : vector<16x1024xf32>
    %247 = tpu.matmul %245, %246, %cst_88 {dimension_numbers = #tpu.dot_dimension_numbers<[1], [0], [0], [1], [0, 0, 1, 1], [], []>} : vector<16x128xf32>, vector<128x1024xf32>, vector<16x1024xf32> -> vector<16x1024xf32>
    %c0_89 = arith.constant 0 : index
    %c0_90 = arith.constant 0 : index
    %248 = vector.load %arg19[%c0_89, %c0_90] : memref<1x1024xf32, #tpu.memory_space<vmem>>, vector<1x1024xf32>
    %249 = vector.broadcast %248 : vector<1x1024xf32> to vector<16x1024xf32>
    %250 = arith.addf %247, %249 : vector<16x1024xf32>
    %cst_91 = arith.constant 0.000000e+00 : f32
    %251 = vector.broadcast %cst_91 : f32 to vector<16x1024xf32>
    %252 = arith.maximumf %250, %251 : vector<16x1024xf32>
    %c0_92 = arith.constant 0 : index
    %c0_93 = arith.constant 0 : index
    %253 = vector.load %arg20[%c0_92, %c0_93] : memref<1024x128xf32, #tpu.memory_space<vmem>>, vector<1024x128xf32>
    %cst_94 = arith.constant dense<0.000000e+00> : vector<16x128xf32>
    %254 = tpu.matmul %252, %253, %cst_94 {dimension_numbers = #tpu.dot_dimension_numbers<[1], [0], [0], [1], [0, 0, 1, 1], [], []>} : vector<16x1024xf32>, vector<1024x128xf32>, vector<16x128xf32> -> vector<16x128xf32>
    %c0_95 = arith.constant 0 : index
    %c0_96 = arith.constant 0 : index
    %255 = vector.load %arg21[%c0_95, %c0_96] : memref<1x128xf32, #tpu.memory_space<vmem>>, vector<1x128xf32>
    %256 = vector.broadcast %255 : vector<1x128xf32> to vector<16x128xf32>
    %257 = arith.addf %254, %256 : vector<16x128xf32>
    %258 = arith.addf %245, %257 : vector<16x128xf32>
    %c0_97 = arith.constant 0 : index
    %c0_98 = arith.constant 0 : index
    %259 = vector.load %arg14[%c0_97, %c0_98] : memref<1x128xf32, #tpu.memory_space<vmem>>, vector<1x128xf32>
    %c0_99 = arith.constant 0 : index
    %c0_100 = arith.constant 0 : index
    %260 = vector.load %arg15[%c0_99, %c0_100] : memref<1x128xf32, #tpu.memory_space<vmem>>, vector<1x128xf32>
    %cst_101 = arith.constant dense<0.000000e+00> : vector<16xf32>
    %261 = vector.multi_reduction <add>, %258, %cst_101 [1] : vector<16x128xf32> to vector<16xf32>
    %262 = vector.shape_cast %261 : vector<16xf32> to vector<16x1xf32>
    %cst_102 = arith.constant 1.280000e+02 : f32
    %263 = vector.broadcast %cst_102 : f32 to vector<16x1xf32>
    %264 = arith.divf %262, %263 : vector<16x1xf32>
    %265 = vector.broadcast %264 : vector<16x1xf32> to vector<16x128xf32>
    %266 = arith.subf %258, %265 : vector<16x128xf32>
    %267 = arith.mulf %266, %266 : vector<16x128xf32>
    %cst_103 = arith.constant dense<0.000000e+00> : vector<16xf32>
    %268 = vector.multi_reduction <add>, %267, %cst_103 [1] : vector<16x128xf32> to vector<16xf32>
    %269 = vector.shape_cast %268 : vector<16xf32> to vector<16x1xf32>
    %cst_104 = arith.constant 1.280000e+02 : f32
    %270 = vector.broadcast %cst_104 : f32 to vector<16x1xf32>
    %271 = arith.divf %269, %270 : vector<16x1xf32>
    %272 = vector.broadcast %264 : vector<16x1xf32> to vector<16x128xf32>
    %273 = arith.subf %258, %272 : vector<16x128xf32>
    %cst_105 = arith.constant 9.99999974E-6 : f32
    %274 = vector.broadcast %cst_105 : f32 to vector<16x1xf32>
    %275 = arith.addf %271, %274 : vector<16x1xf32>
    %276 = math.rsqrt %275 : vector<16x1xf32>
    %277 = vector.broadcast %276 : vector<16x1xf32> to vector<16x128xf32>
    %278 = arith.mulf %273, %277 : vector<16x128xf32>
    %279 = vector.broadcast %259 : vector<1x128xf32> to vector<16x128xf32>
    %280 = arith.mulf %278, %279 : vector<16x128xf32>
    %281 = vector.broadcast %260 : vector<1x128xf32> to vector<16x128xf32>
    %282 = arith.addf %280, %281 : vector<16x128xf32>
    %c0_106 = arith.constant 0 : index
    %c0_107 = arith.constant 0 : index
    %283 = vector.load %arg16[%c0_106, %c0_107] : memref<1x128xf32, #tpu.memory_space<vmem>>, vector<1x128xf32>
    %c0_108 = arith.constant 0 : index
    %c0_109 = arith.constant 0 : index
    %284 = vector.load %arg17[%c0_108, %c0_109] : memref<1x128xf32, #tpu.memory_space<vmem>>, vector<1x128xf32>
    %cst_110 = arith.constant dense<0.000000e+00> : vector<16xf32>
    %285 = vector.multi_reduction <add>, %282, %cst_110 [1] : vector<16x128xf32> to vector<16xf32>
    %286 = vector.shape_cast %285 : vector<16xf32> to vector<16x1xf32>
    %cst_111 = arith.constant 1.280000e+02 : f32
    %287 = vector.broadcast %cst_111 : f32 to vector<16x1xf32>
    %288 = arith.divf %286, %287 : vector<16x1xf32>
    %289 = vector.broadcast %288 : vector<16x1xf32> to vector<16x128xf32>
    %290 = arith.subf %282, %289 : vector<16x128xf32>
    %291 = arith.mulf %290, %290 : vector<16x128xf32>
    %cst_112 = arith.constant dense<0.000000e+00> : vector<16xf32>
    %292 = vector.multi_reduction <add>, %291, %cst_112 [1] : vector<16x128xf32> to vector<16xf32>
    %293 = vector.shape_cast %292 : vector<16xf32> to vector<16x1xf32>
    %cst_113 = arith.constant 1.280000e+02 : f32
    %294 = vector.broadcast %cst_113 : f32 to vector<16x1xf32>
    %295 = arith.divf %293, %294 : vector<16x1xf32>
    %296 = vector.broadcast %288 : vector<16x1xf32> to vector<16x128xf32>
    %297 = arith.subf %282, %296 : vector<16x128xf32>
    %cst_114 = arith.constant 9.99999974E-6 : f32
    %298 = vector.broadcast %cst_114 : f32 to vector<16x1xf32>
    %299 = arith.addf %295, %298 : vector<16x1xf32>
    %300 = math.rsqrt %299 : vector<16x1xf32>
    %301 = vector.broadcast %300 : vector<16x1xf32> to vector<16x128xf32>
    %302 = arith.mulf %297, %301 : vector<16x128xf32>
    %303 = vector.broadcast %283 : vector<1x128xf32> to vector<16x128xf32>
    %304 = arith.mulf %302, %303 : vector<16x128xf32>
    %305 = vector.broadcast %284 : vector<1x128xf32> to vector<16x128xf32>
    %306 = arith.addf %304, %305 : vector<16x128xf32>
    %c21_i32 = arith.constant 21 : i32
    %307 = vector.broadcast %c21_i32 : i32 to vector<16x1xi32>
    %308 = arith.cmpi eq, %0, %307 : vector<16x1xi32>
    %309 = arith.extui %308 : vector<16x1xi1> to vector<16x1xi32>
    %310 = arith.sitofp %309 : vector<16x1xi32> to vector<16x1xf32>
    %cst_115 = arith.constant 1.000000e+00 : f32
    %311 = vector.broadcast %cst_115 : f32 to vector<16x1xf32>
    %312 = arith.subf %311, %310 : vector<16x1xf32>
    %313 = vector.broadcast %312 : vector<16x1xf32> to vector<16x128xf32>
    %314 = arith.mulf %313, %306 : vector<16x128xf32>
    %315 = vector.extract_strided_slice %314 {offsets = [0, 0], sizes = [8, 128], strides = [1, 1]} : vector<16x128xf32> to vector<8x128xf32>
    %cst_116 = arith.constant dense<0.000000e+00> : vector<128xf32>
    %316 = vector.multi_reduction <add>, %315, %cst_116 [0] : vector<8x128xf32> to vector<128xf32>
    %317 = vector.shape_cast %316 : vector<128xf32> to vector<1x128xf32>
    %318 = vector.extract_strided_slice %312 {offsets = [0, 0], sizes = [8, 1], strides = [1, 1]} : vector<16x1xf32> to vector<8x1xf32>
    %cst_117 = arith.constant dense<0.000000e+00> : vector<1xf32>
    %319 = vector.multi_reduction <add>, %318, %cst_117 [0] : vector<8x1xf32> to vector<1xf32>
    %320 = vector.shape_cast %319 : vector<1xf32> to vector<1x1xf32>
    %321 = tpu.reciprocal %320 {approx = true} : vector<1x1xf32> -> vector<1x1xf32>
    %322 = vector.broadcast %321 : vector<1x1xf32> to vector<1x128xf32>
    %323 = arith.mulf %317, %322 : vector<1x128xf32>
    %324 = vector.extract_strided_slice %314 {offsets = [8, 0], sizes = [8, 128], strides = [1, 1]} : vector<16x128xf32> to vector<8x128xf32>
    %cst_118 = arith.constant dense<0.000000e+00> : vector<128xf32>
    %325 = vector.multi_reduction <add>, %324, %cst_118 [0] : vector<8x128xf32> to vector<128xf32>
    %326 = vector.shape_cast %325 : vector<128xf32> to vector<1x128xf32>
    %327 = vector.extract_strided_slice %312 {offsets = [8, 0], sizes = [8, 1], strides = [1, 1]} : vector<16x1xf32> to vector<8x1xf32>
    %cst_119 = arith.constant dense<0.000000e+00> : vector<1xf32>
    %328 = vector.multi_reduction <add>, %327, %cst_119 [0] : vector<8x1xf32> to vector<1xf32>
    %329 = vector.shape_cast %328 : vector<1xf32> to vector<1x1xf32>
    %330 = tpu.reciprocal %329 {approx = true} : vector<1x1xf32> -> vector<1x1xf32>
    %331 = vector.broadcast %330 : vector<1x1xf32> to vector<1x128xf32>
    %332 = arith.mulf %326, %331 : vector<1x128xf32>
    %333 = tpu.concatenate %323, %332 in 0 : vector<1x128xf32>, vector<1x128xf32> -> vector<2x128xf32>
    %c0_120 = arith.constant 0 : index
    %c0_121 = arith.constant 0 : index
    %334 = vector.load %arg22[%c0_120, %c0_121] : memref<128x1024xf32, #tpu.memory_space<vmem>>, vector<128x1024xf32>
    %cst_122 = arith.constant dense<0.000000e+00> : vector<2x1024xf32>
    %335 = tpu.matmul %333, %334, %cst_122 {dimension_numbers = #tpu.dot_dimension_numbers<[1], [0], [0], [1], [0, 0, 1, 1], [], []>} : vector<2x128xf32>, vector<128x1024xf32>, vector<2x1024xf32> -> vector<2x1024xf32>
    %c0_123 = arith.constant 0 : index
    %c0_124 = arith.constant 0 : index
    %336 = vector.load %arg23[%c0_123, %c0_124] : memref<1x1024xf32, #tpu.memory_space<vmem>>, vector<1x1024xf32>
    %337 = vector.broadcast %336 : vector<1x1024xf32> to vector<2x1024xf32>
    %338 = arith.addf %335, %337 : vector<2x1024xf32>
    %c0_125 = arith.constant 0 : index
    %c0_126 = arith.constant 0 : index
    %339 = vector.load %arg26[%c0_125, %c0_126] : memref<1x1024xf32, #tpu.memory_space<vmem>>, vector<1x1024xf32>
    %340 = vector.broadcast %339 : vector<1x1024xf32> to vector<2x1024xf32>
    %341 = arith.subf %338, %340 : vector<2x1024xf32>
    %c0_127 = arith.constant 0 : index
    %c0_128 = arith.constant 0 : index
    %342 = vector.load %arg27[%c0_127, %c0_128] : memref<1x1024xf32, #tpu.memory_space<vmem>>, vector<1x1024xf32>
    %cst_129 = arith.constant 9.99999974E-6 : f32
    %343 = vector.broadcast %cst_129 : f32 to vector<1x1024xf32>
    %344 = arith.addf %342, %343 : vector<1x1024xf32>
    %345 = math.rsqrt %344 : vector<1x1024xf32>
    %346 = vector.broadcast %345 : vector<1x1024xf32> to vector<2x1024xf32>
    %347 = arith.mulf %341, %346 : vector<2x1024xf32>
    %c0_130 = arith.constant 0 : index
    %c0_131 = arith.constant 0 : index
    %348 = vector.load %arg24[%c0_130, %c0_131] : memref<1x1024xf32, #tpu.memory_space<vmem>>, vector<1x1024xf32>
    %349 = vector.broadcast %348 : vector<1x1024xf32> to vector<2x1024xf32>
    %350 = arith.mulf %347, %349 : vector<2x1024xf32>
    %c0_132 = arith.constant 0 : index
    %c0_133 = arith.constant 0 : index
    %351 = vector.load %arg25[%c0_132, %c0_133] : memref<1x1024xf32, #tpu.memory_space<vmem>>, vector<1x1024xf32>
    %352 = vector.broadcast %351 : vector<1x1024xf32> to vector<2x1024xf32>
    %353 = arith.addf %350, %352 : vector<2x1024xf32>
    %cst_134 = arith.constant 0.000000e+00 : f32
    %354 = vector.broadcast %cst_134 : f32 to vector<2x1024xf32>
    %355 = arith.maximumf %353, %354 : vector<2x1024xf32>
    %c0_135 = arith.constant 0 : index
    %c0_136 = arith.constant 0 : index
    %356 = vector.load %arg28[%c0_135, %c0_136] : memref<1024x256xf32, #tpu.memory_space<vmem>>, vector<1024x256xf32>
    %cst_137 = arith.constant dense<0.000000e+00> : vector<2x256xf32>
    %357 = tpu.matmul %355, %356, %cst_137 {dimension_numbers = #tpu.dot_dimension_numbers<[1], [0], [0], [1], [0, 0, 1, 1], [], []>} : vector<2x1024xf32>, vector<1024x256xf32>, vector<2x256xf32> -> vector<2x256xf32>
    %c0_138 = arith.constant 0 : index
    %c0_139 = arith.constant 0 : index
    %358 = vector.load %arg29[%c0_138, %c0_139] : memref<1x256xf32, #tpu.memory_space<vmem>>, vector<1x256xf32>
    %359 = vector.broadcast %358 : vector<1x256xf32> to vector<2x256xf32>
    %360 = arith.addf %357, %359 : vector<2x256xf32>
    %c0_140 = arith.constant 0 : index
    %c0_141 = arith.constant 0 : index
    %361 = vector.load %arg32[%c0_140, %c0_141] : memref<1x256xf32, #tpu.memory_space<vmem>>, vector<1x256xf32>
    %362 = vector.broadcast %361 : vector<1x256xf32> to vector<2x256xf32>
    %363 = arith.subf %360, %362 : vector<2x256xf32>
    %c0_142 = arith.constant 0 : index
    %c0_143 = arith.constant 0 : index
    %364 = vector.load %arg33[%c0_142, %c0_143] : memref<1x256xf32, #tpu.memory_space<vmem>>, vector<1x256xf32>
    %cst_144 = arith.constant 9.99999974E-6 : f32
    %365 = vector.broadcast %cst_144 : f32 to vector<1x256xf32>
    %366 = arith.addf %364, %365 : vector<1x256xf32>
    %367 = math.rsqrt %366 : vector<1x256xf32>
    %368 = vector.broadcast %367 : vector<1x256xf32> to vector<2x256xf32>
    %369 = arith.mulf %363, %368 : vector<2x256xf32>
    %c0_145 = arith.constant 0 : index
    %c0_146 = arith.constant 0 : index
    %370 = vector.load %arg30[%c0_145, %c0_146] : memref<1x256xf32, #tpu.memory_space<vmem>>, vector<1x256xf32>
    %371 = vector.broadcast %370 : vector<1x256xf32> to vector<2x256xf32>
    %372 = arith.mulf %369, %371 : vector<2x256xf32>
    %c0_147 = arith.constant 0 : index
    %c0_148 = arith.constant 0 : index
    %373 = vector.load %arg31[%c0_147, %c0_148] : memref<1x256xf32, #tpu.memory_space<vmem>>, vector<1x256xf32>
    %374 = vector.broadcast %373 : vector<1x256xf32> to vector<2x256xf32>
    %375 = arith.addf %372, %374 : vector<2x256xf32>
    %cst_149 = arith.constant 0.000000e+00 : f32
    %376 = vector.broadcast %cst_149 : f32 to vector<2x256xf32>
    %377 = arith.maximumf %375, %376 : vector<2x256xf32>
    %c0_150 = arith.constant 0 : index
    %c0_151 = arith.constant 0 : index
    %378 = vector.load %arg34[%c0_150, %c0_151] : memref<256x1xf32, #tpu.memory_space<vmem>>, vector<256x1xf32>
    %cst_152 = arith.constant dense<0.000000e+00> : vector<2x1xf32>
    %379 = tpu.matmul %377, %378, %cst_152 {dimension_numbers = #tpu.dot_dimension_numbers<[1], [0], [0], [1], [0, 0, 1, 1], [], []>} : vector<2x256xf32>, vector<256x1xf32>, vector<2x1xf32> -> vector<2x1xf32>
    %c0_153 = arith.constant 0 : index
    %c0_154 = arith.constant 0 : index
    %380 = vector.load %arg35[%c0_153, %c0_154] : memref<1x1xf32, #tpu.memory_space<vmem>>, vector<1x1xf32>
    %381 = vector.broadcast %380 : vector<1x1xf32> to vector<2x1xf32>
    %382 = arith.addf %379, %381 : vector<2x1xf32>
    %383 = arith.negf %382 : vector<2x1xf32>
    %384 = math.exp %383 : vector<2x1xf32>
    %cst_155 = arith.constant 1.000000e+00 : f32
    %385 = vector.broadcast %cst_155 : f32 to vector<2x1xf32>
    %386 = arith.addf %385, %384 : vector<2x1xf32>
    %387 = arith.divf %385, %386 : vector<2x1xf32>
    %c0_156 = arith.constant 0 : index
    %c0_157 = arith.constant 0 : index
    %388 = vector.load %arg36[%c0_156, %c0_157] : memref<2x1xf32, #tpu.memory_space<vmem>>, vector<2x1xf32>
    tpu.vector_store %arg36[%c0_156, %c0_157], %387 {strides = array<i32>} : memref<2x1xf32, #tpu.memory_space<vmem>>, vector<2x1xf32>,
    return
  }
}

</mosaic_0001>

<llo_original>
// kernel: baseline_forward.1
$region0: #{baseline_forward.1}
  #allocation0 [shape = 'u32[]', space=smem, size = 0x4, offset = 0x4, fixed_abs, tag = 'smem constant byte address 0x4 - core index']
  #allocation1 [shape = 'u32[144,128]{1,0:T(1,128)}', space=vmem, size = 0x12000, scoped, tag = 'internal scratch']
  #allocation2 [shape = 'f32[1,1]{1,0:T(1,128)S(1)}', space=vmem, size = 0x200, scoped, tag = 'scoped memory for baseline_forward.1']
  %s0 = inlined_call_operand.smem [shape: u32[37], index: -1, kind: input, shape index: {}]
  %s1 = sld [smem:[%s0]]
  %s2 = scalar_lea.smem %s0, 1
  %s3 = sld [smem:[%s2]]
  %s4 = scalar_lea.smem %s0, 2
  %s5 = sld [smem:[%s4]]
  %s6 = scalar_lea.smem %s0, 3
  %s7 = sld [smem:[%s6]]
  %s8 = scalar_lea.smem %s0, 4
  %s9 = sld [smem:[%s8]]
  %s10 = scalar_lea.smem %s0, 5
  %s11 = sld [smem:[%s10]]
  %s12 = scalar_lea.smem %s0, 6
  %s13 = sld [smem:[%s12]]
  %s14 = scalar_lea.smem %s0, 7
  %s15 = sld [smem:[%s14]]
  %s16 = scalar_lea.smem %s0, 8
  %s17 = sld [smem:[%s16]]
  %s18 = scalar_lea.smem %s0, 9
  %s19 = sld [smem:[%s18]]
  %s20 = scalar_lea.smem %s0, 10
  %s21 = sld [smem:[%s20]]
  %s22 = scalar_lea.smem %s0, 11
  %s23 = sld [smem:[%s22]]
  %s24 = scalar_lea.smem %s0, 12
  %s25 = sld [smem:[%s24]]
  %s26 = scalar_lea.smem %s0, 13
  %s27 = sld [smem:[%s26]]
  %s28 = scalar_lea.smem %s0, 14
  %s29 = sld [smem:[%s28]]
  %s30 = scalar_lea.smem %s0, 15
  %s31 = sld [smem:[%s30]]
  %s32 = scalar_lea.smem %s0, 16
  %s33 = sld [smem:[%s32]]
  %s34 = scalar_lea.smem %s0, 17
  %s35 = sld [smem:[%s34]]
  %s36 = scalar_lea.smem %s0, 18
  %s37 = sld [smem:[%s36]]
  %s38 = scalar_lea.smem %s0, 19
  %s39 = sld [smem:[%s38]]
  %s40 = scalar_lea.smem %s0, 20
  %s41 = sld [smem:[%s40]]
  %s42 = scalar_lea.smem %s0, 21
  %s43 = sld [smem:[%s42]]
  %s44 = scalar_lea.smem %s0, 22
  %s45 = sld [smem:[%s44]]
  %s46 = scalar_lea.smem %s0, 23
  %s47 = sld [smem:[%s46]]
  %s48 = scalar_lea.smem %s0, 24
  %s49 = sld [smem:[%s48]]
  %s50 = scalar_lea.smem %s0, 25
  %s51 = sld [smem:[%s50]]
  %s52 = scalar_lea.smem %s0, 26
  %s53 = sld [smem:[%s52]]
  %s54 = scalar_lea.smem %s0, 27
  %s55 = sld [smem:[%s54]]
  %s56 = scalar_lea.smem %s0, 28
  %s57 = sld [smem:[%s56]]
  %s58 = scalar_lea.smem %s0, 29
  %s59 = sld [smem:[%s58]]
  %s60 = scalar_lea.smem %s0, 30
  %s61 = sld [smem:[%s60]]
  %s62 = scalar_lea.smem %s0, 31
  %s63 = sld [smem:[%s62]]
  %s64 = scalar_lea.smem %s0, 32
  %s65 = sld [smem:[%s64]]
  %s66 = scalar_lea.smem %s0, 33
  %s67 = sld [smem:[%s66]]
  %s68 = scalar_lea.smem %s0, 34
  %s69 = sld [smem:[%s68]]
  %s70 = scalar_lea.smem %s0, 35
  %s71 = sld [smem:[%s70]]
  %s72 = scalar_lea.smem %s0, 36
  %s73 = sld [smem:[%s72]]
  %s74 = sld [smem:[#allocation0]]
  $region234: #{baseline_forward.1} parent=0
    _
  %s76 = ssub.s32 1, %s74
  %s77 = scalar_select 0, %s76, %s74
  %v78 = vstv %s71
  %79 = vst [vmem:[#allocation2] sm:$0x1] %v78
  $region1: #{baseline_forward.1} parent=0
    #allocation3 [shape = 'u8[512]{0}', space=vmem, size = 0x400, scoped, tag = 'input window, operand 7, single buffered']
    #allocation4 [shape = 's32[1]{0}', space=sflag, size = 0x4, scoped, tag = 'scoped memory for baseline_forward.1']
    #allocation5 [shape = 'u8[512]{0}', space=vmem, size = 0x400, scoped, tag = 'input window, operand 9, single buffered']
    #allocation6 [shape = 's32[1]{0}', space=sflag, size = 0x4, scoped, tag = 'scoped memory for baseline_forward.1']
    #allocation7 [shape = 'u8[65536]{0}', space=vmem, size = 0x10000, scoped, tag = 'input window, operand 10, single buffered']
    #allocation8 [shape = 'u8[512]{0}', space=vmem, size = 0x400, scoped, tag = 'input window, operand 11, single buffered']
    #allocation9 [shape = 's32[1]{0}', space=sflag, size = 0x4, scoped, tag = 'scoped memory for baseline_forward.1']
    #allocation10 [shape = 'u8[524288]{0}', space=vmem, size = 0x80000, scoped, tag = 'input window, operand 18, single buffered']
    #allocation11 [shape = 'u8[4096]{0}', space=vmem, size = 0x1000, scoped, tag = 'input window, operand 19, single buffered']
    #allocation12 [shape = 's32[1]{0}', space=sflag, size = 0x4, scoped, tag = 'scoped memory for baseline_forward.1']
    #allocation13 [shape = 'u8[524288]{0}', space=vmem, size = 0x80000, scoped, tag = 'input window, operand 20, single buffered']
    #allocation14 [shape = 'u8[512]{0}', space=vmem, size = 0x400, scoped, tag = 'input window, operand 21, single buffered']
    #allocation15 [shape = 's32[1]{0}', space=sflag, size = 0x4, scoped, tag = 'scoped memory for baseline_forward.1']
    #allocation16 [shape = 'u8[524288]{0}', space=vmem, size = 0x80000, scoped, tag = 'input window, operand 22, single buffered']
    #allocation17 [shape = 'u8[4096]{0}', space=vmem, size = 0x1000, scoped, tag = 'input window, operand 23, single buffered']
    #allocation18 [shape = 's32[1]{0}', space=sflag, size = 0x4, scoped, tag = 'scoped memory for baseline_forward.1']
    #allocation19 [shape = 'u8[4096]{0}', space=vmem, size = 0x1000, scoped, tag = 'input window, operand 24, single buffered']
    #allocation20 [shape = 'u8[4096]{0}', space=vmem, size = 0x1000, scoped, tag = 'input window, operand 25, single buffered']
    #allocation21 [shape = 's32[1]{0}', space=sflag, size = 0x4, scoped, tag = 'scoped memory for baseline_forward.1']
    #allocation22 [shape = 'u8[4096]{0}', space=vmem, size = 0x1000, scoped, tag = 'input window, operand 26, single buffered']
    #allocation23 [shape = 'u8[4096]{0}', space=vmem, size = 0x1000, scoped, tag = 'input window, operand 27, single buffered']
    #allocation24 [shape = 's32[1]{0}', space=sflag, size = 0x4, scoped, tag = 'scoped memory for baseline_forward.1']
    #allocation25 [shape = 'u8[1048576]{0}', space=vmem, size = 0x100000, scoped, tag = 'input window, operand 28, single buffered']
    #allocation26 [shape = 'u8[1024]{0}', space=vmem, size = 0x400, scoped, tag = 'input window, operand 29, single buffered']
    #allocation27 [shape = 's32[1]{0}', space=sflag, size = 0x4, scoped, tag = 'scoped memory for baseline_forward.1']
    #allocation28 [shape = 'u8[1024]{0}', space=vmem, size = 0x400, scoped, tag = 'input window, operand 30, single buffered']
    #allocation29 [shape = 'u8[1024]{0}', space=vmem, size = 0x400, scoped, tag = 'input window, operand 31, single buffered']
    #allocation30 [shape = 's32[1]{0}', space=sflag, size = 0x4, scoped, tag = 'scoped memory for baseline_forward.1']
    #allocation31 [shape = 'u8[1024]{0}', space=vmem, size = 0x400, scoped, tag = 'input window, operand 32, single buffered']
    #allocation32 [shape = 'u8[1024]{0}', space=vmem, size = 0x400, scoped, tag = 'input window, operand 33, single buffered']
    #allocation33 [shape = 's32[1]{0}', space=sflag, size = 0x4, scoped, tag = 'scoped memory for baseline_forward.1']
    %80 = vsyncpa [#allocation4], 0
    %81 = vsyncpa [#allocation6], 0
    %82 = vsyncpa [#allocation9], 0
    %83 = vsyncpa [#allocation12], 0
    %84 = vsyncpa [#allocation15], 0
    %85 = vsyncpa [#allocation18], 0
    %86 = vsyncpa [#allocation21], 0
    %87 = vsyncpa [#allocation24], 0
    %88 = vsyncpa [#allocation27], 0
    %89 = vsyncpa [#allocation30], 0
    %90 = vsyncpa [#allocation33], 0
    // Predicated region
    $region2: #{baseline_forward.1} parent=1 // pred_check
      _
    $region3: #{baseline_forward.1} parent=1 // pred_check_branch
      %92 = sbr.rel (0) target = $region5
    $region4: #{baseline_forward.1} parent=1 // pred_region
      _
    $region5: #{baseline_forward.1} parent=1 // pred_fallthru
      _
    // Predicated region
    $region6: #{baseline_forward.1} parent=1 // pred_check
      _
    $region7: #{baseline_forward.1} parent=1 // pred_check_branch
      %94 = sbr.rel (0) target = $region9
    $region8: #{baseline_forward.1} parent=1 // pred_region
      _
    $region9: #{baseline_forward.1} parent=1 // pred_fallthru
      _
    // Predicated region
    $region10: #{baseline_forward.1} parent=1 // pred_check
      _
    $region11: #{baseline_forward.1} parent=1 // pred_check_branch
      %96 = sbr.rel (0) target = $region13
    $region12: #{baseline_forward.1} parent=1 // pred_region
      _
    $region13: #{baseline_forward.1} parent=1 // pred_fallthru
      _
    // Predicated region
    $region14: #{baseline_forward.1} parent=1 // pred_check
      _
    $region15: #{baseline_forward.1} parent=1 // pred_check_branch
      %98 = sbr.rel (0) target = $region17
    $region16: #{baseline_forward.1} parent=1 // pred_region
      _
    $region17: #{baseline_forward.1} parent=1 // pred_fallthru
      _
    // Predicated region
    $region18: #{baseline_forward.1} parent=1 // pred_check
      _
    $region19: #{baseline_forward.1} parent=1 // pred_check_branch
      %100 = sbr.rel (0) target = $region21
    $region20: #{baseline_forward.1} parent=1 // pred_region
      _
    $region21: #{baseline_forward.1} parent=1 // pred_fallthru
      _
    // Predicated region
    $region22: #{baseline_forward.1} parent=1 // pred_check
      _
    $region23: #{baseline_forward.1} parent=1 // pred_check_branch
      %102 = sbr.rel (0) target = $region25
    $region24: #{baseline_forward.1} parent=1 // pred_region
      _
    $region25: #{baseline_forward.1} parent=1 // pred_fallthru
      _
    // Predicated region
    $region26: #{baseline_forward.1} parent=1 // pred_check
      _
    $region27: #{baseline_forward.1} parent=1 // pred_check_branch
      %104 = sbr.rel (0) target = $region29
    $region28: #{baseline_forward.1} parent=1 // pred_region
      _
    $region29: #{baseline_forward.1} parent=1 // pred_fallthru
      _
    // Predicated region
    $region30: #{baseline_forward.1} parent=1 // pred_check
      _
    $region31: #{baseline_forward.1} parent=1 // pred_check_branch
      %106 = sbr.rel (0) target = $region33
    $region32: #{baseline_forward.1} parent=1 // pred_region
      %s108 = ssub.s32 16, 16
      %109 = vsyncadd [#allocation4], %s108
      %s111 = sshll.u32 [#allocation3], 4
      %s112 = int_to_ptr.vmem [resolvable:$true] %s111
      %114 = dma.hbm_to_vmem [thread:$0]  %s15, 16, %s112, [#allocation4]
    $region33: #{baseline_forward.1} parent=1 // pred_fallthru
      _
    // Predicated region
    $region34: #{baseline_forward.1} parent=1 // pred_check
      _
    $region35: #{baseline_forward.1} parent=1 // pred_check_branch
      %116 = sbr.rel (0) target = $region37
    $region36: #{baseline_forward.1} parent=1 // pred_region
      _
    $region37: #{baseline_forward.1} parent=1 // pred_fallthru
      _
    // Predicated region
    $region38: #{baseline_forward.1} parent=1 // pred_check
      _
    $region39: #{baseline_forward.1} parent=1 // pred_check_branch
      %118 = sbr.rel (0) target = $region41
    $region40: #{baseline_forward.1} parent=1 // pred_region
      %s120 = ssub.s32 16, 16
      %121 = vsyncadd [#allocation6], %s120
      %s123 = sshll.u32 [#allocation5], 4
      %s124 = int_to_ptr.vmem [resolvable:$true] %s123
      %126 = dma.hbm_to_vmem [thread:$0]  %s19, 16, %s124, [#allocation6]
    $region41: #{baseline_forward.1} parent=1 // pred_fallthru
      _
    // Predicated region
    $region42: #{baseline_forward.1} parent=1 // pred_check
      _
    $region43: #{baseline_forward.1} parent=1 // pred_check_branch
      %128 = sbr.rel (0) target = $region45
    $region44: #{baseline_forward.1} parent=1 // pred_region
      %s130 = ssub.s32 2048, 2048
      %131 = vsyncadd [#allocation6], %s130
      %s132 = sshll.u32 [#allocation7], 4
      %s133 = int_to_ptr.vmem [resolvable:$true] %s132
      %138 = dma.hbm_to_vmem [thread:$0]  %s21, 2048, %s133, [#allocation6], 128, 128, 8
    $region45: #{baseline_forward.1} parent=1 // pred_fallthru
      _
    // Predicated region
    $region46: #{baseline_forward.1} parent=1 // pred_check
      _
    $region47: #{baseline_forward.1} parent=1 // pred_check_branch
      %140 = sbr.rel (0) target = $region49
    $region48: #{baseline_forward.1} parent=1 // pred_region
      %s142 = ssub.s32 16, 16
      %143 = vsyncadd [#allocation9], %s142
      %s145 = sshll.u32 [#allocation8], 4
      %s146 = int_to_ptr.vmem [resolvable:$true] %s145
      %148 = dma.hbm_to_vmem [thread:$0]  %s23, 16, %s146, [#allocation9]
    $region49: #{baseline_forward.1} parent=1 // pred_fallthru
      _
    // Predicated region
    $region50: #{baseline_forward.1} parent=1 // pred_check
      _
    $region51: #{baseline_forward.1} parent=1 // pred_check_branch
      %150 = sbr.rel (0) target = $region53
    $region52: #{baseline_forward.1} parent=1 // pred_region
      _
    $region53: #{baseline_forward.1} parent=1 // pred_fallthru
      _
    // Predicated region
    $region54: #{baseline_forward.1} parent=1 // pred_check
      _
    $region55: #{baseline_forward.1} parent=1 // pred_check_branch
      %152 = sbr.rel (0) target = $region57
    $region56: #{baseline_forward.1} parent=1 // pred_region
      _
    $region57: #{baseline_forward.1} parent=1 // pred_fallthru
      _
    // Predicated region
    $region58: #{baseline_forward.1} parent=1 // pred_check
      _
    $region59: #{baseline_forward.1} parent=1 // pred_check_branch
      %154 = sbr.rel (0) target = $region61
    $region60: #{baseline_forward.1} parent=1 // pred_region
      _
    $region61: #{baseline_forward.1} parent=1 // pred_fallthru
      _
    // Predicated region
    $region62: #{baseline_forward.1} parent=1 // pred_check
      _
    $region63: #{baseline_forward.1} parent=1 // pred_check_branch
      %156 = sbr.rel (0) target = $region65
    $region64: #{baseline_forward.1} parent=1 // pred_region
      _
    $region65: #{baseline_forward.1} parent=1 // pred_fallthru
      _
    // Predicated region
    $region66: #{baseline_forward.1} parent=1 // pred_check
      _
    $region67: #{baseline_forward.1} parent=1 // pred_check_branch
      %158 = sbr.rel (0) target = $region69
    $region68: #{baseline_forward.1} parent=1 // pred_region
      _
    $region69: #{baseline_forward.1} parent=1 // pred_fallthru
      _
    // Predicated region
    $region70: #{baseline_forward.1} parent=1 // pred_check
      _
    $region71: #{baseline_forward.1} parent=1 // pred_check_branch
      %160 = sbr.rel (0) target = $region73
    $region72: #{baseline_forward.1} parent=1 // pred_region
      _
    $region73: #{baseline_forward.1} parent=1 // pred_fallthru
      _
    // Predicated region
    $region74: #{baseline_forward.1} parent=1 // pred_check
      _
    $region75: #{baseline_forward.1} parent=1 // pred_check_branch
      %162 = sbr.rel (0) target = $region77
    $region76: #{baseline_forward.1} parent=1 // pred_region
      %s164 = ssub.s32 16384, 16384
      %165 = vsyncadd [#allocation9], %s164
      %s166 = sshll.u32 [#allocation10], 4
      %s167 = int_to_ptr.vmem [resolvable:$true] %s166
      %172 = dma.hbm_to_vmem [thread:$0]  %s37, 16384, %s167, [#allocation9], 1024, 1024, 64
    $region77: #{baseline_forward.1} parent=1 // pred_fallthru
      _
    // Predicated region
    $region78: #{baseline_forward.1} parent=1 // pred_check
      _
    $region79: #{baseline_forward.1} parent=1 // pred_check_branch
      %174 = sbr.rel (0) target = $region81
    $region80: #{baseline_forward.1} parent=1 // pred_region
      %s176 = ssub.s32 128, 128
      %177 = vsyncadd [#allocation12], %s176
      %s179 = sshll.u32 [#allocation11], 4
      %s180 = int_to_ptr.vmem [resolvable:$true] %s179
      %182 = dma.hbm_to_vmem [thread:$0]  %s39, 128, %s180, [#allocation12]
    $region81: #{baseline_forward.1} parent=1 // pred_fallthru
      _
    // Predicated region
    $region82: #{baseline_forward.1} parent=1 // pred_check
      _
    $region83: #{baseline_forward.1} parent=1 // pred_check_branch
      %184 = sbr.rel (0) target = $region85
    $region84: #{baseline_forward.1} parent=1 // pred_region
      %s186 = ssub.s32 16384, 16384
      %187 = vsyncadd [#allocation12], %s186
      %s188 = sshll.u32 [#allocation13], 4
      %s189 = int_to_ptr.vmem [resolvable:$true] %s188
      %194 = dma.hbm_to_vmem [thread:$0]  %s41, 16384, %s189, [#allocation12], 128, 128, 8
    $region85: #{baseline_forward.1} parent=1 // pred_fallthru
      _
    // Predicated region
    $region86: #{baseline_forward.1} parent=1 // pred_check
      _
    $region87: #{baseline_forward.1} parent=1 // pred_check_branch
      %196 = sbr.rel (0) target = $region89
    $region88: #{baseline_forward.1} parent=1 // pred_region
      %s198 = ssub.s32 16, 16
      %199 = vsyncadd [#allocation15], %s198
      %s201 = sshll.u32 [#allocation14], 4
      %s202 = int_to_ptr.vmem [resolvable:$true] %s201
      %204 = dma.hbm_to_vmem [thread:$0]  %s43, 16, %s202, [#allocation15]
    $region89: #{baseline_forward.1} parent=1 // pred_fallthru
      _
    // Predicated region
    $region90: #{baseline_forward.1} parent=1 // pred_check
      _
    $region91: #{baseline_forward.1} parent=1 // pred_check_branch
      %206 = sbr.rel (0) target = $region93
    $region92: #{baseline_forward.1} parent=1 // pred_region
      %s208 = ssub.s32 16384, 16384
      %209 = vsyncadd [#allocation15], %s208
      %s210 = sshll.u32 [#allocation16], 4
      %s211 = int_to_ptr.vmem [resolvable:$true] %s210
      %216 = dma.hbm_to_vmem [thread:$0]  %s45, 16384, %s211, [#allocation15], 1024, 1024, 64
    $region93: #{baseline_forward.1} parent=1 // pred_fallthru
      _
    // Predicated region
    $region94: #{baseline_forward.1} parent=1 // pred_check
      _
    $region95: #{baseline_forward.1} parent=1 // pred_check_branch
      %218 = sbr.rel (0) target = $region97
    $region96: #{baseline_forward.1} parent=1 // pred_region
      %s220 = ssub.s32 128, 128
      %221 = vsyncadd [#allocation18], %s220
      %s223 = sshll.u32 [#allocation17], 4
      %s224 = int_to_ptr.vmem [resolvable:$true] %s223
      %226 = dma.hbm_to_vmem [thread:$0]  %s47, 128, %s224, [#allocation18]
    $region97: #{baseline_forward.1} parent=1 // pred_fallthru
      _
    // Predicated region
    $region98: #{baseline_forward.1} parent=1 // pred_check
      _
    $region99: #{baseline_forward.1} parent=1 // pred_check_branch
      %228 = sbr.rel (0) target = $region101
    $region100: #{baseline_forward.1} parent=1 // pred_region
      %s230 = ssub.s32 128, 128
      %231 = vsyncadd [#allocation18], %s230
      %s233 = sshll.u32 [#allocation19], 4
      %s234 = int_to_ptr.vmem [resolvable:$true] %s233
      %236 = dma.hbm_to_vmem [thread:$0]  %s49, 128, %s234, [#allocation18]
    $region101: #{baseline_forward.1} parent=1 // pred_fallthru
      _
    // Predicated region
    $region102: #{baseline_forward.1} parent=1 // pred_check
      _
    $region103: #{baseline_forward.1} parent=1 // pred_check_branch
      %238 = sbr.rel (0) target = $region105
    $region104: #{baseline_forward.1} parent=1 // pred_region
      %s240 = ssub.s32 128, 128
      %241 = vsyncadd [#allocation21], %s240
      %s243 = sshll.u32 [#allocation20], 4
      %s244 = int_to_ptr.vmem [resolvable:$true] %s243
      %246 = dma.hbm_to_vmem [thread:$0]  %s51, 128, %s244, [#allocation21]
    $region105: #{baseline_forward.1} parent=1 // pred_fallthru
      _
    // Predicated region
    $region106: #{baseline_forward.1} parent=1 // pred_check
      _
    $region107: #{baseline_forward.1} parent=1 // pred_check_branch
      %248 = sbr.rel (0) target = $region109
    $region108: #{baseline_forward.1} parent=1 // pred_region
      %s250 = ssub.s32 128, 128
      %251 = vsyncadd [#allocation21], %s250
      %s253 = sshll.u32 [#allocation22], 4
      %s254 = int_to_ptr.vmem [resolvable:$true] %s253
      %256 = dma.hbm_to_vmem [thread:$0]  %s53, 128, %s254, [#allocation21]
    $region109: #{baseline_forward.1} parent=1 // pred_fallthru
      _
    // Predicated region
    $region110: #{baseline_forward.1} parent=1 // pred_check
      _
    $region111: #{baseline_forward.1} parent=1 // pred_check_branch
      %258 = sbr.rel (0) target = $region113
    $region112: #{baseline_forward.1} parent=1 // pred_region
      %s260 = ssub.s32 128, 128
      %261 = vsyncadd [#allocation24], %s260
      %s263 = sshll.u32 [#allocation23], 4
      %s264 = int_to_ptr.vmem [resolvable:$true] %s263
      %266 = dma.hbm_to_vmem [thread:$0]  %s55, 128, %s264, [#allocation24]
    $region113: #{baseline_forward.1} parent=1 // pred_fallthru
      _
    // Predicated region
    $region114: #{baseline_forward.1} parent=1 // pred_check
      _
    $region115: #{baseline_forward.1} parent=1 // pred_check_branch
      %268 = sbr.rel (0) target = $region117
    $region116: #{baseline_forward.1} parent=1 // pred_region
      %s270 = ssub.s32 32768, 32768
      %271 = vsyncadd [#allocation24], %s270
      %s272 = sshll.u32 [#allocation25], 4
      %s273 = int_to_ptr.vmem [resolvable:$true] %s272
      %278 = dma.hbm_to_vmem [thread:$0]  %s57, 32768, %s273, [#allocation24], 256, 256, 16
    $region117: #{baseline_forward.1} parent=1 // pred_fallthru
      _
    // Predicated region
    $region118: #{baseline_forward.1} parent=1 // pred_check
      _
    $region119: #{baseline_forward.1} parent=1 // pred_check_branch
      %280 = sbr.rel (0) target = $region121
    $region120: #{baseline_forward.1} parent=1 // pred_region
      %s282 = ssub.s32 32, 32
      %283 = vsyncadd [#allocation27], %s282
      %s285 = sshll.u32 [#allocation26], 4
      %s286 = int_to_ptr.vmem [resolvable:$true] %s285
      %288 = dma.hbm_to_vmem [thread:$0]  %s59, 32, %s286, [#allocation27]
    $region121: #{baseline_forward.1} parent=1 // pred_fallthru
      _
    // Predicated region
    $region122: #{baseline_forward.1} parent=1 // pred_check
      _
    $region123: #{baseline_forward.1} parent=1 // pred_check_branch
      %290 = sbr.rel (0) target = $region125
    $region124: #{baseline_forward.1} parent=1 // pred_region
      %s292 = ssub.s32 32, 32
      %293 = vsyncadd [#allocation27], %s292
      %s295 = sshll.u32 [#allocation28], 4
      %s296 = int_to_ptr.vmem [resolvable:$true] %s295
      %298 = dma.hbm_to_vmem [thread:$0]  %s61, 32, %s296, [#allocation27]
    $region125: #{baseline_forward.1} parent=1 // pred_fallthru
      _
    // Predicated region
    $region126: #{baseline_forward.1} parent=1 // pred_check
      _
    $region127: #{baseline_forward.1} parent=1 // pred_check_branch
      %300 = sbr.rel (0) target = $region129
    $region128: #{baseline_forward.1} parent=1 // pred_region
      %s302 = ssub.s32 32, 32
      %303 = vsyncadd [#allocation30], %s302
      %s305 = sshll.u32 [#allocation29], 4
      %s306 = int_to_ptr.vmem [resolvable:$true] %s305
      %308 = dma.hbm_to_vmem [thread:$0]  %s63, 32, %s306, [#allocation30]
    $region129: #{baseline_forward.1} parent=1 // pred_fallthru
      _
    // Predicated region
    $region130: #{baseline_forward.1} parent=1 // pred_check
      _
    $region131: #{baseline_forward.1} parent=1 // pred_check_branch
      %310 = sbr.rel (0) target = $region133
    $region132: #{baseline_forward.1} parent=1 // pred_region
      %s312 = ssub.s32 32, 32
      %313 = vsyncadd [#allocation30], %s312
      %s315 = sshll.u32 [#allocation31], 4
      %s316 = int_to_ptr.vmem [resolvable:$true] %s315
      %318 = dma.hbm_to_vmem [thread:$0]  %s65, 32, %s316, [#allocation30]
    $region133: #{baseline_forward.1} parent=1 // pred_fallthru
      _
    // Predicated region
    $region134: #{baseline_forward.1} parent=1 // pred_check
      _
    $region135: #{baseline_forward.1} parent=1 // pred_check_branch
      %320 = sbr.rel (0) target = $region137
    $region136: #{baseline_forward.1} parent=1 // pred_region
      %s322 = ssub.s32 32, 32
      %323 = vsyncadd [#allocation33], %s322
      %s325 = sshll.u32 [#allocation32], 4
      %s326 = int_to_ptr.vmem [resolvable:$true] %s325
      %328 = dma.hbm_to_vmem [thread:$0]  %s67, 32, %s326, [#allocation33]
    $region137: #{baseline_forward.1} parent=1 // pred_fallthru
      _
    // Predicated region
    $region138: #{baseline_forward.1} parent=1 // pred_check
      _
    $region139: #{baseline_forward.1} parent=1 // pred_check_branch
      %330 = sbr.rel (0) target = $region141
    $region140: #{baseline_forward.1} parent=1 // pred_region
      _
    $region141: #{baseline_forward.1} parent=1 // pred_fallthru
      _
    // Predicated region
    $region142: #{baseline_forward.1} parent=1 // pred_check
      _
    $region143: #{baseline_forward.1} parent=1 // pred_check_branch
      %332 = sbr.rel (0) target = $region145
    $region144: #{baseline_forward.1} parent=1 // pred_region
      _
    $region145: #{baseline_forward.1} parent=1 // pred_fallthru
      _
    // Predicated region
    $region146: #{baseline_forward.1} parent=1 // pred_check
      _
    $region147: #{baseline_forward.1} parent=1 // pred_check_branch
      %334 = sbr.rel (0) target = $region149
    $region148: #{baseline_forward.1} parent=1 // pred_region
      %335 = dma.done [#allocation4], 16
    $region149: #{baseline_forward.1} parent=1 // pred_fallthru
      _
    // Predicated region
    $region150: #{baseline_forward.1} parent=1 // pred_check
      _
    $region151: #{baseline_forward.1} parent=1 // pred_check_branch
      %337 = sbr.rel (0) target = $region153
    $region152: #{baseline_forward.1} parent=1 // pred_region
      %338 = dma.done [#allocation6], 16
    $region153: #{baseline_forward.1} parent=1 // pred_fallthru
      _
    // Predicated region
    $region154: #{baseline_forward.1} parent=1 // pred_check
      _
    $region155: #{baseline_forward.1} parent=1 // pred_check_branch
      %340 = sbr.rel (0) target = $region157
    $region156: #{baseline_forward.1} parent=1 // pred_region
      %341 = dma.done [#allocation6], 2048
    $region157: #{baseline_forward.1} parent=1 // pred_fallthru
      _
    // Predicated region
    $region158: #{baseline_forward.1} parent=1 // pred_check
      _
    $region159: #{baseline_forward.1} parent=1 // pred_check_branch
      %343 = sbr.rel (0) target = $region161
    $region160: #{baseline_forward.1} parent=1 // pred_region
      %344 = dma.done [#allocation9], 16
    $region161: #{baseline_forward.1} parent=1 // pred_fallthru
      _
    // Predicated region
    $region162: #{baseline_forward.1} parent=1 // pred_check
      _
    $region163: #{baseline_forward.1} parent=1 // pred_check_branch
      %346 = sbr.rel (0) target = $region165
    $region164: #{baseline_forward.1} parent=1 // pred_region
      %347 = dma.done [#allocation9], 16384
    $region165: #{baseline_forward.1} parent=1 // pred_fallthru
      _
    // Predicated region
    $region166: #{baseline_forward.1} parent=1 // pred_check
      _
    $region167: #{baseline_forward.1} parent=1 // pred_check_branch
      %349 = sbr.rel (0) target = $region169
    $region168: #{baseline_forward.1} parent=1 // pred_region
      %350 = dma.done [#allocation12], 128
    $region169: #{baseline_forward.1} parent=1 // pred_fallthru
      _
    // Predicated region
    $region170: #{baseline_forward.1} parent=1 // pred_check
      _
    $region171: #{baseline_forward.1} parent=1 // pred_check_branch
      %352 = sbr.rel (0) target = $region173
    $region172: #{baseline_forward.1} parent=1 // pred_region
      %353 = dma.done [#allocation12], 16384
    $region173: #{baseline_forward.1} parent=1 // pred_fallthru
      _
    // Predicated region
    $region174: #{baseline_forward.1} parent=1 // pred_check
      _
    $region175: #{baseline_forward.1} parent=1 // pred_check_branch
      %355 = sbr.rel (0) target = $region177
    $region176: #{baseline_forward.1} parent=1 // pred_region
      %356 = dma.done [#allocation15], 16
    $region177: #{baseline_forward.1} parent=1 // pred_fallthru
      _
    // Predicated region
    $region178: #{baseline_forward.1} parent=1 // pred_check
      _
    $region179: #{baseline_forward.1} parent=1 // pred_check_branch
      %358 = sbr.rel (0) target = $region181
    $region180: #{baseline_forward.1} parent=1 // pred_region
      %359 = dma.done [#allocation15], 16384
    $region181: #{baseline_forward.1} parent=1 // pred_fallthru
      _
    // Predicated region
    $region182: #{baseline_forward.1} parent=1 // pred_check
      _
    $region183: #{baseline_forward.1} parent=1 // pred_check_branch
      %361 = sbr.rel (0) target = $region185
    $region184: #{baseline_forward.1} parent=1 // pred_region
      %362 = dma.done [#allocation18], 128
    $region185: #{baseline_forward.1} parent=1 // pred_fallthru
      _
    // Predicated region
    $region186: #{baseline_forward.1} parent=1 // pred_check
      _
    $region187: #{baseline_forward.1} parent=1 // pred_check_branch
      %364 = sbr.rel (0) target = $region189
    $region188: #{baseline_forward.1} parent=1 // pred_region
      %365 = dma.done [#allocation18], 128
    $region189: #{baseline_forward.1} parent=1 // pred_fallthru
      _
    // Predicated region
    $region190: #{baseline_forward.1} parent=1 // pred_check
      _
    $region191: #{baseline_forward.1} parent=1 // pred_check_branch
      %367 = sbr.rel (0) target = $region193
    $region192: #{baseline_forward.1} parent=1 // pred_region
      %368 = dma.done [#allocation21], 128
    $region193: #{baseline_forward.1} parent=1 // pred_fallthru
      _
    // Predicated region
    $region194: #{baseline_forward.1} parent=1 // pred_check
      _
    $region195: #{baseline_forward.1} parent=1 // pred_check_branch
      %370 = sbr.rel (0) target = $region197
    $region196: #{baseline_forward.1} parent=1 // pred_region
      %371 = dma.done [#allocation21], 128
    $region197: #{baseline_forward.1} parent=1 // pred_fallthru
      _
    // Predicated region
    $region198: #{baseline_forward.1} parent=1 // pred_check
      _
    $region199: #{baseline_forward.1} parent=1 // pred_check_branch
      %373 = sbr.rel (0) target = $region201
    $region200: #{baseline_forward.1} parent=1 // pred_region
      %374 = dma.done [#allocation24], 128
    $region201: #{baseline_forward.1} parent=1 // pred_fallthru
      _
    // Predicated region
    $region202: #{baseline_forward.1} parent=1 // pred_check
      _
    $region203: #{baseline_forward.1} parent=1 // pred_check_branch
      %376 = sbr.rel (0) target = $region205
    $region204: #{baseline_forward.1} parent=1 // pred_region
      %377 = dma.done [#allocation24], 32768
    $region205: #{baseline_forward.1} parent=1 // pred_fallthru
      _
    // Predicated region
    $region206: #{baseline_forward.1} parent=1 // pred_check
      _
    $region207: #{baseline_forward.1} parent=1 // pred_check_branch
      %379 = sbr.rel (0) target = $region209
    $region208: #{baseline_forward.1} parent=1 // pred_region
      %380 = dma.done [#allocation27], 32
    $region209: #{baseline_forward.1} parent=1 // pred_fallthru
      _
    // Predicated region
    $region210: #{baseline_forward.1} parent=1 // pred_check
      _
    $region211: #{baseline_forward.1} parent=1 // pred_check_branch
      %382 = sbr.rel (0) target = $region213
    $region212: #{baseline_forward.1} parent=1 // pred_region
      %383 = dma.done [#allocation27], 32
    $region213: #{baseline_forward.1} parent=1 // pred_fallthru
      _
    // Predicated region
    $region214: #{baseline_forward.1} parent=1 // pred_check
      _
    $region215: #{baseline_forward.1} parent=1 // pred_check_branch
      %385 = sbr.rel (0) target = $region217
    $region216: #{baseline_forward.1} parent=1 // pred_region
      %386 = dma.done [#allocation30], 32
    $region217: #{baseline_forward.1} parent=1 // pred_fallthru
      _
    // Predicated region
    $region218: #{baseline_forward.1} parent=1 // pred_check
      _
    $region219: #{baseline_forward.1} parent=1 // pred_check_branch
      %388 = sbr.rel (0) target = $region221
    $region220: #{baseline_forward.1} parent=1 // pred_region
      %389 = dma.done [#allocation30], 32
    $region221: #{baseline_forward.1} parent=1 // pred_fallthru
      _
    // Predicated region
    $region222: #{baseline_forward.1} parent=1 // pred_check
      _
    $region223: #{baseline_forward.1} parent=1 // pred_check_branch
      %391 = sbr.rel (0) target = $region225
    $region224: #{baseline_forward.1} parent=1 // pred_region
      %392 = dma.done [#allocation33], 32
    $region225: #{baseline_forward.1} parent=1 // pred_fallthru
      _
    %v393 = vld [vmem:[%s1] sm:$0xff]
    %v394 = vld [vmem:[%s1 + $0x8] sm:$0xff]
    %v395 = vlaneseq
    %v396 = vand.u32 %v395, 127
    %397 = vset.pattern.permute.xlu0 0
    %398 = vperm.xlu0 %397, %v393
    %v399 = vpop.permute.xlu0 %398
    %400 = vset.pattern.permute.xlu0 0
    %401 = vperm.xlu0 %400, %v394
    %v402 = vpop.permute.xlu0 %401
    %vm403 = vcmp.eq.s32.totalorder %v399, %v396
    %vm404 = vcmp.eq.s32.totalorder %v402, %v396
    %v405 = vsel %vm403, 1, 0
    %v406 = vsel %vm404, 1, 0
    %v407 = vcvt.s32.f32 %v405
    %v408 = vcvt.s32.f32 %v406
    %v409 = vld [vmem:[%s7] sm:$0xff]
    %v410 = vld [vmem:[%s7 + $0x8] sm:$0xff]
    %v411 = vld [vmem:[%s7 + $0x10] sm:$0xff]
    %v412 = vld [vmem:[%s7 + $0x18] sm:$0xff]
    %v413 = vld [vmem:[%s5] sm:$0xff]
    %vm414 = vcmask 261120
    %v416 = vsel %vm414, %v407, 0
    %v419 = vsel %vm414, %v408, 0
    %421 = vmatprep.subr.mxu0 0.0
    %422 = vmatpush1.msra.mxu0 %v409
    %423 = vmatprep.subr.mxu0 0.0
    %424 = vmatpush1.msra.mxu0 %v410
    %425 = vmatprep.subr.mxu0 0.0
    %426 = vmatpush1.msra.mxu0 %v411
    %427 = vmatprep.subr.mxu0 0.0
    %428 = vmatpush1.msra.mxu0 %v412
    %429 = vmatprep.subr.mxu0 0.0
    %430 = vmatpush1.msra.mxu0 0.0
    %431 = vmatprep.subr.mxu0 0.0
    %432 = vmatpush1.msra.mxu0 0.0
    %433 = vmatprep.subr.mxu0 0.0
    %434 = vmatpush1.msra.mxu0 0.0
    %435 = vmatprep.subr.mxu0 0.0
    %436 = vmatpush1.msra.mxu0 0.0
    %437 = vmatprep.subr.mxu0 0.0
    %438 = vmatpush1.msra.mxu0 0.0
    %439 = vmatprep.subr.mxu0 0.0
    %440 = vmatpush1.msra.mxu0 0.0
    %441 = vmatprep.subr.mxu0 0.0
    %442 = vmatpush1.msra.mxu0 0.0
    %443 = vmatprep.subr.mxu0 0.0
    %444 = vmatpush1.msra.mxu0 0.0
    %445 = vmatprep.subr.mxu0 0.0
    %446 = vmatpush1.msra.mxu0 0.0
    %447 = vmatprep.subr.mxu0 0.0
    %448 = vmatpush1.msra.mxu0 0.0
    %449 = vmatprep.subr.mxu0 0.0
    %450 = vmatpush1.msra.mxu0 0.0
    %451 = vmatprep.subr.mxu0 0.0
    %452 = vmatpush1.msra.mxu0 0.0
    %453 = vmatprep.subr.mxu0 0.0
    %454 = vmatpush1.msra.mxu0 0.0
    %455 = vmatprep.subr.mxu0 0.0
    %456 = vmatpush1.msra.mxu0 0.0
    %457 = vmatprep.subr.mxu0 0.0
    %458 = vmatpush1.msra.mxu0 0.0
    %459 = vmatprep.subr.mxu0 0.0
    %460 = vmatpush1.msra.mxu0 0.0
    %461 = vmatprep.subr.mxu0 0.0
    %462 = vmatpush1.msra.mxu0 0.0
    %463 = vmatprep.subr.mxu0 0.0
    %464 = vmatpush1.msra.mxu0 0.0
    %465 = vmatprep.subr.mxu0 0.0
    %466 = vmatpush1.msra.mxu0 0.0
    %467 = vmatprep.subr.mxu0 0.0
    %468 = vmatpush1.msra.mxu0 0.0
    %469 = vmatprep.subr.mxu0 0.0
    %470 = vmatpush1.msra.mxu0 0.0
    %471 = vmatprep.subr.mxu0 0.0
    %472 = vmatpush1.msra.mxu0 0.0
    %473 = vmatprep.subr.mxu0 0.0
    %474 = vmatpush1.msra.mxu0 0.0
    %475 = vmatprep.subr.mxu0 0.0
    %476 = vmatpush1.msra.mxu0 0.0
    %477 = vmatprep.subr.mxu0 0.0
    %478 = vmatpush1.msra.mxu0 0.0
    %479 = vmatprep.subr.mxu0 0.0
    %480 = vmatpush1.msra.mxu0 0.0
    %481 = vmatprep.subr.mxu0 0.0
    %482 = vmatpush1.msra.mxu0 0.0
    %483 = vmatprep.subr.mxu0 0.0
    %484 = vmatpush1.msra.mxu0 0.0
    %485 = vmatprep.mubr.f32.mxu0 0.0
    %486 = vmatmul.mubr.f32.gmra.mrb[0].mxu0 %v416
    %v487 = vpop.f32.mrb[0].mxu0
    %v488 = vadd.f32 %v413, %v487
    %v489 = vpop.f32.mrb[0].mxu0
    %490 = vmatprep.mubr.f32.mxu0 0.0
    %491 = vmatmul.mubr.f32.gmra.mrb[0].mxu0 %v419
    %v492 = vpop.f32.mrb[0].mxu0
    %v493 = vadd.f32 %v413, %v492
    %v494 = vpop.f32.mrb[0].mxu0
    %495 = vdwg.mxu0
    %v496 = vld [vmem:[%s9] sm:$0xff]
    %v497 = vld [vmem:[%s9 + $0x8] sm:$0xff]
    %v498 = vld [vmem:[%s9 + $0x10] sm:$0xff]
    %v499 = vld [vmem:[%s9 + $0x18] sm:$0xff]
    %v500 = vld [vmem:[%s9 + $0x20] sm:$0xff]
    %v501 = vld [vmem:[%s9 + $0x28] sm:$0xff]
    %v502 = vld [vmem:[%s9 + $0x30] sm:$0xff]
    %v503 = vld [vmem:[%s9 + $0x38] sm:$0xff]
    %v504 = vld [vmem:[%s9 + $0x40] sm:$0xff]
    %v505 = vld [vmem:[%s9 + $0x48] sm:$0xff]
    %v506 = vld [vmem:[%s9 + $0x50] sm:$0xff]
    %v507 = vld [vmem:[%s9 + $0x58] sm:$0xff]
    %v508 = vld [vmem:[%s9 + $0x60] sm:$0xff]
    %v509 = vld [vmem:[%s9 + $0x68] sm:$0xff]
    %v510 = vld [vmem:[%s9 + $0x70] sm:$0xff]
    %v511 = vld [vmem:[%s9 + $0x78] sm:$0xff]
    %v512 = vld [vmem:[%s11] sm:$0x1]
    %v514 = vlaneseq
    %v515 = vshrl.u32 %v514, 7
    %v516 = vsub.s32 0, %v515
    %v517 = vrot.slane %v512, %v516
    %519 = vmatprep.subr.mxu0 0.0
    %520 = vmatpush1.msra.mxu0 %v496
    %521 = vmatprep.subr.mxu0 0.0
    %522 = vmatpush1.msra.mxu0 %v497
    %523 = vmatprep.subr.mxu0 0.0
    %524 = vmatpush1.msra.mxu0 %v498
    %525 = vmatprep.subr.mxu0 0.0
    %526 = vmatpush1.msra.mxu0 %v499
    %527 = vmatprep.subr.mxu0 0.0
    %528 = vmatpush1.msra.mxu0 %v500
    %529 = vmatprep.subr.mxu0 0.0
    %530 = vmatpush1.msra.mxu0 %v501
    %531 = vmatprep.subr.mxu0 0.0
    %532 = vmatpush1.msra.mxu0 %v502
    %533 = vmatprep.subr.mxu0 0.0
    %534 = vmatpush1.msra.mxu0 %v503
    %535 = vmatprep.subr.mxu0 0.0
    %536 = vmatpush1.msra.mxu0 %v504
    %537 = vmatprep.subr.mxu0 0.0
    %538 = vmatpush1.msra.mxu0 %v505
    %539 = vmatprep.subr.mxu0 0.0
    %540 = vmatpush1.msra.mxu0 %v506
    %541 = vmatprep.subr.mxu0 0.0
    %542 = vmatpush1.msra.mxu0 %v507
    %543 = vmatprep.subr.mxu0 0.0
    %544 = vmatpush1.msra.mxu0 %v508
    %545 = vmatprep.subr.mxu0 0.0
    %546 = vmatpush1.msra.mxu0 %v509
    %547 = vmatprep.subr.mxu0 0.0
    %548 = vmatpush1.msra.mxu0 %v510
    %549 = vmatprep.subr.mxu0 0.0
    %550 = vmatpush1.msra.mxu0 %v511
    %551 = vmatprep.subr.mxu0 0.0
    %552 = vmatpush1.msra.mxu0 0.0
    %553 = vmatprep.subr.mxu0 0.0
    %554 = vmatpush1.msra.mxu0 0.0
    %555 = vmatprep.subr.mxu0 0.0
    %556 = vmatpush1.msra.mxu0 0.0
    %557 = vmatprep.subr.mxu0 0.0
    %558 = vmatpush1.msra.mxu0 0.0
    %559 = vmatprep.subr.mxu0 0.0
    %560 = vmatpush1.msra.mxu0 0.0
    %561 = vmatprep.subr.mxu0 0.0
    %562 = vmatpush1.msra.mxu0 0.0
    %563 = vmatprep.subr.mxu0 0.0
    %564 = vmatpush1.msra.mxu0 0.0
    %565 = vmatprep.subr.mxu0 0.0
    %566 = vmatpush1.msra.mxu0 0.0
    %567 = vmatprep.subr.mxu0 0.0
    %568 = vmatpush1.msra.mxu0 0.0
    %569 = vmatprep.subr.mxu0 0.0
    %570 = vmatpush1.msra.mxu0 0.0
    %571 = vmatprep.subr.mxu0 0.0
    %572 = vmatpush1.msra.mxu0 0.0
    %573 = vmatprep.subr.mxu0 0.0
    %574 = vmatpush1.msra.mxu0 0.0
    %575 = vmatprep.subr.mxu0 0.0
    %576 = vmatpush1.msra.mxu0 0.0
    %577 = vmatprep.subr.mxu0 0.0
    %578 = vmatpush1.msra.mxu0 0.0
    %579 = vmatprep.subr.mxu0 0.0
    %580 = vmatpush1.msra.mxu0 0.0
    %581 = vmatprep.subr.mxu0 0.0
    %582 = vmatpush1.msra.mxu0 0.0
    %583 = vmatprep.mubr.f32.mxu0 0.0
    %584 = vmatmul.mubr.f32.gmra.mrb[0].mxu0 %v488
    %v585 = vpop.f32.mrb[0].mxu0
    %v586 = vadd.f32 %v517, %v585
    %v587 = vpop.f32.mrb[0].mxu0
    %588 = vmatprep.mubr.f32.mxu0 0.0
    %589 = vmatmul.mubr.f32.gmra.mrb[0].mxu0 %v493
    %v590 = vpop.f32.mrb[0].mxu0
    %v591 = vadd.f32 %v517, %v590
    %v592 = vpop.f32.mrb[0].mxu0
    %593 = vdwg.mxu0
    %v594 = vld [vmem:[%s13] sm:$0xff]
    %v595 = vld [vmem:[%s13 + $0x8] sm:$0xff]
    %v596 = vld [vmem:[%s13 + $0x10] sm:$0xff]
    %v597 = vld [vmem:[%s13 + $0x18] sm:$0xff]
    %v598 = vld [vmem:[%s13 + $0x20] sm:$0xff]
    %v599 = vld [vmem:[%s13 + $0x28] sm:$0xff]
    %v600 = vld [vmem:[%s13 + $0x30] sm:$0xff]
    %v601 = vld [vmem:[%s13 + $0x38] sm:$0xff]
    %v602 = vld [vmem:[%s13 + $0x40] sm:$0xff]
    %v603 = vld [vmem:[%s13 + $0x48] sm:$0xff]
    %v604 = vld [vmem:[%s13 + $0x50] sm:$0xff]
    %v605 = vld [vmem:[%s13 + $0x58] sm:$0xff]
    %v606 = vld [vmem:[%s13 + $0x60] sm:$0xff]
    %v607 = vld [vmem:[%s13 + $0x68] sm:$0xff]
    %v608 = vld [vmem:[%s13 + $0x70] sm:$0xff]
    %v609 = vld [vmem:[%s13 + $0x78] sm:$0xff]
    %v610 = vld [vmem:[#allocation3] sm:$0x1]
    %v612 = vlaneseq
    %v613 = vshrl.u32 %v612, 7
    %v614 = vsub.s32 0, %v613
    %v615 = vrot.slane %v610, %v614
    %617 = vmatprep.subr.mxu0 0.0
    %618 = vmatpush1.msra.mxu0 %v594
    %619 = vmatprep.subr.mxu0 0.0
    %620 = vmatpush1.msra.mxu0 %v595
    %621 = vmatprep.subr.mxu0 0.0
    %622 = vmatpush1.msra.mxu0 %v596
    %623 = vmatprep.subr.mxu0 0.0
    %624 = vmatpush1.msra.mxu0 %v597
    %625 = vmatprep.subr.mxu0 0.0
    %626 = vmatpush1.msra.mxu0 %v598
    %627 = vmatprep.subr.mxu0 0.0
    %628 = vmatpush1.msra.mxu0 %v599
    %629 = vmatprep.subr.mxu0 0.0
    %630 = vmatpush1.msra.mxu0 %v600
    %631 = vmatprep.subr.mxu0 0.0
    %632 = vmatpush1.msra.mxu0 %v601
    %633 = vmatprep.subr.mxu0 0.0
    %634 = vmatpush1.msra.mxu0 %v602
    %635 = vmatprep.subr.mxu0 0.0
    %636 = vmatpush1.msra.mxu0 %v603
    %637 = vmatprep.subr.mxu0 0.0
    %638 = vmatpush1.msra.mxu0 %v604
    %639 = vmatprep.subr.mxu0 0.0
    %640 = vmatpush1.msra.mxu0 %v605
    %641 = vmatprep.subr.mxu0 0.0
    %642 = vmatpush1.msra.mxu0 %v606
    %643 = vmatprep.subr.mxu0 0.0
    %644 = vmatpush1.msra.mxu0 %v607
    %645 = vmatprep.subr.mxu0 0.0
    %646 = vmatpush1.msra.mxu0 %v608
    %647 = vmatprep.subr.mxu0 0.0
    %648 = vmatpush1.msra.mxu0 %v609
    %649 = vmatprep.subr.mxu0 0.0
    %650 = vmatpush1.msra.mxu0 0.0
    %651 = vmatprep.subr.mxu0 0.0
    %652 = vmatpush1.msra.mxu0 0.0
    %653 = vmatprep.subr.mxu0 0.0
    %654 = vmatpush1.msra.mxu0 0.0
    %655 = vmatprep.subr.mxu0 0.0
    %656 = vmatpush1.msra.mxu0 0.0
    %657 = vmatprep.subr.mxu0 0.0
    %658 = vmatpush1.msra.mxu0 0.0
    %659 = vmatprep.subr.mxu0 0.0
    %660 = vmatpush1.msra.mxu0 0.0
    %661 = vmatprep.subr.mxu0 0.0
    %662 = vmatpush1.msra.mxu0 0.0
    %663 = vmatprep.subr.mxu0 0.0
    %664 = vmatpush1.msra.mxu0 0.0
    %665 = vmatprep.subr.mxu0 0.0
    %666 = vmatpush1.msra.mxu0 0.0
    %667 = vmatprep.subr.mxu0 0.0
    %668 = vmatpush1.msra.mxu0 0.0
    %669 = vmatprep.subr.mxu0 0.0
    %670 = vmatpush1.msra.mxu0 0.0
    %671 = vmatprep.subr.mxu0 0.0
    %672 = vmatpush1.msra.mxu0 0.0
    %673 = vmatprep.subr.mxu0 0.0
    %674 = vmatpush1.msra.mxu0 0.0
    %675 = vmatprep.subr.mxu0 0.0
    %676 = vmatpush1.msra.mxu0 0.0
    %677 = vmatprep.subr.mxu0 0.0
    %678 = vmatpush1.msra.mxu0 0.0
    %679 = vmatprep.subr.mxu0 0.0
    %680 = vmatpush1.msra.mxu0 0.0
    %681 = vmatprep.mubr.f32.mxu0 0.0
    %682 = vmatmul.mubr.f32.gmra.mrb[0].mxu0 %v488
    %v683 = vpop.f32.mrb[0].mxu0
    %v684 = vadd.f32 %v615, %v683
    %v685 = vpop.f32.mrb[0].mxu0
    %686 = vmatprep.mubr.f32.mxu0 0.0
    %687 = vmatmul.mubr.f32.gmra.mrb[0].mxu0 %v493
    %v688 = vpop.f32.mrb[0].mxu0
    %v689 = vadd.f32 %v615, %v688
    %v690 = vpop.f32.mrb[0].mxu0
    %691 = vdwg.mxu0
    %v692 = vld [vmem:[%s17] sm:$0xff]
    %v693 = vld [vmem:[%s17 + $0x8] sm:$0xff]
    %v694 = vld [vmem:[%s17 + $0x10] sm:$0xff]
    %v695 = vld [vmem:[%s17 + $0x18] sm:$0xff]
    %v696 = vld [vmem:[%s17 + $0x20] sm:$0xff]
    %v697 = vld [vmem:[%s17 + $0x28] sm:$0xff]
    %v698 = vld [vmem:[%s17 + $0x30] sm:$0xff]
    %v699 = vld [vmem:[%s17 + $0x38] sm:$0xff]
    %v700 = vld [vmem:[%s17 + $0x40] sm:$0xff]
    %v701 = vld [vmem:[%s17 + $0x48] sm:$0xff]
    %v702 = vld [vmem:[%s17 + $0x50] sm:$0xff]
    %v703 = vld [vmem:[%s17 + $0x58] sm:$0xff]
    %v704 = vld [vmem:[%s17 + $0x60] sm:$0xff]
    %v705 = vld [vmem:[%s17 + $0x68] sm:$0xff]
    %v706 = vld [vmem:[%s17 + $0x70] sm:$0xff]
    %v707 = vld [vmem:[%s17 + $0x78] sm:$0xff]
    %v708 = vld [vmem:[#allocation5] sm:$0x1]
    %v710 = vlaneseq
    %v711 = vshrl.u32 %v710, 7
    %v712 = vsub.s32 0, %v711
    %v713 = vrot.slane %v708, %v712
    %715 = vmatprep.subr.mxu0 0.0
    %716 = vmatpush1.msra.mxu0 %v692
    %717 = vmatprep.subr.mxu0 0.0
    %718 = vmatpush1.msra.mxu0 %v693
    %719 = vmatprep.subr.mxu0 0.0
    %720 = vmatpush1.msra.mxu0 %v694
    %721 = vmatprep.subr.mxu0 0.0
    %722 = vmatpush1.msra.mxu0 %v695
    %723 = vmatprep.subr.mxu0 0.0
    %724 = vmatpush1.msra.mxu0 %v696
    %725 = vmatprep.subr.mxu0 0.0
    %726 = vmatpush1.msra.mxu0 %v697
    %727 = vmatprep.subr.mxu0 0.0
    %728 = vmatpush1.msra.mxu0 %v698
    %729 = vmatprep.subr.mxu0 0.0
    %730 = vmatpush1.msra.mxu0 %v699
    %731 = vmatprep.subr.mxu0 0.0
    %732 = vmatpush1.msra.mxu0 %v700
    %733 = vmatprep.subr.mxu0 0.0
    %734 = vmatpush1.msra.mxu0 %v701
    %735 = vmatprep.subr.mxu0 0.0
    %736 = vmatpush1.msra.mxu0 %v702
    %737 = vmatprep.subr.mxu0 0.0
    %738 = vmatpush1.msra.mxu0 %v703
    %739 = vmatprep.subr.mxu0 0.0
    %740 = vmatpush1.msra.mxu0 %v704
    %741 = vmatprep.subr.mxu0 0.0
    %742 = vmatpush1.msra.mxu0 %v705
    %743 = vmatprep.subr.mxu0 0.0
    %744 = vmatpush1.msra.mxu0 %v706
    %745 = vmatprep.subr.mxu0 0.0
    %746 = vmatpush1.msra.mxu0 %v707
    %747 = vmatprep.subr.mxu0 0.0
    %748 = vmatpush1.msra.mxu0 0.0
    %749 = vmatprep.subr.mxu0 0.0
    %750 = vmatpush1.msra.mxu0 0.0
    %751 = vmatprep.subr.mxu0 0.0
    %752 = vmatpush1.msra.mxu0 0.0
    %753 = vmatprep.subr.mxu0 0.0
    %754 = vmatpush1.msra.mxu0 0.0
    %755 = vmatprep.subr.mxu0 0.0
    %756 = vmatpush1.msra.mxu0 0.0
    %757 = vmatprep.subr.mxu0 0.0
    %758 = vmatpush1.msra.mxu0 0.0
    %759 = vmatprep.subr.mxu0 0.0
    %760 = vmatpush1.msra.mxu0 0.0
    %761 = vmatprep.subr.mxu0 0.0
    %762 = vmatpush1.msra.mxu0 0.0
    %763 = vmatprep.subr.mxu0 0.0
    %764 = vmatpush1.msra.mxu0 0.0
    %765 = vmatprep.subr.mxu0 0.0
    %766 = vmatpush1.msra.mxu0 0.0
    %767 = vmatprep.subr.mxu0 0.0
    %768 = vmatpush1.msra.mxu0 0.0
    %769 = vmatprep.subr.mxu0 0.0
    %770 = vmatpush1.msra.mxu0 0.0
    %771 = vmatprep.subr.mxu0 0.0
    %772 = vmatpush1.msra.mxu0 0.0
    %773 = vmatprep.subr.mxu0 0.0
    %774 = vmatpush1.msra.mxu0 0.0
    %775 = vmatprep.subr.mxu0 0.0
    %776 = vmatpush1.msra.mxu0 0.0
    %777 = vmatprep.subr.mxu0 0.0
    %778 = vmatpush1.msra.mxu0 0.0
    %779 = vmatprep.mubr.f32.mxu0 0.0
    %780 = vmatmul.mubr.f32.gmra.mrb[0].mxu0 %v488
    %v781 = vpop.f32.mrb[0].mxu0
    %v782 = vadd.f32 %v713, %v781
    %v783 = vpop.f32.mrb[0].mxu0
    %784 = vmatprep.mubr.f32.mxu0 0.0
    %785 = vmatmul.mubr.f32.gmra.mrb[0].mxu0 %v493
    %v786 = vpop.f32.mrb[0].mxu0
    %v787 = vadd.f32 %v713, %v786
    %v788 = vpop.f32.mrb[0].mxu0
    %789 = vdwg.mxu0
    %v790 = vld [vmem:[%s3] sm:$0x1]
    %v791 = vld [vmem:[%s3 + $0x1] sm:$0x1]
    %v792 = vmul.f32 %v790, -1e+30
    %v793 = vmul.f32 %v791, -1e+30
    %v794 = vld [vmem:[#allocation7] sm:$0xff]
    %v795 = vld [vmem:[#allocation7 + $0x8] sm:$0xff]
    %v796 = vld [vmem:[#allocation7 + $0x10] sm:$0xff]
    %v797 = vld [vmem:[#allocation7 + $0x18] sm:$0xff]
    %v798 = vld [vmem:[#allocation7 + $0x20] sm:$0xff]
    %v799 = vld [vmem:[#allocation7 + $0x28] sm:$0xff]
    %v800 = vld [vmem:[#allocation7 + $0x30] sm:$0xff]
    %v801 = vld [vmem:[#allocation7 + $0x38] sm:$0xff]
    %v802 = vld [vmem:[#allocation7 + $0x40] sm:$0xff]
    %v803 = vld [vmem:[#allocation7 + $0x48] sm:$0xff]
    %v804 = vld [vmem:[#allocation7 + $0x50] sm:$0xff]
    %v805 = vld [vmem:[#allocation7 + $0x58] sm:$0xff]
    %v806 = vld [vmem:[#allocation7 + $0x60] sm:$0xff]
    %v807 = vld [vmem:[#allocation7 + $0x68] sm:$0xff]
    %v808 = vld [vmem:[#allocation7 + $0x70] sm:$0xff]
    %v809 = vld [vmem:[#allocation7 + $0x78] sm:$0xff]
    %vm810 = vcmask 130048
    %v812 = vsel %vm810, %v586, 0
    %v815 = vsel %vm810, %v684, 0
    %817 = vmatprep.subr.mxu0 0.0
    %818 = vmatpush1.xpose.msra.mxu0 %v815
    %819 = vmatprep.subr.mxu0 0.0
    %820 = vmatpush1.xpose.msra.mxu0 0.0
    %821 = vmatprep.subr.mxu0 0.0
    %822 = vmatpush1.xpose.msra.mxu0 0.0
    %823 = vmatprep.subr.mxu0 0.0
    %824 = vmatpush1.xpose.msra.mxu0 0.0
    %825 = vmatprep.subr.mxu0 0.0
    %826 = vmatpush1.xpose.msra.mxu0 0.0
    %827 = vmatprep.subr.mxu0 0.0
    %828 = vmatpush1.xpose.msra.mxu0 0.0
    %829 = vmatprep.subr.mxu0 0.0
    %830 = vmatpush1.xpose.msra.mxu0 0.0
    %831 = vmatprep.subr.mxu0 0.0
    %832 = vmatpush1.xpose.msra.mxu0 0.0
    %833 = vmatprep.subr.mxu0 0.0
    %834 = vmatpush1.xpose.msra.mxu0 0.0
    %835 = vmatprep.subr.mxu0 0.0
    %836 = vmatpush1.xpose.msra.mxu0 0.0
    %837 = vmatprep.subr.mxu0 0.0
    %838 = vmatpush1.xpose.msra.mxu0 0.0
    %839 = vmatprep.subr.mxu0 0.0
    %840 = vmatpush1.xpose.msra.mxu0 0.0
    %841 = vmatprep.subr.mxu0 0.0
    %842 = vmatpush1.xpose.msra.mxu0 0.0
    %843 = vmatprep.subr.mxu0 0.0
    %844 = vmatpush1.xpose.msra.mxu0 0.0
    %845 = vmatprep.subr.mxu0 0.0
    %846 = vmatpush1.xpose.msra.mxu0 0.0
    %847 = vmatprep.subr.mxu0 0.0
    %848 = vmatpush1.xpose.msra.mxu0 0.0
    %849 = vmatprep.subr.mxu0 0.0
    %850 = vmatpush1.xpose.msra.mxu0 0.0
    %851 = vmatprep.subr.mxu0 0.0
    %852 = vmatpush1.xpose.msra.mxu0 0.0
    %853 = vmatprep.subr.mxu0 0.0
    %854 = vmatpush1.xpose.msra.mxu0 0.0
    %855 = vmatprep.subr.mxu0 0.0
    %856 = vmatpush1.xpose.msra.mxu0 0.0
    %857 = vmatprep.subr.mxu0 0.0
    %858 = vmatpush1.xpose.msra.mxu0 0.0
    %859 = vmatprep.subr.mxu0 0.0
    %860 = vmatpush1.xpose.msra.mxu0 0.0
    %861 = vmatprep.subr.mxu0 0.0
    %862 = vmatpush1.xpose.msra.mxu0 0.0
    %863 = vmatprep.subr.mxu0 0.0
    %864 = vmatpush1.xpose.msra.mxu0 0.0
    %865 = vmatprep.subr.mxu0 0.0
    %866 = vmatpush1.xpose.msra.mxu0 0.0
    %867 = vmatprep.subr.mxu0 0.0
    %868 = vmatpush1.xpose.msra.mxu0 0.0
    %869 = vmatprep.subr.mxu0 0.0
    %870 = vmatpush1.xpose.msra.mxu0 0.0
    %871 = vmatprep.subr.mxu0 0.0
    %872 = vmatpush1.xpose.msra.mxu0 0.0
    %873 = vmatprep.subr.mxu0 0.0
    %874 = vmatpush1.xpose.msra.mxu0 0.0
    %875 = vmatprep.subr.mxu0 0.0
    %876 = vmatpush1.xpose.msra.mxu0 0.0
    %877 = vmatprep.subr.mxu0 0.0
    %878 = vmatpush1.xpose.msra.mxu0 0.0
    %879 = vmatprep.subr.mxu0 0.0
    %880 = vmatpush1.xpose.msra.mxu0 0.0
    %881 = vmatprep.mubr.f32.mxu0 0.0
    %882 = vmatmul.mubr.f32.gmra.mrb[0].mxu0 %v812
    %v883 = vpop.f32.mrb[0].mxu0
    %v884 = vadd.f32 0.0, %v883
    %v885 = vpop.f32.mrb[0].mxu0
    %886 = vdwg.mxu0
    %v888 = vsel %vm810, %v591, 0
    %v891 = vsel %vm810, %v689, 0
    %893 = vmatprep.subr.mxu0 0.0
    %894 = vmatpush1.xpose.msra.mxu0 %v891
    %895 = vmatprep.subr.mxu0 0.0
    %896 = vmatpush1.xpose.msra.mxu0 0.0
    %897 = vmatprep.subr.mxu0 0.0
    %898 = vmatpush1.xpose.msra.mxu0 0.0
    %899 = vmatprep.subr.mxu0 0.0
    %900 = vmatpush1.xpose.msra.mxu0 0.0
    %901 = vmatprep.subr.mxu0 0.0
    %902 = vmatpush1.xpose.msra.mxu0 0.0
    %903 = vmatprep.subr.mxu0 0.0
    %904 = vmatpush1.xpose.msra.mxu0 0.0
    %905 = vmatprep.subr.mxu0 0.0
    %906 = vmatpush1.xpose.msra.mxu0 0.0
    %907 = vmatprep.subr.mxu0 0.0
    %908 = vmatpush1.xpose.msra.mxu0 0.0
    %909 = vmatprep.subr.mxu0 0.0
    %910 = vmatpush1.xpose.msra.mxu0 0.0
    %911 = vmatprep.subr.mxu0 0.0
    %912 = vmatpush1.xpose.msra.mxu0 0.0
    %913 = vmatprep.subr.mxu0 0.0
    %914 = vmatpush1.xpose.msra.mxu0 0.0
    %915 = vmatprep.subr.mxu0 0.0
    %916 = vmatpush1.xpose.msra.mxu0 0.0
    %917 = vmatprep.subr.mxu0 0.0
    %918 = vmatpush1.xpose.msra.mxu0 0.0
    %919 = vmatprep.subr.mxu0 0.0
    %920 = vmatpush1.xpose.msra.mxu0 0.0
    %921 = vmatprep.subr.mxu0 0.0
    %922 = vmatpush1.xpose.msra.mxu0 0.0
    %923 = vmatprep.subr.mxu0 0.0
    %924 = vmatpush1.xpose.msra.mxu0 0.0
    %925 = vmatprep.subr.mxu0 0.0
    %926 = vmatpush1.xpose.msra.mxu0 0.0
    %927 = vmatprep.subr.mxu0 0.0
    %928 = vmatpush1.xpose.msra.mxu0 0.0
    %929 = vmatprep.subr.mxu0 0.0
    %930 = vmatpush1.xpose.msra.mxu0 0.0
    %931 = vmatprep.subr.mxu0 0.0
    %932 = vmatpush1.xpose.msra.mxu0 0.0
    %933 = vmatprep.subr.mxu0 0.0
    %934 = vmatpush1.xpose.msra.mxu0 0.0
    %935 = vmatprep.subr.mxu0 0.0
    %936 = vmatpush1.xpose.msra.mxu0 0.0
    %937 = vmatprep.subr.mxu0 0.0
    %938 = vmatpush1.xpose.msra.mxu0 0.0
    %939 = vmatprep.subr.mxu0 0.0
    %940 = vmatpush1.xpose.msra.mxu0 0.0
    %941 = vmatprep.subr.mxu0 0.0
    %942 = vmatpush1.xpose.msra.mxu0 0.0
    %943 = vmatprep.subr.mxu0 0.0
    %944 = vmatpush1.xpose.msra.mxu0 0.0
    %945 = vmatprep.subr.mxu0 0.0
    %946 = vmatpush1.xpose.msra.mxu0 0.0
    %947 = vmatprep.subr.mxu0 0.0
    %948 = vmatpush1.xpose.msra.mxu0 0.0
    %949 = vmatprep.subr.mxu0 0.0
    %950 = vmatpush1.xpose.msra.mxu0 0.0
    %951 = vmatprep.subr.mxu0 0.0
    %952 = vmatpush1.xpose.msra.mxu0 0.0
    %953 = vmatprep.subr.mxu0 0.0
    %954 = vmatpush1.xpose.msra.mxu0 0.0
    %955 = vmatprep.subr.mxu0 0.0
    %956 = vmatpush1.xpose.msra.mxu0 0.0
    %957 = vmatprep.mubr.f32.mxu0 0.0
    %958 = vmatmul.mubr.f32.gmra.mrb[0].mxu0 %v888
    %v959 = vpop.f32.mrb[0].mxu0
    %v960 = vadd.f32 0.0, %v959
    %v961 = vpop.f32.mrb[0].mxu0
    %962 = vdwg.mxu0
    %v963 = vmul.f32 %v884, 0.25
    %v964 = vmul.f32 %v960, 0.25
    %v967 = vlaneseq
    %v968 = vshrl.u32 %v967, 7
    %v969 = vsub.s32 0, %v968
    %v970 = vrot.slane %v792, %v969
    %v971 = vlaneseq
    %v972 = vshrl.u32 %v971, 7
    %v973 = vsub.s32 0, %v972
    %v974 = vrot.slane %v793, %v973
    %v977 = vadd.f32 %v963, %v970
    %v978 = vadd.f32 %v964, %v974
    %vm979 = vcmask 64512
    %v980 = vsel %vm979, %v977, -inf
    %981 = vmax.xlane.f32.xlu0 %v980
    %v982 = vpop.xlane.xlu0 %981
    %v983 = vsel %vm979, %v978, -inf
    %984 = vmax.xlane.f32.xlu0 %v983
    %v985 = vpop.xlane.xlu0 %984
    %v986 = vsub.f32 %v977, %v982
    %v987 = vsub.f32 %v978, %v985
    %v988 = vmul.f32 %v986, 1.442695
    %v989 = vpow.pop %v988
    %v990 = vmul.f32 %v987, 1.442695
    %v991 = vpow.pop %v990
    %v992 = vsel %vm979, %v989, 0.0
    %993 = vadd.xlane.f32.xlu0 %v992
    %v994 = vpop.xlane.xlu0 %993
    %v995 = vsel %vm979, %v991, 0.0
    %996 = vadd.xlane.f32.xlu0 %v995
    %v997 = vpop.xlane.xlu0 %996
    %v998 = vrcp.pop %v994
    %v999 = vrcp.pop %v997
    %v1000 = vmul.f32 %v989, %v998
    %v1001 = vmul.f32 %v991, %v999
    %v1003 = vsel %vm979, %v1000, 0
    %1005 = vmatprep.subr.mxu0 0.0
    %1006 = vmatpush1.msra.mxu0 %v782
    %1007 = vmatprep.subr.mxu0 0.0
    %1008 = vmatpush1.msra.mxu0 0.0
    %1009 = vmatprep.subr.mxu0 0.0
    %1010 = vmatpush1.msra.mxu0 0.0
    %1011 = vmatprep.subr.mxu0 0.0
    %1012 = vmatpush1.msra.mxu0 0.0
    %1013 = vmatprep.subr.mxu0 0.0
    %1014 = vmatpush1.msra.mxu0 0.0
    %1015 = vmatprep.subr.mxu0 0.0
    %1016 = vmatpush1.msra.mxu0 0.0
    %1017 = vmatprep.subr.mxu0 0.0
    %1018 = vmatpush1.msra.mxu0 0.0
    %1019 = vmatprep.subr.mxu0 0.0
    %1020 = vmatpush1.msra.mxu0 0.0
    %1021 = vmatprep.subr.mxu0 0.0
    %1022 = vmatpush1.msra.mxu0 0.0
    %1023 = vmatprep.subr.mxu0 0.0
    %1024 = vmatpush1.msra.mxu0 0.0
    %1025 = vmatprep.subr.mxu0 0.0
    %1026 = vmatpush1.msra.mxu0 0.0
    %1027 = vmatprep.subr.mxu0 0.0
    %1028 = vmatpush1.msra.mxu0 0.0
    %1029 = vmatprep.subr.mxu0 0.0
    %1030 = vmatpush1.msra.mxu0 0.0
    %1031 = vmatprep.subr.mxu0 0.0
    %1032 = vmatpush1.msra.mxu0 0.0
    %1033 = vmatprep.subr.mxu0 0.0
    %1034 = vmatpush1.msra.mxu0 0.0
    %1035 = vmatprep.subr.mxu0 0.0
    %1036 = vmatpush1.msra.mxu0 0.0
    %1037 = vmatprep.subr.mxu0 0.0
    %1038 = vmatpush1.msra.mxu0 0.0
    %1039 = vmatprep.subr.mxu0 0.0
    %1040 = vmatpush1.msra.mxu0 0.0
    %1041 = vmatprep.subr.mxu0 0.0
    %1042 = vmatpush1.msra.mxu0 0.0
    %1043 = vmatprep.subr.mxu0 0.0
    %1044 = vmatpush1.msra.mxu0 0.0
    %1045 = vmatprep.subr.mxu0 0.0
    %1046 = vmatpush1.msra.mxu0 0.0
    %1047 = vmatprep.subr.mxu0 0.0
    %1048 = vmatpush1.msra.mxu0 0.0
    %1049 = vmatprep.subr.mxu0 0.0
    %1050 = vmatpush1.msra.mxu0 0.0
    %1051 = vmatprep.subr.mxu0 0.0
    %1052 = vmatpush1.msra.mxu0 0.0
    %1053 = vmatprep.subr.mxu0 0.0
    %1054 = vmatpush1.msra.mxu0 0.0
    %1055 = vmatprep.subr.mxu0 0.0
    %1056 = vmatpush1.msra.mxu0 0.0
    %1057 = vmatprep.subr.mxu0 0.0
    %1058 = vmatpush1.msra.mxu0 0.0
    %1059 = vmatprep.subr.mxu0 0.0
    %1060 = vmatpush1.msra.mxu0 0.0
    %1061 = vmatprep.subr.mxu0 0.0
    %1062 = vmatpush1.msra.mxu0 0.0
    %1063 = vmatprep.subr.mxu0 0.0
    %1064 = vmatpush1.msra.mxu0 0.0
    %1065 = vmatprep.subr.mxu0 0.0
    %1066 = vmatpush1.msra.mxu0 0.0
    %1067 = vmatprep.subr.mxu0 0.0
    %1068 = vmatpush1.msra.mxu0 0.0
    %1069 = vmatprep.mubr.f32.mxu0 0.0
    %1070 = vmatmul.mubr.f32.gmra.mrb[0].mxu0 %v1003
    %v1071 = vpop.f32.mrb[0].mxu0
    %v1072 = vadd.f32 0.0, %v1071
    %v1073 = vpop.f32.mrb[0].mxu0
    %1074 = vdwg.mxu0
    %v1076 = vsel %vm979, %v1001, 0
    %1078 = vmatprep.subr.mxu0 0.0
    %1079 = vmatpush1.msra.mxu0 %v787
    %1080 = vmatprep.subr.mxu0 0.0
    %1081 = vmatpush1.msra.mxu0 0.0
    %1082 = vmatprep.subr.mxu0 0.0
    %1083 = vmatpush1.msra.mxu0 0.0
    %1084 = vmatprep.subr.mxu0 0.0
    %1085 = vmatpush1.msra.mxu0 0.0
    %1086 = vmatprep.subr.mxu0 0.0
    %1087 = vmatpush1.msra.mxu0 0.0
    %1088 = vmatprep.subr.mxu0 0.0
    %1089 = vmatpush1.msra.mxu0 0.0
    %1090 = vmatprep.subr.mxu0 0.0
    %1091 = vmatpush1.msra.mxu0 0.0
    %1092 = vmatprep.subr.mxu0 0.0
    %1093 = vmatpush1.msra.mxu0 0.0
    %1094 = vmatprep.subr.mxu0 0.0
    %1095 = vmatpush1.msra.mxu0 0.0
    %1096 = vmatprep.subr.mxu0 0.0
    %1097 = vmatpush1.msra.mxu0 0.0
    %1098 = vmatprep.subr.mxu0 0.0
    %1099 = vmatpush1.msra.mxu0 0.0
    %1100 = vmatprep.subr.mxu0 0.0
    %1101 = vmatpush1.msra.mxu0 0.0
    %1102 = vmatprep.subr.mxu0 0.0
    %1103 = vmatpush1.msra.mxu0 0.0
    %1104 = vmatprep.subr.mxu0 0.0
    %1105 = vmatpush1.msra.mxu0 0.0
    %1106 = vmatprep.subr.mxu0 0.0
    %1107 = vmatpush1.msra.mxu0 0.0
    %1108 = vmatprep.subr.mxu0 0.0
    %1109 = vmatpush1.msra.mxu0 0.0
    %1110 = vmatprep.subr.mxu0 0.0
    %1111 = vmatpush1.msra.mxu0 0.0
    %1112 = vmatprep.subr.mxu0 0.0
    %1113 = vmatpush1.msra.mxu0 0.0
    %1114 = vmatprep.subr.mxu0 0.0
    %1115 = vmatpush1.msra.mxu0 0.0
    %1116 = vmatprep.subr.mxu0 0.0
    %1117 = vmatpush1.msra.mxu0 0.0
    %1118 = vmatprep.subr.mxu0 0.0
    %1119 = vmatpush1.msra.mxu0 0.0
    %1120 = vmatprep.subr.mxu0 0.0
    %1121 = vmatpush1.msra.mxu0 0.0
    %1122 = vmatprep.subr.mxu0 0.0
    %1123 = vmatpush1.msra.mxu0 0.0
    %1124 = vmatprep.subr.mxu0 0.0
    %1125 = vmatpush1.msra.mxu0 0.0
    %1126 = vmatprep.subr.mxu0 0.0
    %1127 = vmatpush1.msra.mxu0 0.0
    %1128 = vmatprep.subr.mxu0 0.0
    %1129 = vmatpush1.msra.mxu0 0.0
    %1130 = vmatprep.subr.mxu0 0.0
    %1131 = vmatpush1.msra.mxu0 0.0
    %1132 = vmatprep.subr.mxu0 0.0
    %1133 = vmatpush1.msra.mxu0 0.0
    %1134 = vmatprep.subr.mxu0 0.0
    %1135 = vmatpush1.msra.mxu0 0.0
    %1136 = vmatprep.subr.mxu0 0.0
    %1137 = vmatpush1.msra.mxu0 0.0
    %1138 = vmatprep.subr.mxu0 0.0
    %1139 = vmatpush1.msra.mxu0 0.0
    %1140 = vmatprep.subr.mxu0 0.0
    %1141 = vmatpush1.msra.mxu0 0.0
    %1142 = vmatprep.mubr.f32.mxu0 0.0
    %1143 = vmatmul.mubr.f32.gmra.mrb[0].mxu0 %v1076
    %v1144 = vpop.f32.mrb[0].mxu0
    %v1145 = vadd.f32 0.0, %v1144
    %v1146 = vpop.f32.mrb[0].mxu0
    %1147 = vdwg.mxu0
    %1148 = vrot.lane.b32.xlu0 %v586, 112
    %v1149 = vpop.permute.xlu0 %1148
    %1150 = vrot.lane.b32.xlu0 %v684, 112
    %v1151 = vpop.permute.xlu0 %1150
    %v1152 = vsel %vm810, %v1149, 0
    %v1154 = vsel %vm810, %v1151, 0
    %1156 = vmatprep.subr.mxu0 0.0
    %1157 = vmatpush1.xpose.msra.mxu0 %v1154
    %1158 = vmatprep.subr.mxu0 0.0
    %1159 = vmatpush1.xpose.msra.mxu0 0.0
    %1160 = vmatprep.subr.mxu0 0.0
    %1161 = vmatpush1.xpose.msra.mxu0 0.0
    %1162 = vmatprep.subr.mxu0 0.0
    %1163 = vmatpush1.xpose.msra.mxu0 0.0
    %1164 = vmatprep.subr.mxu0 0.0
    %1165 = vmatpush1.xpose.msra.mxu0 0.0
    %1166 = vmatprep.subr.mxu0 0.0
    %1167 = vmatpush1.xpose.msra.mxu0 0.0
    %1168 = vmatprep.subr.mxu0 0.0
    %1169 = vmatpush1.xpose.msra.mxu0 0.0
    %1170 = vmatprep.subr.mxu0 0.0
    %1171 = vmatpush1.xpose.msra.mxu0 0.0
    %1172 = vmatprep.subr.mxu0 0.0
    %1173 = vmatpush1.xpose.msra.mxu0 0.0
    %1174 = vmatprep.subr.mxu0 0.0
    %1175 = vmatpush1.xpose.msra.mxu0 0.0
    %1176 = vmatprep.subr.mxu0 0.0
    %1177 = vmatpush1.xpose.msra.mxu0 0.0
    %1178 = vmatprep.subr.mxu0 0.0
    %1179 = vmatpush1.xpose.msra.mxu0 0.0
    %1180 = vmatprep.subr.mxu0 0.0
    %1181 = vmatpush1.xpose.msra.mxu0 0.0
    %1182 = vmatprep.subr.mxu0 0.0
    %1183 = vmatpush1.xpose.msra.mxu0 0.0
    %1184 = vmatprep.subr.mxu0 0.0
    %1185 = vmatpush1.xpose.msra.mxu0 0.0
    %1186 = vmatprep.subr.mxu0 0.0
    %1187 = vmatpush1.xpose.msra.mxu0 0.0
    %1188 = vmatprep.subr.mxu0 0.0
    %1189 = vmatpush1.xpose.msra.mxu0 0.0
    %1190 = vmatprep.subr.mxu0 0.0
    %1191 = vmatpush1.xpose.msra.mxu0 0.0
    %1192 = vmatprep.subr.mxu0 0.0
    %1193 = vmatpush1.xpose.msra.mxu0 0.0
    %1194 = vmatprep.subr.mxu0 0.0
    %1195 = vmatpush1.xpose.msra.mxu0 0.0
    %1196 = vmatprep.subr.mxu0 0.0
    %1197 = vmatpush1.xpose.msra.mxu0 0.0
    %1198 = vmatprep.subr.mxu0 0.0
    %1199 = vmatpush1.xpose.msra.mxu0 0.0
    %1200 = vmatprep.subr.mxu0 0.0
    %1201 = vmatpush1.xpose.msra.mxu0 0.0
    %1202 = vmatprep.subr.mxu0 0.0
    %1203 = vmatpush1.xpose.msra.mxu0 0.0
    %1204 = vmatprep.subr.mxu0 0.0
    %1205 = vmatpush1.xpose.msra.mxu0 0.0
    %1206 = vmatprep.subr.mxu0 0.0
    %1207 = vmatpush1.xpose.msra.mxu0 0.0
    %1208 = vmatprep.subr.mxu0 0.0
    %1209 = vmatpush1.xpose.msra.mxu0 0.0
    %1210 = vmatprep.subr.mxu0 0.0
    %1211 = vmatpush1.xpose.msra.mxu0 0.0
    %1212 = vmatprep.subr.mxu0 0.0
    %1213 = vmatpush1.xpose.msra.mxu0 0.0
    %1214 = vmatprep.subr.mxu0 0.0
    %1215 = vmatpush1.xpose.msra.mxu0 0.0
    %1216 = vmatprep.subr.mxu0 0.0
    %1217 = vmatpush1.xpose.msra.mxu0 0.0
    %1218 = vmatprep.subr.mxu0 0.0
    %1219 = vmatpush1.xpose.msra.mxu0 0.0
    %1220 = vmatprep.mubr.f32.mxu0 0.0
    %1221 = vmatmul.mubr.f32.gmra.mrb[0].mxu0 %v1152
    %v1222 = vpop.f32.mrb[0].mxu0
    %v1223 = vadd.f32 0.0, %v1222
    %v1224 = vpop.f32.mrb[0].mxu0
    %1225 = vdwg.mxu0
    %1226 = vrot.lane.b32.xlu0 %v591, 112
    %v1227 = vpop.permute.xlu0 %1226
    %1228 = vrot.lane.b32.xlu0 %v689, 112
    %v1229 = vpop.permute.xlu0 %1228
    %v1230 = vsel %vm810, %v1227, 0
    %v1232 = vsel %vm810, %v1229, 0
    %1234 = vmatprep.subr.mxu0 0.0
    %1235 = vmatpush1.xpose.msra.mxu0 %v1232
    %1236 = vmatprep.subr.mxu0 0.0
    %1237 = vmatpush1.xpose.msra.mxu0 0.0
    %1238 = vmatprep.subr.mxu0 0.0
    %1239 = vmatpush1.xpose.msra.mxu0 0.0
    %1240 = vmatprep.subr.mxu0 0.0
    %1241 = vmatpush1.xpose.msra.mxu0 0.0
    %1242 = vmatprep.subr.mxu0 0.0
    %1243 = vmatpush1.xpose.msra.mxu0 0.0
    %1244 = vmatprep.subr.mxu0 0.0
    %1245 = vmatpush1.xpose.msra.mxu0 0.0
    %1246 = vmatprep.subr.mxu0 0.0
    %1247 = vmatpush1.xpose.msra.mxu0 0.0
    %1248 = vmatprep.subr.mxu0 0.0
    %1249 = vmatpush1.xpose.msra.mxu0 0.0
    %1250 = vmatprep.subr.mxu0 0.0
    %1251 = vmatpush1.xpose.msra.mxu0 0.0
    %1252 = vmatprep.subr.mxu0 0.0
    %1253 = vmatpush1.xpose.msra.mxu0 0.0
    %1254 = vmatprep.subr.mxu0 0.0
    %1255 = vmatpush1.xpose.msra.mxu0 0.0
    %1256 = vmatprep.subr.mxu0 0.0
    %1257 = vmatpush1.xpose.msra.mxu0 0.0
    %1258 = vmatprep.subr.mxu0 0.0
    %1259 = vmatpush1.xpose.msra.mxu0 0.0
    %1260 = vmatprep.subr.mxu0 0.0
    %1261 = vmatpush1.xpose.msra.mxu0 0.0
    %1262 = vmatprep.subr.mxu0 0.0
    %1263 = vmatpush1.xpose.msra.mxu0 0.0
    %1264 = vmatprep.subr.mxu0 0.0
    %1265 = vmatpush1.xpose.msra.mxu0 0.0
    %1266 = vmatprep.subr.mxu0 0.0
    %1267 = vmatpush1.xpose.msra.mxu0 0.0
    %1268 = vmatprep.subr.mxu0 0.0
    %1269 = vmatpush1.xpose.msra.mxu0 0.0
    %1270 = vmatprep.subr.mxu0 0.0
    %1271 = vmatpush1.xpose.msra.mxu0 0.0
    %1272 = vmatprep.subr.mxu0 0.0
    %1273 = vmatpush1.xpose.msra.mxu0 0.0
    %1274 = vmatprep.subr.mxu0 0.0
    %1275 = vmatpush1.xpose.msra.mxu0 0.0
    %1276 = vmatprep.subr.mxu0 0.0
    %1277 = vmatpush1.xpose.msra.mxu0 0.0
    %1278 = vmatprep.subr.mxu0 0.0
    %1279 = vmatpush1.xpose.msra.mxu0 0.0
    %1280 = vmatprep.subr.mxu0 0.0
    %1281 = vmatpush1.xpose.msra.mxu0 0.0
    %1282 = vmatprep.subr.mxu0 0.0
    %1283 = vmatpush1.xpose.msra.mxu0 0.0
    %1284 = vmatprep.subr.mxu0 0.0
    %1285 = vmatpush1.xpose.msra.mxu0 0.0
    %1286 = vmatprep.subr.mxu0 0.0
    %1287 = vmatpush1.xpose.msra.mxu0 0.0
    %1288 = vmatprep.subr.mxu0 0.0
    %1289 = vmatpush1.xpose.msra.mxu0 0.0
    %1290 = vmatprep.subr.mxu0 0.0
    %1291 = vmatpush1.xpose.msra.mxu0 0.0
    %1292 = vmatprep.subr.mxu0 0.0
    %1293 = vmatpush1.xpose.msra.mxu0 0.0
    %1294 = vmatprep.subr.mxu0 0.0
    %1295 = vmatpush1.xpose.msra.mxu0 0.0
    %1296 = vmatprep.subr.mxu0 0.0
    %1297 = vmatpush1.xpose.msra.mxu0 0.0
    %1298 = vmatprep.mubr.f32.mxu0 0.0
    %1299 = vmatmul.mubr.f32.gmra.mrb[0].mxu0 %v1230
    %v1300 = vpop.f32.mrb[0].mxu0
    %v1301 = vadd.f32 0.0, %v1300
    %v1302 = vpop.f32.mrb[0].mxu0
    %1303 = vdwg.mxu0
    %v1304 = vmul.f32 %v1223, 0.25
    %v1305 = vmul.f32 %v1301, 0.25
    %v1306 = vadd.f32 %v1304, %v970
    %v1307 = vadd.f32 %v1305, %v974
    %v1308 = vsel %vm979, %v1306, -inf
    %1309 = vmax.xlane.f32.xlu0 %v1308
    %v1310 = vpop.xlane.xlu0 %1309
    %v1311 = vsel %vm979, %v1307, -inf
    %1312 = vmax.xlane.f32.xlu0 %v1311
    %v1313 = vpop.xlane.xlu0 %1312
    %v1314 = vsub.f32 %v1306, %v1310
    %v1315 = vsub.f32 %v1307, %v1313
    %v1316 = vmul.f32 %v1314, 1.442695
    %v1317 = vpow.pop %v1316
    %v1318 = vmul.f32 %v1315, 1.442695
    %v1319 = vpow.pop %v1318
    %v1320 = vsel %vm979, %v1317, 0.0
    %1321 = vadd.xlane.f32.xlu0 %v1320
    %v1322 = vpop.xlane.xlu0 %1321
    %v1323 = vsel %vm979, %v1319, 0.0
    %1324 = vadd.xlane.f32.xlu0 %v1323
    %v1325 = vpop.xlane.xlu0 %1324
    %v1326 = vrcp.pop %v1322
    %v1327 = vrcp.pop %v1325
    %v1328 = vmul.f32 %v1317, %v1326
    %v1329 = vmul.f32 %v1319, %v1327
    %1331 = vrot.lane.b32.xlu0 %v782, 112
    %v1332 = vpop.permute.xlu0 %1331
    %v1335 = vsel %vm979, %v1328, 0
    %1337 = vmatprep.subr.mxu0 0.0
    %1338 = vmatpush1.msra.mxu0 %v1332
    %1339 = vmatprep.subr.mxu0 0.0
    %1340 = vmatpush1.msra.mxu0 0.0
    %1341 = vmatprep.subr.mxu0 0.0
    %1342 = vmatpush1.msra.mxu0 0.0
    %1343 = vmatprep.subr.mxu0 0.0
    %1344 = vmatpush1.msra.mxu0 0.0
    %1345 = vmatprep.subr.mxu0 0.0
    %1346 = vmatpush1.msra.mxu0 0.0
    %1347 = vmatprep.subr.mxu0 0.0
    %1348 = vmatpush1.msra.mxu0 0.0
    %1349 = vmatprep.subr.mxu0 0.0
    %1350 = vmatpush1.msra.mxu0 0.0
    %1351 = vmatprep.subr.mxu0 0.0
    %1352 = vmatpush1.msra.mxu0 0.0
    %1353 = vmatprep.subr.mxu0 0.0
    %1354 = vmatpush1.msra.mxu0 0.0
    %1355 = vmatprep.subr.mxu0 0.0
    %1356 = vmatpush1.msra.mxu0 0.0
    %1357 = vmatprep.subr.mxu0 0.0
    %1358 = vmatpush1.msra.mxu0 0.0
    %1359 = vmatprep.subr.mxu0 0.0
    %1360 = vmatpush1.msra.mxu0 0.0
    %1361 = vmatprep.subr.mxu0 0.0
    %1362 = vmatpush1.msra.mxu0 0.0
    %1363 = vmatprep.subr.mxu0 0.0
    %1364 = vmatpush1.msra.mxu0 0.0
    %1365 = vmatprep.subr.mxu0 0.0
    %1366 = vmatpush1.msra.mxu0 0.0
    %1367 = vmatprep.subr.mxu0 0.0
    %1368 = vmatpush1.msra.mxu0 0.0
    %1369 = vmatprep.subr.mxu0 0.0
    %1370 = vmatpush1.msra.mxu0 0.0
    %1371 = vmatprep.subr.mxu0 0.0
    %1372 = vmatpush1.msra.mxu0 0.0
    %1373 = vmatprep.subr.mxu0 0.0
    %1374 = vmatpush1.msra.mxu0 0.0
    %1375 = vmatprep.subr.mxu0 0.0
    %1376 = vmatpush1.msra.mxu0 0.0
    %1377 = vmatprep.subr.mxu0 0.0
    %1378 = vmatpush1.msra.mxu0 0.0
    %1379 = vmatprep.subr.mxu0 0.0
    %1380 = vmatpush1.msra.mxu0 0.0
    %1381 = vmatprep.subr.mxu0 0.0
    %1382 = vmatpush1.msra.mxu0 0.0
    %1383 = vmatprep.subr.mxu0 0.0
    %1384 = vmatpush1.msra.mxu0 0.0
    %1385 = vmatprep.subr.mxu0 0.0
    %1386 = vmatpush1.msra.mxu0 0.0
    %1387 = vmatprep.subr.mxu0 0.0
    %1388 = vmatpush1.msra.mxu0 0.0
    %1389 = vmatprep.subr.mxu0 0.0
    %1390 = vmatpush1.msra.mxu0 0.0
    %1391 = vmatprep.subr.mxu0 0.0
    %1392 = vmatpush1.msra.mxu0 0.0
    %1393 = vmatprep.subr.mxu0 0.0
    %1394 = vmatpush1.msra.mxu0 0.0
    %1395 = vmatprep.subr.mxu0 0.0
    %1396 = vmatpush1.msra.mxu0 0.0
    %1397 = vmatprep.subr.mxu0 0.0
    %1398 = vmatpush1.msra.mxu0 0.0
    %1399 = vmatprep.subr.mxu0 0.0
    %1400 = vmatpush1.msra.mxu0 0.0
    %1401 = vmatprep.mubr.f32.mxu0 0.0
    %1402 = vmatmul.mubr.f32.gmra.mrb[0].mxu0 %v1335
    %v1403 = vpop.f32.mrb[0].mxu0
    %v1404 = vadd.f32 0.0, %v1403
    %v1405 = vpop.f32.mrb[0].mxu0
    %1406 = vdwg.mxu0
    %1408 = vrot.lane.b32.xlu0 %v787, 112
    %v1409 = vpop.permute.xlu0 %1408
    %v1412 = vsel %vm979, %v1329, 0
    %1414 = vmatprep.subr.mxu0 0.0
    %1415 = vmatpush1.msra.mxu0 %v1409
    %1416 = vmatprep.subr.mxu0 0.0
    %1417 = vmatpush1.msra.mxu0 0.0
    %1418 = vmatprep.subr.mxu0 0.0
    %1419 = vmatpush1.msra.mxu0 0.0
    %1420 = vmatprep.subr.mxu0 0.0
    %1421 = vmatpush1.msra.mxu0 0.0
    %1422 = vmatprep.subr.mxu0 0.0
    %1423 = vmatpush1.msra.mxu0 0.0
    %1424 = vmatprep.subr.mxu0 0.0
    %1425 = vmatpush1.msra.mxu0 0.0
    %1426 = vmatprep.subr.mxu0 0.0
    %1427 = vmatpush1.msra.mxu0 0.0
    %1428 = vmatprep.subr.mxu0 0.0
    %1429 = vmatpush1.msra.mxu0 0.0
    %1430 = vmatprep.subr.mxu0 0.0
    %1431 = vmatpush1.msra.mxu0 0.0
    %1432 = vmatprep.subr.mxu0 0.0
    %1433 = vmatpush1.msra.mxu0 0.0
    %1434 = vmatprep.subr.mxu0 0.0
    %1435 = vmatpush1.msra.mxu0 0.0
    %1436 = vmatprep.subr.mxu0 0.0
    %1437 = vmatpush1.msra.mxu0 0.0
    %1438 = vmatprep.subr.mxu0 0.0
    %1439 = vmatpush1.msra.mxu0 0.0
    %1440 = vmatprep.subr.mxu0 0.0
    %1441 = vmatpush1.msra.mxu0 0.0
    %1442 = vmatprep.subr.mxu0 0.0
    %1443 = vmatpush1.msra.mxu0 0.0
    %1444 = vmatprep.subr.mxu0 0.0
    %1445 = vmatpush1.msra.mxu0 0.0
    %1446 = vmatprep.subr.mxu0 0.0
    %1447 = vmatpush1.msra.mxu0 0.0
    %1448 = vmatprep.subr.mxu0 0.0
    %1449 = vmatpush1.msra.mxu0 0.0
    %1450 = vmatprep.subr.mxu0 0.0
    %1451 = vmatpush1.msra.mxu0 0.0
    %1452 = vmatprep.subr.mxu0 0.0
    %1453 = vmatpush1.msra.mxu0 0.0
    %1454 = vmatprep.subr.mxu0 0.0
    %1455 = vmatpush1.msra.mxu0 0.0
    %1456 = vmatprep.subr.mxu0 0.0
    %1457 = vmatpush1.msra.mxu0 0.0
    %1458 = vmatprep.subr.mxu0 0.0
    %1459 = vmatpush1.msra.mxu0 0.0
    %1460 = vmatprep.subr.mxu0 0.0
    %1461 = vmatpush1.msra.mxu0 0.0
    %1462 = vmatprep.subr.mxu0 0.0
    %1463 = vmatpush1.msra.mxu0 0.0
    %1464 = vmatprep.subr.mxu0 0.0
    %1465 = vmatpush1.msra.mxu0 0.0
    %1466 = vmatprep.subr.mxu0 0.0
    %1467 = vmatpush1.msra.mxu0 0.0
    %1468 = vmatprep.subr.mxu0 0.0
    %1469 = vmatpush1.msra.mxu0 0.0
    %1470 = vmatprep.subr.mxu0 0.0
    %1471 = vmatpush1.msra.mxu0 0.0
    %1472 = vmatprep.subr.mxu0 0.0
    %1473 = vmatpush1.msra.mxu0 0.0
    %1474 = vmatprep.subr.mxu0 0.0
    %1475 = vmatpush1.msra.mxu0 0.0
    %1476 = vmatprep.subr.mxu0 0.0
    %1477 = vmatpush1.msra.mxu0 0.0
    %1478 = vmatprep.mubr.f32.mxu0 0.0
    %1479 = vmatmul.mubr.f32.gmra.mrb[0].mxu0 %v1412
    %v1480 = vpop.f32.mrb[0].mxu0
    %v1481 = vadd.f32 0.0, %v1480
    %v1482 = vpop.f32.mrb[0].mxu0
    %1483 = vdwg.mxu0
    %v1485 = vsel %vm810, %v1404, 0
    %v1488 = vsel %vm810, %v1481, 0
    %1490 = vmatprep.subr.mxu0 0.0
    %1491 = vmatpush1.msra.mxu0 %v796
    %1492 = vmatprep.subr.mxu0 0.0
    %1493 = vmatpush1.msra.mxu0 %v797
    %1494 = vmatprep.subr.mxu0 0.0
    %1495 = vmatpush1.msra.mxu0 0.0
    %1496 = vmatprep.subr.mxu0 0.0
    %1497 = vmatpush1.msra.mxu0 0.0
    %1498 = vmatprep.subr.mxu0 0.0
    %1499 = vmatpush1.msra.mxu0 0.0
    %1500 = vmatprep.subr.mxu0 0.0
    %1501 = vmatpush1.msra.mxu0 0.0
    %1502 = vmatprep.subr.mxu0 0.0
    %1503 = vmatpush1.msra.mxu0 0.0
    %1504 = vmatprep.subr.mxu0 0.0
    %1505 = vmatpush1.msra.mxu0 0.0
    %1506 = vmatprep.subr.mxu0 0.0
    %1507 = vmatpush1.msra.mxu0 0.0
    %1508 = vmatprep.subr.mxu0 0.0
    %1509 = vmatpush1.msra.mxu0 0.0
    %1510 = vmatprep.subr.mxu0 0.0
    %1511 = vmatpush1.msra.mxu0 0.0
    %1512 = vmatprep.subr.mxu0 0.0
    %1513 = vmatpush1.msra.mxu0 0.0
    %1514 = vmatprep.subr.mxu0 0.0
    %1515 = vmatpush1.msra.mxu0 0.0
    %1516 = vmatprep.subr.mxu0 0.0
    %1517 = vmatpush1.msra.mxu0 0.0
    %1518 = vmatprep.subr.mxu0 0.0
    %1519 = vmatpush1.msra.mxu0 0.0
    %1520 = vmatprep.subr.mxu0 0.0
    %1521 = vmatpush1.msra.mxu0 0.0
    %1522 = vmatprep.subr.mxu0 0.0
    %1523 = vmatpush1.msra.mxu0 0.0
    %1524 = vmatprep.subr.mxu0 0.0
    %1525 = vmatpush1.msra.mxu0 0.0
    %1526 = vmatprep.subr.mxu0 0.0
    %1527 = vmatpush1.msra.mxu0 0.0
    %1528 = vmatprep.subr.mxu0 0.0
    %1529 = vmatpush1.msra.mxu0 0.0
    %1530 = vmatprep.subr.mxu0 0.0
    %1531 = vmatpush1.msra.mxu0 0.0
    %1532 = vmatprep.subr.mxu0 0.0
    %1533 = vmatpush1.msra.mxu0 0.0
    %1534 = vmatprep.subr.mxu0 0.0
    %1535 = vmatpush1.msra.mxu0 0.0
    %1536 = vmatprep.subr.mxu0 0.0
    %1537 = vmatpush1.msra.mxu0 0.0
    %1538 = vmatprep.subr.mxu0 0.0
    %1539 = vmatpush1.msra.mxu0 0.0
    %1540 = vmatprep.subr.mxu0 0.0
    %1541 = vmatpush1.msra.mxu0 0.0
    %1542 = vmatprep.subr.mxu0 0.0
    %1543 = vmatpush1.msra.mxu0 0.0
    %1544 = vmatprep.subr.mxu0 0.0
    %1545 = vmatpush1.msra.mxu0 0.0
    %1546 = vmatprep.subr.mxu0 0.0
    %1547 = vmatpush1.msra.mxu0 0.0
    %1548 = vmatprep.subr.mxu0 0.0
    %1549 = vmatpush1.msra.mxu0 0.0
    %1550 = vmatprep.subr.mxu0 0.0
    %1551 = vmatpush1.msra.mxu0 0.0
    %1552 = vmatprep.subr.mxu0 0.0
    %1553 = vmatpush1.msra.mxu0 0.0
    %1554 = vmatprep.mubr.f32.mxu0 0.0
    %1555 = vmatmul.mubr.f32.gmra.mrb[0].mxu0 %v1485
    %v1556 = vpop.f32.mrb[0].mxu0
    %v1557 = vadd.f32 0.0, %v1556
    %v1558 = vpop.f32.mrb[0].mxu0
    %1559 = vmatprep.mubr.f32.mxu0 0.0
    %1560 = vmatmul.mubr.f32.gmra.mrb[0].mxu0 %v1488
    %v1561 = vpop.f32.mrb[0].mxu0
    %v1562 = vadd.f32 0.0, %v1561
    %v1563 = vpop.f32.mrb[0].mxu0
    %1564 = vdwg.mxu0
    %v1566 = vsel %vm810, %v1072, 0
    %v1569 = vsel %vm810, %v1145, 0
    %1571 = vmatprep.subr.mxu0 0.0
    %1572 = vmatpush1.msra.mxu0 %v794
    %1573 = vmatprep.subr.mxu0 0.0
    %1574 = vmatpush1.msra.mxu0 %v795
    %1575 = vmatprep.subr.mxu0 0.0
    %1576 = vmatpush1.msra.mxu0 0.0
    %1577 = vmatprep.subr.mxu0 0.0
    %1578 = vmatpush1.msra.mxu0 0.0
    %1579 = vmatprep.subr.mxu0 0.0
    %1580 = vmatpush1.msra.mxu0 0.0
    %1581 = vmatprep.subr.mxu0 0.0
    %1582 = vmatpush1.msra.mxu0 0.0
    %1583 = vmatprep.subr.mxu0 0.0
    %1584 = vmatpush1.msra.mxu0 0.0
    %1585 = vmatprep.subr.mxu0 0.0
    %1586 = vmatpush1.msra.mxu0 0.0
    %1587 = vmatprep.subr.mxu0 0.0
    %1588 = vmatpush1.msra.mxu0 0.0
    %1589 = vmatprep.subr.mxu0 0.0
    %1590 = vmatpush1.msra.mxu0 0.0
    %1591 = vmatprep.subr.mxu0 0.0
    %1592 = vmatpush1.msra.mxu0 0.0
    %1593 = vmatprep.subr.mxu0 0.0
    %1594 = vmatpush1.msra.mxu0 0.0
    %1595 = vmatprep.subr.mxu0 0.0
    %1596 = vmatpush1.msra.mxu0 0.0
    %1597 = vmatprep.subr.mxu0 0.0
    %1598 = vmatpush1.msra.mxu0 0.0
    %1599 = vmatprep.subr.mxu0 0.0
    %1600 = vmatpush1.msra.mxu0 0.0
    %1601 = vmatprep.subr.mxu0 0.0
    %1602 = vmatpush1.msra.mxu0 0.0
    %1603 = vmatprep.subr.mxu0 0.0
    %1604 = vmatpush1.msra.mxu0 0.0
    %1605 = vmatprep.subr.mxu0 0.0
    %1606 = vmatpush1.msra.mxu0 0.0
    %1607 = vmatprep.subr.mxu0 0.0
    %1608 = vmatpush1.msra.mxu0 0.0
    %1609 = vmatprep.subr.mxu0 0.0
    %1610 = vmatpush1.msra.mxu0 0.0
    %1611 = vmatprep.subr.mxu0 0.0
    %1612 = vmatpush1.msra.mxu0 0.0
    %1613 = vmatprep.subr.mxu0 0.0
    %1614 = vmatpush1.msra.mxu0 0.0
    %1615 = vmatprep.subr.mxu0 0.0
    %1616 = vmatpush1.msra.mxu0 0.0
    %1617 = vmatprep.subr.mxu0 0.0
    %1618 = vmatpush1.msra.mxu0 0.0
    %1619 = vmatprep.subr.mxu0 0.0
    %1620 = vmatpush1.msra.mxu0 0.0
    %1621 = vmatprep.subr.mxu0 0.0
    %1622 = vmatpush1.msra.mxu0 0.0
    %1623 = vmatprep.subr.mxu0 0.0
    %1624 = vmatpush1.msra.mxu0 0.0
    %1625 = vmatprep.subr.mxu0 0.0
    %1626 = vmatpush1.msra.mxu0 0.0
    %1627 = vmatprep.subr.mxu0 0.0
    %1628 = vmatpush1.msra.mxu0 0.0
    %1629 = vmatprep.subr.mxu0 0.0
    %1630 = vmatpush1.msra.mxu0 0.0
    %1631 = vmatprep.subr.mxu0 0.0
    %1632 = vmatpush1.msra.mxu0 0.0
    %1633 = vmatprep.subr.mxu0 0.0
    %1634 = vmatpush1.msra.mxu0 0.0
    %1635 = vmatprep.mubr.f32.mxu0 0.0
    %1636 = vmatmul.mubr.f32.gmra.mrb[0].mxu0 %v1566
    %v1637 = vpop.f32.mrb[0].mxu0
    %v1638 = vadd.f32 %v1557, %v1637
    %v1639 = vpop.f32.mrb[0].mxu0
    %1640 = vmatprep.mubr.f32.mxu0 0.0
    %1641 = vmatmul.mubr.f32.gmra.mrb[0].mxu0 %v1569
    %v1642 = vpop.f32.mrb[0].mxu0
    %v1643 = vadd.f32 %v1562, %v1642
    %v1644 = vpop.f32.mrb[0].mxu0
    %1645 = vdwg.mxu0
    %1646 = vrot.lane.b32.xlu0 %v586, 96
    %v1647 = vpop.permute.xlu0 %1646
    %1648 = vrot.lane.b32.xlu0 %v684, 96
    %v1649 = vpop.permute.xlu0 %1648
    %v1650 = vsel %vm810, %v1647, 0
    %v1652 = vsel %vm810, %v1649, 0
    %1654 = vmatprep.subr.mxu0 0.0
    %1655 = vmatpush1.xpose.msra.mxu0 %v1652
    %1656 = vmatprep.subr.mxu0 0.0
    %1657 = vmatpush1.xpose.msra.mxu0 0.0
    %1658 = vmatprep.subr.mxu0 0.0
    %1659 = vmatpush1.xpose.msra.mxu0 0.0
    %1660 = vmatprep.subr.mxu0 0.0
    %1661 = vmatpush1.xpose.msra.mxu0 0.0
    %1662 = vmatprep.subr.mxu0 0.0
    %1663 = vmatpush1.xpose.msra.mxu0 0.0
    %1664 = vmatprep.subr.mxu0 0.0
    %1665 = vmatpush1.xpose.msra.mxu0 0.0
    %1666 = vmatprep.subr.mxu0 0.0
    %1667 = vmatpush1.xpose.msra.mxu0 0.0
    %1668 = vmatprep.subr.mxu0 0.0
    %1669 = vmatpush1.xpose.msra.mxu0 0.0
    %1670 = vmatprep.subr.mxu0 0.0
    %1671 = vmatpush1.xpose.msra.mxu0 0.0
    %1672 = vmatprep.subr.mxu0 0.0
    %1673 = vmatpush1.xpose.msra.mxu0 0.0
    %1674 = vmatprep.subr.mxu0 0.0
    %1675 = vmatpush1.xpose.msra.mxu0 0.0
    %1676 = vmatprep.subr.mxu0 0.0
    %1677 = vmatpush1.xpose.msra.mxu0 0.0
    %1678 = vmatprep.subr.mxu0 0.0
    %1679 = vmatpush1.xpose.msra.mxu0 0.0
    %1680 = vmatprep.subr.mxu0 0.0
    %1681 = vmatpush1.xpose.msra.mxu0 0.0
    %1682 = vmatprep.subr.mxu0 0.0
    %1683 = vmatpush1.xpose.msra.mxu0 0.0
    %1684 = vmatprep.subr.mxu0 0.0
    %1685 = vmatpush1.xpose.msra.mxu0 0.0
    %1686 = vmatprep.subr.mxu0 0.0
    %1687 = vmatpush1.xpose.msra.mxu0 0.0
    %1688 = vmatprep.subr.mxu0 0.0
    %1689 = vmatpush1.xpose.msra.mxu0 0.0
    %1690 = vmatprep.subr.mxu0 0.0
    %1691 = vmatpush1.xpose.msra.mxu0 0.0
    %1692 = vmatprep.subr.mxu0 0.0
    %1693 = vmatpush1.xpose.msra.mxu0 0.0
    %1694 = vmatprep.subr.mxu0 0.0
    %1695 = vmatpush1.xpose.msra.mxu0 0.0
    %1696 = vmatprep.subr.mxu0 0.0
    %1697 = vmatpush1.xpose.msra.mxu0 0.0
    %1698 = vmatprep.subr.mxu0 0.0
    %1699 = vmatpush1.xpose.msra.mxu0 0.0
    %1700 = vmatprep.subr.mxu0 0.0
    %1701 = vmatpush1.xpose.msra.mxu0 0.0
    %1702 = vmatprep.subr.mxu0 0.0
    %1703 = vmatpush1.xpose.msra.mxu0 0.0
    %1704 = vmatprep.subr.mxu0 0.0
    %1705 = vmatpush1.xpose.msra.mxu0 0.0
    %1706 = vmatprep.subr.mxu0 0.0
    %1707 = vmatpush1.xpose.msra.mxu0 0.0
    %1708 = vmatprep.subr.mxu0 0.0
    %1709 = vmatpush1.xpose.msra.mxu0 0.0
    %1710 = vmatprep.subr.mxu0 0.0
    %1711 = vmatpush1.xpose.msra.mxu0 0.0
    %1712 = vmatprep.subr.mxu0 0.0
    %1713 = vmatpush1.xpose.msra.mxu0 0.0
    %1714 = vmatprep.subr.mxu0 0.0
    %1715 = vmatpush1.xpose.msra.mxu0 0.0
    %1716 = vmatprep.subr.mxu0 0.0
    %1717 = vmatpush1.xpose.msra.mxu0 0.0
    %1718 = vmatprep.mubr.f32.mxu0 0.0
    %1719 = vmatmul.mubr.f32.gmra.mrb[0].mxu0 %v1650
    %v1720 = vpop.f32.mrb[0].mxu0
    %v1721 = vadd.f32 0.0, %v1720
    %v1722 = vpop.f32.mrb[0].mxu0
    %1723 = vdwg.mxu0
    %1724 = vrot.lane.b32.xlu0 %v591, 96
    %v1725 = vpop.permute.xlu0 %1724
    %1726 = vrot.lane.b32.xlu0 %v689, 96
    %v1727 = vpop.permute.xlu0 %1726
    %v1728 = vsel %vm810, %v1725, 0
    %v1730 = vsel %vm810, %v1727, 0
    %1732 = vmatprep.subr.mxu0 0.0
    %1733 = vmatpush1.xpose.msra.mxu0 %v1730
    %1734 = vmatprep.subr.mxu0 0.0
    %1735 = vmatpush1.xpose.msra.mxu0 0.0
    %1736 = vmatprep.subr.mxu0 0.0
    %1737 = vmatpush1.xpose.msra.mxu0 0.0
    %1738 = vmatprep.subr.mxu0 0.0
    %1739 = vmatpush1.xpose.msra.mxu0 0.0
    %1740 = vmatprep.subr.mxu0 0.0
    %1741 = vmatpush1.xpose.msra.mxu0 0.0
    %1742 = vmatprep.subr.mxu0 0.0
    %1743 = vmatpush1.xpose.msra.mxu0 0.0
    %1744 = vmatprep.subr.mxu0 0.0
    %1745 = vmatpush1.xpose.msra.mxu0 0.0
    %1746 = vmatprep.subr.mxu0 0.0
    %1747 = vmatpush1.xpose.msra.mxu0 0.0
    %1748 = vmatprep.subr.mxu0 0.0
    %1749 = vmatpush1.xpose.msra.mxu0 0.0
    %1750 = vmatprep.subr.mxu0 0.0
    %1751 = vmatpush1.xpose.msra.mxu0 0.0
    %1752 = vmatprep.subr.mxu0 0.0
    %1753 = vmatpush1.xpose.msra.mxu0 0.0
    %1754 = vmatprep.subr.mxu0 0.0
    %1755 = vmatpush1.xpose.msra.mxu0 0.0
    %1756 = vmatprep.subr.mxu0 0.0
    %1757 = vmatpush1.xpose.msra.mxu0 0.0
    %1758 = vmatprep.subr.mxu0 0.0
    %1759 = vmatpush1.xpose.msra.mxu0 0.0
    %1760 = vmatprep.subr.mxu0 0.0
    %1761 = vmatpush1.xpose.msra.mxu0 0.0
    %1762 = vmatprep.subr.mxu0 0.0
    %1763 = vmatpush1.xpose.msra.mxu0 0.0
    %1764 = vmatprep.subr.mxu0 0.0
    %1765 = vmatpush1.xpose.msra.mxu0 0.0
    %1766 = vmatprep.subr.mxu0 0.0
    %1767 = vmatpush1.xpose.msra.mxu0 0.0
    %1768 = vmatprep.subr.mxu0 0.0
    %1769 = vmatpush1.xpose.msra.mxu0 0.0
    %1770 = vmatprep.subr.mxu0 0.0
    %1771 = vmatpush1.xpose.msra.mxu0 0.0
    %1772 = vmatprep.subr.mxu0 0.0
    %1773 = vmatpush1.xpose.msra.mxu0 0.0
    %1774 = vmatprep.subr.mxu0 0.0
    %1775 = vmatpush1.xpose.msra.mxu0 0.0
    %1776 = vmatprep.subr.mxu0 0.0
    %1777 = vmatpush1.xpose.msra.mxu0 0.0
    %1778 = vmatprep.subr.mxu0 0.0
    %1779 = vmatpush1.xpose.msra.mxu0 0.0
    %1780 = vmatprep.subr.mxu0 0.0
    %1781 = vmatpush1.xpose.msra.mxu0 0.0
    %1782 = vmatprep.subr.mxu0 0.0
    %1783 = vmatpush1.xpose.msra.mxu0 0.0
    %1784 = vmatprep.subr.mxu0 0.0
    %1785 = vmatpush1.xpose.msra.mxu0 0.0
    %1786 = vmatprep.subr.mxu0 0.0
    %1787 = vmatpush1.xpose.msra.mxu0 0.0
    %1788 = vmatprep.subr.mxu0 0.0
    %1789 = vmatpush1.xpose.msra.mxu0 0.0
    %1790 = vmatprep.subr.mxu0 0.0
    %1791 = vmatpush1.xpose.msra.mxu0 0.0
    %1792 = vmatprep.subr.mxu0 0.0
    %1793 = vmatpush1.xpose.msra.mxu0 0.0
    %1794 = vmatprep.subr.mxu0 0.0
    %1795 = vmatpush1.xpose.msra.mxu0 0.0
    %1796 = vmatprep.mubr.f32.mxu0 0.0
    %1797 = vmatmul.mubr.f32.gmra.mrb[0].mxu0 %v1728
    %v1798 = vpop.f32.mrb[0].mxu0
    %v1799 = vadd.f32 0.0, %v1798
    %v1800 = vpop.f32.mrb[0].mxu0
    %1801 = vdwg.mxu0
    %v1802 = vmul.f32 %v1721, 0.25
    %v1803 = vmul.f32 %v1799, 0.25
    %v1804 = vadd.f32 %v1802, %v970
    %v1805 = vadd.f32 %v1803, %v974
    %v1806 = vsel %vm979, %v1804, -inf
    %1807 = vmax.xlane.f32.xlu0 %v1806
    %v1808 = vpop.xlane.xlu0 %1807
    %v1809 = vsel %vm979, %v1805, -inf
    %1810 = vmax.xlane.f32.xlu0 %v1809
    %v1811 = vpop.xlane.xlu0 %1810
    %v1812 = vsub.f32 %v1804, %v1808
    %v1813 = vsub.f32 %v1805, %v1811
    %v1814 = vmul.f32 %v1812, 1.442695
    %v1815 = vpow.pop %v1814
    %v1816 = vmul.f32 %v1813, 1.442695
    %v1817 = vpow.pop %v1816
    %v1818 = vsel %vm979, %v1815, 0.0
    %1819 = vadd.xlane.f32.xlu0 %v1818
    %v1820 = vpop.xlane.xlu0 %1819
    %v1821 = vsel %vm979, %v1817, 0.0
    %1822 = vadd.xlane.f32.xlu0 %v1821
    %v1823 = vpop.xlane.xlu0 %1822
    %v1824 = vrcp.pop %v1820
    %v1825 = vrcp.pop %v1823
    %v1826 = vmul.f32 %v1815, %v1824
    %v1827 = vmul.f32 %v1817, %v1825
    %1828 = vrot.lane.b32.xlu0 %v782, 96
    %v1829 = vpop.permute.xlu0 %1828
    %v1832 = vsel %vm979, %v1826, 0
    %1834 = vmatprep.subr.mxu0 0.0
    %1835 = vmatpush1.msra.mxu0 %v1829
    %1836 = vmatprep.subr.mxu0 0.0
    %1837 = vmatpush1.msra.mxu0 0.0
    %1838 = vmatprep.subr.mxu0 0.0
    %1839 = vmatpush1.msra.mxu0 0.0
    %1840 = vmatprep.subr.mxu0 0.0
    %1841 = vmatpush1.msra.mxu0 0.0
    %1842 = vmatprep.subr.mxu0 0.0
    %1843 = vmatpush1.msra.mxu0 0.0
    %1844 = vmatprep.subr.mxu0 0.0
    %1845 = vmatpush1.msra.mxu0 0.0
    %1846 = vmatprep.subr.mxu0 0.0
    %1847 = vmatpush1.msra.mxu0 0.0
    %1848 = vmatprep.subr.mxu0 0.0
    %1849 = vmatpush1.msra.mxu0 0.0
    %1850 = vmatprep.subr.mxu0 0.0
    %1851 = vmatpush1.msra.mxu0 0.0
    %1852 = vmatprep.subr.mxu0 0.0
    %1853 = vmatpush1.msra.mxu0 0.0
    %1854 = vmatprep.subr.mxu0 0.0
    %1855 = vmatpush1.msra.mxu0 0.0
    %1856 = vmatprep.subr.mxu0 0.0
    %1857 = vmatpush1.msra.mxu0 0.0
    %1858 = vmatprep.subr.mxu0 0.0
    %1859 = vmatpush1.msra.mxu0 0.0
    %1860 = vmatprep.subr.mxu0 0.0
    %1861 = vmatpush1.msra.mxu0 0.0
    %1862 = vmatprep.subr.mxu0 0.0
    %1863 = vmatpush1.msra.mxu0 0.0
    %1864 = vmatprep.subr.mxu0 0.0
    %1865 = vmatpush1.msra.mxu0 0.0
    %1866 = vmatprep.subr.mxu0 0.0
    %1867 = vmatpush1.msra.mxu0 0.0
    %1868 = vmatprep.subr.mxu0 0.0
    %1869 = vmatpush1.msra.mxu0 0.0
    %1870 = vmatprep.subr.mxu0 0.0
    %1871 = vmatpush1.msra.mxu0 0.0
    %1872 = vmatprep.subr.mxu0 0.0
    %1873 = vmatpush1.msra.mxu0 0.0
    %1874 = vmatprep.subr.mxu0 0.0
    %1875 = vmatpush1.msra.mxu0 0.0
    %1876 = vmatprep.subr.mxu0 0.0
    %1877 = vmatpush1.msra.mxu0 0.0
    %1878 = vmatprep.subr.mxu0 0.0
    %1879 = vmatpush1.msra.mxu0 0.0
    %1880 = vmatprep.subr.mxu0 0.0
    %1881 = vmatpush1.msra.mxu0 0.0
    %1882 = vmatprep.subr.mxu0 0.0
    %1883 = vmatpush1.msra.mxu0 0.0
    %1884 = vmatprep.subr.mxu0 0.0
    %1885 = vmatpush1.msra.mxu0 0.0
    %1886 = vmatprep.subr.mxu0 0.0
    %1887 = vmatpush1.msra.mxu0 0.0
    %1888 = vmatprep.subr.mxu0 0.0
    %1889 = vmatpush1.msra.mxu0 0.0
    %1890 = vmatprep.subr.mxu0 0.0
    %1891 = vmatpush1.msra.mxu0 0.0
    %1892 = vmatprep.subr.mxu0 0.0
    %1893 = vmatpush1.msra.mxu0 0.0
    %1894 = vmatprep.subr.mxu0 0.0
    %1895 = vmatpush1.msra.mxu0 0.0
    %1896 = vmatprep.subr.mxu0 0.0
    %1897 = vmatpush1.msra.mxu0 0.0
    %1898 = vmatprep.mubr.f32.mxu0 0.0
    %1899 = vmatmul.mubr.f32.gmra.mrb[0].mxu0 %v1832
    %v1900 = vpop.f32.mrb[0].mxu0
    %v1901 = vadd.f32 0.0, %v1900
    %v1902 = vpop.f32.mrb[0].mxu0
    %1903 = vdwg.mxu0
    %1904 = vrot.lane.b32.xlu0 %v787, 96
    %v1905 = vpop.permute.xlu0 %1904
    %v1908 = vsel %vm979, %v1827, 0
    %1910 = vmatprep.subr.mxu0 0.0
    %1911 = vmatpush1.msra.mxu0 %v1905
    %1912 = vmatprep.subr.mxu0 0.0
    %1913 = vmatpush1.msra.mxu0 0.0
    %1914 = vmatprep.subr.mxu0 0.0
    %1915 = vmatpush1.msra.mxu0 0.0
    %1916 = vmatprep.subr.mxu0 0.0
    %1917 = vmatpush1.msra.mxu0 0.0
    %1918 = vmatprep.subr.mxu0 0.0
    %1919 = vmatpush1.msra.mxu0 0.0
    %1920 = vmatprep.subr.mxu0 0.0
    %1921 = vmatpush1.msra.mxu0 0.0
    %1922 = vmatprep.subr.mxu0 0.0
    %1923 = vmatpush1.msra.mxu0 0.0
    %1924 = vmatprep.subr.mxu0 0.0
    %1925 = vmatpush1.msra.mxu0 0.0
    %1926 = vmatprep.subr.mxu0 0.0
    %1927 = vmatpush1.msra.mxu0 0.0
    %1928 = vmatprep.subr.mxu0 0.0
    %1929 = vmatpush1.msra.mxu0 0.0
    %1930 = vmatprep.subr.mxu0 0.0
    %1931 = vmatpush1.msra.mxu0 0.0
    %1932 = vmatprep.subr.mxu0 0.0
    %1933 = vmatpush1.msra.mxu0 0.0
    %1934 = vmatprep.subr.mxu0 0.0
    %1935 = vmatpush1.msra.mxu0 0.0
    %1936 = vmatprep.subr.mxu0 0.0
    %1937 = vmatpush1.msra.mxu0 0.0
    %1938 = vmatprep.subr.mxu0 0.0
    %1939 = vmatpush1.msra.mxu0 0.0
    %1940 = vmatprep.subr.mxu0 0.0
    %1941 = vmatpush1.msra.mxu0 0.0
    %1942 = vmatprep.subr.mxu0 0.0
    %1943 = vmatpush1.msra.mxu0 0.0
    %1944 = vmatprep.subr.mxu0 0.0
    %1945 = vmatpush1.msra.mxu0 0.0
    %1946 = vmatprep.subr.mxu0 0.0
    %1947 = vmatpush1.msra.mxu0 0.0
    %1948 = vmatprep.subr.mxu0 0.0
    %1949 = vmatpush1.msra.mxu0 0.0
    %1950 = vmatprep.subr.mxu0 0.0
    %1951 = vmatpush1.msra.mxu0 0.0
    %1952 = vmatprep.subr.mxu0 0.0
    %1953 = vmatpush1.msra.mxu0 0.0
    %1954 = vmatprep.subr.mxu0 0.0
    %1955 = vmatpush1.msra.mxu0 0.0
    %1956 = vmatprep.subr.mxu0 0.0
    %1957 = vmatpush1.msra.mxu0 0.0
    %1958 = vmatprep.subr.mxu0 0.0
    %1959 = vmatpush1.msra.mxu0 0.0
    %1960 = vmatprep.subr.mxu0 0.0
    %1961 = vmatpush1.msra.mxu0 0.0
    %1962 = vmatprep.subr.mxu0 0.0
    %1963 = vmatpush1.msra.mxu0 0.0
    %1964 = vmatprep.subr.mxu0 0.0
    %1965 = vmatpush1.msra.mxu0 0.0
    %1966 = vmatprep.subr.mxu0 0.0
    %1967 = vmatpush1.msra.mxu0 0.0
    %1968 = vmatprep.subr.mxu0 0.0
    %1969 = vmatpush1.msra.mxu0 0.0
    %1970 = vmatprep.subr.mxu0 0.0
    %1971 = vmatpush1.msra.mxu0 0.0
    %1972 = vmatprep.subr.mxu0 0.0
    %1973 = vmatpush1.msra.mxu0 0.0
    %1974 = vmatprep.mubr.f32.mxu0 0.0
    %1975 = vmatmul.mubr.f32.gmra.mrb[0].mxu0 %v1908
    %v1976 = vpop.f32.mrb[0].mxu0
    %v1977 = vadd.f32 0.0, %v1976
    %v1978 = vpop.f32.mrb[0].mxu0
    %1979 = vdwg.mxu0
    %v1981 = vsel %vm810, %v1901, 0
    %v1984 = vsel %vm810, %v1977, 0
    %1986 = vmatprep.subr.mxu0 0.0
    %1987 = vmatpush1.msra.mxu0 %v798
    %1988 = vmatprep.subr.mxu0 0.0
    %1989 = vmatpush1.msra.mxu0 %v799
    %1990 = vmatprep.subr.mxu0 0.0
    %1991 = vmatpush1.msra.mxu0 0.0
    %1992 = vmatprep.subr.mxu0 0.0
    %1993 = vmatpush1.msra.mxu0 0.0
    %1994 = vmatprep.subr.mxu0 0.0
    %1995 = vmatpush1.msra.mxu0 0.0
    %1996 = vmatprep.subr.mxu0 0.0
    %1997 = vmatpush1.msra.mxu0 0.0
    %1998 = vmatprep.subr.mxu0 0.0
    %1999 = vmatpush1.msra.mxu0 0.0
    %2000 = vmatprep.subr.mxu0 0.0
    %2001 = vmatpush1.msra.mxu0 0.0
    %2002 = vmatprep.subr.mxu0 0.0
    %2003 = vmatpush1.msra.mxu0 0.0
    %2004 = vmatprep.subr.mxu0 0.0
    %2005 = vmatpush1.msra.mxu0 0.0
    %2006 = vmatprep.subr.mxu0 0.0
    %2007 = vmatpush1.msra.mxu0 0.0
    %2008 = vmatprep.subr.mxu0 0.0
    %2009 = vmatpush1.msra.mxu0 0.0
    %2010 = vmatprep.subr.mxu0 0.0
    %2011 = vmatpush1.msra.mxu0 0.0
    %2012 = vmatprep.subr.mxu0 0.0
    %2013 = vmatpush1.msra.mxu0 0.0
    %2014 = vmatprep.subr.mxu0 0.0
    %2015 = vmatpush1.msra.mxu0 0.0
    %2016 = vmatprep.subr.mxu0 0.0
    %2017 = vmatpush1.msra.mxu0 0.0
    %2018 = vmatprep.subr.mxu0 0.0
    %2019 = vmatpush1.msra.mxu0 0.0
    %2020 = vmatprep.subr.mxu0 0.0
    %2021 = vmatpush1.msra.mxu0 0.0
    %2022 = vmatprep.subr.mxu0 0.0
    %2023 = vmatpush1.msra.mxu0 0.0
    %2024 = vmatprep.subr.mxu0 0.0
    %2025 = vmatpush1.msra.mxu0 0.0
    %2026 = vmatprep.subr.mxu0 0.0
    %2027 = vmatpush1.msra.mxu0 0.0
    %2028 = vmatprep.subr.mxu0 0.0
    %2029 = vmatpush1.msra.mxu0 0.0
    %2030 = vmatprep.subr.mxu0 0.0
    %2031 = vmatpush1.msra.mxu0 0.0
    %2032 = vmatprep.subr.mxu0 0.0
    %2033 = vmatpush1.msra.mxu0 0.0
    %2034 = vmatprep.subr.mxu0 0.0
    %2035 = vmatpush1.msra.mxu0 0.0
    %2036 = vmatprep.subr.mxu0 0.0
    %2037 = vmatpush1.msra.mxu0 0.0
    %2038 = vmatprep.subr.mxu0 0.0
    %2039 = vmatpush1.msra.mxu0 0.0
    %2040 = vmatprep.subr.mxu0 0.0
    %2041 = vmatpush1.msra.mxu0 0.0
    %2042 = vmatprep.subr.mxu0 0.0
    %2043 = vmatpush1.msra.mxu0 0.0
    %2044 = vmatprep.subr.mxu0 0.0
    %2045 = vmatpush1.msra.mxu0 0.0
    %2046 = vmatprep.subr.mxu0 0.0
    %2047 = vmatpush1.msra.mxu0 0.0
    %2048 = vmatprep.subr.mxu0 0.0
    %2049 = vmatpush1.msra.mxu0 0.0
    %2050 = vmatprep.mubr.f32.mxu0 0.0
    %2051 = vmatmul.mubr.f32.gmra.mrb[0].mxu0 %v1981
    %v2052 = vpop.f32.mrb[0].mxu0
    %v2053 = vadd.f32 0.0, %v2052
    %v2054 = vpop.f32.mrb[0].mxu0
    %2055 = vmatprep.mubr.f32.mxu0 0.0
    %2056 = vmatmul.mubr.f32.gmra.mrb[0].mxu0 %v1984
    %v2057 = vpop.f32.mrb[0].mxu0
    %v2058 = vadd.f32 0.0, %v2057
    %v2059 = vpop.f32.mrb[0].mxu0
    %2060 = vdwg.mxu0
    %v2061 = vadd.f32 %v1638, %v2053
    %v2062 = vadd.f32 %v1643, %v2058
    %2063 = vrot.lane.b32.xlu0 %v586, 80
    %v2064 = vpop.permute.xlu0 %2063
    %2065 = vrot.lane.b32.xlu0 %v684, 80
    %v2066 = vpop.permute.xlu0 %2065
    %v2067 = vsel %vm810, %v2064, 0
    %v2069 = vsel %vm810, %v2066, 0
    %2071 = vmatprep.subr.mxu0 0.0
    %2072 = vmatpush1.xpose.msra.mxu0 %v2069
    %2073 = vmatprep.subr.mxu0 0.0
    %2074 = vmatpush1.xpose.msra.mxu0 0.0
    %2075 = vmatprep.subr.mxu0 0.0
    %2076 = vmatpush1.xpose.msra.mxu0 0.0
    %2077 = vmatprep.subr.mxu0 0.0
    %2078 = vmatpush1.xpose.msra.mxu0 0.0
    %2079 = vmatprep.subr.mxu0 0.0
    %2080 = vmatpush1.xpose.msra.mxu0 0.0
    %2081 = vmatprep.subr.mxu0 0.0
    %2082 = vmatpush1.xpose.msra.mxu0 0.0
    %2083 = vmatprep.subr.mxu0 0.0
    %2084 = vmatpush1.xpose.msra.mxu0 0.0
    %2085 = vmatprep.subr.mxu0 0.0
    %2086 = vmatpush1.xpose.msra.mxu0 0.0
    %2087 = vmatprep.subr.mxu0 0.0
    %2088 = vmatpush1.xpose.msra.mxu0 0.0
    %2089 = vmatprep.subr.mxu0 0.0
    %2090 = vmatpush1.xpose.msra.mxu0 0.0
    %2091 = vmatprep.subr.mxu0 0.0
    %2092 = vmatpush1.xpose.msra.mxu0 0.0
    %2093 = vmatprep.subr.mxu0 0.0
    %2094 = vmatpush1.xpose.msra.mxu0 0.0
    %2095 = vmatprep.subr.mxu0 0.0
    %2096 = vmatpush1.xpose.msra.mxu0 0.0
    %2097 = vmatprep.subr.mxu0 0.0
    %2098 = vmatpush1.xpose.msra.mxu0 0.0
    %2099 = vmatprep.subr.mxu0 0.0
    %2100 = vmatpush1.xpose.msra.mxu0 0.0
    %2101 = vmatprep.subr.mxu0 0.0
    %2102 = vmatpush1.xpose.msra.mxu0 0.0
    %2103 = vmatprep.subr.mxu0 0.0
    %2104 = vmatpush1.xpose.msra.mxu0 0.0
    %2105 = vmatprep.subr.mxu0 0.0
    %2106 = vmatpush1.xpose.msra.mxu0 0.0
    %2107 = vmatprep.subr.mxu0 0.0
    %2108 = vmatpush1.xpose.msra.mxu0 0.0
    %2109 = vmatprep.subr.mxu0 0.0
    %2110 = vmatpush1.xpose.msra.mxu0 0.0
    %2111 = vmatprep.subr.mxu0 0.0
    %2112 = vmatpush1.xpose.msra.mxu0 0.0
    %2113 = vmatprep.subr.mxu0 0.0
    %2114 = vmatpush1.xpose.msra.mxu0 0.0
    %2115 = vmatprep.subr.mxu0 0.0
    %2116 = vmatpush1.xpose.msra.mxu0 0.0
    %2117 = vmatprep.subr.mxu0 0.0
    %2118 = vmatpush1.xpose.msra.mxu0 0.0
    %2119 = vmatprep.subr.mxu0 0.0
    %2120 = vmatpush1.xpose.msra.mxu0 0.0
    %2121 = vmatprep.subr.mxu0 0.0
    %2122 = vmatpush1.xpose.msra.mxu0 0.0
    %2123 = vmatprep.subr.mxu0 0.0
    %2124 = vmatpush1.xpose.msra.mxu0 0.0
    %2125 = vmatprep.subr.mxu0 0.0
    %2126 = vmatpush1.xpose.msra.mxu0 0.0
    %2127 = vmatprep.subr.mxu0 0.0
    %2128 = vmatpush1.xpose.msra.mxu0 0.0
    %2129 = vmatprep.subr.mxu0 0.0
    %2130 = vmatpush1.xpose.msra.mxu0 0.0
    %2131 = vmatprep.subr.mxu0 0.0
    %2132 = vmatpush1.xpose.msra.mxu0 0.0
    %2133 = vmatprep.subr.mxu0 0.0
    %2134 = vmatpush1.xpose.msra.mxu0 0.0
    %2135 = vmatprep.mubr.f32.mxu0 0.0
    %2136 = vmatmul.mubr.f32.gmra.mrb[0].mxu0 %v2067
    %v2137 = vpop.f32.mrb[0].mxu0
    %v2138 = vadd.f32 0.0, %v2137
    %v2139 = vpop.f32.mrb[0].mxu0
    %2140 = vdwg.mxu0
    %2141 = vrot.lane.b32.xlu0 %v591, 80
    %v2142 = vpop.permute.xlu0 %2141
    %2143 = vrot.lane.b32.xlu0 %v689, 80
    %v2144 = vpop.permute.xlu0 %2143
    %v2145 = vsel %vm810, %v2142, 0
    %v2147 = vsel %vm810, %v2144, 0
    %2149 = vmatprep.subr.mxu0 0.0
    %2150 = vmatpush1.xpose.msra.mxu0 %v2147
    %2151 = vmatprep.subr.mxu0 0.0
    %2152 = vmatpush1.xpose.msra.mxu0 0.0
    %2153 = vmatprep.subr.mxu0 0.0
    %2154 = vmatpush1.xpose.msra.mxu0 0.0
    %2155 = vmatprep.subr.mxu0 0.0
    %2156 = vmatpush1.xpose.msra.mxu0 0.0
    %2157 = vmatprep.subr.mxu0 0.0
    %2158 = vmatpush1.xpose.msra.mxu0 0.0
    %2159 = vmatprep.subr.mxu0 0.0
    %2160 = vmatpush1.xpose.msra.mxu0 0.0
    %2161 = vmatprep.subr.mxu0 0.0
    %2162 = vmatpush1.xpose.msra.mxu0 0.0
    %2163 = vmatprep.subr.mxu0 0.0
    %2164 = vmatpush1.xpose.msra.mxu0 0.0
    %2165 = vmatprep.subr.mxu0 0.0
    %2166 = vmatpush1.xpose.msra.mxu0 0.0
    %2167 = vmatprep.subr.mxu0 0.0
    %2168 = vmatpush1.xpose.msra.mxu0 0.0
    %2169 = vmatprep.subr.mxu0 0.0
    %2170 = vmatpush1.xpose.msra.mxu0 0.0
    %2171 = vmatprep.subr.mxu0 0.0
    %2172 = vmatpush1.xpose.msra.mxu0 0.0
    %2173 = vmatprep.subr.mxu0 0.0
    %2174 = vmatpush1.xpose.msra.mxu0 0.0
    %2175 = vmatprep.subr.mxu0 0.0
    %2176 = vmatpush1.xpose.msra.mxu0 0.0
    %2177 = vmatprep.subr.mxu0 0.0
    %2178 = vmatpush1.xpose.msra.mxu0 0.0
    %2179 = vmatprep.subr.mxu0 0.0
    %2180 = vmatpush1.xpose.msra.mxu0 0.0
    %2181 = vmatprep.subr.mxu0 0.0
    %2182 = vmatpush1.xpose.msra.mxu0 0.0
    %2183 = vmatprep.subr.mxu0 0.0
    %2184 = vmatpush1.xpose.msra.mxu0 0.0
    %2185 = vmatprep.subr.mxu0 0.0
    %2186 = vmatpush1.xpose.msra.mxu0 0.0
    %2187 = vmatprep.subr.mxu0 0.0
    %2188 = vmatpush1.xpose.msra.mxu0 0.0
    %2189 = vmatprep.subr.mxu0 0.0
    %2190 = vmatpush1.xpose.msra.mxu0 0.0
    %2191 = vmatprep.subr.mxu0 0.0
    %2192 = vmatpush1.xpose.msra.mxu0 0.0
    %2193 = vmatprep.subr.mxu0 0.0
    %2194 = vmatpush1.xpose.msra.mxu0 0.0
    %2195 = vmatprep.subr.mxu0 0.0
    %2196 = vmatpush1.xpose.msra.mxu0 0.0
    %2197 = vmatprep.subr.mxu0 0.0
    %2198 = vmatpush1.xpose.msra.mxu0 0.0
    %2199 = vmatprep.subr.mxu0 0.0
    %2200 = vmatpush1.xpose.msra.mxu0 0.0
    %2201 = vmatprep.subr.mxu0 0.0
    %2202 = vmatpush1.xpose.msra.mxu0 0.0
    %2203 = vmatprep.subr.mxu0 0.0
    %2204 = vmatpush1.xpose.msra.mxu0 0.0
    %2205 = vmatprep.subr.mxu0 0.0
    %2206 = vmatpush1.xpose.msra.mxu0 0.0
    %2207 = vmatprep.subr.mxu0 0.0
    %2208 = vmatpush1.xpose.msra.mxu0 0.0
    %2209 = vmatprep.subr.mxu0 0.0
    %2210 = vmatpush1.xpose.msra.mxu0 0.0
    %2211 = vmatprep.subr.mxu0 0.0
    %2212 = vmatpush1.xpose.msra.mxu0 0.0
    %2213 = vmatprep.mubr.f32.mxu0 0.0
    %2214 = vmatmul.mubr.f32.gmra.mrb[0].mxu0 %v2145
    %v2215 = vpop.f32.mrb[0].mxu0
    %v2216 = vadd.f32 0.0, %v2215
    %v2217 = vpop.f32.mrb[0].mxu0
    %2218 = vdwg.mxu0
    %v2219 = vmul.f32 %v2138, 0.25
    %v2220 = vmul.f32 %v2216, 0.25
    %v2221 = vadd.f32 %v2219, %v970
    %v2222 = vadd.f32 %v2220, %v974
    %v2223 = vsel %vm979, %v2221, -inf
    %2224 = vmax.xlane.f32.xlu0 %v2223
    %v2225 = vpop.xlane.xlu0 %2224
    %v2226 = vsel %vm979, %v2222, -inf
    %2227 = vmax.xlane.f32.xlu0 %v2226
    %v2228 = vpop.xlane.xlu0 %2227
    %v2229 = vsub.f32 %v2221, %v2225
    %v2230 = vsub.f32 %v2222, %v2228
    %v2231 = vmul.f32 %v2229, 1.442695
    %v2232 = vpow.pop %v2231
    %v2233 = vmul.f32 %v2230, 1.442695
    %v2234 = vpow.pop %v2233
    %v2235 = vsel %vm979, %v2232, 0.0
    %2236 = vadd.xlane.f32.xlu0 %v2235
    %v2237 = vpop.xlane.xlu0 %2236
    %v2238 = vsel %vm979, %v2234, 0.0
    %2239 = vadd.xlane.f32.xlu0 %v2238
    %v2240 = vpop.xlane.xlu0 %2239
    %v2241 = vrcp.pop %v2237
    %v2242 = vrcp.pop %v2240
    %v2243 = vmul.f32 %v2232, %v2241
    %v2244 = vmul.f32 %v2234, %v2242
    %2245 = vrot.lane.b32.xlu0 %v782, 80
    %v2246 = vpop.permute.xlu0 %2245
    %v2249 = vsel %vm979, %v2243, 0
    %2251 = vmatprep.subr.mxu0 0.0
    %2252 = vmatpush1.msra.mxu0 %v2246
    %2253 = vmatprep.subr.mxu0 0.0
    %2254 = vmatpush1.msra.mxu0 0.0
    %2255 = vmatprep.subr.mxu0 0.0
    %2256 = vmatpush1.msra.mxu0 0.0
    %2257 = vmatprep.subr.mxu0 0.0
    %2258 = vmatpush1.msra.mxu0 0.0
    %2259 = vmatprep.subr.mxu0 0.0
    %2260 = vmatpush1.msra.mxu0 0.0
    %2261 = vmatprep.subr.mxu0 0.0
    %2262 = vmatpush1.msra.mxu0 0.0
    %2263 = vmatprep.subr.mxu0 0.0
    %2264 = vmatpush1.msra.mxu0 0.0
    %2265 = vmatprep.subr.mxu0 0.0
    %2266 = vmatpush1.msra.mxu0 0.0
    %2267 = vmatprep.subr.mxu0 0.0
    %2268 = vmatpush1.msra.mxu0 0.0
    %2269 = vmatprep.subr.mxu0 0.0
    %2270 = vmatpush1.msra.mxu0 0.0
    %2271 = vmatprep.subr.mxu0 0.0
    %2272 = vmatpush1.msra.mxu0 0.0
    %2273 = vmatprep.subr.mxu0 0.0
    %2274 = vmatpush1.msra.mxu0 0.0
    %2275 = vmatprep.subr.mxu0 0.0
    %2276 = vmatpush1.msra.mxu0 0.0
    %2277 = vmatprep.subr.mxu0 0.0
    %2278 = vmatpush1.msra.mxu0 0.0
    %2279 = vmatprep.subr.mxu0 0.0
    %2280 = vmatpush1.msra.mxu0 0.0
    %2281 = vmatprep.subr.mxu0 0.0
    %2282 = vmatpush1.msra.mxu0 0.0
    %2283 = vmatprep.subr.mxu0 0.0
    %2284 = vmatpush1.msra.mxu0 0.0
    %2285 = vmatprep.subr.mxu0 0.0
    %2286 = vmatpush1.msra.mxu0 0.0
    %2287 = vmatprep.subr.mxu0 0.0
    %2288 = vmatpush1.msra.mxu0 0.0
    %2289 = vmatprep.subr.mxu0 0.0
    %2290 = vmatpush1.msra.mxu0 0.0
    %2291 = vmatprep.subr.mxu0 0.0
    %2292 = vmatpush1.msra.mxu0 0.0
    %2293 = vmatprep.subr.mxu0 0.0
    %2294 = vmatpush1.msra.mxu0 0.0
    %2295 = vmatprep.subr.mxu0 0.0
    %2296 = vmatpush1.msra.mxu0 0.0
    %2297 = vmatprep.subr.mxu0 0.0
    %2298 = vmatpush1.msra.mxu0 0.0
    %2299 = vmatprep.subr.mxu0 0.0
    %2300 = vmatpush1.msra.mxu0 0.0
    %2301 = vmatprep.subr.mxu0 0.0
    %2302 = vmatpush1.msra.mxu0 0.0
    %2303 = vmatprep.subr.mxu0 0.0
    %2304 = vmatpush1.msra.mxu0 0.0
    %2305 = vmatprep.subr.mxu0 0.0
    %2306 = vmatpush1.msra.mxu0 0.0
    %2307 = vmatprep.subr.mxu0 0.0
    %2308 = vmatpush1.msra.mxu0 0.0
    %2309 = vmatprep.subr.mxu0 0.0
    %2310 = vmatpush1.msra.mxu0 0.0
    %2311 = vmatprep.subr.mxu0 0.0
    %2312 = vmatpush1.msra.mxu0 0.0
    %2313 = vmatprep.subr.mxu0 0.0
    %2314 = vmatpush1.msra.mxu0 0.0
    %2315 = vmatprep.mubr.f32.mxu0 0.0
    %2316 = vmatmul.mubr.f32.gmra.mrb[0].mxu0 %v2249
    %v2317 = vpop.f32.mrb[0].mxu0
    %v2318 = vadd.f32 0.0, %v2317
    %v2319 = vpop.f32.mrb[0].mxu0
    %2320 = vdwg.mxu0
    %2321 = vrot.lane.b32.xlu0 %v787, 80
    %v2322 = vpop.permute.xlu0 %2321
    %v2325 = vsel %vm979, %v2244, 0
    %2327 = vmatprep.subr.mxu0 0.0
    %2328 = vmatpush1.msra.mxu0 %v2322
    %2329 = vmatprep.subr.mxu0 0.0
    %2330 = vmatpush1.msra.mxu0 0.0
    %2331 = vmatprep.subr.mxu0 0.0
    %2332 = vmatpush1.msra.mxu0 0.0
    %2333 = vmatprep.subr.mxu0 0.0
    %2334 = vmatpush1.msra.mxu0 0.0
    %2335 = vmatprep.subr.mxu0 0.0
    %2336 = vmatpush1.msra.mxu0 0.0
    %2337 = vmatprep.subr.mxu0 0.0
    %2338 = vmatpush1.msra.mxu0 0.0
    %2339 = vmatprep.subr.mxu0 0.0
    %2340 = vmatpush1.msra.mxu0 0.0
    %2341 = vmatprep.subr.mxu0 0.0
    %2342 = vmatpush1.msra.mxu0 0.0
    %2343 = vmatprep.subr.mxu0 0.0
    %2344 = vmatpush1.msra.mxu0 0.0
    %2345 = vmatprep.subr.mxu0 0.0
    %2346 = vmatpush1.msra.mxu0 0.0
    %2347 = vmatprep.subr.mxu0 0.0
    %2348 = vmatpush1.msra.mxu0 0.0
    %2349 = vmatprep.subr.mxu0 0.0
    %2350 = vmatpush1.msra.mxu0 0.0
    %2351 = vmatprep.subr.mxu0 0.0
    %2352 = vmatpush1.msra.mxu0 0.0
    %2353 = vmatprep.subr.mxu0 0.0
    %2354 = vmatpush1.msra.mxu0 0.0
    %2355 = vmatprep.subr.mxu0 0.0
    %2356 = vmatpush1.msra.mxu0 0.0
    %2357 = vmatprep.subr.mxu0 0.0
    %2358 = vmatpush1.msra.mxu0 0.0
    %2359 = vmatprep.subr.mxu0 0.0
    %2360 = vmatpush1.msra.mxu0 0.0
    %2361 = vmatprep.subr.mxu0 0.0
    %2362 = vmatpush1.msra.mxu0 0.0
    %2363 = vmatprep.subr.mxu0 0.0
    %2364 = vmatpush1.msra.mxu0 0.0
    %2365 = vmatprep.subr.mxu0 0.0
    %2366 = vmatpush1.msra.mxu0 0.0
    %2367 = vmatprep.subr.mxu0 0.0
    %2368 = vmatpush1.msra.mxu0 0.0
    %2369 = vmatprep.subr.mxu0 0.0
    %2370 = vmatpush1.msra.mxu0 0.0
    %2371 = vmatprep.subr.mxu0 0.0
    %2372 = vmatpush1.msra.mxu0 0.0
    %2373 = vmatprep.subr.mxu0 0.0
    %2374 = vmatpush1.msra.mxu0 0.0
    %2375 = vmatprep.subr.mxu0 0.0
    %2376 = vmatpush1.msra.mxu0 0.0
    %2377 = vmatprep.subr.mxu0 0.0
    %2378 = vmatpush1.msra.mxu0 0.0
    %2379 = vmatprep.subr.mxu0 0.0
    %2380 = vmatpush1.msra.mxu0 0.0
    %2381 = vmatprep.subr.mxu0 0.0
    %2382 = vmatpush1.msra.mxu0 0.0
    %2383 = vmatprep.subr.mxu0 0.0
    %2384 = vmatpush1.msra.mxu0 0.0
    %2385 = vmatprep.subr.mxu0 0.0
    %2386 = vmatpush1.msra.mxu0 0.0
    %2387 = vmatprep.subr.mxu0 0.0
    %2388 = vmatpush1.msra.mxu0 0.0
    %2389 = vmatprep.subr.mxu0 0.0
    %2390 = vmatpush1.msra.mxu0 0.0
    %2391 = vmatprep.mubr.f32.mxu0 0.0
    %2392 = vmatmul.mubr.f32.gmra.mrb[0].mxu0 %v2325
    %v2393 = vpop.f32.mrb[0].mxu0
    %v2394 = vadd.f32 0.0, %v2393
    %v2395 = vpop.f32.mrb[0].mxu0
    %2396 = vdwg.mxu0
    %v2398 = vsel %vm810, %v2318, 0
    %v2401 = vsel %vm810, %v2394, 0
    %2403 = vmatprep.subr.mxu0 0.0
    %2404 = vmatpush1.msra.mxu0 %v800
    %2405 = vmatprep.subr.mxu0 0.0
    %2406 = vmatpush1.msra.mxu0 %v801
    %2407 = vmatprep.subr.mxu0 0.0
    %2408 = vmatpush1.msra.mxu0 0.0
    %2409 = vmatprep.subr.mxu0 0.0
    %2410 = vmatpush1.msra.mxu0 0.0
    %2411 = vmatprep.subr.mxu0 0.0
    %2412 = vmatpush1.msra.mxu0 0.0
    %2413 = vmatprep.subr.mxu0 0.0
    %2414 = vmatpush1.msra.mxu0 0.0
    %2415 = vmatprep.subr.mxu0 0.0
    %2416 = vmatpush1.msra.mxu0 0.0
    %2417 = vmatprep.subr.mxu0 0.0
    %2418 = vmatpush1.msra.mxu0 0.0
    %2419 = vmatprep.subr.mxu0 0.0
    %2420 = vmatpush1.msra.mxu0 0.0
    %2421 = vmatprep.subr.mxu0 0.0
    %2422 = vmatpush1.msra.mxu0 0.0
    %2423 = vmatprep.subr.mxu0 0.0
    %2424 = vmatpush1.msra.mxu0 0.0
    %2425 = vmatprep.subr.mxu0 0.0
    %2426 = vmatpush1.msra.mxu0 0.0
    %2427 = vmatprep.subr.mxu0 0.0
    %2428 = vmatpush1.msra.mxu0 0.0
    %2429 = vmatprep.subr.mxu0 0.0
    %2430 = vmatpush1.msra.mxu0 0.0
    %2431 = vmatprep.subr.mxu0 0.0
    %2432 = vmatpush1.msra.mxu0 0.0
    %2433 = vmatprep.subr.mxu0 0.0
    %2434 = vmatpush1.msra.mxu0 0.0
    %2435 = vmatprep.subr.mxu0 0.0
    %2436 = vmatpush1.msra.mxu0 0.0
    %2437 = vmatprep.subr.mxu0 0.0
    %2438 = vmatpush1.msra.mxu0 0.0
    %2439 = vmatprep.subr.mxu0 0.0
    %2440 = vmatpush1.msra.mxu0 0.0
    %2441 = vmatprep.subr.mxu0 0.0
    %2442 = vmatpush1.msra.mxu0 0.0
    %2443 = vmatprep.subr.mxu0 0.0
    %2444 = vmatpush1.msra.mxu0 0.0
    %2445 = vmatprep.subr.mxu0 0.0
    %2446 = vmatpush1.msra.mxu0 0.0
    %2447 = vmatprep.subr.mxu0 0.0
    %2448 = vmatpush1.msra.mxu0 0.0
    %2449 = vmatprep.subr.mxu0 0.0
    %2450 = vmatpush1.msra.mxu0 0.0
    %2451 = vmatprep.subr.mxu0 0.0
    %2452 = vmatpush1.msra.mxu0 0.0
    %2453 = vmatprep.subr.mxu0 0.0
    %2454 = vmatpush1.msra.mxu0 0.0
    %2455 = vmatprep.subr.mxu0 0.0
    %2456 = vmatpush1.msra.mxu0 0.0
    %2457 = vmatprep.subr.mxu0 0.0
    %2458 = vmatpush1.msra.mxu0 0.0
    %2459 = vmatprep.subr.mxu0 0.0
    %2460 = vmatpush1.msra.mxu0 0.0
    %2461 = vmatprep.subr.mxu0 0.0
    %2462 = vmatpush1.msra.mxu0 0.0
    %2463 = vmatprep.subr.mxu0 0.0
    %2464 = vmatpush1.msra.mxu0 0.0
    %2465 = vmatprep.subr.mxu0 0.0
    %2466 = vmatpush1.msra.mxu0 0.0
    %2467 = vmatprep.mubr.f32.mxu0 0.0
    %2468 = vmatmul.mubr.f32.gmra.mrb[0].mxu0 %v2398
    %v2469 = vpop.f32.mrb[0].mxu0
    %v2470 = vadd.f32 0.0, %v2469
    %v2471 = vpop.f32.mrb[0].mxu0
    %2472 = vmatprep.mubr.f32.mxu0 0.0
    %2473 = vmatmul.mubr.f32.gmra.mrb[0].mxu0 %v2401
    %v2474 = vpop.f32.mrb[0].mxu0
    %v2475 = vadd.f32 0.0, %v2474
    %v2476 = vpop.f32.mrb[0].mxu0
    %2477 = vdwg.mxu0
    %v2478 = vadd.f32 %v2061, %v2470
    %v2479 = vadd.f32 %v2062, %v2475
    %2480 = vrot.lane.b32.xlu0 %v586, 64
    %v2481 = vpop.permute.xlu0 %2480
    %2482 = vrot.lane.b32.xlu0 %v684, 64
    %v2483 = vpop.permute.xlu0 %2482
    %v2484 = vsel %vm810, %v2481, 0
    %v2486 = vsel %vm810, %v2483, 0
    %2488 = vmatprep.subr.mxu0 0.0
    %2489 = vmatpush1.xpose.msra.mxu0 %v2486
    %2490 = vmatprep.subr.mxu0 0.0
    %2491 = vmatpush1.xpose.msra.mxu0 0.0
    %2492 = vmatprep.subr.mxu0 0.0
    %2493 = vmatpush1.xpose.msra.mxu0 0.0
    %2494 = vmatprep.subr.mxu0 0.0
    %2495 = vmatpush1.xpose.msra.mxu0 0.0
    %2496 = vmatprep.subr.mxu0 0.0
    %2497 = vmatpush1.xpose.msra.mxu0 0.0
    %2498 = vmatprep.subr.mxu0 0.0
    %2499 = vmatpush1.xpose.msra.mxu0 0.0
    %2500 = vmatprep.subr.mxu0 0.0
    %2501 = vmatpush1.xpose.msra.mxu0 0.0
    %2502 = vmatprep.subr.mxu0 0.0
    %2503 = vmatpush1.xpose.msra.mxu0 0.0
    %2504 = vmatprep.subr.mxu0 0.0
    %2505 = vmatpush1.xpose.msra.mxu0 0.0
    %2506 = vmatprep.subr.mxu0 0.0
    %2507 = vmatpush1.xpose.msra.mxu0 0.0
    %2508 = vmatprep.subr.mxu0 0.0
    %2509 = vmatpush1.xpose.msra.mxu0 0.0
    %2510 = vmatprep.subr.mxu0 0.0
    %2511 = vmatpush1.xpose.msra.mxu0 0.0
    %2512 = vmatprep.subr.mxu0 0.0
    %2513 = vmatpush1.xpose.msra.mxu0 0.0
    %2514 = vmatprep.subr.mxu0 0.0
    %2515 = vmatpush1.xpose.msra.mxu0 0.0
    %2516 = vmatprep.subr.mxu0 0.0
    %2517 = vmatpush1.xpose.msra.mxu0 0.0
    %2518 = vmatprep.subr.mxu0 0.0
    %2519 = vmatpush1.xpose.msra.mxu0 0.0
    %2520 = vmatprep.subr.mxu0 0.0
    %2521 = vmatpush1.xpose.msra.mxu0 0.0
    %2522 = vmatprep.subr.mxu0 0.0
    %2523 = vmatpush1.xpose.msra.mxu0 0.0
    %2524 = vmatprep.subr.mxu0 0.0
    %2525 = vmatpush1.xpose.msra.mxu0 0.0
    %2526 = vmatprep.subr.mxu0 0.0
    %2527 = vmatpush1.xpose.msra.mxu0 0.0
    %2528 = vmatprep.subr.mxu0 0.0
    %2529 = vmatpush1.xpose.msra.mxu0 0.0
    %2530 = vmatprep.subr.mxu0 0.0
    %2531 = vmatpush1.xpose.msra.mxu0 0.0
    %2532 = vmatprep.subr.mxu0 0.0
    %2533 = vmatpush1.xpose.msra.mxu0 0.0
    %2534 = vmatprep.subr.mxu0 0.0
    %2535 = vmatpush1.xpose.msra.mxu0 0.0
    %2536 = vmatprep.subr.mxu0 0.0
    %2537 = vmatpush1.xpose.msra.mxu0 0.0
    %2538 = vmatprep.subr.mxu0 0.0
    %2539 = vmatpush1.xpose.msra.mxu0 0.0
    %2540 = vmatprep.subr.mxu0 0.0
    %2541 = vmatpush1.xpose.msra.mxu0 0.0
    %2542 = vmatprep.subr.mxu0 0.0
    %2543 = vmatpush1.xpose.msra.mxu0 0.0
    %2544 = vmatprep.subr.mxu0 0.0
    %2545 = vmatpush1.xpose.msra.mxu0 0.0
    %2546 = vmatprep.subr.mxu0 0.0
    %2547 = vmatpush1.xpose.msra.mxu0 0.0
    %2548 = vmatprep.subr.mxu0 0.0
    %2549 = vmatpush1.xpose.msra.mxu0 0.0
    %2550 = vmatprep.subr.mxu0 0.0
    %2551 = vmatpush1.xpose.msra.mxu0 0.0
    %2552 = vmatprep.mubr.f32.mxu0 0.0
    %2553 = vmatmul.mubr.f32.gmra.mrb[0].mxu0 %v2484
    %v2554 = vpop.f32.mrb[0].mxu0
    %v2555 = vadd.f32 0.0, %v2554
    %v2556 = vpop.f32.mrb[0].mxu0
    %2557 = vdwg.mxu0
    %2558 = vrot.lane.b32.xlu0 %v591, 64
    %v2559 = vpop.permute.xlu0 %2558
    %2560 = vrot.lane.b32.xlu0 %v689, 64
    %v2561 = vpop.permute.xlu0 %2560
    %v2562 = vsel %vm810, %v2559, 0
    %v2564 = vsel %vm810, %v2561, 0
    %2566 = vmatprep.subr.mxu0 0.0
    %2567 = vmatpush1.xpose.msra.mxu0 %v2564
    %2568 = vmatprep.subr.mxu0 0.0
    %2569 = vmatpush1.xpose.msra.mxu0 0.0
    %2570 = vmatprep.subr.mxu0 0.0
    %2571 = vmatpush1.xpose.msra.mxu0 0.0
    %2572 = vmatprep.subr.mxu0 0.0
    %2573 = vmatpush1.xpose.msra.mxu0 0.0
    %2574 = vmatprep.subr.mxu0 0.0
    %2575 = vmatpush1.xpose.msra.mxu0 0.0
    %2576 = vmatprep.subr.mxu0 0.0
    %2577 = vmatpush1.xpose.msra.mxu0 0.0
    %2578 = vmatprep.subr.mxu0 0.0
    %2579 = vmatpush1.xpose.msra.mxu0 0.0
    %2580 = vmatprep.subr.mxu0 0.0
    %2581 = vmatpush1.xpose.msra.mxu0 0.0
    %2582 = vmatprep.subr.mxu0 0.0
    %2583 = vmatpush1.xpose.msra.mxu0 0.0
    %2584 = vmatprep.subr.mxu0 0.0
    %2585 = vmatpush1.xpose.msra.mxu0 0.0
    %2586 = vmatprep.subr.mxu0 0.0
    %2587 = vmatpush1.xpose.msra.mxu0 0.0
    %2588 = vmatprep.subr.mxu0 0.0
    %2589 = vmatpush1.xpose.msra.mxu0 0.0
    %2590 = vmatprep.subr.mxu0 0.0
    %2591 = vmatpush1.xpose.msra.mxu0 0.0
    %2592 = vmatprep.subr.mxu0 0.0
    %2593 = vmatpush1.xpose.msra.mxu0 0.0
    %2594 = vmatprep.subr.mxu0 0.0
    %2595 = vmatpush1.xpose.msra.mxu0 0.0
    %2596 = vmatprep.subr.mxu0 0.0
    %2597 = vmatpush1.xpose.msra.mxu0 0.0
    %2598 = vmatprep.subr.mxu0 0.0
    %2599 = vmatpush1.xpose.msra.mxu0 0.0
    %2600 = vmatprep.subr.mxu0 0.0
    %2601 = vmatpush1.xpose.msra.mxu0 0.0
    %2602 = vmatprep.subr.mxu0 0.0
    %2603 = vmatpush1.xpose.msra.mxu0 0.0
    %2604 = vmatprep.subr.mxu0 0.0
    %2605 = vmatpush1.xpose.msra.mxu0 0.0
    %2606 = vmatprep.subr.mxu0 0.0
    %2607 = vmatpush1.xpose.msra.mxu0 0.0
    %2608 = vmatprep.subr.mxu0 0.0
    %2609 = vmatpush1.xpose.msra.mxu0 0.0
    %2610 = vmatprep.subr.mxu0 0.0
    %2611 = vmatpush1.xpose.msra.mxu0 0.0
    %2612 = vmatprep.subr.mxu0 0.0
    %2613 = vmatpush1.xpose.msra.mxu0 0.0
    %2614 = vmatprep.subr.mxu0 0.0
    %2615 = vmatpush1.xpose.msra.mxu0 0.0
    %2616 = vmatprep.subr.mxu0 0.0
    %2617 = vmatpush1.xpose.msra.mxu0 0.0
    %2618 = vmatprep.subr.mxu0 0.0
    %2619 = vmatpush1.xpose.msra.mxu0 0.0
    %2620 = vmatprep.subr.mxu0 0.0
    %2621 = vmatpush1.xpose.msra.mxu0 0.0
    %2622 = vmatprep.subr.mxu0 0.0
    %2623 = vmatpush1.xpose.msra.mxu0 0.0
    %2624 = vmatprep.subr.mxu0 0.0
    %2625 = vmatpush1.xpose.msra.mxu0 0.0
    %2626 = vmatprep.subr.mxu0 0.0
    %2627 = vmatpush1.xpose.msra.mxu0 0.0
    %2628 = vmatprep.subr.mxu0 0.0
    %2629 = vmatpush1.xpose.msra.mxu0 0.0
    %2630 = vmatprep.mubr.f32.mxu0 0.0
    %2631 = vmatmul.mubr.f32.gmra.mrb[0].mxu0 %v2562
    %v2632 = vpop.f32.mrb[0].mxu0
    %v2633 = vadd.f32 0.0, %v2632
    %v2634 = vpop.f32.mrb[0].mxu0
    %2635 = vdwg.mxu0
    %v2636 = vmul.f32 %v2555, 0.25
    %v2637 = vmul.f32 %v2633, 0.25
    %v2638 = vadd.f32 %v2636, %v970
    %v2639 = vadd.f32 %v2637, %v974
    %v2640 = vsel %vm979, %v2638, -inf
    %2641 = vmax.xlane.f32.xlu0 %v2640
    %v2642 = vpop.xlane.xlu0 %2641
    %v2643 = vsel %vm979, %v2639, -inf
    %2644 = vmax.xlane.f32.xlu0 %v2643
    %v2645 = vpop.xlane.xlu0 %2644
    %v2646 = vsub.f32 %v2638, %v2642
    %v2647 = vsub.f32 %v2639, %v2645
    %v2648 = vmul.f32 %v2646, 1.442695
    %v2649 = vpow.pop %v2648
    %v2650 = vmul.f32 %v2647, 1.442695
    %v2651 = vpow.pop %v2650
    %v2652 = vsel %vm979, %v2649, 0.0
    %2653 = vadd.xlane.f32.xlu0 %v2652
    %v2654 = vpop.xlane.xlu0 %2653
    %v2655 = vsel %vm979, %v2651, 0.0
    %2656 = vadd.xlane.f32.xlu0 %v2655
    %v2657 = vpop.xlane.xlu0 %2656
    %v2658 = vrcp.pop %v2654
    %v2659 = vrcp.pop %v2657
    %v2660 = vmul.f32 %v2649, %v2658
    %v2661 = vmul.f32 %v2651, %v2659
    %2662 = vrot.lane.b32.xlu0 %v782, 64
    %v2663 = vpop.permute.xlu0 %2662
    %v2666 = vsel %vm979, %v2660, 0
    %2668 = vmatprep.subr.mxu0 0.0
    %2669 = vmatpush1.msra.mxu0 %v2663
    %2670 = vmatprep.subr.mxu0 0.0
    %2671 = vmatpush1.msra.mxu0 0.0
    %2672 = vmatprep.subr.mxu0 0.0
    %2673 = vmatpush1.msra.mxu0 0.0
    %2674 = vmatprep.subr.mxu0 0.0
    %2675 = vmatpush1.msra.mxu0 0.0
    %2676 = vmatprep.subr.mxu0 0.0
    %2677 = vmatpush1.msra.mxu0 0.0
    %2678 = vmatprep.subr.mxu0 0.0
    %2679 = vmatpush1.msra.mxu0 0.0
    %2680 = vmatprep.subr.mxu0 0.0
    %2681 = vmatpush1.msra.mxu0 0.0
    %2682 = vmatprep.subr.mxu0 0.0
    %2683 = vmatpush1.msra.mxu0 0.0
    %2684 = vmatprep.subr.mxu0 0.0
    %2685 = vmatpush1.msra.mxu0 0.0
    %2686 = vmatprep.subr.mxu0 0.0
    %2687 = vmatpush1.msra.mxu0 0.0
    %2688 = vmatprep.subr.mxu0 0.0
    %2689 = vmatpush1.msra.mxu0 0.0
    %2690 = vmatprep.subr.mxu0 0.0
    %2691 = vmatpush1.msra.mxu0 0.0
    %2692 = vmatprep.subr.mxu0 0.0
    %2693 = vmatpush1.msra.mxu0 0.0
    %2694 = vmatprep.subr.mxu0 0.0
    %2695 = vmatpush1.msra.mxu0 0.0
    %2696 = vmatprep.subr.mxu0 0.0
    %2697 = vmatpush1.msra.mxu0 0.0
    %2698 = vmatprep.subr.mxu0 0.0
    %2699 = vmatpush1.msra.mxu0 0.0
    %2700 = vmatprep.subr.mxu0 0.0
    %2701 = vmatpush1.msra.mxu0 0.0
    %2702 = vmatprep.subr.mxu0 0.0
    %2703 = vmatpush1.msra.mxu0 0.0
    %2704 = vmatprep.subr.mxu0 0.0
    %2705 = vmatpush1.msra.mxu0 0.0
    %2706 = vmatprep.subr.mxu0 0.0
    %2707 = vmatpush1.msra.mxu0 0.0
    %2708 = vmatprep.subr.mxu0 0.0
    %2709 = vmatpush1.msra.mxu0 0.0
    %2710 = vmatprep.subr.mxu0 0.0
    %2711 = vmatpush1.msra.mxu0 0.0
    %2712 = vmatprep.subr.mxu0 0.0
    %2713 = vmatpush1.msra.mxu0 0.0
    %2714 = vmatprep.subr.mxu0 0.0
    %2715 = vmatpush1.msra.mxu0 0.0
    %2716 = vmatprep.subr.mxu0 0.0
    %2717 = vmatpush1.msra.mxu0 0.0
    %2718 = vmatprep.subr.mxu0 0.0
    %2719 = vmatpush1.msra.mxu0 0.0
    %2720 = vmatprep.subr.mxu0 0.0
    %2721 = vmatpush1.msra.mxu0 0.0
    %2722 = vmatprep.subr.mxu0 0.0
    %2723 = vmatpush1.msra.mxu0 0.0
    %2724 = vmatprep.subr.mxu0 0.0
    %2725 = vmatpush1.msra.mxu0 0.0
    %2726 = vmatprep.subr.mxu0 0.0
    %2727 = vmatpush1.msra.mxu0 0.0
    %2728 = vmatprep.subr.mxu0 0.0
    %2729 = vmatpush1.msra.mxu0 0.0
    %2730 = vmatprep.subr.mxu0 0.0
    %2731 = vmatpush1.msra.mxu0 0.0
    %2732 = vmatprep.mubr.f32.mxu0 0.0
    %2733 = vmatmul.mubr.f32.gmra.mrb[0].mxu0 %v2666
    %v2734 = vpop.f32.mrb[0].mxu0
    %v2735 = vadd.f32 0.0, %v2734
    %v2736 = vpop.f32.mrb[0].mxu0
    %2737 = vdwg.mxu0
    %2738 = vrot.lane.b32.xlu0 %v787, 64
    %v2739 = vpop.permute.xlu0 %2738
    %v2742 = vsel %vm979, %v2661, 0
    %2744 = vmatprep.subr.mxu0 0.0
    %2745 = vmatpush1.msra.mxu0 %v2739
    %2746 = vmatprep.subr.mxu0 0.0
    %2747 = vmatpush1.msra.mxu0 0.0
    %2748 = vmatprep.subr.mxu0 0.0
    %2749 = vmatpush1.msra.mxu0 0.0
    %2750 = vmatprep.subr.mxu0 0.0
    %2751 = vmatpush1.msra.mxu0 0.0
    %2752 = vmatprep.subr.mxu0 0.0
    %2753 = vmatpush1.msra.mxu0 0.0
    %2754 = vmatprep.subr.mxu0 0.0
    %2755 = vmatpush1.msra.mxu0 0.0
    %2756 = vmatprep.subr.mxu0 0.0
    %2757 = vmatpush1.msra.mxu0 0.0
    %2758 = vmatprep.subr.mxu0 0.0
    %2759 = vmatpush1.msra.mxu0 0.0
    %2760 = vmatprep.subr.mxu0 0.0
    %2761 = vmatpush1.msra.mxu0 0.0
    %2762 = vmatprep.subr.mxu0 0.0
    %2763 = vmatpush1.msra.mxu0 0.0
    %2764 = vmatprep.subr.mxu0 0.0
    %2765 = vmatpush1.msra.mxu0 0.0
    %2766 = vmatprep.subr.mxu0 0.0
    %2767 = vmatpush1.msra.mxu0 0.0
    %2768 = vmatprep.subr.mxu0 0.0
    %2769 = vmatpush1.msra.mxu0 0.0
    %2770 = vmatprep.subr.mxu0 0.0
    %2771 = vmatpush1.msra.mxu0 0.0
    %2772 = vmatprep.subr.mxu0 0.0
    %2773 = vmatpush1.msra.mxu0 0.0
    %2774 = vmatprep.subr.mxu0 0.0
    %2775 = vmatpush1.msra.mxu0 0.0
    %2776 = vmatprep.subr.mxu0 0.0
    %2777 = vmatpush1.msra.mxu0 0.0
    %2778 = vmatprep.subr.mxu0 0.0
    %2779 = vmatpush1.msra.mxu0 0.0
    %2780 = vmatprep.subr.mxu0 0.0
    %2781 = vmatpush1.msra.mxu0 0.0
    %2782 = vmatprep.subr.mxu0 0.0
    %2783 = vmatpush1.msra.mxu0 0.0
    %2784 = vmatprep.subr.mxu0 0.0
    %2785 = vmatpush1.msra.mxu0 0.0
    %2786 = vmatprep.subr.mxu0 0.0
    %2787 = vmatpush1.msra.mxu0 0.0
    %2788 = vmatprep.subr.mxu0 0.0
    %2789 = vmatpush1.msra.mxu0 0.0
    %2790 = vmatprep.subr.mxu0 0.0
    %2791 = vmatpush1.msra.mxu0 0.0
    %2792 = vmatprep.subr.mxu0 0.0
    %2793 = vmatpush1.msra.mxu0 0.0
    %2794 = vmatprep.subr.mxu0 0.0
    %2795 = vmatpush1.msra.mxu0 0.0
    %2796 = vmatprep.subr.mxu0 0.0
    %2797 = vmatpush1.msra.mxu0 0.0
    %2798 = vmatprep.subr.mxu0 0.0
    %2799 = vmatpush1.msra.mxu0 0.0
    %2800 = vmatprep.subr.mxu0 0.0
    %2801 = vmatpush1.msra.mxu0 0.0
    %2802 = vmatprep.subr.mxu0 0.0
    %2803 = vmatpush1.msra.mxu0 0.0
    %2804 = vmatprep.subr.mxu0 0.0
    %2805 = vmatpush1.msra.mxu0 0.0
    %2806 = vmatprep.subr.mxu0 0.0
    %2807 = vmatpush1.msra.mxu0 0.0
    %2808 = vmatprep.mubr.f32.mxu0 0.0
    %2809 = vmatmul.mubr.f32.gmra.mrb[0].mxu0 %v2742
    %v2810 = vpop.f32.mrb[0].mxu0
    %v2811 = vadd.f32 0.0, %v2810
    %v2812 = vpop.f32.mrb[0].mxu0
    %2813 = vdwg.mxu0
    %v2815 = vsel %vm810, %v2735, 0
    %v2818 = vsel %vm810, %v2811, 0
    %2820 = vmatprep.subr.mxu0 0.0
    %2821 = vmatpush1.msra.mxu0 %v802
    %2822 = vmatprep.subr.mxu0 0.0
    %2823 = vmatpush1.msra.mxu0 %v803
    %2824 = vmatprep.subr.mxu0 0.0
    %2825 = vmatpush1.msra.mxu0 0.0
    %2826 = vmatprep.subr.mxu0 0.0
    %2827 = vmatpush1.msra.mxu0 0.0
    %2828 = vmatprep.subr.mxu0 0.0
    %2829 = vmatpush1.msra.mxu0 0.0
    %2830 = vmatprep.subr.mxu0 0.0
    %2831 = vmatpush1.msra.mxu0 0.0
    %2832 = vmatprep.subr.mxu0 0.0
    %2833 = vmatpush1.msra.mxu0 0.0
    %2834 = vmatprep.subr.mxu0 0.0
    %2835 = vmatpush1.msra.mxu0 0.0
    %2836 = vmatprep.subr.mxu0 0.0
    %2837 = vmatpush1.msra.mxu0 0.0
    %2838 = vmatprep.subr.mxu0 0.0
    %2839 = vmatpush1.msra.mxu0 0.0
    %2840 = vmatprep.subr.mxu0 0.0
    %2841 = vmatpush1.msra.mxu0 0.0
    %2842 = vmatprep.subr.mxu0 0.0
    %2843 = vmatpush1.msra.mxu0 0.0
    %2844 = vmatprep.subr.mxu0 0.0
    %2845 = vmatpush1.msra.mxu0 0.0
    %2846 = vmatprep.subr.mxu0 0.0
    %2847 = vmatpush1.msra.mxu0 0.0
    %2848 = vmatprep.subr.mxu0 0.0
    %2849 = vmatpush1.msra.mxu0 0.0
    %2850 = vmatprep.subr.mxu0 0.0
    %2851 = vmatpush1.msra.mxu0 0.0
    %2852 = vmatprep.subr.mxu0 0.0
    %2853 = vmatpush1.msra.mxu0 0.0
    %2854 = vmatprep.subr.mxu0 0.0
    %2855 = vmatpush1.msra.mxu0 0.0
    %2856 = vmatprep.subr.mxu0 0.0
    %2857 = vmatpush1.msra.mxu0 0.0
    %2858 = vmatprep.subr.mxu0 0.0
    %2859 = vmatpush1.msra.mxu0 0.0
    %2860 = vmatprep.subr.mxu0 0.0
    %2861 = vmatpush1.msra.mxu0 0.0
    %2862 = vmatprep.subr.mxu0 0.0
    %2863 = vmatpush1.msra.mxu0 0.0
    %2864 = vmatprep.subr.mxu0 0.0
    %2865 = vmatpush1.msra.mxu0 0.0
    %2866 = vmatprep.subr.mxu0 0.0
    %2867 = vmatpush1.msra.mxu0 0.0
    %2868 = vmatprep.subr.mxu0 0.0
    %2869 = vmatpush1.msra.mxu0 0.0
    %2870 = vmatprep.subr.mxu0 0.0
    %2871 = vmatpush1.msra.mxu0 0.0
    %2872 = vmatprep.subr.mxu0 0.0
    %2873 = vmatpush1.msra.mxu0 0.0
    %2874 = vmatprep.subr.mxu0 0.0
    %2875 = vmatpush1.msra.mxu0 0.0
    %2876 = vmatprep.subr.mxu0 0.0
    %2877 = vmatpush1.msra.mxu0 0.0
    %2878 = vmatprep.subr.mxu0 0.0
    %2879 = vmatpush1.msra.mxu0 0.0
    %2880 = vmatprep.subr.mxu0 0.0
    %2881 = vmatpush1.msra.mxu0 0.0
    %2882 = vmatprep.subr.mxu0 0.0
    %2883 = vmatpush1.msra.mxu0 0.0
    %2884 = vmatprep.mubr.f32.mxu0 0.0
    %2885 = vmatmul.mubr.f32.gmra.mrb[0].mxu0 %v2815
    %v2886 = vpop.f32.mrb[0].mxu0
    %v2887 = vadd.f32 0.0, %v2886
    %v2888 = vpop.f32.mrb[0].mxu0
    %2889 = vmatprep.mubr.f32.mxu0 0.0
    %2890 = vmatmul.mubr.f32.gmra.mrb[0].mxu0 %v2818
    %v2891 = vpop.f32.mrb[0].mxu0
    %v2892 = vadd.f32 0.0, %v2891
    %v2893 = vpop.f32.mrb[0].mxu0
    %2894 = vdwg.mxu0
    %v2895 = vadd.f32 %v2478, %v2887
    %v2896 = vadd.f32 %v2479, %v2892
    %2897 = vrot.lane.b32.xlu0 %v586, 48
    %v2898 = vpop.permute.xlu0 %2897
    %2899 = vrot.lane.b32.xlu0 %v684, 48
    %v2900 = vpop.permute.xlu0 %2899
    %v2901 = vsel %vm810, %v2898, 0
    %v2903 = vsel %vm810, %v2900, 0
    %2905 = vmatprep.subr.mxu0 0.0
    %2906 = vmatpush1.xpose.msra.mxu0 %v2903
    %2907 = vmatprep.subr.mxu0 0.0
    %2908 = vmatpush1.xpose.msra.mxu0 0.0
    %2909 = vmatprep.subr.mxu0 0.0
    %2910 = vmatpush1.xpose.msra.mxu0 0.0
    %2911 = vmatprep.subr.mxu0 0.0
    %2912 = vmatpush1.xpose.msra.mxu0 0.0
    %2913 = vmatprep.subr.mxu0 0.0
    %2914 = vmatpush1.xpose.msra.mxu0 0.0
    %2915 = vmatprep.subr.mxu0 0.0
    %2916 = vmatpush1.xpose.msra.mxu0 0.0
    %2917 = vmatprep.subr.mxu0 0.0
    %2918 = vmatpush1.xpose.msra.mxu0 0.0
    %2919 = vmatprep.subr.mxu0 0.0
    %2920 = vmatpush1.xpose.msra.mxu0 0.0
    %2921 = vmatprep.subr.mxu0 0.0
    %2922 = vmatpush1.xpose.msra.mxu0 0.0
    %2923 = vmatprep.subr.mxu0 0.0
    %2924 = vmatpush1.xpose.msra.mxu0 0.0
    %2925 = vmatprep.subr.mxu0 0.0
    %2926 = vmatpush1.xpose.msra.mxu0 0.0
    %2927 = vmatprep.subr.mxu0 0.0
    %2928 = vmatpush1.xpose.msra.mxu0 0.0
    %2929 = vmatprep.subr.mxu0 0.0
    %2930 = vmatpush1.xpose.msra.mxu0 0.0
    %2931 = vmatprep.subr.mxu0 0.0
    %2932 = vmatpush1.xpose.msra.mxu0 0.0
    %2933 = vmatprep.subr.mxu0 0.0
    %2934 = vmatpush1.xpose.msra.mxu0 0.0
    %2935 = vmatprep.subr.mxu0 0.0
    %2936 = vmatpush1.xpose.msra.mxu0 0.0
    %2937 = vmatprep.subr.mxu0 0.0
    %2938 = vmatpush1.xpose.msra.mxu0 0.0
    %2939 = vmatprep.subr.mxu0 0.0
    %2940 = vmatpush1.xpose.msra.mxu0 0.0
    %2941 = vmatprep.subr.mxu0 0.0
    %2942 = vmatpush1.xpose.msra.mxu0 0.0
    %2943 = vmatprep.subr.mxu0 0.0
    %2944 = vmatpush1.xpose.msra.mxu0 0.0
    %2945 = vmatprep.subr.mxu0 0.0
    %2946 = vmatpush1.xpose.msra.mxu0 0.0
    %2947 = vmatprep.subr.mxu0 0.0
    %2948 = vmatpush1.xpose.msra.mxu0 0.0
    %2949 = vmatprep.subr.mxu0 0.0
    %2950 = vmatpush1.xpose.msra.mxu0 0.0
    %2951 = vmatprep.subr.mxu0 0.0
    %2952 = vmatpush1.xpose.msra.mxu0 0.0
    %2953 = vmatprep.subr.mxu0 0.0
    %2954 = vmatpush1.xpose.msra.mxu0 0.0
    %2955 = vmatprep.subr.mxu0 0.0
    %2956 = vmatpush1.xpose.msra.mxu0 0.0
    %2957 = vmatprep.subr.mxu0 0.0
    %2958 = vmatpush1.xpose.msra.mxu0 0.0
    %2959 = vmatprep.subr.mxu0 0.0
    %2960 = vmatpush1.xpose.msra.mxu0 0.0
    %2961 = vmatprep.subr.mxu0 0.0
    %2962 = vmatpush1.xpose.msra.mxu0 0.0
    %2963 = vmatprep.subr.mxu0 0.0
    %2964 = vmatpush1.xpose.msra.mxu0 0.0
    %2965 = vmatprep.subr.mxu0 0.0
    %2966 = vmatpush1.xpose.msra.mxu0 0.0
    %2967 = vmatprep.subr.mxu0 0.0
    %2968 = vmatpush1.xpose.msra.mxu0 0.0
    %2969 = vmatprep.mubr.f32.mxu0 0.0
    %2970 = vmatmul.mubr.f32.gmra.mrb[0].mxu0 %v2901
    %v2971 = vpop.f32.mrb[0].mxu0
    %v2972 = vadd.f32 0.0, %v2971
    %v2973 = vpop.f32.mrb[0].mxu0
    %2974 = vdwg.mxu0
    %2975 = vrot.lane.b32.xlu0 %v591, 48
    %v2976 = vpop.permute.xlu0 %2975
    %2977 = vrot.lane.b32.xlu0 %v689, 48
    %v2978 = vpop.permute.xlu0 %2977
    %v2979 = vsel %vm810, %v2976, 0
    %v2981 = vsel %vm810, %v2978, 0
    %2983 = vmatprep.subr.mxu0 0.0
    %2984 = vmatpush1.xpose.msra.mxu0 %v2981
    %2985 = vmatprep.subr.mxu0 0.0
    %2986 = vmatpush1.xpose.msra.mxu0 0.0
    %2987 = vmatprep.subr.mxu0 0.0
    %2988 = vmatpush1.xpose.msra.mxu0 0.0
    %2989 = vmatprep.subr.mxu0 0.0
    %2990 = vmatpush1.xpose.msra.mxu0 0.0
    %2991 = vmatprep.subr.mxu0 0.0
    %2992 = vmatpush1.xpose.msra.mxu0 0.0
    %2993 = vmatprep.subr.mxu0 0.0
    %2994 = vmatpush1.xpose.msra.mxu0 0.0
    %2995 = vmatprep.subr.mxu0 0.0
    %2996 = vmatpush1.xpose.msra.mxu0 0.0
    %2997 = vmatprep.subr.mxu0 0.0
    %2998 = vmatpush1.xpose.msra.mxu0 0.0
    %2999 = vmatprep.subr.mxu0 0.0
    %3000 = vmatpush1.xpose.msra.mxu0 0.0
    %3001 = vmatprep.subr.mxu0 0.0
    %3002 = vmatpush1.xpose.msra.mxu0 0.0
    %3003 = vmatprep.subr.mxu0 0.0
    %3004 = vmatpush1.xpose.msra.mxu0 0.0
    %3005 = vmatprep.subr.mxu0 0.0
    %3006 = vmatpush1.xpose.msra.mxu0 0.0
    %3007 = vmatprep.subr.mxu0 0.0
    %3008 = vmatpush1.xpose.msra.mxu0 0.0
    %3009 = vmatprep.subr.mxu0 0.0
    %3010 = vmatpush1.xpose.msra.mxu0 0.0
    %3011 = vmatprep.subr.mxu0 0.0
    %3012 = vmatpush1.xpose.msra.mxu0 0.0
    %3013 = vmatprep.subr.mxu0 0.0
    %3014 = vmatpush1.xpose.msra.mxu0 0.0
    %3015 = vmatprep.subr.mxu0 0.0
    %3016 = vmatpush1.xpose.msra.mxu0 0.0
    %3017 = vmatprep.subr.mxu0 0.0
    %3018 = vmatpush1.xpose.msra.mxu0 0.0
    %3019 = vmatprep.subr.mxu0 0.0
    %3020 = vmatpush1.xpose.msra.mxu0 0.0
    %3021 = vmatprep.subr.mxu0 0.0
    %3022 = vmatpush1.xpose.msra.mxu0 0.0
    %3023 = vmatprep.subr.mxu0 0.0
    %3024 = vmatpush1.xpose.msra.mxu0 0.0
    %3025 = vmatprep.subr.mxu0 0.0
    %3026 = vmatpush1.xpose.msra.mxu0 0.0
    %3027 = vmatprep.subr.mxu0 0.0
    %3028 = vmatpush1.xpose.msra.mxu0 0.0
    %3029 = vmatprep.subr.mxu0 0.0
    %3030 = vmatpush1.xpose.msra.mxu0 0.0
    %3031 = vmatprep.subr.mxu0 0.0
    %3032 = vmatpush1.xpose.msra.mxu0 0.0
    %3033 = vmatprep.subr.mxu0 0.0
    %3034 = vmatpush1.xpose.msra.mxu0 0.0
    %3035 = vmatprep.subr.mxu0 0.0
    %3036 = vmatpush1.xpose.msra.mxu0 0.0
    %3037 = vmatprep.subr.mxu0 0.0
    %3038 = vmatpush1.xpose.msra.mxu0 0.0
    %3039 = vmatprep.subr.mxu0 0.0
    %3040 = vmatpush1.xpose.msra.mxu0 0.0
    %3041 = vmatprep.subr.mxu0 0.0
    %3042 = vmatpush1.xpose.msra.mxu0 0.0
    %3043 = vmatprep.subr.mxu0 0.0
    %3044 = vmatpush1.xpose.msra.mxu0 0.0
    %3045 = vmatprep.subr.mxu0 0.0
    %3046 = vmatpush1.xpose.msra.mxu0 0.0
    %3047 = vmatprep.mubr.f32.mxu0 0.0
    %3048 = vmatmul.mubr.f32.gmra.mrb[0].mxu0 %v2979
    %v3049 = vpop.f32.mrb[0].mxu0
    %v3050 = vadd.f32 0.0, %v3049
    %v3051 = vpop.f32.mrb[0].mxu0
    %3052 = vdwg.mxu0
    %v3053 = vmul.f32 %v2972, 0.25
    %v3054 = vmul.f32 %v3050, 0.25
    %v3055 = vadd.f32 %v3053, %v970
    %v3056 = vadd.f32 %v3054, %v974
    %v3057 = vsel %vm979, %v3055, -inf
    %3058 = vmax.xlane.f32.xlu0 %v3057
    %v3059 = vpop.xlane.xlu0 %3058
    %v3060 = vsel %vm979, %v3056, -inf
    %3061 = vmax.xlane.f32.xlu0 %v3060
    %v3062 = vpop.xlane.xlu0 %3061
    %v3063 = vsub.f32 %v3055, %v3059
    %v3064 = vsub.f32 %v3056, %v3062
    %v3065 = vmul.f32 %v3063, 1.442695
    %v3066 = vpow.pop %v3065
    %v3067 = vmul.f32 %v3064, 1.442695
    %v3068 = vpow.pop %v3067
    %v3069 = vsel %vm979, %v3066, 0.0
    %3070 = vadd.xlane.f32.xlu0 %v3069
    %v3071 = vpop.xlane.xlu0 %3070
    %v3072 = vsel %vm979, %v3068, 0.0
    %3073 = vadd.xlane.f32.xlu0 %v3072
    %v3074 = vpop.xlane.xlu0 %3073
    %v3075 = vrcp.pop %v3071
    %v3076 = vrcp.pop %v3074
    %v3077 = vmul.f32 %v3066, %v3075
    %v3078 = vmul.f32 %v3068, %v3076
    %3079 = vrot.lane.b32.xlu0 %v782, 48
    %v3080 = vpop.permute.xlu0 %3079
    %v3083 = vsel %vm979, %v3077, 0
    %3085 = vmatprep.subr.mxu0 0.0
    %3086 = vmatpush1.msra.mxu0 %v3080
    %3087 = vmatprep.subr.mxu0 0.0
    %3088 = vmatpush1.msra.mxu0 0.0
    %3089 = vmatprep.subr.mxu0 0.0
    %3090 = vmatpush1.msra.mxu0 0.0
    %3091 = vmatprep.subr.mxu0 0.0
    %3092 = vmatpush1.msra.mxu0 0.0
    %3093 = vmatprep.subr.mxu0 0.0
    %3094 = vmatpush1.msra.mxu0 0.0
    %3095 = vmatprep.subr.mxu0 0.0
    %3096 = vmatpush1.msra.mxu0 0.0
    %3097 = vmatprep.subr.mxu0 0.0
    %3098 = vmatpush1.msra.mxu0 0.0
    %3099 = vmatprep.subr.mxu0 0.0
    %3100 = vmatpush1.msra.mxu0 0.0
    %3101 = vmatprep.subr.mxu0 0.0
    %3102 = vmatpush1.msra.mxu0 0.0
    %3103 = vmatprep.subr.mxu0 0.0
    %3104 = vmatpush1.msra.mxu0 0.0
    %3105 = vmatprep.subr.mxu0 0.0
    %3106 = vmatpush1.msra.mxu0 0.0
    %3107 = vmatprep.subr.mxu0 0.0
    %3108 = vmatpush1.msra.mxu0 0.0
    %3109 = vmatprep.subr.mxu0 0.0
    %3110 = vmatpush1.msra.mxu0 0.0
    %3111 = vmatprep.subr.mxu0 0.0
    %3112 = vmatpush1.msra.mxu0 0.0
    %3113 = vmatprep.subr.mxu0 0.0
    %3114 = vmatpush1.msra.mxu0 0.0
    %3115 = vmatprep.subr.mxu0 0.0
    %3116 = vmatpush1.msra.mxu0 0.0
    %3117 = vmatprep.subr.mxu0 0.0
    %3118 = vmatpush1.msra.mxu0 0.0
    %3119 = vmatprep.subr.mxu0 0.0
    %3120 = vmatpush1.msra.mxu0 0.0
    %3121 = vmatprep.subr.mxu0 0.0
    %3122 = vmatpush1.msra.mxu0 0.0
    %3123 = vmatprep.subr.mxu0 0.0
    %3124 = vmatpush1.msra.mxu0 0.0
    %3125 = vmatprep.subr.mxu0 0.0
    %3126 = vmatpush1.msra.mxu0 0.0
    %3127 = vmatprep.subr.mxu0 0.0
    %3128 = vmatpush1.msra.mxu0 0.0
    %3129 = vmatprep.subr.mxu0 0.0
    %3130 = vmatpush1.msra.mxu0 0.0
    %3131 = vmatprep.subr.mxu0 0.0
    %3132 = vmatpush1.msra.mxu0 0.0
    %3133 = vmatprep.subr.mxu0 0.0
    %3134 = vmatpush1.msra.mxu0 0.0
    %3135 = vmatprep.subr.mxu0 0.0
    %3136 = vmatpush1.msra.mxu0 0.0
    %3137 = vmatprep.subr.mxu0 0.0
    %3138 = vmatpush1.msra.mxu0 0.0
    %3139 = vmatprep.subr.mxu0 0.0
    %3140 = vmatpush1.msra.mxu0 0.0
    %3141 = vmatprep.subr.mxu0 0.0
    %3142 = vmatpush1.msra.mxu0 0.0
    %3143 = vmatprep.subr.mxu0 0.0
    %3144 = vmatpush1.msra.mxu0 0.0
    %3145 = vmatprep.subr.mxu0 0.0
    %3146 = vmatpush1.msra.mxu0 0.0
    %3147 = vmatprep.subr.mxu0 0.0
    %3148 = vmatpush1.msra.mxu0 0.0
    %3149 = vmatprep.mubr.f32.mxu0 0.0
    %3150 = vmatmul.mubr.f32.gmra.mrb[0].mxu0 %v3083
    %v3151 = vpop.f32.mrb[0].mxu0
    %v3152 = vadd.f32 0.0, %v3151
    %v3153 = vpop.f32.mrb[0].mxu0
    %3154 = vdwg.mxu0
    %3155 = vrot.lane.b32.xlu0 %v787, 48
    %v3156 = vpop.permute.xlu0 %3155
    %v3159 = vsel %vm979, %v3078, 0
    %3161 = vmatprep.subr.mxu0 0.0
    %3162 = vmatpush1.msra.mxu0 %v3156
    %3163 = vmatprep.subr.mxu0 0.0
    %3164 = vmatpush1.msra.mxu0 0.0
    %3165 = vmatprep.subr.mxu0 0.0
    %3166 = vmatpush1.msra.mxu0 0.0
    %3167 = vmatprep.subr.mxu0 0.0
    %3168 = vmatpush1.msra.mxu0 0.0
    %3169 = vmatprep.subr.mxu0 0.0
    %3170 = vmatpush1.msra.mxu0 0.0
    %3171 = vmatprep.subr.mxu0 0.0
    %3172 = vmatpush1.msra.mxu0 0.0
    %3173 = vmatprep.subr.mxu0 0.0
    %3174 = vmatpush1.msra.mxu0 0.0
    %3175 = vmatprep.subr.mxu0 0.0
    %3176 = vmatpush1.msra.mxu0 0.0
    %3177 = vmatprep.subr.mxu0 0.0
    %3178 = vmatpush1.msra.mxu0 0.0
    %3179 = vmatprep.subr.mxu0 0.0
    %3180 = vmatpush1.msra.mxu0 0.0
    %3181 = vmatprep.subr.mxu0 0.0
    %3182 = vmatpush1.msra.mxu0 0.0
    %3183 = vmatprep.subr.mxu0 0.0
    %3184 = vmatpush1.msra.mxu0 0.0
    %3185 = vmatprep.subr.mxu0 0.0
    %3186 = vmatpush1.msra.mxu0 0.0
    %3187 = vmatprep.subr.mxu0 0.0
    %3188 = vmatpush1.msra.mxu0 0.0
    %3189 = vmatprep.subr.mxu0 0.0
    %3190 = vmatpush1.msra.mxu0 0.0
    %3191 = vmatprep.subr.mxu0 0.0
    %3192 = vmatpush1.msra.mxu0 0.0
    %3193 = vmatprep.subr.mxu0 0.0
    %3194 = vmatpush1.msra.mxu0 0.0
    %3195 = vmatprep.subr.mxu0 0.0
    %3196 = vmatpush1.msra.mxu0 0.0
    %3197 = vmatprep.subr.mxu0 0.0
    %3198 = vmatpush1.msra.mxu0 0.0
    %3199 = vmatprep.subr.mxu0 0.0
    %3200 = vmatpush1.msra.mxu0 0.0
    %3201 = vmatprep.subr.mxu0 0.0
    %3202 = vmatpush1.msra.mxu0 0.0
    %3203 = vmatprep.subr.mxu0 0.0
    %3204 = vmatpush1.msra.mxu0 0.0
    %3205 = vmatprep.subr.mxu0 0.0
    %3206 = vmatpush1.msra.mxu0 0.0
    %3207 = vmatprep.subr.mxu0 0.0
    %3208 = vmatpush1.msra.mxu0 0.0
    %3209 = vmatprep.subr.mxu0 0.0
    %3210 = vmatpush1.msra.mxu0 0.0
    %3211 = vmatprep.subr.mxu0 0.0
    %3212 = vmatpush1.msra.mxu0 0.0
    %3213 = vmatprep.subr.mxu0 0.0
    %3214 = vmatpush1.msra.mxu0 0.0
    %3215 = vmatprep.subr.mxu0 0.0
    %3216 = vmatpush1.msra.mxu0 0.0
    %3217 = vmatprep.subr.mxu0 0.0
    %3218 = vmatpush1.msra.mxu0 0.0
    %3219 = vmatprep.subr.mxu0 0.0
    %3220 = vmatpush1.msra.mxu0 0.0
    %3221 = vmatprep.subr.mxu0 0.0
    %3222 = vmatpush1.msra.mxu0 0.0
    %3223 = vmatprep.subr.mxu0 0.0
    %3224 = vmatpush1.msra.mxu0 0.0
    %3225 = vmatprep.mubr.f32.mxu0 0.0
    %3226 = vmatmul.mubr.f32.gmra.mrb[0].mxu0 %v3159
    %v3227 = vpop.f32.mrb[0].mxu0
    %v3228 = vadd.f32 0.0, %v3227
    %v3229 = vpop.f32.mrb[0].mxu0
    %3230 = vdwg.mxu0
    %v3232 = vsel %vm810, %v3152, 0
    %v3235 = vsel %vm810, %v3228, 0
    %3237 = vmatprep.subr.mxu0 0.0
    %3238 = vmatpush1.msra.mxu0 %v804
    %3239 = vmatprep.subr.mxu0 0.0
    %3240 = vmatpush1.msra.mxu0 %v805
    %3241 = vmatprep.subr.mxu0 0.0
    %3242 = vmatpush1.msra.mxu0 0.0
    %3243 = vmatprep.subr.mxu0 0.0
    %3244 = vmatpush1.msra.mxu0 0.0
    %3245 = vmatprep.subr.mxu0 0.0
    %3246 = vmatpush1.msra.mxu0 0.0
    %3247 = vmatprep.subr.mxu0 0.0
    %3248 = vmatpush1.msra.mxu0 0.0
    %3249 = vmatprep.subr.mxu0 0.0
    %3250 = vmatpush1.msra.mxu0 0.0
    %3251 = vmatprep.subr.mxu0 0.0
    %3252 = vmatpush1.msra.mxu0 0.0
    %3253 = vmatprep.subr.mxu0 0.0
    %3254 = vmatpush1.msra.mxu0 0.0
    %3255 = vmatprep.subr.mxu0 0.0
    %3256 = vmatpush1.msra.mxu0 0.0
    %3257 = vmatprep.subr.mxu0 0.0
    %3258 = vmatpush1.msra.mxu0 0.0
    %3259 = vmatprep.subr.mxu0 0.0
    %3260 = vmatpush1.msra.mxu0 0.0
    %3261 = vmatprep.subr.mxu0 0.0
    %3262 = vmatpush1.msra.mxu0 0.0
    %3263 = vmatprep.subr.mxu0 0.0
    %3264 = vmatpush1.msra.mxu0 0.0
    %3265 = vmatprep.subr.mxu0 0.0
    %3266 = vmatpush1.msra.mxu0 0.0
    %3267 = vmatprep.subr.mxu0 0.0
    %3268 = vmatpush1.msra.mxu0 0.0
    %3269 = vmatprep.subr.mxu0 0.0
    %3270 = vmatpush1.msra.mxu0 0.0
    %3271 = vmatprep.subr.mxu0 0.0
    %3272 = vmatpush1.msra.mxu0 0.0
    %3273 = vmatprep.subr.mxu0 0.0
    %3274 = vmatpush1.msra.mxu0 0.0
    %3275 = vmatprep.subr.mxu0 0.0
    %3276 = vmatpush1.msra.mxu0 0.0
    %3277 = vmatprep.subr.mxu0 0.0
    %3278 = vmatpush1.msra.mxu0 0.0
    %3279 = vmatprep.subr.mxu0 0.0
    %3280 = vmatpush1.msra.mxu0 0.0
    %3281 = vmatprep.subr.mxu0 0.0
    %3282 = vmatpush1.msra.mxu0 0.0
    %3283 = vmatprep.subr.mxu0 0.0
    %3284 = vmatpush1.msra.mxu0 0.0
    %3285 = vmatprep.subr.mxu0 0.0
    %3286 = vmatpush1.msra.mxu0 0.0
    %3287 = vmatprep.subr.mxu0 0.0
    %3288 = vmatpush1.msra.mxu0 0.0
    %3289 = vmatprep.subr.mxu0 0.0
    %3290 = vmatpush1.msra.mxu0 0.0
    %3291 = vmatprep.subr.mxu0 0.0
    %3292 = vmatpush1.msra.mxu0 0.0
    %3293 = vmatprep.subr.mxu0 0.0
    %3294 = vmatpush1.msra.mxu0 0.0
    %3295 = vmatprep.subr.mxu0 0.0
    %3296 = vmatpush1.msra.mxu0 0.0
    %3297 = vmatprep.subr.mxu0 0.0
    %3298 = vmatpush1.msra.mxu0 0.0
    %3299 = vmatprep.subr.mxu0 0.0
    %3300 = vmatpush1.msra.mxu0 0.0
    %3301 = vmatprep.mubr.f32.mxu0 0.0
    %3302 = vmatmul.mubr.f32.gmra.mrb[0].mxu0 %v3232
    %v3303 = vpop.f32.mrb[0].mxu0
    %v3304 = vadd.f32 0.0, %v3303
    %v3305 = vpop.f32.mrb[0].mxu0
    %3306 = vmatprep.mubr.f32.mxu0 0.0
    %3307 = vmatmul.mubr.f32.gmra.mrb[0].mxu0 %v3235
    %v3308 = vpop.f32.mrb[0].mxu0
    %v3309 = vadd.f32 0.0, %v3308
    %v3310 = vpop.f32.mrb[0].mxu0
    %3311 = vdwg.mxu0
    %v3312 = vadd.f32 %v2895, %v3304
    %v3313 = vadd.f32 %v2896, %v3309
    %3314 = vrot.lane.b32.xlu0 %v586, 32
    %v3315 = vpop.permute.xlu0 %3314
    %3316 = vrot.lane.b32.xlu0 %v684, 32
    %v3317 = vpop.permute.xlu0 %3316
    %v3318 = vsel %vm810, %v3315, 0
    %v3320 = vsel %vm810, %v3317, 0
    %3322 = vmatprep.subr.mxu0 0.0
    %3323 = vmatpush1.xpose.msra.mxu0 %v3320
    %3324 = vmatprep.subr.mxu0 0.0
    %3325 = vmatpush1.xpose.msra.mxu0 0.0
    %3326 = vmatprep.subr.mxu0 0.0
    %3327 = vmatpush1.xpose.msra.mxu0 0.0
    %3328 = vmatprep.subr.mxu0 0.0
    %3329 = vmatpush1.xpose.msra.mxu0 0.0
    %3330 = vmatprep.subr.mxu0 0.0
    %3331 = vmatpush1.xpose.msra.mxu0 0.0
    %3332 = vmatprep.subr.mxu0 0.0
    %3333 = vmatpush1.xpose.msra.mxu0 0.0
    %3334 = vmatprep.subr.mxu0 0.0
    %3335 = vmatpush1.xpose.msra.mxu0 0.0
    %3336 = vmatprep.subr.mxu0 0.0
    %3337 = vmatpush1.xpose.msra.mxu0 0.0
    %3338 = vmatprep.subr.mxu0 0.0
    %3339 = vmatpush1.xpose.msra.mxu0 0.0
    %3340 = vmatprep.subr.mxu0 0.0
    %3341 = vmatpush1.xpose.msra.mxu0 0.0
    %3342 = vmatprep.subr.mxu0 0.0
    %3343 = vmatpush1.xpose.msra.mxu0 0.0
    %3344 = vmatprep.subr.mxu0 0.0
    %3345 = vmatpush1.xpose.msra.mxu0 0.0
    %3346 = vmatprep.subr.mxu0 0.0
    %3347 = vmatpush1.xpose.msra.mxu0 0.0
    %3348 = vmatprep.subr.mxu0 0.0
    %3349 = vmatpush1.xpose.msra.mxu0 0.0
    %3350 = vmatprep.subr.mxu0 0.0
    %3351 = vmatpush1.xpose.msra.mxu0 0.0
    %3352 = vmatprep.subr.mxu0 0.0
    %3353 = vmatpush1.xpose.msra.mxu0 0.0
    %3354 = vmatprep.subr.mxu0 0.0
    %3355 = vmatpush1.xpose.msra.mxu0 0.0
    %3356 = vmatprep.subr.mxu0 0.0
    %3357 = vmatpush1.xpose.msra.mxu0 0.0
    %3358 = vmatprep.subr.mxu0 0.0
    %3359 = vmatpush1.xpose.msra.mxu0 0.0
    %3360 = vmatprep.subr.mxu0 0.0
    %3361 = vmatpush1.xpose.msra.mxu0 0.0
    %3362 = vmatprep.subr.mxu0 0.0
    %3363 = vmatpush1.xpose.msra.mxu0 0.0
    %3364 = vmatprep.subr.mxu0 0.0
    %3365 = vmatpush1.xpose.msra.mxu0 0.0
    %3366 = vmatprep.subr.mxu0 0.0
    %3367 = vmatpush1.xpose.msra.mxu0 0.0
    %3368 = vmatprep.subr.mxu0 0.0
    %3369 = vmatpush1.xpose.msra.mxu0 0.0
    %3370 = vmatprep.subr.mxu0 0.0
    %3371 = vmatpush1.xpose.msra.mxu0 0.0
    %3372 = vmatprep.subr.mxu0 0.0
    %3373 = vmatpush1.xpose.msra.mxu0 0.0
    %3374 = vmatprep.subr.mxu0 0.0
    %3375 = vmatpush1.xpose.msra.mxu0 0.0
    %3376 = vmatprep.subr.mxu0 0.0
    %3377 = vmatpush1.xpose.msra.mxu0 0.0
    %3378 = vmatprep.subr.mxu0 0.0
    %3379 = vmatpush1.xpose.msra.mxu0 0.0
    %3380 = vmatprep.subr.mxu0 0.0
    %3381 = vmatpush1.xpose.msra.mxu0 0.0
    %3382 = vmatprep.subr.mxu0 0.0
    %3383 = vmatpush1.xpose.msra.mxu0 0.0
    %3384 = vmatprep.subr.mxu0 0.0
    %3385 = vmatpush1.xpose.msra.mxu0 0.0
    %3386 = vmatprep.mubr.f32.mxu0 0.0
    %3387 = vmatmul.mubr.f32.gmra.mrb[0].mxu0 %v3318
    %v3388 = vpop.f32.mrb[0].mxu0
    %v3389 = vadd.f32 0.0, %v3388
    %v3390 = vpop.f32.mrb[0].mxu0
    %3391 = vdwg.mxu0
    %3392 = vrot.lane.b32.xlu0 %v591, 32
    %v3393 = vpop.permute.xlu0 %3392
    %3394 = vrot.lane.b32.xlu0 %v689, 32
    %v3395 = vpop.permute.xlu0 %3394
    %v3396 = vsel %vm810, %v3393, 0
    %v3398 = vsel %vm810, %v3395, 0
    %3400 = vmatprep.subr.mxu0 0.0
    %3401 = vmatpush1.xpose.msra.mxu0 %v3398
    %3402 = vmatprep.subr.mxu0 0.0
    %3403 = vmatpush1.xpose.msra.mxu0 0.0
    %3404 = vmatprep.subr.mxu0 0.0
    %3405 = vmatpush1.xpose.msra.mxu0 0.0
    %3406 = vmatprep.subr.mxu0 0.0
    %3407 = vmatpush1.xpose.msra.mxu0 0.0
    %3408 = vmatprep.subr.mxu0 0.0
    %3409 = vmatpush1.xpose.msra.mxu0 0.0
    %3410 = vmatprep.subr.mxu0 0.0
    %3411 = vmatpush1.xpose.msra.mxu0 0.0
    %3412 = vmatprep.subr.mxu0 0.0
    %3413 = vmatpush1.xpose.msra.mxu0 0.0
    %3414 = vmatprep.subr.mxu0 0.0
    %3415 = vmatpush1.xpose.msra.mxu0 0.0
    %3416 = vmatprep.subr.mxu0 0.0
    %3417 = vmatpush1.xpose.msra.mxu0 0.0
    %3418 = vmatprep.subr.mxu0 0.0
    %3419 = vmatpush1.xpose.msra.mxu0 0.0
    %3420 = vmatprep.subr.mxu0 0.0
    %3421 = vmatpush1.xpose.msra.mxu0 0.0
    %3422 = vmatprep.subr.mxu0 0.0
    %3423 = vmatpush1.xpose.msra.mxu0 0.0
    %3424 = vmatprep.subr.mxu0 0.0
    %3425 = vmatpush1.xpose.msra.mxu0 0.0
    %3426 = vmatprep.subr.mxu0 0.0
    %3427 = vmatpush1.xpose.msra.mxu0 0.0
    %3428 = vmatprep.subr.mxu0 0.0
    %3429 = vmatpush1.xpose.msra.mxu0 0.0
    %3430 = vmatprep.subr.mxu0 0.0
    %3431 = vmatpush1.xpose.msra.mxu0 0.0
    %3432 = vmatprep.subr.mxu0 0.0
    %3433 = vmatpush1.xpose.msra.mxu0 0.0
    %3434 = vmatprep.subr.mxu0 0.0
    %3435 = vmatpush1.xpose.msra.mxu0 0.0
    %3436 = vmatprep.subr.mxu0 0.0
    %3437 = vmatpush1.xpose.msra.mxu0 0.0
    %3438 = vmatprep.subr.mxu0 0.0
    %3439 = vmatpush1.xpose.msra.mxu0 0.0
    %3440 = vmatprep.subr.mxu0 0.0
    %3441 = vmatpush1.xpose.msra.mxu0 0.0
    %3442 = vmatprep.subr.mxu0 0.0
    %3443 = vmatpush1.xpose.msra.mxu0 0.0
    %3444 = vmatprep.subr.mxu0 0.0
    %3445 = vmatpush1.xpose.msra.mxu0 0.0
    %3446 = vmatprep.subr.mxu0 0.0
    %3447 = vmatpush1.xpose.msra.mxu0 0.0
    %3448 = vmatprep.subr.mxu0 0.0
    %3449 = vmatpush1.xpose.msra.mxu0 0.0
    %3450 = vmatprep.subr.mxu0 0.0
    %3451 = vmatpush1.xpose.msra.mxu0 0.0
    %3452 = vmatprep.subr.mxu0 0.0
    %3453 = vmatpush1.xpose.msra.mxu0 0.0
    %3454 = vmatprep.subr.mxu0 0.0
    %3455 = vmatpush1.xpose.msra.mxu0 0.0
    %3456 = vmatprep.subr.mxu0 0.0
    %3457 = vmatpush1.xpose.msra.mxu0 0.0
    %3458 = vmatprep.subr.mxu0 0.0
    %3459 = vmatpush1.xpose.msra.mxu0 0.0
    %3460 = vmatprep.subr.mxu0 0.0
    %3461 = vmatpush1.xpose.msra.mxu0 0.0
    %3462 = vmatprep.subr.mxu0 0.0
    %3463 = vmatpush1.xpose.msra.mxu0 0.0
    %3464 = vmatprep.mubr.f32.mxu0 0.0
    %3465 = vmatmul.mubr.f32.gmra.mrb[0].mxu0 %v3396
    %v3466 = vpop.f32.mrb[0].mxu0
    %v3467 = vadd.f32 0.0, %v3466
    %v3468 = vpop.f32.mrb[0].mxu0
    %3469 = vdwg.mxu0
    %v3470 = vmul.f32 %v3389, 0.25
    %v3471 = vmul.f32 %v3467, 0.25
    %v3472 = vadd.f32 %v3470, %v970
    %v3473 = vadd.f32 %v3471, %v974
    %v3474 = vsel %vm979, %v3472, -inf
    %3475 = vmax.xlane.f32.xlu0 %v3474
    %v3476 = vpop.xlane.xlu0 %3475
    %v3477 = vsel %vm979, %v3473, -inf
    %3478 = vmax.xlane.f32.xlu0 %v3477
    %v3479 = vpop.xlane.xlu0 %3478
    %v3480 = vsub.f32 %v3472, %v3476
    %v3481 = vsub.f32 %v3473, %v3479
    %v3482 = vmul.f32 %v3480, 1.442695
    %v3483 = vpow.pop %v3482
    %v3484 = vmul.f32 %v3481, 1.442695
    %v3485 = vpow.pop %v3484
    %v3486 = vsel %vm979, %v3483, 0.0
    %3487 = vadd.xlane.f32.xlu0 %v3486
    %v3488 = vpop.xlane.xlu0 %3487
    %v3489 = vsel %vm979, %v3485, 0.0
    %3490 = vadd.xlane.f32.xlu0 %v3489
    %v3491 = vpop.xlane.xlu0 %3490
    %v3492 = vrcp.pop %v3488
    %v3493 = vrcp.pop %v3491
    %v3494 = vmul.f32 %v3483, %v3492
    %v3495 = vmul.f32 %v3485, %v3493
    %3496 = vrot.lane.b32.xlu0 %v782, 32
    %v3497 = vpop.permute.xlu0 %3496
    %v3500 = vsel %vm979, %v3494, 0
    %3502 = vmatprep.subr.mxu0 0.0
    %3503 = vmatpush1.msra.mxu0 %v3497
    %3504 = vmatprep.subr.mxu0 0.0
    %3505 = vmatpush1.msra.mxu0 0.0
    %3506 = vmatprep.subr.mxu0 0.0
    %3507 = vmatpush1.msra.mxu0 0.0
    %3508 = vmatprep.subr.mxu0 0.0
    %3509 = vmatpush1.msra.mxu0 0.0
    %3510 = vmatprep.subr.mxu0 0.0
    %3511 = vmatpush1.msra.mxu0 0.0
    %3512 = vmatprep.subr.mxu0 0.0
    %3513 = vmatpush1.msra.mxu0 0.0
    %3514 = vmatprep.subr.mxu0 0.0
    %3515 = vmatpush1.msra.mxu0 0.0
    %3516 = vmatprep.subr.mxu0 0.0
    %3517 = vmatpush1.msra.mxu0 0.0
    %3518 = vmatprep.subr.mxu0 0.0
    %3519 = vmatpush1.msra.mxu0 0.0
    %3520 = vmatprep.subr.mxu0 0.0
    %3521 = vmatpush1.msra.mxu0 0.0
    %3522 = vmatprep.subr.mxu0 0.0
    %3523 = vmatpush1.msra.mxu0 0.0
    %3524 = vmatprep.subr.mxu0 0.0
    %3525 = vmatpush1.msra.mxu0 0.0
    %3526 = vmatprep.subr.mxu0 0.0
    %3527 = vmatpush1.msra.mxu0 0.0
    %3528 = vmatprep.subr.mxu0 0.0
    %3529 = vmatpush1.msra.mxu0 0.0
    %3530 = vmatprep.subr.mxu0 0.0
    %3531 = vmatpush1.msra.mxu0 0.0
    %3532 = vmatprep.subr.mxu0 0.0
    %3533 = vmatpush1.msra.mxu0 0.0
    %3534 = vmatprep.subr.mxu0 0.0
    %3535 = vmatpush1.msra.mxu0 0.0
    %3536 = vmatprep.subr.mxu0 0.0
    %3537 = vmatpush1.msra.mxu0 0.0
    %3538 = vmatprep.subr.mxu0 0.0
    %3539 = vmatpush1.msra.mxu0 0.0
    %3540 = vmatprep.subr.mxu0 0.0
    %3541 = vmatpush1.msra.mxu0 0.0
    %3542 = vmatprep.subr.mxu0 0.0
    %3543 = vmatpush1.msra.mxu0 0.0
    %3544 = vmatprep.subr.mxu0 0.0
    %3545 = vmatpush1.msra.mxu0 0.0
    %3546 = vmatprep.subr.mxu0 0.0
    %3547 = vmatpush1.msra.mxu0 0.0
    %3548 = vmatprep.subr.mxu0 0.0
    %3549 = vmatpush1.msra.mxu0 0.0
    %3550 = vmatprep.subr.mxu0 0.0
    %3551 = vmatpush1.msra.mxu0 0.0
    %3552 = vmatprep.subr.mxu0 0.0
    %3553 = vmatpush1.msra.mxu0 0.0
    %3554 = vmatprep.subr.mxu0 0.0
    %3555 = vmatpush1.msra.mxu0 0.0
    %3556 = vmatprep.subr.mxu0 0.0
    %3557 = vmatpush1.msra.mxu0 0.0
    %3558 = vmatprep.subr.mxu0 0.0
    %3559 = vmatpush1.msra.mxu0 0.0
    %3560 = vmatprep.subr.mxu0 0.0
    %3561 = vmatpush1.msra.mxu0 0.0
    %3562 = vmatprep.subr.mxu0 0.0
    %3563 = vmatpush1.msra.mxu0 0.0
    %3564 = vmatprep.subr.mxu0 0.0
    %3565 = vmatpush1.msra.mxu0 0.0
    %3566 = vmatprep.mubr.f32.mxu0 0.0
    %3567 = vmatmul.mubr.f32.gmra.mrb[0].mxu0 %v3500
    %v3568 = vpop.f32.mrb[0].mxu0
    %v3569 = vadd.f32 0.0, %v3568
    %v3570 = vpop.f32.mrb[0].mxu0
    %3571 = vdwg.mxu0
    %3572 = vrot.lane.b32.xlu0 %v787, 32
    %v3573 = vpop.permute.xlu0 %3572
    %v3576 = vsel %vm979, %v3495, 0
    %3578 = vmatprep.subr.mxu0 0.0
    %3579 = vmatpush1.msra.mxu0 %v3573
    %3580 = vmatprep.subr.mxu0 0.0
    %3581 = vmatpush1.msra.mxu0 0.0
    %3582 = vmatprep.subr.mxu0 0.0
    %3583 = vmatpush1.msra.mxu0 0.0
    %3584 = vmatprep.subr.mxu0 0.0
    %3585 = vmatpush1.msra.mxu0 0.0
    %3586 = vmatprep.subr.mxu0 0.0
    %3587 = vmatpush1.msra.mxu0 0.0
    %3588 = vmatprep.subr.mxu0 0.0
    %3589 = vmatpush1.msra.mxu0 0.0
    %3590 = vmatprep.subr.mxu0 0.0
    %3591 = vmatpush1.msra.mxu0 0.0
    %3592 = vmatprep.subr.mxu0 0.0
    %3593 = vmatpush1.msra.mxu0 0.0
    %3594 = vmatprep.subr.mxu0 0.0
    %3595 = vmatpush1.msra.mxu0 0.0
    %3596 = vmatprep.subr.mxu0 0.0
    %3597 = vmatpush1.msra.mxu0 0.0
    %3598 = vmatprep.subr.mxu0 0.0
    %3599 = vmatpush1.msra.mxu0 0.0
    %3600 = vmatprep.subr.mxu0 0.0
    %3601 = vmatpush1.msra.mxu0 0.0
    %3602 = vmatprep.subr.mxu0 0.0
    %3603 = vmatpush1.msra.mxu0 0.0
    %3604 = vmatprep.subr.mxu0 0.0
    %3605 = vmatpush1.msra.mxu0 0.0
    %3606 = vmatprep.subr.mxu0 0.0
    %3607 = vmatpush1.msra.mxu0 0.0
    %3608 = vmatprep.subr.mxu0 0.0
    %3609 = vmatpush1.msra.mxu0 0.0
    %3610 = vmatprep.subr.mxu0 0.0
    %3611 = vmatpush1.msra.mxu0 0.0
    %3612 = vmatprep.subr.mxu0 0.0
    %3613 = vmatpush1.msra.mxu0 0.0
    %3614 = vmatprep.subr.mxu0 0.0
    %3615 = vmatpush1.msra.mxu0 0.0
    %3616 = vmatprep.subr.mxu0 0.0
    %3617 = vmatpush1.msra.mxu0 0.0
    %3618 = vmatprep.subr.mxu0 0.0
    %3619 = vmatpush1.msra.mxu0 0.0
    %3620 = vmatprep.subr.mxu0 0.0
    %3621 = vmatpush1.msra.mxu0 0.0
    %3622 = vmatprep.subr.mxu0 0.0
    %3623 = vmatpush1.msra.mxu0 0.0
    %3624 = vmatprep.subr.mxu0 0.0
    %3625 = vmatpush1.msra.mxu0 0.0
    %3626 = vmatprep.subr.mxu0 0.0
    %3627 = vmatpush1.msra.mxu0 0.0
    %3628 = vmatprep.subr.mxu0 0.0
    %3629 = vmatpush1.msra.mxu0 0.0
    %3630 = vmatprep.subr.mxu0 0.0
    %3631 = vmatpush1.msra.mxu0 0.0
    %3632 = vmatprep.subr.mxu0 0.0
    %3633 = vmatpush1.msra.mxu0 0.0
    %3634 = vmatprep.subr.mxu0 0.0
    %3635 = vmatpush1.msra.mxu0 0.0
    %3636 = vmatprep.subr.mxu0 0.0
    %3637 = vmatpush1.msra.mxu0 0.0
    %3638 = vmatprep.subr.mxu0 0.0
    %3639 = vmatpush1.msra.mxu0 0.0
    %3640 = vmatprep.subr.mxu0 0.0
    %3641 = vmatpush1.msra.mxu0 0.0
    %3642 = vmatprep.mubr.f32.mxu0 0.0
    %3643 = vmatmul.mubr.f32.gmra.mrb[0].mxu0 %v3576
    %v3644 = vpop.f32.mrb[0].mxu0
    %v3645 = vadd.f32 0.0, %v3644
    %v3646 = vpop.f32.mrb[0].mxu0
    %3647 = vdwg.mxu0
    %v3649 = vsel %vm810, %v3569, 0
    %v3652 = vsel %vm810, %v3645, 0
    %3654 = vmatprep.subr.mxu0 0.0
    %3655 = vmatpush1.msra.mxu0 %v806
    %3656 = vmatprep.subr.mxu0 0.0
    %3657 = vmatpush1.msra.mxu0 %v807
    %3658 = vmatprep.subr.mxu0 0.0
    %3659 = vmatpush1.msra.mxu0 0.0
    %3660 = vmatprep.subr.mxu0 0.0
    %3661 = vmatpush1.msra.mxu0 0.0
    %3662 = vmatprep.subr.mxu0 0.0
    %3663 = vmatpush1.msra.mxu0 0.0
    %3664 = vmatprep.subr.mxu0 0.0
    %3665 = vmatpush1.msra.mxu0 0.0
    %3666 = vmatprep.subr.mxu0 0.0
    %3667 = vmatpush1.msra.mxu0 0.0
    %3668 = vmatprep.subr.mxu0 0.0
    %3669 = vmatpush1.msra.mxu0 0.0
    %3670 = vmatprep.subr.mxu0 0.0
    %3671 = vmatpush1.msra.mxu0 0.0
    %3672 = vmatprep.subr.mxu0 0.0
    %3673 = vmatpush1.msra.mxu0 0.0
    %3674 = vmatprep.subr.mxu0 0.0
    %3675 = vmatpush1.msra.mxu0 0.0
    %3676 = vmatprep.subr.mxu0 0.0
    %3677 = vmatpush1.msra.mxu0 0.0
    %3678 = vmatprep.subr.mxu0 0.0
    %3679 = vmatpush1.msra.mxu0 0.0
    %3680 = vmatprep.subr.mxu0 0.0
    %3681 = vmatpush1.msra.mxu0 0.0
    %3682 = vmatprep.subr.mxu0 0.0
    %3683 = vmatpush1.msra.mxu0 0.0
    %3684 = vmatprep.subr.mxu0 0.0
    %3685 = vmatpush1.msra.mxu0 0.0
    %3686 = vmatprep.subr.mxu0 0.0
    %3687 = vmatpush1.msra.mxu0 0.0
    %3688 = vmatprep.subr.mxu0 0.0
    %3689 = vmatpush1.msra.mxu0 0.0
    %3690 = vmatprep.subr.mxu0 0.0
    %3691 = vmatpush1.msra.mxu0 0.0
    %3692 = vmatprep.subr.mxu0 0.0
    %3693 = vmatpush1.msra.mxu0 0.0
    %3694 = vmatprep.subr.mxu0 0.0
    %3695 = vmatpush1.msra.mxu0 0.0
    %3696 = vmatprep.subr.mxu0 0.0
    %3697 = vmatpush1.msra.mxu0 0.0
    %3698 = vmatprep.subr.mxu0 0.0
    %3699 = vmatpush1.msra.mxu0 0.0
    %3700 = vmatprep.subr.mxu0 0.0
    %3701 = vmatpush1.msra.mxu0 0.0
    %3702 = vmatprep.subr.mxu0 0.0
    %3703 = vmatpush1.msra.mxu0 0.0
    %3704 = vmatprep.subr.mxu0 0.0
    %3705 = vmatpush1.msra.mxu0 0.0
    %3706 = vmatprep.subr.mxu0 0.0
    %3707 = vmatpush1.msra.mxu0 0.0
    %3708 = vmatprep.subr.mxu0 0.0
    %3709 = vmatpush1.msra.mxu0 0.0
    %3710 = vmatprep.subr.mxu0 0.0
    %3711 = vmatpush1.msra.mxu0 0.0
    %3712 = vmatprep.subr.mxu0 0.0
    %3713 = vmatpush1.msra.mxu0 0.0
    %3714 = vmatprep.subr.mxu0 0.0
    %3715 = vmatpush1.msra.mxu0 0.0
    %3716 = vmatprep.subr.mxu0 0.0
    %3717 = vmatpush1.msra.mxu0 0.0
    %3718 = vmatprep.mubr.f32.mxu0 0.0
    %3719 = vmatmul.mubr.f32.gmra.mrb[0].mxu0 %v3649
    %v3720 = vpop.f32.mrb[0].mxu0
    %v3721 = vadd.f32 0.0, %v3720
    %v3722 = vpop.f32.mrb[0].mxu0
    %3723 = vmatprep.mubr.f32.mxu0 0.0
    %3724 = vmatmul.mubr.f32.gmra.mrb[0].mxu0 %v3652
    %v3725 = vpop.f32.mrb[0].mxu0
    %v3726 = vadd.f32 0.0, %v3725
    %v3727 = vpop.f32.mrb[0].mxu0
    %3728 = vdwg.mxu0
    %v3729 = vadd.f32 %v3312, %v3721
    %v3730 = vadd.f32 %v3313, %v3726
    %3731 = vrot.lane.b32.xlu0 %v586, 16
    %v3732 = vpop.permute.xlu0 %3731
    %3733 = vrot.lane.b32.xlu0 %v684, 16
    %v3734 = vpop.permute.xlu0 %3733
    %v3735 = vsel %vm810, %v3732, 0
    %v3737 = vsel %vm810, %v3734, 0
    %3739 = vmatprep.subr.mxu0 0.0
    %3740 = vmatpush1.xpose.msra.mxu0 %v3737
    %3741 = vmatprep.subr.mxu0 0.0
    %3742 = vmatpush1.xpose.msra.mxu0 0.0
    %3743 = vmatprep.subr.mxu0 0.0
    %3744 = vmatpush1.xpose.msra.mxu0 0.0
    %3745 = vmatprep.subr.mxu0 0.0
    %3746 = vmatpush1.xpose.msra.mxu0 0.0
    %3747 = vmatprep.subr.mxu0 0.0
    %3748 = vmatpush1.xpose.msra.mxu0 0.0
    %3749 = vmatprep.subr.mxu0 0.0
    %3750 = vmatpush1.xpose.msra.mxu0 0.0
    %3751 = vmatprep.subr.mxu0 0.0
    %3752 = vmatpush1.xpose.msra.mxu0 0.0
    %3753 = vmatprep.subr.mxu0 0.0
    %3754 = vmatpush1.xpose.msra.mxu0 0.0
    %3755 = vmatprep.subr.mxu0 0.0
    %3756 = vmatpush1.xpose.msra.mxu0 0.0
    %3757 = vmatprep.subr.mxu0 0.0
    %3758 = vmatpush1.xpose.msra.mxu0 0.0
    %3759 = vmatprep.subr.mxu0 0.0
    %3760 = vmatpush1.xpose.msra.mxu0 0.0
    %3761 = vmatprep.subr.mxu0 0.0
    %3762 = vmatpush1.xpose.msra.mxu0 0.0
    %3763 = vmatprep.subr.mxu0 0.0
    %3764 = vmatpush1.xpose.msra.mxu0 0.0
    %3765 = vmatprep.subr.mxu0 0.0
    %3766 = vmatpush1.xpose.msra.mxu0 0.0
    %3767 = vmatprep.subr.mxu0 0.0
    %3768 = vmatpush1.xpose.msra.mxu0 0.0
    %3769 = vmatprep.subr.mxu0 0.0
    %3770 = vmatpush1.xpose.msra.mxu0 0.0
    %3771 = vmatprep.subr.mxu0 0.0
    %3772 = vmatpush1.xpose.msra.mxu0 0.0
    %3773 = vmatprep.subr.mxu0 0.0
    %3774 = vmatpush1.xpose.msra.mxu0 0.0
    %3775 = vmatprep.subr.mxu0 0.0
    %3776 = vmatpush1.xpose.msra.mxu0 0.0
    %3777 = vmatprep.subr.mxu0 0.0
    %3778 = vmatpush1.xpose.msra.mxu0 0.0
    %3779 = vmatprep.subr.mxu0 0.0
    %3780 = vmatpush1.xpose.msra.mxu0 0.0
    %3781 = vmatprep.subr.mxu0 0.0
    %3782 = vmatpush1.xpose.msra.mxu0 0.0
    %3783 = vmatprep.subr.mxu0 0.0
    %3784 = vmatpush1.xpose.msra.mxu0 0.0
    %3785 = vmatprep.subr.mxu0 0.0
    %3786 = vmatpush1.xpose.msra.mxu0 0.0
    %3787 = vmatprep.subr.mxu0 0.0
    %3788 = vmatpush1.xpose.msra.mxu0 0.0
    %3789 = vmatprep.subr.mxu0 0.0
    %3790 = vmatpush1.xpose.msra.mxu0 0.0
    %3791 = vmatprep.subr.mxu0 0.0
    %3792 = vmatpush1.xpose.msra.mxu0 0.0
    %3793 = vmatprep.subr.mxu0 0.0
    %3794 = vmatpush1.xpose.msra.mxu0 0.0
    %3795 = vmatprep.subr.mxu0 0.0
    %3796 = vmatpush1.xpose.msra.mxu0 0.0
    %3797 = vmatprep.subr.mxu0 0.0
    %3798 = vmatpush1.xpose.msra.mxu0 0.0
    %3799 = vmatprep.subr.mxu0 0.0
    %3800 = vmatpush1.xpose.msra.mxu0 0.0
    %3801 = vmatprep.subr.mxu0 0.0
    %3802 = vmatpush1.xpose.msra.mxu0 0.0
    %3803 = vmatprep.mubr.f32.mxu0 0.0
    %3804 = vmatmul.mubr.f32.gmra.mrb[0].mxu0 %v3735
    %v3805 = vpop.f32.mrb[0].mxu0
    %v3806 = vadd.f32 0.0, %v3805
    %v3807 = vpop.f32.mrb[0].mxu0
    %3808 = vdwg.mxu0
    %3809 = vrot.lane.b32.xlu0 %v591, 16
    %v3810 = vpop.permute.xlu0 %3809
    %3811 = vrot.lane.b32.xlu0 %v689, 16
    %v3812 = vpop.permute.xlu0 %3811
    %v3813 = vsel %vm810, %v3810, 0
    %v3815 = vsel %vm810, %v3812, 0
    %3817 = vmatprep.subr.mxu0 0.0
    %3818 = vmatpush1.xpose.msra.mxu0 %v3815
    %3819 = vmatprep.subr.mxu0 0.0
    %3820 = vmatpush1.xpose.msra.mxu0 0.0
    %3821 = vmatprep.subr.mxu0 0.0
    %3822 = vmatpush1.xpose.msra.mxu0 0.0
    %3823 = vmatprep.subr.mxu0 0.0
    %3824 = vmatpush1.xpose.msra.mxu0 0.0
    %3825 = vmatprep.subr.mxu0 0.0
    %3826 = vmatpush1.xpose.msra.mxu0 0.0
    %3827 = vmatprep.subr.mxu0 0.0
    %3828 = vmatpush1.xpose.msra.mxu0 0.0
    %3829 = vmatprep.subr.mxu0 0.0
    %3830 = vmatpush1.xpose.msra.mxu0 0.0
    %3831 = vmatprep.subr.mxu0 0.0
    %3832 = vmatpush1.xpose.msra.mxu0 0.0
    %3833 = vmatprep.subr.mxu0 0.0
    %3834 = vmatpush1.xpose.msra.mxu0 0.0
    %3835 = vmatprep.subr.mxu0 0.0
    %3836 = vmatpush1.xpose.msra.mxu0 0.0
    %3837 = vmatprep.subr.mxu0 0.0
    %3838 = vmatpush1.xpose.msra.mxu0 0.0
    %3839 = vmatprep.subr.mxu0 0.0
    %3840 = vmatpush1.xpose.msra.mxu0 0.0
    %3841 = vmatprep.subr.mxu0 0.0
    %3842 = vmatpush1.xpose.msra.mxu0 0.0
    %3843 = vmatprep.subr.mxu0 0.0
    %3844 = vmatpush1.xpose.msra.mxu0 0.0
    %3845 = vmatprep.subr.mxu0 0.0
    %3846 = vmatpush1.xpose.msra.mxu0 0.0
    %3847 = vmatprep.subr.mxu0 0.0
    %3848 = vmatpush1.xpose.msra.mxu0 0.0
    %3849 = vmatprep.subr.mxu0 0.0
    %3850 = vmatpush1.xpose.msra.mxu0 0.0
    %3851 = vmatprep.subr.mxu0 0.0
    %3852 = vmatpush1.xpose.msra.mxu0 0.0
    %3853 = vmatprep.subr.mxu0 0.0
    %3854 = vmatpush1.xpose.msra.mxu0 0.0
    %3855 = vmatprep.subr.mxu0 0.0
    %3856 = vmatpush1.xpose.msra.mxu0 0.0
    %3857 = vmatprep.subr.mxu0 0.0
    %3858 = vmatpush1.xpose.msra.mxu0 0.0
    %3859 = vmatprep.subr.mxu0 0.0
    %3860 = vmatpush1.xpose.msra.mxu0 0.0
    %3861 = vmatprep.subr.mxu0 0.0
    %3862 = vmatpush1.xpose.msra.mxu0 0.0
    %3863 = vmatprep.subr.mxu0 0.0
    %3864 = vmatpush1.xpose.msra.mxu0 0.0
    %3865 = vmatprep.subr.mxu0 0.0
    %3866 = vmatpush1.xpose.msra.mxu0 0.0
    %3867 = vmatprep.subr.mxu0 0.0
    %3868 = vmatpush1.xpose.msra.mxu0 0.0
    %3869 = vmatprep.subr.mxu0 0.0
    %3870 = vmatpush1.xpose.msra.mxu0 0.0
    %3871 = vmatprep.subr.mxu0 0.0
    %3872 = vmatpush1.xpose.msra.mxu0 0.0
    %3873 = vmatprep.subr.mxu0 0.0
    %3874 = vmatpush1.xpose.msra.mxu0 0.0
    %3875 = vmatprep.subr.mxu0 0.0
    %3876 = vmatpush1.xpose.msra.mxu0 0.0
    %3877 = vmatprep.subr.mxu0 0.0
    %3878 = vmatpush1.xpose.msra.mxu0 0.0
    %3879 = vmatprep.subr.mxu0 0.0
    %3880 = vmatpush1.xpose.msra.mxu0 0.0
    %3881 = vmatprep.mubr.f32.mxu0 0.0
    %3882 = vmatmul.mubr.f32.gmra.mrb[0].mxu0 %v3813
    %v3883 = vpop.f32.mrb[0].mxu0
    %v3884 = vadd.f32 0.0, %v3883
    %v3885 = vpop.f32.mrb[0].mxu0
    %3886 = vdwg.mxu0
    %v3887 = vmul.f32 %v3806, 0.25
    %v3888 = vmul.f32 %v3884, 0.25
    %v3889 = vadd.f32 %v3887, %v970
    %v3890 = vadd.f32 %v3888, %v974
    %v3891 = vsel %vm979, %v3889, -inf
    %3892 = vmax.xlane.f32.xlu0 %v3891
    %v3893 = vpop.xlane.xlu0 %3892
    %v3894 = vsel %vm979, %v3890, -inf
    %3895 = vmax.xlane.f32.xlu0 %v3894
    %v3896 = vpop.xlane.xlu0 %3895
    %v3897 = vsub.f32 %v3889, %v3893
    %v3898 = vsub.f32 %v3890, %v3896
    %v3899 = vmul.f32 %v3897, 1.442695
    %v3900 = vpow.pop %v3899
    %v3901 = vmul.f32 %v3898, 1.442695
    %v3902 = vpow.pop %v3901
    %v3903 = vsel %vm979, %v3900, 0.0
    %3904 = vadd.xlane.f32.xlu0 %v3903
    %v3905 = vpop.xlane.xlu0 %3904
    %v3906 = vsel %vm979, %v3902, 0.0
    %3907 = vadd.xlane.f32.xlu0 %v3906
    %v3908 = vpop.xlane.xlu0 %3907
    %v3909 = vrcp.pop %v3905
    %v3910 = vrcp.pop %v3908
    %v3911 = vmul.f32 %v3900, %v3909
    %v3912 = vmul.f32 %v3902, %v3910
    %3913 = vrot.lane.b32.xlu0 %v782, 16
    %v3914 = vpop.permute.xlu0 %3913
    %v3917 = vsel %vm979, %v3911, 0
    %3919 = vmatprep.subr.mxu0 0.0
    %3920 = vmatpush1.msra.mxu0 %v3914
    %3921 = vmatprep.subr.mxu0 0.0
    %3922 = vmatpush1.msra.mxu0 0.0
    %3923 = vmatprep.subr.mxu0 0.0
    %3924 = vmatpush1.msra.mxu0 0.0
    %3925 = vmatprep.subr.mxu0 0.0
    %3926 = vmatpush1.msra.mxu0 0.0
    %3927 = vmatprep.subr.mxu0 0.0
    %3928 = vmatpush1.msra.mxu0 0.0
    %3929 = vmatprep.subr.mxu0 0.0
    %3930 = vmatpush1.msra.mxu0 0.0
    %3931 = vmatprep.subr.mxu0 0.0
    %3932 = vmatpush1.msra.mxu0 0.0
    %3933 = vmatprep.subr.mxu0 0.0
    %3934 = vmatpush1.msra.mxu0 0.0
    %3935 = vmatprep.subr.mxu0 0.0
    %3936 = vmatpush1.msra.mxu0 0.0
    %3937 = vmatprep.subr.mxu0 0.0
    %3938 = vmatpush1.msra.mxu0 0.0
    %3939 = vmatprep.subr.mxu0 0.0
    %3940 = vmatpush1.msra.mxu0 0.0
    %3941 = vmatprep.subr.mxu0 0.0
    %3942 = vmatpush1.msra.mxu0 0.0
    %3943 = vmatprep.subr.mxu0 0.0
    %3944 = vmatpush1.msra.mxu0 0.0
    %3945 = vmatprep.subr.mxu0 0.0
    %3946 = vmatpush1.msra.mxu0 0.0
    %3947 = vmatprep.subr.mxu0 0.0
    %3948 = vmatpush1.msra.mxu0 0.0
    %3949 = vmatprep.subr.mxu0 0.0
    %3950 = vmatpush1.msra.mxu0 0.0
    %3951 = vmatprep.subr.mxu0 0.0
    %3952 = vmatpush1.msra.mxu0 0.0
    %3953 = vmatprep.subr.mxu0 0.0
    %3954 = vmatpush1.msra.mxu0 0.0
    %3955 = vmatprep.subr.mxu0 0.0
    %3956 = vmatpush1.msra.mxu0 0.0
    %3957 = vmatprep.subr.mxu0 0.0
    %3958 = vmatpush1.msra.mxu0 0.0
    %3959 = vmatprep.subr.mxu0 0.0
    %3960 = vmatpush1.msra.mxu0 0.0
    %3961 = vmatprep.subr.mxu0 0.0
    %3962 = vmatpush1.msra.mxu0 0.0
    %3963 = vmatprep.subr.mxu0 0.0
    %3964 = vmatpush1.msra.mxu0 0.0
    %3965 = vmatprep.subr.mxu0 0.0
    %3966 = vmatpush1.msra.mxu0 0.0
    %3967 = vmatprep.subr.mxu0 0.0
    %3968 = vmatpush1.msra.mxu0 0.0
    %3969 = vmatprep.subr.mxu0 0.0
    %3970 = vmatpush1.msra.mxu0 0.0
    %3971 = vmatprep.subr.mxu0 0.0
    %3972 = vmatpush1.msra.mxu0 0.0
    %3973 = vmatprep.subr.mxu0 0.0
    %3974 = vmatpush1.msra.mxu0 0.0
    %3975 = vmatprep.subr.mxu0 0.0
    %3976 = vmatpush1.msra.mxu0 0.0
    %3977 = vmatprep.subr.mxu0 0.0
    %3978 = vmatpush1.msra.mxu0 0.0
    %3979 = vmatprep.subr.mxu0 0.0
    %3980 = vmatpush1.msra.mxu0 0.0
    %3981 = vmatprep.subr.mxu0 0.0
    %3982 = vmatpush1.msra.mxu0 0.0
    %3983 = vmatprep.mubr.f32.mxu0 0.0
    %3984 = vmatmul.mubr.f32.gmra.mrb[0].mxu0 %v3917
    %v3985 = vpop.f32.mrb[0].mxu0
    %v3986 = vadd.f32 0.0, %v3985
    %v3987 = vpop.f32.mrb[0].mxu0
    %3988 = vdwg.mxu0
    %3989 = vrot.lane.b32.xlu0 %v787, 16
    %v3990 = vpop.permute.xlu0 %3989
    %v3993 = vsel %vm979, %v3912, 0
    %3995 = vmatprep.subr.mxu0 0.0
    %3996 = vmatpush1.msra.mxu0 %v3990
    %3997 = vmatprep.subr.mxu0 0.0
    %3998 = vmatpush1.msra.mxu0 0.0
    %3999 = vmatprep.subr.mxu0 0.0
    %4000 = vmatpush1.msra.mxu0 0.0
    %4001 = vmatprep.subr.mxu0 0.0
    %4002 = vmatpush1.msra.mxu0 0.0
    %4003 = vmatprep.subr.mxu0 0.0
    %4004 = vmatpush1.msra.mxu0 0.0
    %4005 = vmatprep.subr.mxu0 0.0
    %4006 = vmatpush1.msra.mxu0 0.0
    %4007 = vmatprep.subr.mxu0 0.0
    %4008 = vmatpush1.msra.mxu0 0.0
    %4009 = vmatprep.subr.mxu0 0.0
    %4010 = vmatpush1.msra.mxu0 0.0
    %4011 = vmatprep.subr.mxu0 0.0
    %4012 = vmatpush1.msra.mxu0 0.0
    %4013 = vmatprep.subr.mxu0 0.0
    %4014 = vmatpush1.msra.mxu0 0.0
    %4015 = vmatprep.subr.mxu0 0.0
    %4016 = vmatpush1.msra.mxu0 0.0
    %4017 = vmatprep.subr.mxu0 0.0
    %4018 = vmatpush1.msra.mxu0 0.0
    %4019 = vmatprep.subr.mxu0 0.0
    %4020 = vmatpush1.msra.mxu0 0.0
    %4021 = vmatprep.subr.mxu0 0.0
    %4022 = vmatpush1.msra.mxu0 0.0
    %4023 = vmatprep.subr.mxu0 0.0
    %4024 = vmatpush1.msra.mxu0 0.0
    %4025 = vmatprep.subr.mxu0 0.0
    %4026 = vmatpush1.msra.mxu0 0.0
    %4027 = vmatprep.subr.mxu0 0.0
    %4028 = vmatpush1.msra.mxu0 0.0
    %4029 = vmatprep.subr.mxu0 0.0
    %4030 = vmatpush1.msra.mxu0 0.0
    %4031 = vmatprep.subr.mxu0 0.0
    %4032 = vmatpush1.msra.mxu0 0.0
    %4033 = vmatprep.subr.mxu0 0.0
    %4034 = vmatpush1.msra.mxu0 0.0
    %4035 = vmatprep.subr.mxu0 0.0
    %4036 = vmatpush1.msra.mxu0 0.0
    %4037 = vmatprep.subr.mxu0 0.0
    %4038 = vmatpush1.msra.mxu0 0.0
    %4039 = vmatprep.subr.mxu0 0.0
    %4040 = vmatpush1.msra.mxu0 0.0
    %4041 = vmatprep.subr.mxu0 0.0
    %4042 = vmatpush1.msra.mxu0 0.0
    %4043 = vmatprep.subr.mxu0 0.0
    %4044 = vmatpush1.msra.mxu0 0.0
    %4045 = vmatprep.subr.mxu0 0.0
    %4046 = vmatpush1.msra.mxu0 0.0
    %4047 = vmatprep.subr.mxu0 0.0
    %4048 = vmatpush1.msra.mxu0 0.0
    %4049 = vmatprep.subr.mxu0 0.0
    %4050 = vmatpush1.msra.mxu0 0.0
    %4051 = vmatprep.subr.mxu0 0.0
    %4052 = vmatpush1.msra.mxu0 0.0
    %4053 = vmatprep.subr.mxu0 0.0
    %4054 = vmatpush1.msra.mxu0 0.0
    %4055 = vmatprep.subr.mxu0 0.0
    %4056 = vmatpush1.msra.mxu0 0.0
    %4057 = vmatprep.subr.mxu0 0.0
    %4058 = vmatpush1.msra.mxu0 0.0
    %4059 = vmatprep.mubr.f32.mxu0 0.0
    %4060 = vmatmul.mubr.f32.gmra.mrb[0].mxu0 %v3993
    %v4061 = vpop.f32.mrb[0].mxu0
    %v4062 = vadd.f32 0.0, %v4061
    %v4063 = vpop.f32.mrb[0].mxu0
    %4064 = vdwg.mxu0
    %v4066 = vsel %vm810, %v3986, 0
    %v4069 = vsel %vm810, %v4062, 0
    %4071 = vmatprep.subr.mxu0 0.0
    %4072 = vmatpush1.msra.mxu0 %v808
    %4073 = vmatprep.subr.mxu0 0.0
    %4074 = vmatpush1.msra.mxu0 %v809
    %4075 = vmatprep.subr.mxu0 0.0
    %4076 = vmatpush1.msra.mxu0 0.0
    %4077 = vmatprep.subr.mxu0 0.0
    %4078 = vmatpush1.msra.mxu0 0.0
    %4079 = vmatprep.subr.mxu0 0.0
    %4080 = vmatpush1.msra.mxu0 0.0
    %4081 = vmatprep.subr.mxu0 0.0
    %4082 = vmatpush1.msra.mxu0 0.0
    %4083 = vmatprep.subr.mxu0 0.0
    %4084 = vmatpush1.msra.mxu0 0.0
    %4085 = vmatprep.subr.mxu0 0.0
    %4086 = vmatpush1.msra.mxu0 0.0
    %4087 = vmatprep.subr.mxu0 0.0
    %4088 = vmatpush1.msra.mxu0 0.0
    %4089 = vmatprep.subr.mxu0 0.0
    %4090 = vmatpush1.msra.mxu0 0.0
    %4091 = vmatprep.subr.mxu0 0.0
    %4092 = vmatpush1.msra.mxu0 0.0
    %4093 = vmatprep.subr.mxu0 0.0
    %4094 = vmatpush1.msra.mxu0 0.0
    %4095 = vmatprep.subr.mxu0 0.0
    %4096 = vmatpush1.msra.mxu0 0.0
    %4097 = vmatprep.subr.mxu0 0.0
    %4098 = vmatpush1.msra.mxu0 0.0
    %4099 = vmatprep.subr.mxu0 0.0
    %4100 = vmatpush1.msra.mxu0 0.0
    %4101 = vmatprep.subr.mxu0 0.0
    %4102 = vmatpush1.msra.mxu0 0.0
    %4103 = vmatprep.subr.mxu0 0.0
    %4104 = vmatpush1.msra.mxu0 0.0
    %4105 = vmatprep.subr.mxu0 0.0
    %4106 = vmatpush1.msra.mxu0 0.0
    %4107 = vmatprep.subr.mxu0 0.0
    %4108 = vmatpush1.msra.mxu0 0.0
    %4109 = vmatprep.subr.mxu0 0.0
    %4110 = vmatpush1.msra.mxu0 0.0
    %4111 = vmatprep.subr.mxu0 0.0
    %4112 = vmatpush1.msra.mxu0 0.0
    %4113 = vmatprep.subr.mxu0 0.0
    %4114 = vmatpush1.msra.mxu0 0.0
    %4115 = vmatprep.subr.mxu0 0.0
    %4116 = vmatpush1.msra.mxu0 0.0
    %4117 = vmatprep.subr.mxu0 0.0
    %4118 = vmatpush1.msra.mxu0 0.0
    %4119 = vmatprep.subr.mxu0 0.0
    %4120 = vmatpush1.msra.mxu0 0.0
    %4121 = vmatprep.subr.mxu0 0.0
    %4122 = vmatpush1.msra.mxu0 0.0
    %4123 = vmatprep.subr.mxu0 0.0
    %4124 = vmatpush1.msra.mxu0 0.0
    %4125 = vmatprep.subr.mxu0 0.0
    %4126 = vmatpush1.msra.mxu0 0.0
    %4127 = vmatprep.subr.mxu0 0.0
    %4128 = vmatpush1.msra.mxu0 0.0
    %4129 = vmatprep.subr.mxu0 0.0
    %4130 = vmatpush1.msra.mxu0 0.0
    %4131 = vmatprep.subr.mxu0 0.0
    %4132 = vmatpush1.msra.mxu0 0.0
    %4133 = vmatprep.subr.mxu0 0.0
    %4134 = vmatpush1.msra.mxu0 0.0
    %4135 = vmatprep.mubr.f32.mxu0 0.0
    %4136 = vmatmul.mubr.f32.gmra.mrb[0].mxu0 %v4066
    %v4137 = vpop.f32.mrb[0].mxu0
    %v4138 = vadd.f32 0.0, %v4137
    %v4139 = vpop.f32.mrb[0].mxu0
    %4140 = vmatprep.mubr.f32.mxu0 0.0
    %4141 = vmatmul.mubr.f32.gmra.mrb[0].mxu0 %v4069
    %v4142 = vpop.f32.mrb[0].mxu0
    %v4143 = vadd.f32 0.0, %v4142
    %v4144 = vpop.f32.mrb[0].mxu0
    %4145 = vdwg.mxu0
    %v4146 = vadd.f32 %v3729, %v4138
    %v4147 = vadd.f32 %v3730, %v4143
    %v4148 = vld [vmem:[#allocation8] sm:$0x1]
    %v4150 = vlaneseq
    %v4151 = vshrl.u32 %v4150, 7
    %v4152 = vsub.s32 0, %v4151
    %v4153 = vrot.slane %v4148, %v4152
    %v4155 = vadd.f32 %v4146, %v4153
    %v4156 = vadd.f32 %v4147, %v4153
    %v4157 = vadd.f32 %v488, %v4155
    %v4158 = vadd.f32 %v493, %v4156
    %v4159 = vld [vmem:[%s25] sm:$0x1]
    %v4160 = vld [vmem:[%s27] sm:$0x1]
    %4161 = vadd.xlane.f32.xlu0 %v4157
    %v4162 = vpop.xlane.xlu0 %4161
    %4163 = vadd.xlane.f32.xlu0 %v4158
    %v4164 = vpop.xlane.xlu0 %4163
    %v4165 = vrcp.pop 128.0
    %v4166 = vmul.f32 %v4162, %v4165
    %v4167 = vmul.f32 %v4164, %v4165
    %v4168 = vsub.f32 %v4157, %v4166
    %v4169 = vsub.f32 %v4158, %v4167
    %v4170 = vmul.f32 %v4168, %v4168
    %v4171 = vmul.f32 %v4169, %v4169
    %4172 = vadd.xlane.f32.xlu0 %v4170
    %v4173 = vpop.xlane.xlu0 %4172
    %4174 = vadd.xlane.f32.xlu0 %v4171
    %v4175 = vpop.xlane.xlu0 %4174
    %v4176 = vmul.f32 %v4173, %v4165
    %v4177 = vmul.f32 %v4175, %v4165
    %v4178 = vadd.f32 %v4176, 1e-05
    %v4179 = vadd.f32 %v4177, 1e-05
    %v4180 = vrsqrt.pop %v4178
    %v4181 = vrsqrt.pop %v4179
    %v4182 = vmul.f32 %v4168, %v4180
    %v4183 = vmul.f32 %v4169, %v4181
    %v4185 = vlaneseq
    %v4186 = vshrl.u32 %v4185, 7
    %v4187 = vsub.s32 0, %v4186
    %v4188 = vrot.slane %v4159, %v4187
    %v4190 = vmul.f32 %v4182, %v4188
    %v4191 = vmul.f32 %v4183, %v4188
    %v4193 = vlaneseq
    %v4194 = vshrl.u32 %v4193, 7
    %v4195 = vsub.s32 0, %v4194
    %v4196 = vrot.slane %v4160, %v4195
    %v4198 = vadd.f32 %v4190, %v4196
    %v4199 = vadd.f32 %v4191, %v4196
    %v4200 = vld [vmem:[#allocation10] sm:$0xff]
    %v4201 = vld [vmem:[#allocation10 + $0x8] sm:$0xff]
    %v4202 = vld [vmem:[#allocation10 + $0x10] sm:$0xff]
    %v4203 = vld [vmem:[#allocation10 + $0x18] sm:$0xff]
    %v4204 = vld [vmem:[#allocation10 + $0x20] sm:$0xff]
    %v4205 = vld [vmem:[#allocation10 + $0x28] sm:$0xff]
    %v4206 = vld [vmem:[#allocation10 + $0x30] sm:$0xff]
    %v4207 = vld [vmem:[#allocation10 + $0x38] sm:$0xff]
    %v4208 = vld [vmem:[#allocation10 + $0x40] sm:$0xff]
    %v4209 = vld [vmem:[#allocation10 + $0x48] sm:$0xff]
    %v4210 = vld [vmem:[#allocation10 + $0x50] sm:$0xff]
    %v4211 = vld [vmem:[#allocation10 + $0x58] sm:$0xff]
    %v4212 = vld [vmem:[#allocation10 + $0x60] sm:$0xff]
    %v4213 = vld [vmem:[#allocation10 + $0x68] sm:$0xff]
    %v4214 = vld [vmem:[#allocation10 + $0x70] sm:$0xff]
    %v4215 = vld [vmem:[#allocation10 + $0x78] sm:$0xff]
    %v4216 = vld [vmem:[#allocation10 + $0x80] sm:$0xff]
    %v4217 = vld [vmem:[#allocation10 + $0x88] sm:$0xff]
    %v4218 = vld [vmem:[#allocation10 + $0x90] sm:$0xff]
    %v4219 = vld [vmem:[#allocation10 + $0x98] sm:$0xff]
    %v4220 = vld [vmem:[#allocation10 + $0xa0] sm:$0xff]
    %v4221 = vld [vmem:[#allocation10 + $0xa8] sm:$0xff]
    %v4222 = vld [vmem:[#allocation10 + $0xb0] sm:$0xff]
    %v4223 = vld [vmem:[#allocation10 + $0xb8] sm:$0xff]
    %v4224 = vld [vmem:[#allocation10 + $0xc0] sm:$0xff]
    %v4225 = vld [vmem:[#allocation10 + $0xc8] sm:$0xff]
    %v4226 = vld [vmem:[#allocation10 + $0xd0] sm:$0xff]
    %v4227 = vld [vmem:[#allocation10 + $0xd8] sm:$0xff]
    %v4228 = vld [vmem:[#allocation10 + $0xe0] sm:$0xff]
    %v4229 = vld [vmem:[#allocation10 + $0xe8] sm:$0xff]
    %v4230 = vld [vmem:[#allocation10 + $0xf0] sm:$0xff]
    %v4231 = vld [vmem:[#allocation10 + $0xf8] sm:$0xff]
    %v4232 = vld [vmem:[#allocation10 + $0x100] sm:$0xff]
    %v4233 = vld [vmem:[#allocation10 + $0x108] sm:$0xff]
    %v4234 = vld [vmem:[#allocation10 + $0x110] sm:$0xff]
    %v4235 = vld [vmem:[#allocation10 + $0x118] sm:$0xff]
    %v4236 = vld [vmem:[#allocation10 + $0x120] sm:$0xff]
    %v4237 = vld [vmem:[#allocation10 + $0x128] sm:$0xff]
    %v4238 = vld [vmem:[#allocation10 + $0x130] sm:$0xff]
    %v4239 = vld [vmem:[#allocation10 + $0x138] sm:$0xff]
    %v4240 = vld [vmem:[#allocation10 + $0x140] sm:$0xff]
    %v4241 = vld [vmem:[#allocation10 + $0x148] sm:$0xff]
    %v4242 = vld [vmem:[#allocation10 + $0x150] sm:$0xff]
    %v4243 = vld [vmem:[#allocation10 + $0x158] sm:$0xff]
    %v4244 = vld [vmem:[#allocation10 + $0x160] sm:$0xff]
    %v4245 = vld [vmem:[#allocation10 + $0x168] sm:$0xff]
    %v4246 = vld [vmem:[#allocation10 + $0x170] sm:$0xff]
    %v4247 = vld [vmem:[#allocation10 + $0x178] sm:$0xff]
    %v4248 = vld [vmem:[#allocation10 + $0x180] sm:$0xff]
    %v4249 = vld [vmem:[#allocation10 + $0x188] sm:$0xff]
    %v4250 = vld [vmem:[#allocation10 + $0x190] sm:$0xff]
    %v4251 = vld [vmem:[#allocation10 + $0x198] sm:$0xff]
    %v4252 = vld [vmem:[#allocation10 + $0x1a0] sm:$0xff]
    %v4253 = vld [vmem:[#allocation10 + $0x1a8] sm:$0xff]
    %v4254 = vld [vmem:[#allocation10 + $0x1b0] sm:$0xff]
    %v4255 = vld [vmem:[#allocation10 + $0x1b8] sm:$0xff]
    %v4256 = vld [vmem:[#allocation10 + $0x1c0] sm:$0xff]
    %v4257 = vld [vmem:[#allocation10 + $0x1c8] sm:$0xff]
    %v4258 = vld [vmem:[#allocation10 + $0x1d0] sm:$0xff]
    %v4259 = vld [vmem:[#allocation10 + $0x1d8] sm:$0xff]
    %v4260 = vld [vmem:[#allocation10 + $0x1e0] sm:$0xff]
    %v4261 = vld [vmem:[#allocation10 + $0x1e8] sm:$0xff]
    %v4262 = vld [vmem:[#allocation10 + $0x1f0] sm:$0xff]
    %v4263 = vld [vmem:[#allocation10 + $0x1f8] sm:$0xff]
    %v4264 = vld [vmem:[#allocation10 + $0x200] sm:$0xff]
    %v4265 = vld [vmem:[#allocation10 + $0x208] sm:$0xff]
    %v4266 = vld [vmem:[#allocation10 + $0x210] sm:$0xff]
    %v4267 = vld [vmem:[#allocation10 + $0x218] sm:$0xff]
    %v4268 = vld [vmem:[#allocation10 + $0x220] sm:$0xff]
    %v4269 = vld [vmem:[#allocation10 + $0x228] sm:$0xff]
    %v4270 = vld [vmem:[#allocation10 + $0x230] sm:$0xff]
    %v4271 = vld [vmem:[#allocation10 + $0x238] sm:$0xff]
    %v4272 = vld [vmem:[#allocation10 + $0x240] sm:$0xff]
    %v4273 = vld [vmem:[#allocation10 + $0x248] sm:$0xff]
    %v4274 = vld [vmem:[#allocation10 + $0x250] sm:$0xff]
    %v4275 = vld [vmem:[#allocation10 + $0x258] sm:$0xff]
    %v4276 = vld [vmem:[#allocation10 + $0x260] sm:$0xff]
    %v4277 = vld [vmem:[#allocation10 + $0x268] sm:$0xff]
    %v4278 = vld [vmem:[#allocation10 + $0x270] sm:$0xff]
    %v4279 = vld [vmem:[#allocation10 + $0x278] sm:$0xff]
    %v4280 = vld [vmem:[#allocation10 + $0x280] sm:$0xff]
    %v4281 = vld [vmem:[#allocation10 + $0x288] sm:$0xff]
    %v4282 = vld [vmem:[#allocation10 + $0x290] sm:$0xff]
    %v4283 = vld [vmem:[#allocation10 + $0x298] sm:$0xff]
    %v4284 = vld [vmem:[#allocation10 + $0x2a0] sm:$0xff]
    %v4285 = vld [vmem:[#allocation10 + $0x2a8] sm:$0xff]
    %v4286 = vld [vmem:[#allocation10 + $0x2b0] sm:$0xff]
    %v4287 = vld [vmem:[#allocation10 + $0x2b8] sm:$0xff]
    %v4288 = vld [vmem:[#allocation10 + $0x2c0] sm:$0xff]
    %v4289 = vld [vmem:[#allocation10 + $0x2c8] sm:$0xff]
    %v4290 = vld [vmem:[#allocation10 + $0x2d0] sm:$0xff]
    %v4291 = vld [vmem:[#allocation10 + $0x2d8] sm:$0xff]
    %v4292 = vld [vmem:[#allocation10 + $0x2e0] sm:$0xff]
    %v4293 = vld [vmem:[#allocation10 + $0x2e8] sm:$0xff]
    %v4294 = vld [vmem:[#allocation10 + $0x2f0] sm:$0xff]
    %v4295 = vld [vmem:[#allocation10 + $0x2f8] sm:$0xff]
    %v4296 = vld [vmem:[#allocation10 + $0x300] sm:$0xff]
    %v4297 = vld [vmem:[#allocation10 + $0x308] sm:$0xff]
    %v4298 = vld [vmem:[#allocation10 + $0x310] sm:$0xff]
    %v4299 = vld [vmem:[#allocation10 + $0x318] sm:$0xff]
    %v4300 = vld [vmem:[#allocation10 + $0x320] sm:$0xff]
    %v4301 = vld [vmem:[#allocation10 + $0x328] sm:$0xff]
    %v4302 = vld [vmem:[#allocation10 + $0x330] sm:$0xff]
    %v4303 = vld [vmem:[#allocation10 + $0x338] sm:$0xff]
    %v4304 = vld [vmem:[#allocation10 + $0x340] sm:$0xff]
    %v4305 = vld [vmem:[#allocation10 + $0x348] sm:$0xff]
    %v4306 = vld [vmem:[#allocation10 + $0x350] sm:$0xff]
    %v4307 = vld [vmem:[#allocation10 + $0x358] sm:$0xff]
    %v4308 = vld [vmem:[#allocation10 + $0x360] sm:$0xff]
    %v4309 = vld [vmem:[#allocation10 + $0x368] sm:$0xff]
    %v4310 = vld [vmem:[#allocation10 + $0x370] sm:$0xff]
    %v4311 = vld [vmem:[#allocation10 + $0x378] sm:$0xff]
    %v4312 = vld [vmem:[#allocation10 + $0x380] sm:$0xff]
    %v4313 = vld [vmem:[#allocation10 + $0x388] sm:$0xff]
    %v4314 = vld [vmem:[#allocation10 + $0x390] sm:$0xff]
    %v4315 = vld [vmem:[#allocation10 + $0x398] sm:$0xff]
    %v4316 = vld [vmem:[#allocation10 + $0x3a0] sm:$0xff]
    %v4317 = vld [vmem:[#allocation10 + $0x3a8] sm:$0xff]
    %v4318 = vld [vmem:[#allocation10 + $0x3b0] sm:$0xff]
    %v4319 = vld [vmem:[#allocation10 + $0x3b8] sm:$0xff]
    %v4320 = vld [vmem:[#allocation10 + $0x3c0] sm:$0xff]
    %v4321 = vld [vmem:[#allocation10 + $0x3c8] sm:$0xff]
    %v4322 = vld [vmem:[#allocation10 + $0x3d0] sm:$0xff]
    %v4323 = vld [vmem:[#allocation10 + $0x3d8] sm:$0xff]
    %v4324 = vld [vmem:[#allocation10 + $0x3e0] sm:$0xff]
    %v4325 = vld [vmem:[#allocation10 + $0x3e8] sm:$0xff]
    %v4326 = vld [vmem:[#allocation10 + $0x3f0] sm:$0xff]
    %v4327 = vld [vmem:[#allocation10 + $0x3f8] sm:$0xff]
    %v4328 = vld [vmem:[#allocation11] sm:$0xff]
    %v4330 = vlaneseq
    %v4331 = vshrl.u32 %v4330, 7
    %v4332 = vsub.s32 0, %v4331
    %v4333 = vrot.slane %v4328, %v4332
    %v4334 = vlaneseq
    %v4335 = vshrl.u32 %v4334, 7
    %v4336 = vsub.s32 1, %v4335
    %v4337 = vrot.slane %v4328, %v4336
    %v4338 = vlaneseq
    %v4339 = vshrl.u32 %v4338, 7
    %v4340 = vsub.s32 2, %v4339
    %v4341 = vrot.slane %v4328, %v4340
    %v4342 = vlaneseq
    %v4343 = vshrl.u32 %v4342, 7
    %v4344 = vsub.s32 3, %v4343
    %v4345 = vrot.slane %v4328, %v4344
    %v4346 = vlaneseq
    %v4347 = vshrl.u32 %v4346, 7
    %v4348 = vsub.s32 4, %v4347
    %v4349 = vrot.slane %v4328, %v4348
    %v4350 = vlaneseq
    %v4351 = vshrl.u32 %v4350, 7
    %v4352 = vsub.s32 5, %v4351
    %v4353 = vrot.slane %v4328, %v4352
    %v4354 = vlaneseq
    %v4355 = vshrl.u32 %v4354, 7
    %v4356 = vsub.s32 6, %v4355
    %v4357 = vrot.slane %v4328, %v4356
    %v4358 = vlaneseq
    %v4359 = vshrl.u32 %v4358, 7
    %v4360 = vsub.s32 7, %v4359
    %v4361 = vrot.slane %v4328, %v4360
    %4370 = vmatprep.subr.mxu0 %v4201
    %4371 = vmatpush1.msra.mxu0 %v4200
    %4372 = vmatprep.subr.mxu0 %v4209
    %4373 = vmatpush1.msra.mxu0 %v4208
    %4374 = vmatprep.subr.mxu0 %v4217
    %4375 = vmatpush1.msra.mxu0 %v4216
    %4376 = vmatprep.subr.mxu0 %v4225
    %4377 = vmatpush1.msra.mxu0 %v4224
    %4378 = vmatprep.subr.mxu0 %v4233
    %4379 = vmatpush1.msra.mxu0 %v4232
    %4380 = vmatprep.subr.mxu0 %v4241
    %4381 = vmatpush1.msra.mxu0 %v4240
    %4382 = vmatprep.subr.mxu0 %v4249
    %4383 = vmatpush1.msra.mxu0 %v4248
    %4384 = vmatprep.subr.mxu0 %v4257
    %4385 = vmatpush1.msra.mxu0 %v4256
    %4386 = vmatprep.subr.mxu0 %v4265
    %4387 = vmatpush1.msra.mxu0 %v4264
    %4388 = vmatprep.subr.mxu0 %v4273
    %4389 = vmatpush1.msra.mxu0 %v4272
    %4390 = vmatprep.subr.mxu0 %v4281
    %4391 = vmatpush1.msra.mxu0 %v4280
    %4392 = vmatprep.subr.mxu0 %v4289
    %4393 = vmatpush1.msra.mxu0 %v4288
    %4394 = vmatprep.subr.mxu0 %v4297
    %4395 = vmatpush1.msra.mxu0 %v4296
    %4396 = vmatprep.subr.mxu0 %v4305
    %4397 = vmatpush1.msra.mxu0 %v4304
    %4398 = vmatprep.subr.mxu0 %v4313
    %4399 = vmatpush1.msra.mxu0 %v4312
    %4400 = vmatprep.subr.mxu0 %v4321
    %4401 = vmatpush1.msra.mxu0 %v4320
    %4402 = vmatprep.subr.mxu0 0.0
    %4403 = vmatpush1.msra.mxu0 0.0
    %4404 = vmatprep.subr.mxu0 0.0
    %4405 = vmatpush1.msra.mxu0 0.0
    %4406 = vmatprep.subr.mxu0 0.0
    %4407 = vmatpush1.msra.mxu0 0.0
    %4408 = vmatprep.subr.mxu0 0.0
    %4409 = vmatpush1.msra.mxu0 0.0
    %4410 = vmatprep.subr.mxu0 0.0
    %4411 = vmatpush1.msra.mxu0 0.0
    %4412 = vmatprep.subr.mxu0 0.0
    %4413 = vmatpush1.msra.mxu0 0.0
    %4414 = vmatprep.subr.mxu0 0.0
    %4415 = vmatpush1.msra.mxu0 0.0
    %4416 = vmatprep.subr.mxu0 0.0
    %4417 = vmatpush1.msra.mxu0 0.0
    %4418 = vmatprep.subr.mxu0 0.0
    %4419 = vmatpush1.msra.mxu0 0.0
    %4420 = vmatprep.subr.mxu0 0.0
    %4421 = vmatpush1.msra.mxu0 0.0
    %4422 = vmatprep.subr.mxu0 0.0
    %4423 = vmatpush1.msra.mxu0 0.0
    %4424 = vmatprep.subr.mxu0 0.0
    %4425 = vmatpush1.msra.mxu0 0.0
    %4426 = vmatprep.subr.mxu0 0.0
    %4427 = vmatpush1.msra.mxu0 0.0
    %4428 = vmatprep.subr.mxu0 0.0
    %4429 = vmatpush1.msra.mxu0 0.0
    %4430 = vmatprep.subr.mxu0 0.0
    %4431 = vmatpush1.msra.mxu0 0.0
    %4432 = vmatprep.subr.mxu0 0.0
    %4433 = vmatpush1.msra.mxu0 0.0
    %4434 = vmatprep.mubr.f32.mxu0 0.0
    %4435 = vmatmul.mubr.f32.gmra.mrb[0].mxu0 %v4198
    %v4436 = vpop.f32.mrb[0].mxu0
    %v4437 = vadd.f32 %v4333, %v4436
    %v4438 = vpop.f32.mrb[0].mxu0
    %v4439 = vadd.f32 %v4337, %v4438
    %4440 = vmatprep.mubr.f32.mxu0 0.0
    %4441 = vmatmul.mubr.f32.gmra.mrb[0].mxu0 %v4199
    %v4442 = vpop.f32.mrb[0].mxu0
    %v4443 = vadd.f32 %v4333, %v4442
    %v4444 = vpop.f32.mrb[0].mxu0
    %v4445 = vadd.f32 %v4337, %v4444
    %4446 = vdwg.mxu0
    %4447 = vmatprep.subr.mxu0 %v4203
    %4448 = vmatpush1.msra.mxu0 %v4202
    %4449 = vmatprep.subr.mxu0 %v4211
    %4450 = vmatpush1.msra.mxu0 %v4210
    %4451 = vmatprep.subr.mxu0 %v4219
    %4452 = vmatpush1.msra.mxu0 %v4218
    %4453 = vmatprep.subr.mxu0 %v4227
    %4454 = vmatpush1.msra.mxu0 %v4226
    %4455 = vmatprep.subr.mxu0 %v4235
    %4456 = vmatpush1.msra.mxu0 %v4234
    %4457 = vmatprep.subr.mxu0 %v4243
    %4458 = vmatpush1.msra.mxu0 %v4242
    %4459 = vmatprep.subr.mxu0 %v4251
    %4460 = vmatpush1.msra.mxu0 %v4250
    %4461 = vmatprep.subr.mxu0 %v4259
    %4462 = vmatpush1.msra.mxu0 %v4258
    %4463 = vmatprep.subr.mxu0 %v4267
    %4464 = vmatpush1.msra.mxu0 %v4266
    %4465 = vmatprep.subr.mxu0 %v4275
    %4466 = vmatpush1.msra.mxu0 %v4274
    %4467 = vmatprep.subr.mxu0 %v4283
    %4468 = vmatpush1.msra.mxu0 %v4282
    %4469 = vmatprep.subr.mxu0 %v4291
    %4470 = vmatpush1.msra.mxu0 %v4290
    %4471 = vmatprep.subr.mxu0 %v4299
    %4472 = vmatpush1.msra.mxu0 %v4298
    %4473 = vmatprep.subr.mxu0 %v4307
    %4474 = vmatpush1.msra.mxu0 %v4306
    %4475 = vmatprep.subr.mxu0 %v4315
    %4476 = vmatpush1.msra.mxu0 %v4314
    %4477 = vmatprep.subr.mxu0 %v4323
    %4478 = vmatpush1.msra.mxu0 %v4322
    %4479 = vmatprep.subr.mxu0 0.0
    %4480 = vmatpush1.msra.mxu0 0.0
    %4481 = vmatprep.subr.mxu0 0.0
    %4482 = vmatpush1.msra.mxu0 0.0
    %4483 = vmatprep.subr.mxu0 0.0
    %4484 = vmatpush1.msra.mxu0 0.0
    %4485 = vmatprep.subr.mxu0 0.0
    %4486 = vmatpush1.msra.mxu0 0.0
    %4487 = vmatprep.subr.mxu0 0.0
    %4488 = vmatpush1.msra.mxu0 0.0
    %4489 = vmatprep.subr.mxu0 0.0
    %4490 = vmatpush1.msra.mxu0 0.0
    %4491 = vmatprep.subr.mxu0 0.0
    %4492 = vmatpush1.msra.mxu0 0.0
    %4493 = vmatprep.subr.mxu0 0.0
    %4494 = vmatpush1.msra.mxu0 0.0
    %4495 = vmatprep.subr.mxu0 0.0
    %4496 = vmatpush1.msra.mxu0 0.0
    %4497 = vmatprep.subr.mxu0 0.0
    %4498 = vmatpush1.msra.mxu0 0.0
    %4499 = vmatprep.subr.mxu0 0.0
    %4500 = vmatpush1.msra.mxu0 0.0
    %4501 = vmatprep.subr.mxu0 0.0
    %4502 = vmatpush1.msra.mxu0 0.0
    %4503 = vmatprep.subr.mxu0 0.0
    %4504 = vmatpush1.msra.mxu0 0.0
    %4505 = vmatprep.subr.mxu0 0.0
    %4506 = vmatpush1.msra.mxu0 0.0
    %4507 = vmatprep.subr.mxu0 0.0
    %4508 = vmatpush1.msra.mxu0 0.0
    %4509 = vmatprep.subr.mxu0 0.0
    %4510 = vmatpush1.msra.mxu0 0.0
    %4511 = vmatprep.mubr.f32.mxu0 0.0
    %4512 = vmatmul.mubr.f32.gmra.mrb[0].mxu0 %v4198
    %v4513 = vpop.f32.mrb[0].mxu0
    %v4514 = vadd.f32 %v4341, %v4513
    %v4515 = vpop.f32.mrb[0].mxu0
    %v4516 = vadd.f32 %v4345, %v4515
    %4517 = vmatprep.mubr.f32.mxu0 0.0
    %4518 = vmatmul.mubr.f32.gmra.mrb[0].mxu0 %v4199
    %v4519 = vpop.f32.mrb[0].mxu0
    %v4520 = vadd.f32 %v4341, %v4519
    %v4521 = vpop.f32.mrb[0].mxu0
    %v4522 = vadd.f32 %v4345, %v4521
    %4523 = vdwg.mxu0
    %4524 = vmatprep.subr.mxu0 %v4205
    %4525 = vmatpush1.msra.mxu0 %v4204
    %4526 = vmatprep.subr.mxu0 %v4213
    %4527 = vmatpush1.msra.mxu0 %v4212
    %4528 = vmatprep.subr.mxu0 %v4221
    %4529 = vmatpush1.msra.mxu0 %v4220
    %4530 = vmatprep.subr.mxu0 %v4229
    %4531 = vmatpush1.msra.mxu0 %v4228
    %4532 = vmatprep.subr.mxu0 %v4237
    %4533 = vmatpush1.msra.mxu0 %v4236
    %4534 = vmatprep.subr.mxu0 %v4245
    %4535 = vmatpush1.msra.mxu0 %v4244
    %4536 = vmatprep.subr.mxu0 %v4253
    %4537 = vmatpush1.msra.mxu0 %v4252
    %4538 = vmatprep.subr.mxu0 %v4261
    %4539 = vmatpush1.msra.mxu0 %v4260
    %4540 = vmatprep.subr.mxu0 %v4269
    %4541 = vmatpush1.msra.mxu0 %v4268
    %4542 = vmatprep.subr.mxu0 %v4277
    %4543 = vmatpush1.msra.mxu0 %v4276
    %4544 = vmatprep.subr.mxu0 %v4285
    %4545 = vmatpush1.msra.mxu0 %v4284
    %4546 = vmatprep.subr.mxu0 %v4293
    %4547 = vmatpush1.msra.mxu0 %v4292
    %4548 = vmatprep.subr.mxu0 %v4301
    %4549 = vmatpush1.msra.mxu0 %v4300
    %4550 = vmatprep.subr.mxu0 %v4309
    %4551 = vmatpush1.msra.mxu0 %v4308
    %4552 = vmatprep.subr.mxu0 %v4317
    %4553 = vmatpush1.msra.mxu0 %v4316
    %4554 = vmatprep.subr.mxu0 %v4325
    %4555 = vmatpush1.msra.mxu0 %v4324
    %4556 = vmatprep.subr.mxu0 0.0
    %4557 = vmatpush1.msra.mxu0 0.0
    %4558 = vmatprep.subr.mxu0 0.0
    %4559 = vmatpush1.msra.mxu0 0.0
    %4560 = vmatprep.subr.mxu0 0.0
    %4561 = vmatpush1.msra.mxu0 0.0
    %4562 = vmatprep.subr.mxu0 0.0
    %4563 = vmatpush1.msra.mxu0 0.0
    %4564 = vmatprep.subr.mxu0 0.0
    %4565 = vmatpush1.msra.mxu0 0.0
    %4566 = vmatprep.subr.mxu0 0.0
    %4567 = vmatpush1.msra.mxu0 0.0
    %4568 = vmatprep.subr.mxu0 0.0
    %4569 = vmatpush1.msra.mxu0 0.0
    %4570 = vmatprep.subr.mxu0 0.0
    %4571 = vmatpush1.msra.mxu0 0.0
    %4572 = vmatprep.subr.mxu0 0.0
    %4573 = vmatpush1.msra.mxu0 0.0
    %4574 = vmatprep.subr.mxu0 0.0
    %4575 = vmatpush1.msra.mxu0 0.0
    %4576 = vmatprep.subr.mxu0 0.0
    %4577 = vmatpush1.msra.mxu0 0.0
    %4578 = vmatprep.subr.mxu0 0.0
    %4579 = vmatpush1.msra.mxu0 0.0
    %4580 = vmatprep.subr.mxu0 0.0
    %4581 = vmatpush1.msra.mxu0 0.0
    %4582 = vmatprep.subr.mxu0 0.0
    %4583 = vmatpush1.msra.mxu0 0.0
    %4584 = vmatprep.subr.mxu0 0.0
    %4585 = vmatpush1.msra.mxu0 0.0
    %4586 = vmatprep.subr.mxu0 0.0
    %4587 = vmatpush1.msra.mxu0 0.0
    %4588 = vmatprep.mubr.f32.mxu0 0.0
    %4589 = vmatmul.mubr.f32.gmra.mrb[0].mxu0 %v4198
    %v4590 = vpop.f32.mrb[0].mxu0
    %v4591 = vadd.f32 %v4349, %v4590
    %v4592 = vpop.f32.mrb[0].mxu0
    %v4593 = vadd.f32 %v4353, %v4592
    %4594 = vmatprep.mubr.f32.mxu0 0.0
    %4595 = vmatmul.mubr.f32.gmra.mrb[0].mxu0 %v4199
    %v4596 = vpop.f32.mrb[0].mxu0
    %v4597 = vadd.f32 %v4349, %v4596
    %v4598 = vpop.f32.mrb[0].mxu0
    %v4599 = vadd.f32 %v4353, %v4598
    %4600 = vdwg.mxu0
    %4601 = vmatprep.subr.mxu0 %v4207
    %4602 = vmatpush1.msra.mxu0 %v4206
    %4603 = vmatprep.subr.mxu0 %v4215
    %4604 = vmatpush1.msra.mxu0 %v4214
    %4605 = vmatprep.subr.mxu0 %v4223
    %4606 = vmatpush1.msra.mxu0 %v4222
    %4607 = vmatprep.subr.mxu0 %v4231
    %4608 = vmatpush1.msra.mxu0 %v4230
    %4609 = vmatprep.subr.mxu0 %v4239
    %4610 = vmatpush1.msra.mxu0 %v4238
    %4611 = vmatprep.subr.mxu0 %v4247
    %4612 = vmatpush1.msra.mxu0 %v4246
    %4613 = vmatprep.subr.mxu0 %v4255
    %4614 = vmatpush1.msra.mxu0 %v4254
    %4615 = vmatprep.subr.mxu0 %v4263
    %4616 = vmatpush1.msra.mxu0 %v4262
    %4617 = vmatprep.subr.mxu0 %v4271
    %4618 = vmatpush1.msra.mxu0 %v4270
    %4619 = vmatprep.subr.mxu0 %v4279
    %4620 = vmatpush1.msra.mxu0 %v4278
    %4621 = vmatprep.subr.mxu0 %v4287
    %4622 = vmatpush1.msra.mxu0 %v4286
    %4623 = vmatprep.subr.mxu0 %v4295
    %4624 = vmatpush1.msra.mxu0 %v4294
    %4625 = vmatprep.subr.mxu0 %v4303
    %4626 = vmatpush1.msra.mxu0 %v4302
    %4627 = vmatprep.subr.mxu0 %v4311
    %4628 = vmatpush1.msra.mxu0 %v4310
    %4629 = vmatprep.subr.mxu0 %v4319
    %4630 = vmatpush1.msra.mxu0 %v4318
    %4631 = vmatprep.subr.mxu0 %v4327
    %4632 = vmatpush1.msra.mxu0 %v4326
    %4633 = vmatprep.subr.mxu0 0.0
    %4634 = vmatpush1.msra.mxu0 0.0
    %4635 = vmatprep.subr.mxu0 0.0
    %4636 = vmatpush1.msra.mxu0 0.0
    %4637 = vmatprep.subr.mxu0 0.0
    %4638 = vmatpush1.msra.mxu0 0.0
    %4639 = vmatprep.subr.mxu0 0.0
    %4640 = vmatpush1.msra.mxu0 0.0
    %4641 = vmatprep.subr.mxu0 0.0
    %4642 = vmatpush1.msra.mxu0 0.0
    %4643 = vmatprep.subr.mxu0 0.0
    %4644 = vmatpush1.msra.mxu0 0.0
    %4645 = vmatprep.subr.mxu0 0.0
    %4646 = vmatpush1.msra.mxu0 0.0
    %4647 = vmatprep.subr.mxu0 0.0
    %4648 = vmatpush1.msra.mxu0 0.0
    %4649 = vmatprep.subr.mxu0 0.0
    %4650 = vmatpush1.msra.mxu0 0.0
    %4651 = vmatprep.subr.mxu0 0.0
    %4652 = vmatpush1.msra.mxu0 0.0
    %4653 = vmatprep.subr.mxu0 0.0
    %4654 = vmatpush1.msra.mxu0 0.0
    %4655 = vmatprep.subr.mxu0 0.0
    %4656 = vmatpush1.msra.mxu0 0.0
    %4657 = vmatprep.subr.mxu0 0.0
    %4658 = vmatpush1.msra.mxu0 0.0
    %4659 = vmatprep.subr.mxu0 0.0
    %4660 = vmatpush1.msra.mxu0 0.0
    %4661 = vmatprep.subr.mxu0 0.0
    %4662 = vmatpush1.msra.mxu0 0.0
    %4663 = vmatprep.subr.mxu0 0.0
    %4664 = vmatpush1.msra.mxu0 0.0
    %4665 = vmatprep.mubr.f32.mxu0 0.0
    %4666 = vmatmul.mubr.f32.gmra.mrb[0].mxu0 %v4198
    %v4667 = vpop.f32.mrb[0].mxu0
    %v4668 = vadd.f32 %v4357, %v4667
    %v4669 = vpop.f32.mrb[0].mxu0
    %v4670 = vadd.f32 %v4361, %v4669
    %4671 = vmatprep.mubr.f32.mxu0 0.0
    %4672 = vmatmul.mubr.f32.gmra.mrb[0].mxu0 %v4199
    %v4673 = vpop.f32.mrb[0].mxu0
    %v4674 = vadd.f32 %v4357, %v4673
    %v4675 = vpop.f32.mrb[0].mxu0
    %v4676 = vadd.f32 %v4361, %v4675
    %4677 = vdwg.mxu0
    %v4678 = vmax.f32 %v4437, 0.0
    %v4679 = vmax.f32 %v4439, 0.0
    %v4680 = vmax.f32 %v4514, 0.0
    %v4681 = vmax.f32 %v4516, 0.0
    %v4682 = vmax.f32 %v4591, 0.0
    %v4683 = vmax.f32 %v4593, 0.0
    %v4684 = vmax.f32 %v4668, 0.0
    %v4685 = vmax.f32 %v4670, 0.0
    %v4686 = vmax.f32 %v4443, 0.0
    %v4687 = vmax.f32 %v4445, 0.0
    %v4688 = vmax.f32 %v4520, 0.0
    %v4689 = vmax.f32 %v4522, 0.0
    %v4690 = vmax.f32 %v4597, 0.0
    %v4691 = vmax.f32 %v4599, 0.0
    %v4692 = vmax.f32 %v4674, 0.0
    %v4693 = vmax.f32 %v4676, 0.0
    %v4694 = vld [vmem:[#allocation13] sm:$0xff]
    %v4695 = vld [vmem:[#allocation13 + $0x8] sm:$0xff]
    %v4696 = vld [vmem:[#allocation13 + $0x10] sm:$0xff]
    %v4697 = vld [vmem:[#allocation13 + $0x18] sm:$0xff]
    %v4698 = vld [vmem:[#allocation13 + $0x20] sm:$0xff]
    %v4699 = vld [vmem:[#allocation13 + $0x28] sm:$0xff]
    %v4700 = vld [vmem:[#allocation13 + $0x30] sm:$0xff]
    %v4701 = vld [vmem:[#allocation13 + $0x38] sm:$0xff]
    %v4702 = vld [vmem:[#allocation13 + $0x40] sm:$0xff]
    %v4703 = vld [vmem:[#allocation13 + $0x48] sm:$0xff]
    %v4704 = vld [vmem:[#allocation13 + $0x50] sm:$0xff]
    %v4705 = vld [vmem:[#allocation13 + $0x58] sm:$0xff]
    %v4706 = vld [vmem:[#allocation13 + $0x60] sm:$0xff]
    %v4707 = vld [vmem:[#allocation13 + $0x68] sm:$0xff]
    %v4708 = vld [vmem:[#allocation13 + $0x70] sm:$0xff]
    %v4709 = vld [vmem:[#allocation13 + $0x78] sm:$0xff]
    %v4710 = vld [vmem:[#allocation13 + $0x80] sm:$0xff]
    %v4711 = vld [vmem:[#allocation13 + $0x88] sm:$0xff]
    %v4712 = vld [vmem:[#allocation13 + $0x90] sm:$0xff]
    %v4713 = vld [vmem:[#allocation13 + $0x98] sm:$0xff]
    %v4714 = vld [vmem:[#allocation13 + $0xa0] sm:$0xff]
    %v4715 = vld [vmem:[#allocation13 + $0xa8] sm:$0xff]
    %v4716 = vld [vmem:[#allocation13 + $0xb0] sm:$0xff]
    %v4717 = vld [vmem:[#allocation13 + $0xb8] sm:$0xff]
    %v4718 = vld [vmem:[#allocation13 + $0xc0] sm:$0xff]
    %v4719 = vld [vmem:[#allocation13 + $0xc8] sm:$0xff]
    %v4720 = vld [vmem:[#allocation13 + $0xd0] sm:$0xff]
    %v4721 = vld [vmem:[#allocation13 + $0xd8] sm:$0xff]
    %v4722 = vld [vmem:[#allocation13 + $0xe0] sm:$0xff]
    %v4723 = vld [vmem:[#allocation13 + $0xe8] sm:$0xff]
    %v4724 = vld [vmem:[#allocation13 + $0xf0] sm:$0xff]
    %v4725 = vld [vmem:[#allocation13 + $0xf8] sm:$0xff]
    %v4726 = vld [vmem:[#allocation13 + $0x100] sm:$0xff]
    %v4727 = vld [vmem:[#allocation13 + $0x108] sm:$0xff]
    %v4728 = vld [vmem:[#allocation13 + $0x110] sm:$0xff]
    %v4729 = vld [vmem:[#allocation13 + $0x118] sm:$0xff]
    %v4730 = vld [vmem:[#allocation13 + $0x120] sm:$0xff]
    %v4731 = vld [vmem:[#allocation13 + $0x128] sm:$0xff]
    %v4732 = vld [vmem:[#allocation13 + $0x130] sm:$0xff]
    %v4733 = vld [vmem:[#allocation13 + $0x138] sm:$0xff]
    %v4734 = vld [vmem:[#allocation13 + $0x140] sm:$0xff]
    %v4735 = vld [vmem:[#allocation13 + $0x148] sm:$0xff]
    %v4736 = vld [vmem:[#allocation13 + $0x150] sm:$0xff]
    %v4737 = vld [vmem:[#allocation13 + $0x158] sm:$0xff]
    %v4738 = vld [vmem:[#allocation13 + $0x160] sm:$0xff]
    %v4739 = vld [vmem:[#allocation13 + $0x168] sm:$0xff]
    %v4740 = vld [vmem:[#allocation13 + $0x170] sm:$0xff]
    %v4741 = vld [vmem:[#allocation13 + $0x178] sm:$0xff]
    %v4742 = vld [vmem:[#allocation13 + $0x180] sm:$0xff]
    %v4743 = vld [vmem:[#allocation13 + $0x188] sm:$0xff]
    %v4744 = vld [vmem:[#allocation13 + $0x190] sm:$0xff]
    %v4745 = vld [vmem:[#allocation13 + $0x198] sm:$0xff]
    %v4746 = vld [vmem:[#allocation13 + $0x1a0] sm:$0xff]
    %v4747 = vld [vmem:[#allocation13 + $0x1a8] sm:$0xff]
    %v4748 = vld [vmem:[#allocation13 + $0x1b0] sm:$0xff]
    %v4749 = vld [vmem:[#allocation13 + $0x1b8] sm:$0xff]
    %v4750 = vld [vmem:[#allocation13 + $0x1c0] sm:$0xff]
    %v4751 = vld [vmem:[#allocation13 + $0x1c8] sm:$0xff]
    %v4752 = vld [vmem:[#allocation13 + $0x1d0] sm:$0xff]
    %v4753 = vld [vmem:[#allocation13 + $0x1d8] sm:$0xff]
    %v4754 = vld [vmem:[#allocation13 + $0x1e0] sm:$0xff]
    %v4755 = vld [vmem:[#allocation13 + $0x1e8] sm:$0xff]
    %v4756 = vld [vmem:[#allocation13 + $0x1f0] sm:$0xff]
    %v4757 = vld [vmem:[#allocation13 + $0x1f8] sm:$0xff]
    %v4758 = vld [vmem:[#allocation13 + $0x200] sm:$0xff]
    %v4759 = vld [vmem:[#allocation13 + $0x208] sm:$0xff]
    %v4760 = vld [vmem:[#allocation13 + $0x210] sm:$0xff]
    %v4761 = vld [vmem:[#allocation13 + $0x218] sm:$0xff]
    %v4762 = vld [vmem:[#allocation13 + $0x220] sm:$0xff]
    %v4763 = vld [vmem:[#allocation13 + $0x228] sm:$0xff]
    %v4764 = vld [vmem:[#allocation13 + $0x230] sm:$0xff]
    %v4765 = vld [vmem:[#allocation13 + $0x238] sm:$0xff]
    %v4766 = vld [vmem:[#allocation13 + $0x240] sm:$0xff]
    %v4767 = vld [vmem:[#allocation13 + $0x248] sm:$0xff]
    %v4768 = vld [vmem:[#allocation13 + $0x250] sm:$0xff]
    %v4769 = vld [vmem:[#allocation13 + $0x258] sm:$0xff]
    %v4770 = vld [vmem:[#allocation13 + $0x260] sm:$0xff]
    %v4771 = vld [vmem:[#allocation13 + $0x268] sm:$0xff]
    %v4772 = vld [vmem:[#allocation13 + $0x270] sm:$0xff]
    %v4773 = vld [vmem:[#allocation13 + $0x278] sm:$0xff]
    %v4774 = vld [vmem:[#allocation13 + $0x280] sm:$0xff]
    %v4775 = vld [vmem:[#allocation13 + $0x288] sm:$0xff]
    %v4776 = vld [vmem:[#allocation13 + $0x290] sm:$0xff]
    %v4777 = vld [vmem:[#allocation13 + $0x298] sm:$0xff]
    %v4778 = vld [vmem:[#allocation13 + $0x2a0] sm:$0xff]
    %v4779 = vld [vmem:[#allocation13 + $0x2a8] sm:$0xff]
    %v4780 = vld [vmem:[#allocation13 + $0x2b0] sm:$0xff]
    %v4781 = vld [vmem:[#allocation13 + $0x2b8] sm:$0xff]
    %v4782 = vld [vmem:[#allocation13 + $0x2c0] sm:$0xff]
    %v4783 = vld [vmem:[#allocation13 + $0x2c8] sm:$0xff]
    %v4784 = vld [vmem:[#allocation13 + $0x2d0] sm:$0xff]
    %v4785 = vld [vmem:[#allocation13 + $0x2d8] sm:$0xff]
    %v4786 = vld [vmem:[#allocation13 + $0x2e0] sm:$0xff]
    %v4787 = vld [vmem:[#allocation13 + $0x2e8] sm:$0xff]
    %v4788 = vld [vmem:[#allocation13 + $0x2f0] sm:$0xff]
    %v4789 = vld [vmem:[#allocation13 + $0x2f8] sm:$0xff]
    %v4790 = vld [vmem:[#allocation13 + $0x300] sm:$0xff]
    %v4791 = vld [vmem:[#allocation13 + $0x308] sm:$0xff]
    %v4792 = vld [vmem:[#allocation13 + $0x310] sm:$0xff]
    %v4793 = vld [vmem:[#allocation13 + $0x318] sm:$0xff]
    %v4794 = vld [vmem:[#allocation13 + $0x320] sm:$0xff]
    %v4795 = vld [vmem:[#allocation13 + $0x328] sm:$0xff]
    %v4796 = vld [vmem:[#allocation13 + $0x330] sm:$0xff]
    %v4797 = vld [vmem:[#allocation13 + $0x338] sm:$0xff]
    %v4798 = vld [vmem:[#allocation13 + $0x340] sm:$0xff]
    %v4799 = vld [vmem:[#allocation13 + $0x348] sm:$0xff]
    %v4800 = vld [vmem:[#allocation13 + $0x350] sm:$0xff]
    %v4801 = vld [vmem:[#allocation13 + $0x358] sm:$0xff]
    %v4802 = vld [vmem:[#allocation13 + $0x360] sm:$0xff]
    %v4803 = vld [vmem:[#allocation13 + $0x368] sm:$0xff]
    %v4804 = vld [vmem:[#allocation13 + $0x370] sm:$0xff]
    %v4805 = vld [vmem:[#allocation13 + $0x378] sm:$0xff]
    %v4806 = vld [vmem:[#allocation13 + $0x380] sm:$0xff]
    %v4807 = vld [vmem:[#allocation13 + $0x388] sm:$0xff]
    %v4808 = vld [vmem:[#allocation13 + $0x390] sm:$0xff]
    %v4809 = vld [vmem:[#allocation13 + $0x398] sm:$0xff]
    %v4810 = vld [vmem:[#allocation13 + $0x3a0] sm:$0xff]
    %v4811 = vld [vmem:[#allocation13 + $0x3a8] sm:$0xff]
    %v4812 = vld [vmem:[#allocation13 + $0x3b0] sm:$0xff]
    %v4813 = vld [vmem:[#allocation13 + $0x3b8] sm:$0xff]
    %v4814 = vld [vmem:[#allocation13 + $0x3c0] sm:$0xff]
    %v4815 = vld [vmem:[#allocation13 + $0x3c8] sm:$0xff]
    %v4816 = vld [vmem:[#allocation13 + $0x3d0] sm:$0xff]
    %v4817 = vld [vmem:[#allocation13 + $0x3d8] sm:$0xff]
    %v4818 = vld [vmem:[#allocation13 + $0x3e0] sm:$0xff]
    %v4819 = vld [vmem:[#allocation13 + $0x3e8] sm:$0xff]
    %v4820 = vld [vmem:[#allocation13 + $0x3f0] sm:$0xff]
    %v4821 = vld [vmem:[#allocation13 + $0x3f8] sm:$0xff]
    %v4822 = vld [vmem:[#allocation14] sm:$0x1]
    %v4824 = vlaneseq
    %v4825 = vshrl.u32 %v4824, 7
    %v4826 = vsub.s32 0, %v4825
    %v4827 = vrot.slane %v4822, %v4826
    %4829 = vmatprep.subr.mxu0 0.0
    %4830 = vmatpush1.msra.mxu0 %v4694
    %4831 = vmatprep.subr.mxu0 0.0
    %4832 = vmatpush1.msra.mxu0 %v4695
    %4833 = vmatprep.subr.mxu0 0.0
    %4834 = vmatpush1.msra.mxu0 %v4696
    %4835 = vmatprep.subr.mxu0 0.0
    %4836 = vmatpush1.msra.mxu0 %v4697
    %4837 = vmatprep.subr.mxu0 0.0
    %4838 = vmatpush1.msra.mxu0 %v4698
    %4839 = vmatprep.subr.mxu0 0.0
    %4840 = vmatpush1.msra.mxu0 %v4699
    %4841 = vmatprep.subr.mxu0 0.0
    %4842 = vmatpush1.msra.mxu0 %v4700
    %4843 = vmatprep.subr.mxu0 0.0
    %4844 = vmatpush1.msra.mxu0 %v4701
    %4845 = vmatprep.subr.mxu0 0.0
    %4846 = vmatpush1.msra.mxu0 %v4702
    %4847 = vmatprep.subr.mxu0 0.0
    %4848 = vmatpush1.msra.mxu0 %v4703
    %4849 = vmatprep.subr.mxu0 0.0
    %4850 = vmatpush1.msra.mxu0 %v4704
    %4851 = vmatprep.subr.mxu0 0.0
    %4852 = vmatpush1.msra.mxu0 %v4705
    %4853 = vmatprep.subr.mxu0 0.0
    %4854 = vmatpush1.msra.mxu0 %v4706
    %4855 = vmatprep.subr.mxu0 0.0
    %4856 = vmatpush1.msra.mxu0 %v4707
    %4857 = vmatprep.subr.mxu0 0.0
    %4858 = vmatpush1.msra.mxu0 %v4708
    %4859 = vmatprep.subr.mxu0 0.0
    %4860 = vmatpush1.msra.mxu0 %v4709
    %4861 = vmatprep.subr.mxu0 0.0
    %4862 = vmatpush1.msra.mxu0 %v4710
    %4863 = vmatprep.subr.mxu0 0.0
    %4864 = vmatpush1.msra.mxu0 %v4711
    %4865 = vmatprep.subr.mxu0 0.0
    %4866 = vmatpush1.msra.mxu0 %v4712
    %4867 = vmatprep.subr.mxu0 0.0
    %4868 = vmatpush1.msra.mxu0 %v4713
    %4869 = vmatprep.subr.mxu0 0.0
    %4870 = vmatpush1.msra.mxu0 %v4714
    %4871 = vmatprep.subr.mxu0 0.0
    %4872 = vmatpush1.msra.mxu0 %v4715
    %4873 = vmatprep.subr.mxu0 0.0
    %4874 = vmatpush1.msra.mxu0 %v4716
    %4875 = vmatprep.subr.mxu0 0.0
    %4876 = vmatpush1.msra.mxu0 %v4717
    %4877 = vmatprep.subr.mxu0 0.0
    %4878 = vmatpush1.msra.mxu0 %v4718
    %4879 = vmatprep.subr.mxu0 0.0
    %4880 = vmatpush1.msra.mxu0 %v4719
    %4881 = vmatprep.subr.mxu0 0.0
    %4882 = vmatpush1.msra.mxu0 %v4720
    %4883 = vmatprep.subr.mxu0 0.0
    %4884 = vmatpush1.msra.mxu0 %v4721
    %4885 = vmatprep.subr.mxu0 0.0
    %4886 = vmatpush1.msra.mxu0 %v4722
    %4887 = vmatprep.subr.mxu0 0.0
    %4888 = vmatpush1.msra.mxu0 %v4723
    %4889 = vmatprep.subr.mxu0 0.0
    %4890 = vmatpush1.msra.mxu0 %v4724
    %4891 = vmatprep.subr.mxu0 0.0
    %4892 = vmatpush1.msra.mxu0 %v4725
    %4893 = vmatprep.mubr.f32.mxu0 %v4679
    %4894 = vmatmul.mubr.f32.gmra.mrb[0].mxu0 %v4678
    %v4895 = vpop.f32.mrb[0].mxu0
    %v4896 = vadd.f32 %v4827, %v4895
    %v4897 = vpop.f32.mrb[0].mxu0
    %4898 = vmatprep.mubr.f32.mxu0 %v4687
    %4899 = vmatmul.mubr.f32.gmra.mrb[0].mxu0 %v4686
    %v4900 = vpop.f32.mrb[0].mxu0
    %v4901 = vadd.f32 %v4827, %v4900
    %v4902 = vpop.f32.mrb[0].mxu0
    %4903 = vdwg.mxu0
    %4904 = vmatprep.subr.mxu0 0.0
    %4905 = vmatpush1.msra.mxu0 %v4726
    %4906 = vmatprep.subr.mxu0 0.0
    %4907 = vmatpush1.msra.mxu0 %v4727
    %4908 = vmatprep.subr.mxu0 0.0
    %4909 = vmatpush1.msra.mxu0 %v4728
    %4910 = vmatprep.subr.mxu0 0.0
    %4911 = vmatpush1.msra.mxu0 %v4729
    %4912 = vmatprep.subr.mxu0 0.0
    %4913 = vmatpush1.msra.mxu0 %v4730
    %4914 = vmatprep.subr.mxu0 0.0
    %4915 = vmatpush1.msra.mxu0 %v4731
    %4916 = vmatprep.subr.mxu0 0.0
    %4917 = vmatpush1.msra.mxu0 %v4732
    %4918 = vmatprep.subr.mxu0 0.0
    %4919 = vmatpush1.msra.mxu0 %v4733
    %4920 = vmatprep.subr.mxu0 0.0
    %4921 = vmatpush1.msra.mxu0 %v4734
    %4922 = vmatprep.subr.mxu0 0.0
    %4923 = vmatpush1.msra.mxu0 %v4735
    %4924 = vmatprep.subr.mxu0 0.0
    %4925 = vmatpush1.msra.mxu0 %v4736
    %4926 = vmatprep.subr.mxu0 0.0
    %4927 = vmatpush1.msra.mxu0 %v4737
    %4928 = vmatprep.subr.mxu0 0.0
    %4929 = vmatpush1.msra.mxu0 %v4738
    %4930 = vmatprep.subr.mxu0 0.0
    %4931 = vmatpush1.msra.mxu0 %v4739
    %4932 = vmatprep.subr.mxu0 0.0
    %4933 = vmatpush1.msra.mxu0 %v4740
    %4934 = vmatprep.subr.mxu0 0.0
    %4935 = vmatpush1.msra.mxu0 %v4741
    %4936 = vmatprep.subr.mxu0 0.0
    %4937 = vmatpush1.msra.mxu0 %v4742
    %4938 = vmatprep.subr.mxu0 0.0
    %4939 = vmatpush1.msra.mxu0 %v4743
    %4940 = vmatprep.subr.mxu0 0.0
    %4941 = vmatpush1.msra.mxu0 %v4744
    %4942 = vmatprep.subr.mxu0 0.0
    %4943 = vmatpush1.msra.mxu0 %v4745
    %4944 = vmatprep.subr.mxu0 0.0
    %4945 = vmatpush1.msra.mxu0 %v4746
    %4946 = vmatprep.subr.mxu0 0.0
    %4947 = vmatpush1.msra.mxu0 %v4747
    %4948 = vmatprep.subr.mxu0 0.0
    %4949 = vmatpush1.msra.mxu0 %v4748
    %4950 = vmatprep.subr.mxu0 0.0
    %4951 = vmatpush1.msra.mxu0 %v4749
    %4952 = vmatprep.subr.mxu0 0.0
    %4953 = vmatpush1.msra.mxu0 %v4750
    %4954 = vmatprep.subr.mxu0 0.0
    %4955 = vmatpush1.msra.mxu0 %v4751
    %4956 = vmatprep.subr.mxu0 0.0
    %4957 = vmatpush1.msra.mxu0 %v4752
    %4958 = vmatprep.subr.mxu0 0.0
    %4959 = vmatpush1.msra.mxu0 %v4753
    %4960 = vmatprep.subr.mxu0 0.0
    %4961 = vmatpush1.msra.mxu0 %v4754
    %4962 = vmatprep.subr.mxu0 0.0
    %4963 = vmatpush1.msra.mxu0 %v4755
    %4964 = vmatprep.subr.mxu0 0.0
    %4965 = vmatpush1.msra.mxu0 %v4756
    %4966 = vmatprep.subr.mxu0 0.0
    %4967 = vmatpush1.msra.mxu0 %v4757
    %4968 = vmatprep.mubr.f32.mxu0 %v4681
    %4969 = vmatmul.mubr.f32.gmra.mrb[0].mxu0 %v4680
    %v4970 = vpop.f32.mrb[0].mxu0
    %v4971 = vadd.f32 %v4896, %v4970
    %v4972 = vpop.f32.mrb[0].mxu0
    %4973 = vmatprep.mubr.f32.mxu0 %v4689
    %4974 = vmatmul.mubr.f32.gmra.mrb[0].mxu0 %v4688
    %v4975 = vpop.f32.mrb[0].mxu0
    %v4976 = vadd.f32 %v4901, %v4975
    %v4977 = vpop.f32.mrb[0].mxu0
    %4978 = vdwg.mxu0
    %4979 = vmatprep.subr.mxu0 0.0
    %4980 = vmatpush1.msra.mxu0 %v4758
    %4981 = vmatprep.subr.mxu0 0.0
    %4982 = vmatpush1.msra.mxu0 %v4759
    %4983 = vmatprep.subr.mxu0 0.0
    %4984 = vmatpush1.msra.mxu0 %v4760
    %4985 = vmatprep.subr.mxu0 0.0
    %4986 = vmatpush1.msra.mxu0 %v4761
    %4987 = vmatprep.subr.mxu0 0.0
    %4988 = vmatpush1.msra.mxu0 %v4762
    %4989 = vmatprep.subr.mxu0 0.0
    %4990 = vmatpush1.msra.mxu0 %v4763
    %4991 = vmatprep.subr.mxu0 0.0
    %4992 = vmatpush1.msra.mxu0 %v4764
    %4993 = vmatprep.subr.mxu0 0.0
    %4994 = vmatpush1.msra.mxu0 %v4765
    %4995 = vmatprep.subr.mxu0 0.0
    %4996 = vmatpush1.msra.mxu0 %v4766
    %4997 = vmatprep.subr.mxu0 0.0
    %4998 = vmatpush1.msra.mxu0 %v4767
    %4999 = vmatprep.subr.mxu0 0.0
    %5000 = vmatpush1.msra.mxu0 %v4768
    %5001 = vmatprep.subr.mxu0 0.0
    %5002 = vmatpush1.msra.mxu0 %v4769
    %5003 = vmatprep.subr.mxu0 0.0
    %5004 = vmatpush1.msra.mxu0 %v4770
    %5005 = vmatprep.subr.mxu0 0.0
    %5006 = vmatpush1.msra.mxu0 %v4771
    %5007 = vmatprep.subr.mxu0 0.0
    %5008 = vmatpush1.msra.mxu0 %v4772
    %5009 = vmatprep.subr.mxu0 0.0
    %5010 = vmatpush1.msra.mxu0 %v4773
    %5011 = vmatprep.subr.mxu0 0.0
    %5012 = vmatpush1.msra.mxu0 %v4774
    %5013 = vmatprep.subr.mxu0 0.0
    %5014 = vmatpush1.msra.mxu0 %v4775
    %5015 = vmatprep.subr.mxu0 0.0
    %5016 = vmatpush1.msra.mxu0 %v4776
    %5017 = vmatprep.subr.mxu0 0.0
    %5018 = vmatpush1.msra.mxu0 %v4777
    %5019 = vmatprep.subr.mxu0 0.0
    %5020 = vmatpush1.msra.mxu0 %v4778
    %5021 = vmatprep.subr.mxu0 0.0
    %5022 = vmatpush1.msra.mxu0 %v4779
    %5023 = vmatprep.subr.mxu0 0.0
    %5024 = vmatpush1.msra.mxu0 %v4780
    %5025 = vmatprep.subr.mxu0 0.0
    %5026 = vmatpush1.msra.mxu0 %v4781
    %5027 = vmatprep.subr.mxu0 0.0
    %5028 = vmatpush1.msra.mxu0 %v4782
    %5029 = vmatprep.subr.mxu0 0.0
    %5030 = vmatpush1.msra.mxu0 %v4783
    %5031 = vmatprep.subr.mxu0 0.0
    %5032 = vmatpush1.msra.mxu0 %v4784
    %5033 = vmatprep.subr.mxu0 0.0
    %5034 = vmatpush1.msra.mxu0 %v4785
    %5035 = vmatprep.subr.mxu0 0.0
    %5036 = vmatpush1.msra.mxu0 %v4786
    %5037 = vmatprep.subr.mxu0 0.0
    %5038 = vmatpush1.msra.mxu0 %v4787
    %5039 = vmatprep.subr.mxu0 0.0
    %5040 = vmatpush1.msra.mxu0 %v4788
    %5041 = vmatprep.subr.mxu0 0.0
    %5042 = vmatpush1.msra.mxu0 %v4789
    %5043 = vmatprep.mubr.f32.mxu0 %v4683
    %5044 = vmatmul.mubr.f32.gmra.mrb[0].mxu0 %v4682
    %v5045 = vpop.f32.mrb[0].mxu0
    %v5046 = vadd.f32 %v4971, %v5045
    %v5047 = vpop.f32.mrb[0].mxu0
    %5048 = vmatprep.mubr.f32.mxu0 %v4691
    %5049 = vmatmul.mubr.f32.gmra.mrb[0].mxu0 %v4690
    %v5050 = vpop.f32.mrb[0].mxu0
    %v5051 = vadd.f32 %v4976, %v5050
    %v5052 = vpop.f32.mrb[0].mxu0
    %5053 = vdwg.mxu0
    %5054 = vmatprep.subr.mxu0 0.0
    %5055 = vmatpush1.msra.mxu0 %v4790
    %5056 = vmatprep.subr.mxu0 0.0
    %5057 = vmatpush1.msra.mxu0 %v4791
    %5058 = vmatprep.subr.mxu0 0.0
    %5059 = vmatpush1.msra.mxu0 %v4792
    %5060 = vmatprep.subr.mxu0 0.0
    %5061 = vmatpush1.msra.mxu0 %v4793
    %5062 = vmatprep.subr.mxu0 0.0
    %5063 = vmatpush1.msra.mxu0 %v4794
    %5064 = vmatprep.subr.mxu0 0.0
    %5065 = vmatpush1.msra.mxu0 %v4795
    %5066 = vmatprep.subr.mxu0 0.0
    %5067 = vmatpush1.msra.mxu0 %v4796
    %5068 = vmatprep.subr.mxu0 0.0
    %5069 = vmatpush1.msra.mxu0 %v4797
    %5070 = vmatprep.subr.mxu0 0.0
    %5071 = vmatpush1.msra.mxu0 %v4798
    %5072 = vmatprep.subr.mxu0 0.0
    %5073 = vmatpush1.msra.mxu0 %v4799
    %5074 = vmatprep.subr.mxu0 0.0
    %5075 = vmatpush1.msra.mxu0 %v4800
    %5076 = vmatprep.subr.mxu0 0.0
    %5077 = vmatpush1.msra.mxu0 %v4801
    %5078 = vmatprep.subr.mxu0 0.0
    %5079 = vmatpush1.msra.mxu0 %v4802
    %5080 = vmatprep.subr.mxu0 0.0
    %5081 = vmatpush1.msra.mxu0 %v4803
    %5082 = vmatprep.subr.mxu0 0.0
    %5083 = vmatpush1.msra.mxu0 %v4804
    %5084 = vmatprep.subr.mxu0 0.0
    %5085 = vmatpush1.msra.mxu0 %v4805
    %5086 = vmatprep.subr.mxu0 0.0
    %5087 = vmatpush1.msra.mxu0 %v4806
    %5088 = vmatprep.subr.mxu0 0.0
    %5089 = vmatpush1.msra.mxu0 %v4807
    %5090 = vmatprep.subr.mxu0 0.0
    %5091 = vmatpush1.msra.mxu0 %v4808
    %5092 = vmatprep.subr.mxu0 0.0
    %5093 = vmatpush1.msra.mxu0 %v4809
    %5094 = vmatprep.subr.mxu0 0.0
    %5095 = vmatpush1.msra.mxu0 %v4810
    %5096 = vmatprep.subr.mxu0 0.0
    %5097 = vmatpush1.msra.mxu0 %v4811
    %5098 = vmatprep.subr.mxu0 0.0
    %5099 = vmatpush1.msra.mxu0 %v4812
    %5100 = vmatprep.subr.mxu0 0.0
    %5101 = vmatpush1.msra.mxu0 %v4813
    %5102 = vmatprep.subr.mxu0 0.0
    %5103 = vmatpush1.msra.mxu0 %v4814
    %5104 = vmatprep.subr.mxu0 0.0
    %5105 = vmatpush1.msra.mxu0 %v4815
    %5106 = vmatprep.subr.mxu0 0.0
    %5107 = vmatpush1.msra.mxu0 %v4816
    %5108 = vmatprep.subr.mxu0 0.0
    %5109 = vmatpush1.msra.mxu0 %v4817
    %5110 = vmatprep.subr.mxu0 0.0
    %5111 = vmatpush1.msra.mxu0 %v4818
    %5112 = vmatprep.subr.mxu0 0.0
    %5113 = vmatpush1.msra.mxu0 %v4819
    %5114 = vmatprep.subr.mxu0 0.0
    %5115 = vmatpush1.msra.mxu0 %v4820
    %5116 = vmatprep.subr.mxu0 0.0
    %5117 = vmatpush1.msra.mxu0 %v4821
    %5118 = vmatprep.mubr.f32.mxu0 %v4685
    %5119 = vmatmul.mubr.f32.gmra.mrb[0].mxu0 %v4684
    %v5120 = vpop.f32.mrb[0].mxu0
    %v5121 = vadd.f32 %v5046, %v5120
    %v5122 = vpop.f32.mrb[0].mxu0
    %5123 = vmatprep.mubr.f32.mxu0 %v4693
    %5124 = vmatmul.mubr.f32.gmra.mrb[0].mxu0 %v4692
    %v5125 = vpop.f32.mrb[0].mxu0
    %v5126 = vadd.f32 %v5051, %v5125
    %v5127 = vpop.f32.mrb[0].mxu0
    %5128 = vdwg.mxu0
    %v5129 = vadd.f32 %v4198, %v5121
    %v5130 = vadd.f32 %v4199, %v5126
    %v5131 = vld [vmem:[%s29] sm:$0x1]
    %v5132 = vld [vmem:[%s31] sm:$0x1]
    %5133 = vadd.xlane.f32.xlu0 %v5129
    %v5134 = vpop.xlane.xlu0 %5133
    %5135 = vadd.xlane.f32.xlu0 %v5130
    %v5136 = vpop.xlane.xlu0 %5135
    %v5137 = vmul.f32 %v5134, %v4165
    %v5138 = vmul.f32 %v5136, %v4165
    %v5139 = vsub.f32 %v5129, %v5137
    %v5140 = vsub.f32 %v5130, %v5138
    %v5141 = vmul.f32 %v5139, %v5139
    %v5142 = vmul.f32 %v5140, %v5140
    %5143 = vadd.xlane.f32.xlu0 %v5141
    %v5144 = vpop.xlane.xlu0 %5143
    %5145 = vadd.xlane.f32.xlu0 %v5142
    %v5146 = vpop.xlane.xlu0 %5145
    %v5147 = vmul.f32 %v5144, %v4165
    %v5148 = vmul.f32 %v5146, %v4165
    %v5149 = vadd.f32 %v5147, 1e-05
    %v5150 = vadd.f32 %v5148, 1e-05
    %v5151 = vrsqrt.pop %v5149
    %v5152 = vrsqrt.pop %v5150
    %v5153 = vmul.f32 %v5139, %v5151
    %v5154 = vmul.f32 %v5140, %v5152
    %v5156 = vlaneseq
    %v5157 = vshrl.u32 %v5156, 7
    %v5158 = vsub.s32 0, %v5157
    %v5159 = vrot.slane %v5131, %v5158
    %v5161 = vmul.f32 %v5153, %v5159
    %v5162 = vmul.f32 %v5154, %v5159
    %v5164 = vlaneseq
    %v5165 = vshrl.u32 %v5164, 7
    %v5166 = vsub.s32 0, %v5165
    %v5167 = vrot.slane %v5132, %v5166
    %v5169 = vadd.f32 %v5161, %v5167
    %v5170 = vadd.f32 %v5162, %v5167
    %v5171 = vld [vmem:[%s33] sm:$0x1]
    %v5172 = vld [vmem:[%s35] sm:$0x1]
    %5173 = vadd.xlane.f32.xlu0 %v5169
    %v5174 = vpop.xlane.xlu0 %5173
    %5175 = vadd.xlane.f32.xlu0 %v5170
    %v5176 = vpop.xlane.xlu0 %5175
    %v5177 = vmul.f32 %v5174, %v4165
    %v5178 = vmul.f32 %v5176, %v4165
    %v5179 = vsub.f32 %v5169, %v5177
    %v5180 = vsub.f32 %v5170, %v5178
    %v5181 = vmul.f32 %v5179, %v5179
    %v5182 = vmul.f32 %v5180, %v5180
    %5183 = vadd.xlane.f32.xlu0 %v5181
    %v5184 = vpop.xlane.xlu0 %5183
    %5185 = vadd.xlane.f32.xlu0 %v5182
    %v5186 = vpop.xlane.xlu0 %5185
    %v5187 = vmul.f32 %v5184, %v4165
    %v5188 = vmul.f32 %v5186, %v4165
    %v5189 = vadd.f32 %v5187, 1e-05
    %v5190 = vadd.f32 %v5188, 1e-05
    %v5191 = vrsqrt.pop %v5189
    %v5192 = vrsqrt.pop %v5190
    %v5193 = vmul.f32 %v5179, %v5191
    %v5194 = vmul.f32 %v5180, %v5192
    %v5196 = vlaneseq
    %v5197 = vshrl.u32 %v5196, 7
    %v5198 = vsub.s32 0, %v5197
    %v5199 = vrot.slane %v5171, %v5198
    %v5201 = vmul.f32 %v5193, %v5199
    %v5202 = vmul.f32 %v5194, %v5199
    %v5204 = vlaneseq
    %v5205 = vshrl.u32 %v5204, 7
    %v5206 = vsub.s32 0, %v5205
    %v5207 = vrot.slane %v5172, %v5206
    %v5209 = vadd.f32 %v5201, %v5207
    %v5210 = vadd.f32 %v5202, %v5207
    %vm5211 = vcmp.eq.s32.totalorder %v393, 21
    %vm5212 = vcmp.eq.s32.totalorder %v394, 21
    %v5213 = vsel %vm5211, 1, 0
    %v5214 = vsel %vm5212, 1, 0
    %v5215 = vcvt.s32.f32 %v5213
    %v5216 = vcvt.s32.f32 %v5214
    %v5217 = vsub.f32 1.0, %v5215
    %v5218 = vsub.f32 1.0, %v5216
    %5220 = vset.pattern.permute.xlu0 0
    %5221 = vperm.xlu0 %5220, %v5217
    %v5222 = vpop.permute.xlu0 %5221
    %5225 = vset.pattern.permute.xlu0 0
    %5226 = vperm.xlu0 %5225, %v5218
    %v5227 = vpop.permute.xlu0 %5226
    %v5229 = vmul.f32 %v5222, %v5209
    %v5230 = vmul.f32 %v5227, %v5210
    %v5231 = vrot.slane %v5229, 4
    %v5232 = vadd.f32 %v5229, %v5231
    %v5233 = vrot.slane %v5232, 2
    %v5234 = vadd.f32 %v5232, %v5233
    %v5235 = vrot.slane %v5234, 1
    %v5236 = vadd.f32 %v5234, %v5235
    %vm5237 = vcmask 7168
    %v5238 = vsel %vm5237, %v5217, 0.0
    %v5239 = vrot.slane %v5238, 4
    %v5240 = vadd.f32 %v5238, %v5239
    %v5241 = vrot.slane %v5240, 2
    %v5242 = vadd.f32 %v5240, %v5241
    %v5243 = vrot.slane %v5242, 1
    %v5244 = vadd.f32 %v5242, %v5243
    %v5245 = vrcp.pop %v5244
    %5247 = vset.pattern.permute.xlu0 0
    %5248 = vperm.xlu0 %5247, %v5245
    %v5249 = vpop.permute.xlu0 %5248
    %v5251 = vmul.f32 %v5236, %v5249
    %v5252 = vrot.slane %v5230, 4
    %v5253 = vadd.f32 %v5230, %v5252
    %v5254 = vrot.slane %v5253, 2
    %v5255 = vadd.f32 %v5253, %v5254
    %v5256 = vrot.slane %v5255, 1
    %v5257 = vadd.f32 %v5255, %v5256
    %v5258 = vsel %vm5237, %v5218, 0.0
    %v5259 = vrot.slane %v5258, 4
    %v5260 = vadd.f32 %v5258, %v5259
    %v5261 = vrot.slane %v5260, 2
    %v5262 = vadd.f32 %v5260, %v5261
    %v5263 = vrot.slane %v5262, 1
    %v5264 = vadd.f32 %v5262, %v5263
    %v5265 = vrcp.pop %v5264
    %5267 = vset.pattern.permute.xlu0 0
    %5268 = vperm.xlu0 %5267, %v5265
    %v5269 = vpop.permute.xlu0 %5268
    %v5271 = vmul.f32 %v5257, %v5269
    %vm5272 = vcmask 1040384
    %v5273 = vsel %vm5272, %v5251, %v5271
    %v5274 = vld [vmem:[#allocation16] sm:$0xff]
    %v5275 = vld [vmem:[#allocation16 + $0x8] sm:$0xff]
    %v5276 = vld [vmem:[#allocation16 + $0x10] sm:$0xff]
    %v5277 = vld [vmem:[#allocation16 + $0x18] sm:$0xff]
    %v5278 = vld [vmem:[#allocation16 + $0x20] sm:$0xff]
    %v5279 = vld [vmem:[#allocation16 + $0x28] sm:$0xff]
    %v5280 = vld [vmem:[#allocation16 + $0x30] sm:$0xff]
    %v5281 = vld [vmem:[#allocation16 + $0x38] sm:$0xff]
    %v5282 = vld [vmem:[#allocation16 + $0x40] sm:$0xff]
    %v5283 = vld [vmem:[#allocation16 + $0x48] sm:$0xff]
    %v5284 = vld [vmem:[#allocation16 + $0x50] sm:$0xff]
    %v5285 = vld [vmem:[#allocation16 + $0x58] sm:$0xff]
    %v5286 = vld [vmem:[#allocation16 + $0x60] sm:$0xff]
    %v5287 = vld [vmem:[#allocation16 + $0x68] sm:$0xff]
    %v5288 = vld [vmem:[#allocation16 + $0x70] sm:$0xff]
    %v5289 = vld [vmem:[#allocation16 + $0x78] sm:$0xff]
    %v5290 = vld [vmem:[#allocation16 + $0x80] sm:$0xff]
    %v5291 = vld [vmem:[#allocation16 + $0x88] sm:$0xff]
    %v5292 = vld [vmem:[#allocation16 + $0x90] sm:$0xff]
    %v5293 = vld [vmem:[#allocation16 + $0x98] sm:$0xff]
    %v5294 = vld [vmem:[#allocation16 + $0xa0] sm:$0xff]
    %v5295 = vld [vmem:[#allocation16 + $0xa8] sm:$0xff]
    %v5296 = vld [vmem:[#allocation16 + $0xb0] sm:$0xff]
    %v5297 = vld [vmem:[#allocation16 + $0xb8] sm:$0xff]
    %v5298 = vld [vmem:[#allocation16 + $0xc0] sm:$0xff]
    %v5299 = vld [vmem:[#allocation16 + $0xc8] sm:$0xff]
    %v5300 = vld [vmem:[#allocation16 + $0xd0] sm:$0xff]
    %v5301 = vld [vmem:[#allocation16 + $0xd8] sm:$0xff]
    %v5302 = vld [vmem:[#allocation16 + $0xe0] sm:$0xff]
    %v5303 = vld [vmem:[#allocation16 + $0xe8] sm:$0xff]
    %v5304 = vld [vmem:[#allocation16 + $0xf0] sm:$0xff]
    %v5305 = vld [vmem:[#allocation16 + $0xf8] sm:$0xff]
    %v5306 = vld [vmem:[#allocation16 + $0x100] sm:$0xff]
    %v5307 = vld [vmem:[#allocation16 + $0x108] sm:$0xff]
    %v5308 = vld [vmem:[#allocation16 + $0x110] sm:$0xff]
    %v5309 = vld [vmem:[#allocation16 + $0x118] sm:$0xff]
    %v5310 = vld [vmem:[#allocation16 + $0x120] sm:$0xff]
    %v5311 = vld [vmem:[#allocation16 + $0x128] sm:$0xff]
    %v5312 = vld [vmem:[#allocation16 + $0x130] sm:$0xff]
    %v5313 = vld [vmem:[#allocation16 + $0x138] sm:$0xff]
    %v5314 = vld [vmem:[#allocation16 + $0x140] sm:$0xff]
    %v5315 = vld [vmem:[#allocation16 + $0x148] sm:$0xff]
    %v5316 = vld [vmem:[#allocation16 + $0x150] sm:$0xff]
    %v5317 = vld [vmem:[#allocation16 + $0x158] sm:$0xff]
    %v5318 = vld [vmem:[#allocation16 + $0x160] sm:$0xff]
    %v5319 = vld [vmem:[#allocation16 + $0x168] sm:$0xff]
    %v5320 = vld [vmem:[#allocation16 + $0x170] sm:$0xff]
    %v5321 = vld [vmem:[#allocation16 + $0x178] sm:$0xff]
    %v5322 = vld [vmem:[#allocation16 + $0x180] sm:$0xff]
    %v5323 = vld [vmem:[#allocation16 + $0x188] sm:$0xff]
    %v5324 = vld [vmem:[#allocation16 + $0x190] sm:$0xff]
    %v5325 = vld [vmem:[#allocation16 + $0x198] sm:$0xff]
    %v5326 = vld [vmem:[#allocation16 + $0x1a0] sm:$0xff]
    %v5327 = vld [vmem:[#allocation16 + $0x1a8] sm:$0xff]
    %v5328 = vld [vmem:[#allocation16 + $0x1b0] sm:$0xff]
    %v5329 = vld [vmem:[#allocation16 + $0x1b8] sm:$0xff]
    %v5330 = vld [vmem:[#allocation16 + $0x1c0] sm:$0xff]
    %v5331 = vld [vmem:[#allocation16 + $0x1c8] sm:$0xff]
    %v5332 = vld [vmem:[#allocation16 + $0x1d0] sm:$0xff]
    %v5333 = vld [vmem:[#allocation16 + $0x1d8] sm:$0xff]
    %v5334 = vld [vmem:[#allocation16 + $0x1e0] sm:$0xff]
    %v5335 = vld [vmem:[#allocation16 + $0x1e8] sm:$0xff]
    %v5336 = vld [vmem:[#allocation16 + $0x1f0] sm:$0xff]
    %v5337 = vld [vmem:[#allocation16 + $0x1f8] sm:$0xff]
    %v5338 = vld [vmem:[#allocation16 + $0x200] sm:$0xff]
    %v5339 = vld [vmem:[#allocation16 + $0x208] sm:$0xff]
    %v5340 = vld [vmem:[#allocation16 + $0x210] sm:$0xff]
    %v5341 = vld [vmem:[#allocation16 + $0x218] sm:$0xff]
    %v5342 = vld [vmem:[#allocation16 + $0x220] sm:$0xff]
    %v5343 = vld [vmem:[#allocation16 + $0x228] sm:$0xff]
    %v5344 = vld [vmem:[#allocation16 + $0x230] sm:$0xff]
    %v5345 = vld [vmem:[#allocation16 + $0x238] sm:$0xff]
    %v5346 = vld [vmem:[#allocation16 + $0x240] sm:$0xff]
    %v5347 = vld [vmem:[#allocation16 + $0x248] sm:$0xff]
    %v5348 = vld [vmem:[#allocation16 + $0x250] sm:$0xff]
    %v5349 = vld [vmem:[#allocation16 + $0x258] sm:$0xff]
    %v5350 = vld [vmem:[#allocation16 + $0x260] sm:$0xff]
    %v5351 = vld [vmem:[#allocation16 + $0x268] sm:$0xff]
    %v5352 = vld [vmem:[#allocation16 + $0x270] sm:$0xff]
    %v5353 = vld [vmem:[#allocation16 + $0x278] sm:$0xff]
    %v5354 = vld [vmem:[#allocation16 + $0x280] sm:$0xff]
    %v5355 = vld [vmem:[#allocation16 + $0x288] sm:$0xff]
    %v5356 = vld [vmem:[#allocation16 + $0x290] sm:$0xff]
    %v5357 = vld [vmem:[#allocation16 + $0x298] sm:$0xff]
    %v5358 = vld [vmem:[#allocation16 + $0x2a0] sm:$0xff]
    %v5359 = vld [vmem:[#allocation16 + $0x2a8] sm:$0xff]
    %v5360 = vld [vmem:[#allocation16 + $0x2b0] sm:$0xff]
    %v5361 = vld [vmem:[#allocation16 + $0x2b8] sm:$0xff]
    %v5362 = vld [vmem:[#allocation16 + $0x2c0] sm:$0xff]
    %v5363 = vld [vmem:[#allocation16 + $0x2c8] sm:$0xff]
    %v5364 = vld [vmem:[#allocation16 + $0x2d0] sm:$0xff]
    %v5365 = vld [vmem:[#allocation16 + $0x2d8] sm:$0xff]
    %v5366 = vld [vmem:[#allocation16 + $0x2e0] sm:$0xff]
    %v5367 = vld [vmem:[#allocation16 + $0x2e8] sm:$0xff]
    %v5368 = vld [vmem:[#allocation16 + $0x2f0] sm:$0xff]
    %v5369 = vld [vmem:[#allocation16 + $0x2f8] sm:$0xff]
    %v5370 = vld [vmem:[#allocation16 + $0x300] sm:$0xff]
    %v5371 = vld [vmem:[#allocation16 + $0x308] sm:$0xff]
    %v5372 = vld [vmem:[#allocation16 + $0x310] sm:$0xff]
    %v5373 = vld [vmem:[#allocation16 + $0x318] sm:$0xff]
    %v5374 = vld [vmem:[#allocation16 + $0x320] sm:$0xff]
    %v5375 = vld [vmem:[#allocation16 + $0x328] sm:$0xff]
    %v5376 = vld [vmem:[#allocation16 + $0x330] sm:$0xff]
    %v5377 = vld [vmem:[#allocation16 + $0x338] sm:$0xff]
    %v5378 = vld [vmem:[#allocation16 + $0x340] sm:$0xff]
    %v5379 = vld [vmem:[#allocation16 + $0x348] sm:$0xff]
    %v5380 = vld [vmem:[#allocation16 + $0x350] sm:$0xff]
    %v5381 = vld [vmem:[#allocation16 + $0x358] sm:$0xff]
    %v5382 = vld [vmem:[#allocation16 + $0x360] sm:$0xff]
    %v5383 = vld [vmem:[#allocation16 + $0x368] sm:$0xff]
    %v5384 = vld [vmem:[#allocation16 + $0x370] sm:$0xff]
    %v5385 = vld [vmem:[#allocation16 + $0x378] sm:$0xff]
    %v5386 = vld [vmem:[#allocation16 + $0x380] sm:$0xff]
    %v5387 = vld [vmem:[#allocation16 + $0x388] sm:$0xff]
    %v5388 = vld [vmem:[#allocation16 + $0x390] sm:$0xff]
    %v5389 = vld [vmem:[#allocation16 + $0x398] sm:$0xff]
    %v5390 = vld [vmem:[#allocation16 + $0x3a0] sm:$0xff]
    %v5391 = vld [vmem:[#allocation16 + $0x3a8] sm:$0xff]
    %v5392 = vld [vmem:[#allocation16 + $0x3b0] sm:$0xff]
    %v5393 = vld [vmem:[#allocation16 + $0x3b8] sm:$0xff]
    %v5394 = vld [vmem:[#allocation16 + $0x3c0] sm:$0xff]
    %v5395 = vld [vmem:[#allocation16 + $0x3c8] sm:$0xff]
    %v5396 = vld [vmem:[#allocation16 + $0x3d0] sm:$0xff]
    %v5397 = vld [vmem:[#allocation16 + $0x3d8] sm:$0xff]
    %v5398 = vld [vmem:[#allocation16 + $0x3e0] sm:$0xff]
    %v5399 = vld [vmem:[#allocation16 + $0x3e8] sm:$0xff]
    %v5400 = vld [vmem:[#allocation16 + $0x3f0] sm:$0xff]
    %v5401 = vld [vmem:[#allocation16 + $0x3f8] sm:$0xff]
    %v5402 = vld [vmem:[#allocation17] sm:$0xff]
    %v5404 = vlaneseq
    %v5405 = vshrl.u32 %v5404, 7
    %v5406 = vsub.s32 0, %v5405
    %v5407 = vrot.slane %v5402, %v5406
    %v5408 = vlaneseq
    %v5409 = vshrl.u32 %v5408, 7
    %v5410 = vsub.s32 1, %v5409
    %v5411 = vrot.slane %v5402, %v5410
    %v5412 = vlaneseq
    %v5413 = vshrl.u32 %v5412, 7
    %v5414 = vsub.s32 2, %v5413
    %v5415 = vrot.slane %v5402, %v5414
    %v5416 = vlaneseq
    %v5417 = vshrl.u32 %v5416, 7
    %v5418 = vsub.s32 3, %v5417
    %v5419 = vrot.slane %v5402, %v5418
    %v5420 = vlaneseq
    %v5421 = vshrl.u32 %v5420, 7
    %v5422 = vsub.s32 4, %v5421
    %v5423 = vrot.slane %v5402, %v5422
    %v5424 = vlaneseq
    %v5425 = vshrl.u32 %v5424, 7
    %v5426 = vsub.s32 5, %v5425
    %v5427 = vrot.slane %v5402, %v5426
    %v5428 = vlaneseq
    %v5429 = vshrl.u32 %v5428, 7
    %v5430 = vsub.s32 6, %v5429
    %v5431 = vrot.slane %v5402, %v5430
    %v5432 = vlaneseq
    %v5433 = vshrl.u32 %v5432, 7
    %v5434 = vsub.s32 7, %v5433
    %v5435 = vrot.slane %v5402, %v5434
    %5444 = vmatprep.subr.mxu0 %v5275
    %5445 = vmatpush1.msra.mxu0 %v5274
    %5446 = vmatprep.subr.mxu0 %v5283
    %5447 = vmatpush1.msra.mxu0 %v5282
    %5448 = vmatprep.subr.mxu0 %v5291
    %5449 = vmatpush1.msra.mxu0 %v5290
    %5450 = vmatprep.subr.mxu0 %v5299
    %5451 = vmatpush1.msra.mxu0 %v5298
    %5452 = vmatprep.subr.mxu0 %v5307
    %5453 = vmatpush1.msra.mxu0 %v5306
    %5454 = vmatprep.subr.mxu0 %v5315
    %5455 = vmatpush1.msra.mxu0 %v5314
    %5456 = vmatprep.subr.mxu0 %v5323
    %5457 = vmatpush1.msra.mxu0 %v5322
    %5458 = vmatprep.subr.mxu0 %v5331
    %5459 = vmatpush1.msra.mxu0 %v5330
    %5460 = vmatprep.subr.mxu0 %v5339
    %5461 = vmatpush1.msra.mxu0 %v5338
    %5462 = vmatprep.subr.mxu0 %v5347
    %5463 = vmatpush1.msra.mxu0 %v5346
    %5464 = vmatprep.subr.mxu0 %v5355
    %5465 = vmatpush1.msra.mxu0 %v5354
    %5466 = vmatprep.subr.mxu0 %v5363
    %5467 = vmatpush1.msra.mxu0 %v5362
    %5468 = vmatprep.subr.mxu0 %v5371
    %5469 = vmatpush1.msra.mxu0 %v5370
    %5470 = vmatprep.subr.mxu0 %v5379
    %5471 = vmatpush1.msra.mxu0 %v5378
    %5472 = vmatprep.subr.mxu0 %v5387
    %5473 = vmatpush1.msra.mxu0 %v5386
    %5474 = vmatprep.subr.mxu0 %v5395
    %5475 = vmatpush1.msra.mxu0 %v5394
    %5476 = vmatprep.subr.mxu0 0.0
    %5477 = vmatpush1.msra.mxu0 0.0
    %5478 = vmatprep.subr.mxu0 0.0
    %5479 = vmatpush1.msra.mxu0 0.0
    %5480 = vmatprep.subr.mxu0 0.0
    %5481 = vmatpush1.msra.mxu0 0.0
    %5482 = vmatprep.subr.mxu0 0.0
    %5483 = vmatpush1.msra.mxu0 0.0
    %5484 = vmatprep.subr.mxu0 0.0
    %5485 = vmatpush1.msra.mxu0 0.0
    %5486 = vmatprep.subr.mxu0 0.0
    %5487 = vmatpush1.msra.mxu0 0.0
    %5488 = vmatprep.subr.mxu0 0.0
    %5489 = vmatpush1.msra.mxu0 0.0
    %5490 = vmatprep.subr.mxu0 0.0
    %5491 = vmatpush1.msra.mxu0 0.0
    %5492 = vmatprep.subr.mxu0 0.0
    %5493 = vmatpush1.msra.mxu0 0.0
    %5494 = vmatprep.subr.mxu0 0.0
    %5495 = vmatpush1.msra.mxu0 0.0
    %5496 = vmatprep.subr.mxu0 0.0
    %5497 = vmatpush1.msra.mxu0 0.0
    %5498 = vmatprep.subr.mxu0 0.0
    %5499 = vmatpush1.msra.mxu0 0.0
    %5500 = vmatprep.subr.mxu0 0.0
    %5501 = vmatpush1.msra.mxu0 0.0
    %5502 = vmatprep.subr.mxu0 0.0
    %5503 = vmatpush1.msra.mxu0 0.0
    %5504 = vmatprep.subr.mxu0 0.0
    %5505 = vmatpush1.msra.mxu0 0.0
    %5506 = vmatprep.subr.mxu0 0.0
    %5507 = vmatpush1.msra.mxu0 0.0
    %5508 = vmatprep.mubr.f32.mxu0 0.0
    %5509 = vmatmul.mubr.f32.gmra.mrb[0].mxu0 %v5273
    %v5510 = vpop.f32.mrb[0].mxu0
    %v5511 = vadd.f32 %v5407, %v5510
    %v5512 = vpop.f32.mrb[0].mxu0
    %v5513 = vadd.f32 %v5411, %v5512
    %5514 = vdwg.mxu0
    %5515 = vmatprep.subr.mxu0 %v5277
    %5516 = vmatpush1.msra.mxu0 %v5276
    %5517 = vmatprep.subr.mxu0 %v5285
    %5518 = vmatpush1.msra.mxu0 %v5284
    %5519 = vmatprep.subr.mxu0 %v5293
    %5520 = vmatpush1.msra.mxu0 %v5292
    %5521 = vmatprep.subr.mxu0 %v5301
    %5522 = vmatpush1.msra.mxu0 %v5300
    %5523 = vmatprep.subr.mxu0 %v5309
    %5524 = vmatpush1.msra.mxu0 %v5308
    %5525 = vmatprep.subr.mxu0 %v5317
    %5526 = vmatpush1.msra.mxu0 %v5316
    %5527 = vmatprep.subr.mxu0 %v5325
    %5528 = vmatpush1.msra.mxu0 %v5324
    %5529 = vmatprep.subr.mxu0 %v5333
    %5530 = vmatpush1.msra.mxu0 %v5332
    %5531 = vmatprep.subr.mxu0 %v5341
    %5532 = vmatpush1.msra.mxu0 %v5340
    %5533 = vmatprep.subr.mxu0 %v5349
    %5534 = vmatpush1.msra.mxu0 %v5348
    %5535 = vmatprep.subr.mxu0 %v5357
    %5536 = vmatpush1.msra.mxu0 %v5356
    %5537 = vmatprep.subr.mxu0 %v5365
    %5538 = vmatpush1.msra.mxu0 %v5364
    %5539 = vmatprep.subr.mxu0 %v5373
    %5540 = vmatpush1.msra.mxu0 %v5372
    %5541 = vmatprep.subr.mxu0 %v5381
    %5542 = vmatpush1.msra.mxu0 %v5380
    %5543 = vmatprep.subr.mxu0 %v5389
    %5544 = vmatpush1.msra.mxu0 %v5388
    %5545 = vmatprep.subr.mxu0 %v5397
    %5546 = vmatpush1.msra.mxu0 %v5396
    %5547 = vmatprep.subr.mxu0 0.0
    %5548 = vmatpush1.msra.mxu0 0.0
    %5549 = vmatprep.subr.mxu0 0.0
    %5550 = vmatpush1.msra.mxu0 0.0
    %5551 = vmatprep.subr.mxu0 0.0
    %5552 = vmatpush1.msra.mxu0 0.0
    %5553 = vmatprep.subr.mxu0 0.0
    %5554 = vmatpush1.msra.mxu0 0.0
    %5555 = vmatprep.subr.mxu0 0.0
    %5556 = vmatpush1.msra.mxu0 0.0
    %5557 = vmatprep.subr.mxu0 0.0
    %5558 = vmatpush1.msra.mxu0 0.0
    %5559 = vmatprep.subr.mxu0 0.0
    %5560 = vmatpush1.msra.mxu0 0.0
    %5561 = vmatprep.subr.mxu0 0.0
    %5562 = vmatpush1.msra.mxu0 0.0
    %5563 = vmatprep.subr.mxu0 0.0
    %5564 = vmatpush1.msra.mxu0 0.0
    %5565 = vmatprep.subr.mxu0 0.0
    %5566 = vmatpush1.msra.mxu0 0.0
    %5567 = vmatprep.subr.mxu0 0.0
    %5568 = vmatpush1.msra.mxu0 0.0
    %5569 = vmatprep.subr.mxu0 0.0
    %5570 = vmatpush1.msra.mxu0 0.0
    %5571 = vmatprep.subr.mxu0 0.0
    %5572 = vmatpush1.msra.mxu0 0.0
    %5573 = vmatprep.subr.mxu0 0.0
    %5574 = vmatpush1.msra.mxu0 0.0
    %5575 = vmatprep.subr.mxu0 0.0
    %5576 = vmatpush1.msra.mxu0 0.0
    %5577 = vmatprep.subr.mxu0 0.0
    %5578 = vmatpush1.msra.mxu0 0.0
    %5579 = vmatprep.mubr.f32.mxu0 0.0
    %5580 = vmatmul.mubr.f32.gmra.mrb[0].mxu0 %v5273
    %v5581 = vpop.f32.mrb[0].mxu0
    %v5582 = vadd.f32 %v5415, %v5581
    %v5583 = vpop.f32.mrb[0].mxu0
    %v5584 = vadd.f32 %v5419, %v5583
    %5585 = vdwg.mxu0
    %5586 = vmatprep.subr.mxu0 %v5279
    %5587 = vmatpush1.msra.mxu0 %v5278
    %5588 = vmatprep.subr.mxu0 %v5287
    %5589 = vmatpush1.msra.mxu0 %v5286
    %5590 = vmatprep.subr.mxu0 %v5295
    %5591 = vmatpush1.msra.mxu0 %v5294
    %5592 = vmatprep.subr.mxu0 %v5303
    %5593 = vmatpush1.msra.mxu0 %v5302
    %5594 = vmatprep.subr.mxu0 %v5311
    %5595 = vmatpush1.msra.mxu0 %v5310
    %5596 = vmatprep.subr.mxu0 %v5319
    %5597 = vmatpush1.msra.mxu0 %v5318
    %5598 = vmatprep.subr.mxu0 %v5327
    %5599 = vmatpush1.msra.mxu0 %v5326
    %5600 = vmatprep.subr.mxu0 %v5335
    %5601 = vmatpush1.msra.mxu0 %v5334
    %5602 = vmatprep.subr.mxu0 %v5343
    %5603 = vmatpush1.msra.mxu0 %v5342
    %5604 = vmatprep.subr.mxu0 %v5351
    %5605 = vmatpush1.msra.mxu0 %v5350
    %5606 = vmatprep.subr.mxu0 %v5359
    %5607 = vmatpush1.msra.mxu0 %v5358
    %5608 = vmatprep.subr.mxu0 %v5367
    %5609 = vmatpush1.msra.mxu0 %v5366
    %5610 = vmatprep.subr.mxu0 %v5375
    %5611 = vmatpush1.msra.mxu0 %v5374
    %5612 = vmatprep.subr.mxu0 %v5383
    %5613 = vmatpush1.msra.mxu0 %v5382
    %5614 = vmatprep.subr.mxu0 %v5391
    %5615 = vmatpush1.msra.mxu0 %v5390
    %5616 = vmatprep.subr.mxu0 %v5399
    %5617 = vmatpush1.msra.mxu0 %v5398
    %5618 = vmatprep.subr.mxu0 0.0
    %5619 = vmatpush1.msra.mxu0 0.0
    %5620 = vmatprep.subr.mxu0 0.0
    %5621 = vmatpush1.msra.mxu0 0.0
    %5622 = vmatprep.subr.mxu0 0.0
    %5623 = vmatpush1.msra.mxu0 0.0
    %5624 = vmatprep.subr.mxu0 0.0
    %5625 = vmatpush1.msra.mxu0 0.0
    %5626 = vmatprep.subr.mxu0 0.0
    %5627 = vmatpush1.msra.mxu0 0.0
    %5628 = vmatprep.subr.mxu0 0.0
    %5629 = vmatpush1.msra.mxu0 0.0
    %5630 = vmatprep.subr.mxu0 0.0
    %5631 = vmatpush1.msra.mxu0 0.0
    %5632 = vmatprep.subr.mxu0 0.0
    %5633 = vmatpush1.msra.mxu0 0.0
    %5634 = vmatprep.subr.mxu0 0.0
    %5635 = vmatpush1.msra.mxu0 0.0
    %5636 = vmatprep.subr.mxu0 0.0
    %5637 = vmatpush1.msra.mxu0 0.0
    %5638 = vmatprep.subr.mxu0 0.0
    %5639 = vmatpush1.msra.mxu0 0.0
    %5640 = vmatprep.subr.mxu0 0.0
    %5641 = vmatpush1.msra.mxu0 0.0
    %5642 = vmatprep.subr.mxu0 0.0
    %5643 = vmatpush1.msra.mxu0 0.0
    %5644 = vmatprep.subr.mxu0 0.0
    %5645 = vmatpush1.msra.mxu0 0.0
    %5646 = vmatprep.subr.mxu0 0.0
    %5647 = vmatpush1.msra.mxu0 0.0
    %5648 = vmatprep.subr.mxu0 0.0
    %5649 = vmatpush1.msra.mxu0 0.0
    %5650 = vmatprep.mubr.f32.mxu0 0.0
    %5651 = vmatmul.mubr.f32.gmra.mrb[0].mxu0 %v5273
    %v5652 = vpop.f32.mrb[0].mxu0
    %v5653 = vadd.f32 %v5423, %v5652
    %v5654 = vpop.f32.mrb[0].mxu0
    %v5655 = vadd.f32 %v5427, %v5654
    %5656 = vdwg.mxu0
    %5657 = vmatprep.subr.mxu0 %v5281
    %5658 = vmatpush1.msra.mxu0 %v5280
    %5659 = vmatprep.subr.mxu0 %v5289
    %5660 = vmatpush1.msra.mxu0 %v5288
    %5661 = vmatprep.subr.mxu0 %v5297
    %5662 = vmatpush1.msra.mxu0 %v5296
    %5663 = vmatprep.subr.mxu0 %v5305
    %5664 = vmatpush1.msra.mxu0 %v5304
    %5665 = vmatprep.subr.mxu0 %v5313
    %5666 = vmatpush1.msra.mxu0 %v5312
    %5667 = vmatprep.subr.mxu0 %v5321
    %5668 = vmatpush1.msra.mxu0 %v5320
    %5669 = vmatprep.subr.mxu0 %v5329
    %5670 = vmatpush1.msra.mxu0 %v5328
    %5671 = vmatprep.subr.mxu0 %v5337
    %5672 = vmatpush1.msra.mxu0 %v5336
    %5673 = vmatprep.subr.mxu0 %v5345
    %5674 = vmatpush1.msra.mxu0 %v5344
    %5675 = vmatprep.subr.mxu0 %v5353
    %5676 = vmatpush1.msra.mxu0 %v5352
    %5677 = vmatprep.subr.mxu0 %v5361
    %5678 = vmatpush1.msra.mxu0 %v5360
    %5679 = vmatprep.subr.mxu0 %v5369
    %5680 = vmatpush1.msra.mxu0 %v5368
    %5681 = vmatprep.subr.mxu0 %v5377
    %5682 = vmatpush1.msra.mxu0 %v5376
    %5683 = vmatprep.subr.mxu0 %v5385
    %5684 = vmatpush1.msra.mxu0 %v5384
    %5685 = vmatprep.subr.mxu0 %v5393
    %5686 = vmatpush1.msra.mxu0 %v5392
    %5687 = vmatprep.subr.mxu0 %v5401
    %5688 = vmatpush1.msra.mxu0 %v5400
    %5689 = vmatprep.subr.mxu0 0.0
    %5690 = vmatpush1.msra.mxu0 0.0
    %5691 = vmatprep.subr.mxu0 0.0
    %5692 = vmatpush1.msra.mxu0 0.0
    %5693 = vmatprep.subr.mxu0 0.0
    %5694 = vmatpush1.msra.mxu0 0.0
    %5695 = vmatprep.subr.mxu0 0.0
    %5696 = vmatpush1.msra.mxu0 0.0
    %5697 = vmatprep.subr.mxu0 0.0
    %5698 = vmatpush1.msra.mxu0 0.0
    %5699 = vmatprep.subr.mxu0 0.0
    %5700 = vmatpush1.msra.mxu0 0.0
    %5701 = vmatprep.subr.mxu0 0.0
    %5702 = vmatpush1.msra.mxu0 0.0
    %5703 = vmatprep.subr.mxu0 0.0
    %5704 = vmatpush1.msra.mxu0 0.0
    %5705 = vmatprep.subr.mxu0 0.0
    %5706 = vmatpush1.msra.mxu0 0.0
    %5707 = vmatprep.subr.mxu0 0.0
    %5708 = vmatpush1.msra.mxu0 0.0
    %5709 = vmatprep.subr.mxu0 0.0
    %5710 = vmatpush1.msra.mxu0 0.0
    %5711 = vmatprep.subr.mxu0 0.0
    %5712 = vmatpush1.msra.mxu0 0.0
    %5713 = vmatprep.subr.mxu0 0.0
    %5714 = vmatpush1.msra.mxu0 0.0
    %5715 = vmatprep.subr.mxu0 0.0
    %5716 = vmatpush1.msra.mxu0 0.0
    %5717 = vmatprep.subr.mxu0 0.0
    %5718 = vmatpush1.msra.mxu0 0.0
    %5719 = vmatprep.subr.mxu0 0.0
    %5720 = vmatpush1.msra.mxu0 0.0
    %5721 = vmatprep.mubr.f32.mxu0 0.0
    %5722 = vmatmul.mubr.f32.gmra.mrb[0].mxu0 %v5273
    %v5723 = vpop.f32.mrb[0].mxu0
    %v5724 = vadd.f32 %v5431, %v5723
    %v5725 = vpop.f32.mrb[0].mxu0
    %v5726 = vadd.f32 %v5435, %v5725
    %5727 = vdwg.mxu0
    %v5728 = vld [vmem:[#allocation22] sm:$0xff]
    %v5730 = vlaneseq
    %v5731 = vshrl.u32 %v5730, 7
    %v5732 = vsub.s32 0, %v5731
    %v5733 = vrot.slane %v5728, %v5732
    %v5734 = vlaneseq
    %v5735 = vshrl.u32 %v5734, 7
    %v5736 = vsub.s32 1, %v5735
    %v5737 = vrot.slane %v5728, %v5736
    %v5738 = vlaneseq
    %v5739 = vshrl.u32 %v5738, 7
    %v5740 = vsub.s32 2, %v5739
    %v5741 = vrot.slane %v5728, %v5740
    %v5742 = vlaneseq
    %v5743 = vshrl.u32 %v5742, 7
    %v5744 = vsub.s32 3, %v5743
    %v5745 = vrot.slane %v5728, %v5744
    %v5746 = vlaneseq
    %v5747 = vshrl.u32 %v5746, 7
    %v5748 = vsub.s32 4, %v5747
    %v5749 = vrot.slane %v5728, %v5748
    %v5750 = vlaneseq
    %v5751 = vshrl.u32 %v5750, 7
    %v5752 = vsub.s32 5, %v5751
    %v5753 = vrot.slane %v5728, %v5752
    %v5754 = vlaneseq
    %v5755 = vshrl.u32 %v5754, 7
    %v5756 = vsub.s32 6, %v5755
    %v5757 = vrot.slane %v5728, %v5756
    %v5758 = vlaneseq
    %v5759 = vshrl.u32 %v5758, 7
    %v5760 = vsub.s32 7, %v5759
    %v5761 = vrot.slane %v5728, %v5760
    %v5770 = vsub.f32 %v5511, %v5733
    %v5771 = vsub.f32 %v5513, %v5737
    %v5772 = vsub.f32 %v5582, %v5741
    %v5773 = vsub.f32 %v5584, %v5745
    %v5774 = vsub.f32 %v5653, %v5749
    %v5775 = vsub.f32 %v5655, %v5753
    %v5776 = vsub.f32 %v5724, %v5757
    %v5777 = vsub.f32 %v5726, %v5761
    %v5778 = vld [vmem:[#allocation23] sm:$0xff]
    %v5779 = vadd.f32 %v5778, 1e-05
    %v5780 = vrsqrt.pop %v5779
    %v5782 = vlaneseq
    %v5783 = vshrl.u32 %v5782, 7
    %v5784 = vsub.s32 0, %v5783
    %v5785 = vrot.slane %v5780, %v5784
    %v5786 = vlaneseq
    %v5787 = vshrl.u32 %v5786, 7
    %v5788 = vsub.s32 1, %v5787
    %v5789 = vrot.slane %v5780, %v5788
    %v5790 = vlaneseq
    %v5791 = vshrl.u32 %v5790, 7
    %v5792 = vsub.s32 2, %v5791
    %v5793 = vrot.slane %v5780, %v5792
    %v5794 = vlaneseq
    %v5795 = vshrl.u32 %v5794, 7
    %v5796 = vsub.s32 3, %v5795
    %v5797 = vrot.slane %v5780, %v5796
    %v5798 = vlaneseq
    %v5799 = vshrl.u32 %v5798, 7
    %v5800 = vsub.s32 4, %v5799
    %v5801 = vrot.slane %v5780, %v5800
    %v5802 = vlaneseq
    %v5803 = vshrl.u32 %v5802, 7
    %v5804 = vsub.s32 5, %v5803
    %v5805 = vrot.slane %v5780, %v5804
    %v5806 = vlaneseq
    %v5807 = vshrl.u32 %v5806, 7
    %v5808 = vsub.s32 6, %v5807
    %v5809 = vrot.slane %v5780, %v5808
    %v5810 = vlaneseq
    %v5811 = vshrl.u32 %v5810, 7
    %v5812 = vsub.s32 7, %v5811
    %v5813 = vrot.slane %v5780, %v5812
    %v5822 = vmul.f32 %v5770, %v5785
    %v5823 = vmul.f32 %v5771, %v5789
    %v5824 = vmul.f32 %v5772, %v5793
    %v5825 = vmul.f32 %v5773, %v5797
    %v5826 = vmul.f32 %v5774, %v5801
    %v5827 = vmul.f32 %v5775, %v5805
    %v5828 = vmul.f32 %v5776, %v5809
    %v5829 = vmul.f32 %v5777, %v5813
    %v5830 = vld [vmem:[#allocation19] sm:$0xff]
    %v5832 = vlaneseq
    %v5833 = vshrl.u32 %v5832, 7
    %v5834 = vsub.s32 0, %v5833
    %v5835 = vrot.slane %v5830, %v5834
    %v5836 = vlaneseq
    %v5837 = vshrl.u32 %v5836, 7
    %v5838 = vsub.s32 1, %v5837
    %v5839 = vrot.slane %v5830, %v5838
    %v5840 = vlaneseq
    %v5841 = vshrl.u32 %v5840, 7
    %v5842 = vsub.s32 2, %v5841
    %v5843 = vrot.slane %v5830, %v5842
    %v5844 = vlaneseq
    %v5845 = vshrl.u32 %v5844, 7
    %v5846 = vsub.s32 3, %v5845
    %v5847 = vrot.slane %v5830, %v5846
    %v5848 = vlaneseq
    %v5849 = vshrl.u32 %v5848, 7
    %v5850 = vsub.s32 4, %v5849
    %v5851 = vrot.slane %v5830, %v5850
    %v5852 = vlaneseq
    %v5853 = vshrl.u32 %v5852, 7
    %v5854 = vsub.s32 5, %v5853
    %v5855 = vrot.slane %v5830, %v5854
    %v5856 = vlaneseq
    %v5857 = vshrl.u32 %v5856, 7
    %v5858 = vsub.s32 6, %v5857
    %v5859 = vrot.slane %v5830, %v5858
    %v5860 = vlaneseq
    %v5861 = vshrl.u32 %v5860, 7
    %v5862 = vsub.s32 7, %v5861
    %v5863 = vrot.slane %v5830, %v5862
    %v5872 = vmul.f32 %v5822, %v5835
    %v5873 = vmul.f32 %v5823, %v5839
    %v5874 = vmul.f32 %v5824, %v5843
    %v5875 = vmul.f32 %v5825, %v5847
    %v5876 = vmul.f32 %v5826, %v5851
    %v5877 = vmul.f32 %v5827, %v5855
    %v5878 = vmul.f32 %v5828, %v5859
    %v5879 = vmul.f32 %v5829, %v5863
    %v5880 = vld [vmem:[#allocation20] sm:$0xff]
    %v5882 = vlaneseq
    %v5883 = vshrl.u32 %v5882, 7
    %v5884 = vsub.s32 0, %v5883
    %v5885 = vrot.slane %v5880, %v5884
    %v5886 = vlaneseq
    %v5887 = vshrl.u32 %v5886, 7
    %v5888 = vsub.s32 1, %v5887
    %v5889 = vrot.slane %v5880, %v5888
    %v5890 = vlaneseq
    %v5891 = vshrl.u32 %v5890, 7
    %v5892 = vsub.s32 2, %v5891
    %v5893 = vrot.slane %v5880, %v5892
    %v5894 = vlaneseq
    %v5895 = vshrl.u32 %v5894, 7
    %v5896 = vsub.s32 3, %v5895
    %v5897 = vrot.slane %v5880, %v5896
    %v5898 = vlaneseq
    %v5899 = vshrl.u32 %v5898, 7
    %v5900 = vsub.s32 4, %v5899
    %v5901 = vrot.slane %v5880, %v5900
    %v5902 = vlaneseq
    %v5903 = vshrl.u32 %v5902, 7
    %v5904 = vsub.s32 5, %v5903
    %v5905 = vrot.slane %v5880, %v5904
    %v5906 = vlaneseq
    %v5907 = vshrl.u32 %v5906, 7
    %v5908 = vsub.s32 6, %v5907
    %v5909 = vrot.slane %v5880, %v5908
    %v5910 = vlaneseq
    %v5911 = vshrl.u32 %v5910, 7
    %v5912 = vsub.s32 7, %v5911
    %v5913 = vrot.slane %v5880, %v5912
    %v5922 = vadd.f32 %v5872, %v5885
    %v5923 = vadd.f32 %v5873, %v5889
    %v5924 = vadd.f32 %v5874, %v5893
    %v5925 = vadd.f32 %v5875, %v5897
    %v5926 = vadd.f32 %v5876, %v5901
    %v5927 = vadd.f32 %v5877, %v5905
    %v5928 = vadd.f32 %v5878, %v5909
    %v5929 = vadd.f32 %v5879, %v5913
    %v5930 = vmax.f32 %v5922, 0.0
    %v5931 = vmax.f32 %v5923, 0.0
    %v5932 = vmax.f32 %v5924, 0.0
    %v5933 = vmax.f32 %v5925, 0.0
    %v5934 = vmax.f32 %v5926, 0.0
    %v5935 = vmax.f32 %v5927, 0.0
    %v5936 = vmax.f32 %v5928, 0.0
    %v5937 = vmax.f32 %v5929, 0.0
    %v5938 = vld [vmem:[#allocation25] sm:$0xff]
    %v5939 = vld [vmem:[#allocation25 + $0x8] sm:$0xff]
    %v5940 = vld [vmem:[#allocation25 + $0x10] sm:$0xff]
    %v5941 = vld [vmem:[#allocation25 + $0x18] sm:$0xff]
    %v5942 = vld [vmem:[#allocation25 + $0x20] sm:$0xff]
    %v5943 = vld [vmem:[#allocation25 + $0x28] sm:$0xff]
    %v5944 = vld [vmem:[#allocation25 + $0x30] sm:$0xff]
    %v5945 = vld [vmem:[#allocation25 + $0x38] sm:$0xff]
    %v5946 = vld [vmem:[#allocation25 + $0x40] sm:$0xff]
    %v5947 = vld [vmem:[#allocation25 + $0x48] sm:$0xff]
    %v5948 = vld [vmem:[#allocation25 + $0x50] sm:$0xff]
    %v5949 = vld [vmem:[#allocation25 + $0x58] sm:$0xff]
    %v5950 = vld [vmem:[#allocation25 + $0x60] sm:$0xff]
    %v5951 = vld [vmem:[#allocation25 + $0x68] sm:$0xff]
    %v5952 = vld [vmem:[#allocation25 + $0x70] sm:$0xff]
    %v5953 = vld [vmem:[#allocation25 + $0x78] sm:$0xff]
    %v5954 = vld [vmem:[#allocation25 + $0x80] sm:$0xff]
    %v5955 = vld [vmem:[#allocation25 + $0x88] sm:$0xff]
    %v5956 = vld [vmem:[#allocation25 + $0x90] sm:$0xff]
    %v5957 = vld [vmem:[#allocation25 + $0x98] sm:$0xff]
    %v5958 = vld [vmem:[#allocation25 + $0xa0] sm:$0xff]
    %v5959 = vld [vmem:[#allocation25 + $0xa8] sm:$0xff]
    %v5960 = vld [vmem:[#allocation25 + $0xb0] sm:$0xff]
    %v5961 = vld [vmem:[#allocation25 + $0xb8] sm:$0xff]
    %v5962 = vld [vmem:[#allocation25 + $0xc0] sm:$0xff]
    %v5963 = vld [vmem:[#allocation25 + $0xc8] sm:$0xff]
    %v5964 = vld [vmem:[#allocation25 + $0xd0] sm:$0xff]
    %v5965 = vld [vmem:[#allocation25 + $0xd8] sm:$0xff]
    %v5966 = vld [vmem:[#allocation25 + $0xe0] sm:$0xff]
    %v5967 = vld [vmem:[#allocation25 + $0xe8] sm:$0xff]
    %v5968 = vld [vmem:[#allocation25 + $0xf0] sm:$0xff]
    %v5969 = vld [vmem:[#allocation25 + $0xf8] sm:$0xff]
    %v5970 = vld [vmem:[#allocation25 + $0x100] sm:$0xff]
    %v5971 = vld [vmem:[#allocation25 + $0x108] sm:$0xff]
    %v5972 = vld [vmem:[#allocation25 + $0x110] sm:$0xff]
    %v5973 = vld [vmem:[#allocation25 + $0x118] sm:$0xff]
    %v5974 = vld [vmem:[#allocation25 + $0x120] sm:$0xff]
    %v5975 = vld [vmem:[#allocation25 + $0x128] sm:$0xff]
    %v5976 = vld [vmem:[#allocation25 + $0x130] sm:$0xff]
    %v5977 = vld [vmem:[#allocation25 + $0x138] sm:$0xff]
    %v5978 = vld [vmem:[#allocation25 + $0x140] sm:$0xff]
    %v5979 = vld [vmem:[#allocation25 + $0x148] sm:$0xff]
    %v5980 = vld [vmem:[#allocation25 + $0x150] sm:$0xff]
    %v5981 = vld [vmem:[#allocation25 + $0x158] sm:$0xff]
    %v5982 = vld [vmem:[#allocation25 + $0x160] sm:$0xff]
    %v5983 = vld [vmem:[#allocation25 + $0x168] sm:$0xff]
    %v5984 = vld [vmem:[#allocation25 + $0x170] sm:$0xff]
    %v5985 = vld [vmem:[#allocation25 + $0x178] sm:$0xff]
    %v5986 = vld [vmem:[#allocation25 + $0x180] sm:$0xff]
    %v5987 = vld [vmem:[#allocation25 + $0x188] sm:$0xff]
    %v5988 = vld [vmem:[#allocation25 + $0x190] sm:$0xff]
    %v5989 = vld [vmem:[#allocation25 + $0x198] sm:$0xff]
    %v5990 = vld [vmem:[#allocation25 + $0x1a0] sm:$0xff]
    %v5991 = vld [vmem:[#allocation25 + $0x1a8] sm:$0xff]
    %v5992 = vld [vmem:[#allocation25 + $0x1b0] sm:$0xff]
    %v5993 = vld [vmem:[#allocation25 + $0x1b8] sm:$0xff]
    %v5994 = vld [vmem:[#allocation25 + $0x1c0] sm:$0xff]
    %v5995 = vld [vmem:[#allocation25 + $0x1c8] sm:$0xff]
    %v5996 = vld [vmem:[#allocation25 + $0x1d0] sm:$0xff]
    %v5997 = vld [vmem:[#allocation25 + $0x1d8] sm:$0xff]
    %v5998 = vld [vmem:[#allocation25 + $0x1e0] sm:$0xff]
    %v5999 = vld [vmem:[#allocation25 + $0x1e8] sm:$0xff]
    %v6000 = vld [vmem:[#allocation25 + $0x1f0] sm:$0xff]
    %v6001 = vld [vmem:[#allocation25 + $0x1f8] sm:$0xff]
    %v6002 = vld [vmem:[#allocation25 + $0x200] sm:$0xff]
    %v6003 = vld [vmem:[#allocation25 + $0x208] sm:$0xff]
    %v6004 = vld [vmem:[#allocation25 + $0x210] sm:$0xff]
    %v6005 = vld [vmem:[#allocation25 + $0x218] sm:$0xff]
    %v6006 = vld [vmem:[#allocation25 + $0x220] sm:$0xff]
    %v6007 = vld [vmem:[#allocation25 + $0x228] sm:$0xff]
    %v6008 = vld [vmem:[#allocation25 + $0x230] sm:$0xff]
    %v6009 = vld [vmem:[#allocation25 + $0x238] sm:$0xff]
    %v6010 = vld [vmem:[#allocation25 + $0x240] sm:$0xff]
    %v6011 = vld [vmem:[#allocation25 + $0x248] sm:$0xff]
    %v6012 = vld [vmem:[#allocation25 + $0x250] sm:$0xff]
    %v6013 = vld [vmem:[#allocation25 + $0x258] sm:$0xff]
    %v6014 = vld [vmem:[#allocation25 + $0x260] sm:$0xff]
    %v6015 = vld [vmem:[#allocation25 + $0x268] sm:$0xff]
    %v6016 = vld [vmem:[#allocation25 + $0x270] sm:$0xff]
    %v6017 = vld [vmem:[#allocation25 + $0x278] sm:$0xff]
    %v6018 = vld [vmem:[#allocation25 + $0x280] sm:$0xff]
    %v6019 = vld [vmem:[#allocation25 + $0x288] sm:$0xff]
    %v6020 = vld [vmem:[#allocation25 + $0x290] sm:$0xff]
    %v6021 = vld [vmem:[#allocation25 + $0x298] sm:$0xff]
    %v6022 = vld [vmem:[#allocation25 + $0x2a0] sm:$0xff]
    %v6023 = vld [vmem:[#allocation25 + $0x2a8] sm:$0xff]
    %v6024 = vld [vmem:[#allocation25 + $0x2b0] sm:$0xff]
    %v6025 = vld [vmem:[#allocation25 + $0x2b8] sm:$0xff]
    %v6026 = vld [vmem:[#allocation25 + $0x2c0] sm:$0xff]
    %v6027 = vld [vmem:[#allocation25 + $0x2c8] sm:$0xff]
    %v6028 = vld [vmem:[#allocation25 + $0x2d0] sm:$0xff]
    %v6029 = vld [vmem:[#allocation25 + $0x2d8] sm:$0xff]
    %v6030 = vld [vmem:[#allocation25 + $0x2e0] sm:$0xff]
    %v6031 = vld [vmem:[#allocation25 + $0x2e8] sm:$0xff]
    %v6032 = vld [vmem:[#allocation25 + $0x2f0] sm:$0xff]
    %v6033 = vld [vmem:[#allocation25 + $0x2f8] sm:$0xff]
    %v6034 = vld [vmem:[#allocation25 + $0x300] sm:$0xff]
    %v6035 = vld [vmem:[#allocation25 + $0x308] sm:$0xff]
    %v6036 = vld [vmem:[#allocation25 + $0x310] sm:$0xff]
    %v6037 = vld [vmem:[#allocation25 + $0x318] sm:$0xff]
    %v6038 = vld [vmem:[#allocation25 + $0x320] sm:$0xff]
    %v6039 = vld [vmem:[#allocation25 + $0x328] sm:$0xff]
    %v6040 = vld [vmem:[#allocation25 + $0x330] sm:$0xff]
    %v6041 = vld [vmem:[#allocation25 + $0x338] sm:$0xff]
    %v6042 = vld [vmem:[#allocation25 + $0x340] sm:$0xff]
    %v6043 = vld [vmem:[#allocation25 + $0x348] sm:$0xff]
    %v6044 = vld [vmem:[#allocation25 + $0x350] sm:$0xff]
    %v6045 = vld [vmem:[#allocation25 + $0x358] sm:$0xff]
    %v6046 = vld [vmem:[#allocation25 + $0x360] sm:$0xff]
    %v6047 = vld [vmem:[#allocation25 + $0x368] sm:$0xff]
    %v6048 = vld [vmem:[#allocation25 + $0x370] sm:$0xff]
    %v6049 = vld [vmem:[#allocation25 + $0x378] sm:$0xff]
    %v6050 = vld [vmem:[#allocation25 + $0x380] sm:$0xff]
    %v6051 = vld [vmem:[#allocation25 + $0x388] sm:$0xff]
    %v6052 = vld [vmem:[#allocation25 + $0x390] sm:$0xff]
    %v6053 = vld [vmem:[#allocation25 + $0x398] sm:$0xff]
    %v6054 = vld [vmem:[#allocation25 + $0x3a0] sm:$0xff]
    %v6055 = vld [vmem:[#allocation25 + $0x3a8] sm:$0xff]
    %v6056 = vld [vmem:[#allocation25 + $0x3b0] sm:$0xff]
    %v6057 = vld [vmem:[#allocation25 + $0x3b8] sm:$0xff]
    %v6058 = vld [vmem:[#allocation25 + $0x3c0] sm:$0xff]
    %v6059 = vld [vmem:[#allocation25 + $0x3c8] sm:$0xff]
    %v6060 = vld [vmem:[#allocation25 + $0x3d0] sm:$0xff]
    %v6061 = vld [vmem:[#allocation25 + $0x3d8] sm:$0xff]
    %v6062 = vld [vmem:[#allocation25 + $0x3e0] sm:$0xff]
    %v6063 = vld [vmem:[#allocation25 + $0x3e8] sm:$0xff]
    %v6064 = vld [vmem:[#allocation25 + $0x3f0] sm:$0xff]
    %v6065 = vld [vmem:[#allocation25 + $0x3f8] sm:$0xff]
    %v6066 = vld [vmem:[#allocation25 + $0x400] sm:$0xff]
    %v6067 = vld [vmem:[#allocation25 + $0x408] sm:$0xff]
    %v6068 = vld [vmem:[#allocation25 + $0x410] sm:$0xff]
    %v6069 = vld [vmem:[#allocation25 + $0x418] sm:$0xff]
    %v6070 = vld [vmem:[#allocation25 + $0x420] sm:$0xff]
    %v6071 = vld [vmem:[#allocation25 + $0x428] sm:$0xff]
    %v6072 = vld [vmem:[#allocation25 + $0x430] sm:$0xff]
    %v6073 = vld [vmem:[#allocation25 + $0x438] sm:$0xff]
    %v6074 = vld [vmem:[#allocation25 + $0x440] sm:$0xff]
    %v6075 = vld [vmem:[#allocation25 + $0x448] sm:$0xff]
    %v6076 = vld [vmem:[#allocation25 + $0x450] sm:$0xff]
    %v6077 = vld [vmem:[#allocation25 + $0x458] sm:$0xff]
    %v6078 = vld [vmem:[#allocation25 + $0x460] sm:$0xff]
    %v6079 = vld [vmem:[#allocation25 + $0x468] sm:$0xff]
    %v6080 = vld [vmem:[#allocation25 + $0x470] sm:$0xff]
    %v6081 = vld [vmem:[#allocation25 + $0x478] sm:$0xff]
    %v6082 = vld [vmem:[#allocation25 + $0x480] sm:$0xff]
    %v6083 = vld [vmem:[#allocation25 + $0x488] sm:$0xff]
    %v6084 = vld [vmem:[#allocation25 + $0x490] sm:$0xff]
    %v6085 = vld [vmem:[#allocation25 + $0x498] sm:$0xff]
    %v6086 = vld [vmem:[#allocation25 + $0x4a0] sm:$0xff]
    %v6087 = vld [vmem:[#allocation25 + $0x4a8] sm:$0xff]
    %v6088 = vld [vmem:[#allocation25 + $0x4b0] sm:$0xff]
    %v6089 = vld [vmem:[#allocation25 + $0x4b8] sm:$0xff]
    %v6090 = vld [vmem:[#allocation25 + $0x4c0] sm:$0xff]
    %v6091 = vld [vmem:[#allocation25 + $0x4c8] sm:$0xff]
    %v6092 = vld [vmem:[#allocation25 + $0x4d0] sm:$0xff]
    %v6093 = vld [vmem:[#allocation25 + $0x4d8] sm:$0xff]
    %v6094 = vld [vmem:[#allocation25 + $0x4e0] sm:$0xff]
    %v6095 = vld [vmem:[#allocation25 + $0x4e8] sm:$0xff]
    %v6096 = vld [vmem:[#allocation25 + $0x4f0] sm:$0xff]
    %v6097 = vld [vmem:[#allocation25 + $0x4f8] sm:$0xff]
    %v6098 = vld [vmem:[#allocation25 + $0x500] sm:$0xff]
    %v6099 = vld [vmem:[#allocation25 + $0x508] sm:$0xff]
    %v6100 = vld [vmem:[#allocation25 + $0x510] sm:$0xff]
    %v6101 = vld [vmem:[#allocation25 + $0x518] sm:$0xff]
    %v6102 = vld [vmem:[#allocation25 + $0x520] sm:$0xff]
    %v6103 = vld [vmem:[#allocation25 + $0x528] sm:$0xff]
    %v6104 = vld [vmem:[#allocation25 + $0x530] sm:$0xff]
    %v6105 = vld [vmem:[#allocation25 + $0x538] sm:$0xff]
    %v6106 = vld [vmem:[#allocation25 + $0x540] sm:$0xff]
    %v6107 = vld [vmem:[#allocation25 + $0x548] sm:$0xff]
    %v6108 = vld [vmem:[#allocation25 + $0x550] sm:$0xff]
    %v6109 = vld [vmem:[#allocation25 + $0x558] sm:$0xff]
    %v6110 = vld [vmem:[#allocation25 + $0x560] sm:$0xff]
    %v6111 = vld [vmem:[#allocation25 + $0x568] sm:$0xff]
    %v6112 = vld [vmem:[#allocation25 + $0x570] sm:$0xff]
    %v6113 = vld [vmem:[#allocation25 + $0x578] sm:$0xff]
    %v6114 = vld [vmem:[#allocation25 + $0x580] sm:$0xff]
    %v6115 = vld [vmem:[#allocation25 + $0x588] sm:$0xff]
    %v6116 = vld [vmem:[#allocation25 + $0x590] sm:$0xff]
    %v6117 = vld [vmem:[#allocation25 + $0x598] sm:$0xff]
    %v6118 = vld [vmem:[#allocation25 + $0x5a0] sm:$0xff]
    %v6119 = vld [vmem:[#allocation25 + $0x5a8] sm:$0xff]
    %v6120 = vld [vmem:[#allocation25 + $0x5b0] sm:$0xff]
    %v6121 = vld [vmem:[#allocation25 + $0x5b8] sm:$0xff]
    %v6122 = vld [vmem:[#allocation25 + $0x5c0] sm:$0xff]
    %v6123 = vld [vmem:[#allocation25 + $0x5c8] sm:$0xff]
    %v6124 = vld [vmem:[#allocation25 + $0x5d0] sm:$0xff]
    %v6125 = vld [vmem:[#allocation25 + $0x5d8] sm:$0xff]
    %v6126 = vld [vmem:[#allocation25 + $0x5e0] sm:$0xff]
    %v6127 = vld [vmem:[#allocation25 + $0x5e8] sm:$0xff]
    %v6128 = vld [vmem:[#allocation25 + $0x5f0] sm:$0xff]
    %v6129 = vld [vmem:[#allocation25 + $0x5f8] sm:$0xff]
    %v6130 = vld [vmem:[#allocation25 + $0x600] sm:$0xff]
    %v6131 = vld [vmem:[#allocation25 + $0x608] sm:$0xff]
    %v6132 = vld [vmem:[#allocation25 + $0x610] sm:$0xff]
    %v6133 = vld [vmem:[#allocation25 + $0x618] sm:$0xff]
    %v6134 = vld [vmem:[#allocation25 + $0x620] sm:$0xff]
    %v6135 = vld [vmem:[#allocation25 + $0x628] sm:$0xff]
    %v6136 = vld [vmem:[#allocation25 + $0x630] sm:$0xff]
    %v6137 = vld [vmem:[#allocation25 + $0x638] sm:$0xff]
    %v6138 = vld [vmem:[#allocation25 + $0x640] sm:$0xff]
    %v6139 = vld [vmem:[#allocation25 + $0x648] sm:$0xff]
    %v6140 = vld [vmem:[#allocation25 + $0x650] sm:$0xff]
    %v6141 = vld [vmem:[#allocation25 + $0x658] sm:$0xff]
    %v6142 = vld [vmem:[#allocation25 + $0x660] sm:$0xff]
    %v6143 = vld [vmem:[#allocation25 + $0x668] sm:$0xff]
    %v6144 = vld [vmem:[#allocation25 + $0x670] sm:$0xff]
    %v6145 = vld [vmem:[#allocation25 + $0x678] sm:$0xff]
    %v6146 = vld [vmem:[#allocation25 + $0x680] sm:$0xff]
    %v6147 = vld [vmem:[#allocation25 + $0x688] sm:$0xff]
    %v6148 = vld [vmem:[#allocation25 + $0x690] sm:$0xff]
    %v6149 = vld [vmem:[#allocation25 + $0x698] sm:$0xff]
    %v6150 = vld [vmem:[#allocation25 + $0x6a0] sm:$0xff]
    %v6151 = vld [vmem:[#allocation25 + $0x6a8] sm:$0xff]
    %v6152 = vld [vmem:[#allocation25 + $0x6b0] sm:$0xff]
    %v6153 = vld [vmem:[#allocation25 + $0x6b8] sm:$0xff]
    %v6154 = vld [vmem:[#allocation25 + $0x6c0] sm:$0xff]
    %v6155 = vld [vmem:[#allocation25 + $0x6c8] sm:$0xff]
    %v6156 = vld [vmem:[#allocation25 + $0x6d0] sm:$0xff]
    %v6157 = vld [vmem:[#allocation25 + $0x6d8] sm:$0xff]
    %v6158 = vld [vmem:[#allocation25 + $0x6e0] sm:$0xff]
    %v6159 = vld [vmem:[#allocation25 + $0x6e8] sm:$0xff]
    %v6160 = vld [vmem:[#allocation25 + $0x6f0] sm:$0xff]
    %v6161 = vld [vmem:[#allocation25 + $0x6f8] sm:$0xff]
    %v6162 = vld [vmem:[#allocation25 + $0x700] sm:$0xff]
    %v6163 = vld [vmem:[#allocation25 + $0x708] sm:$0xff]
    %v6164 = vld [vmem:[#allocation25 + $0x710] sm:$0xff]
    %v6165 = vld [vmem:[#allocation25 + $0x718] sm:$0xff]
    %v6166 = vld [vmem:[#allocation25 + $0x720] sm:$0xff]
    %v6167 = vld [vmem:[#allocation25 + $0x728] sm:$0xff]
    %v6168 = vld [vmem:[#allocation25 + $0x730] sm:$0xff]
    %v6169 = vld [vmem:[#allocation25 + $0x738] sm:$0xff]
    %v6170 = vld [vmem:[#allocation25 + $0x740] sm:$0xff]
    %v6171 = vld [vmem:[#allocation25 + $0x748] sm:$0xff]
    %v6172 = vld [vmem:[#allocation25 + $0x750] sm:$0xff]
    %v6173 = vld [vmem:[#allocation25 + $0x758] sm:$0xff]
    %v6174 = vld [vmem:[#allocation25 + $0x760] sm:$0xff]
    %v6175 = vld [vmem:[#allocation25 + $0x768] sm:$0xff]
    %v6176 = vld [vmem:[#allocation25 + $0x770] sm:$0xff]
    %v6177 = vld [vmem:[#allocation25 + $0x778] sm:$0xff]
    %v6178 = vld [vmem:[#allocation25 + $0x780] sm:$0xff]
    %v6179 = vld [vmem:[#allocation25 + $0x788] sm:$0xff]
    %v6180 = vld [vmem:[#allocation25 + $0x790] sm:$0xff]
    %v6181 = vld [vmem:[#allocation25 + $0x798] sm:$0xff]
    %v6182 = vld [vmem:[#allocation25 + $0x7a0] sm:$0xff]
    %v6183 = vld [vmem:[#allocation25 + $0x7a8] sm:$0xff]
    %v6184 = vld [vmem:[#allocation25 + $0x7b0] sm:$0xff]
    %v6185 = vld [vmem:[#allocation25 + $0x7b8] sm:$0xff]
    %v6186 = vld [vmem:[#allocation25 + $0x7c0] sm:$0xff]
    %v6187 = vld [vmem:[#allocation25 + $0x7c8] sm:$0xff]
    %v6188 = vld [vmem:[#allocation25 + $0x7d0] sm:$0xff]
    %v6189 = vld [vmem:[#allocation25 + $0x7d8] sm:$0xff]
    %v6190 = vld [vmem:[#allocation25 + $0x7e0] sm:$0xff]
    %v6191 = vld [vmem:[#allocation25 + $0x7e8] sm:$0xff]
    %v6192 = vld [vmem:[#allocation25 + $0x7f0] sm:$0xff]
    %v6193 = vld [vmem:[#allocation25 + $0x7f8] sm:$0xff]
    %v6194 = vld [vmem:[#allocation26] sm:$0x3]
    %v6196 = vlaneseq
    %v6197 = vshrl.u32 %v6196, 7
    %v6198 = vsub.s32 0, %v6197
    %v6199 = vrot.slane %v6194, %v6198
    %v6200 = vlaneseq
    %v6201 = vshrl.u32 %v6200, 7
    %v6202 = vsub.s32 1, %v6201
    %v6203 = vrot.slane %v6194, %v6202
    %6206 = vmatprep.subr.mxu0 %v5939
    %6207 = vmatpush1.msra.mxu0 %v5938
    %6208 = vmatprep.subr.mxu0 %v5941
    %6209 = vmatpush1.msra.mxu0 %v5940
    %6210 = vmatprep.subr.mxu0 %v5943
    %6211 = vmatpush1.msra.mxu0 %v5942
    %6212 = vmatprep.subr.mxu0 %v5945
    %6213 = vmatpush1.msra.mxu0 %v5944
    %6214 = vmatprep.subr.mxu0 %v5947
    %6215 = vmatpush1.msra.mxu0 %v5946
    %6216 = vmatprep.subr.mxu0 %v5949
    %6217 = vmatpush1.msra.mxu0 %v5948
    %6218 = vmatprep.subr.mxu0 %v5951
    %6219 = vmatpush1.msra.mxu0 %v5950
    %6220 = vmatprep.subr.mxu0 %v5953
    %6221 = vmatpush1.msra.mxu0 %v5952
    %6222 = vmatprep.subr.mxu0 %v5955
    %6223 = vmatpush1.msra.mxu0 %v5954
    %6224 = vmatprep.subr.mxu0 %v5957
    %6225 = vmatpush1.msra.mxu0 %v5956
    %6226 = vmatprep.subr.mxu0 %v5959
    %6227 = vmatpush1.msra.mxu0 %v5958
    %6228 = vmatprep.subr.mxu0 %v5961
    %6229 = vmatpush1.msra.mxu0 %v5960
    %6230 = vmatprep.subr.mxu0 %v5963
    %6231 = vmatpush1.msra.mxu0 %v5962
    %6232 = vmatprep.subr.mxu0 %v5965
    %6233 = vmatpush1.msra.mxu0 %v5964
    %6234 = vmatprep.subr.mxu0 %v5967
    %6235 = vmatpush1.msra.mxu0 %v5966
    %6236 = vmatprep.subr.mxu0 %v5969
    %6237 = vmatpush1.msra.mxu0 %v5968
    %6238 = vmatprep.subr.mxu0 %v5971
    %6239 = vmatpush1.msra.mxu0 %v5970
    %6240 = vmatprep.subr.mxu0 %v5973
    %6241 = vmatpush1.msra.mxu0 %v5972
    %6242 = vmatprep.subr.mxu0 %v5975
    %6243 = vmatpush1.msra.mxu0 %v5974
    %6244 = vmatprep.subr.mxu0 %v5977
    %6245 = vmatpush1.msra.mxu0 %v5976
    %6246 = vmatprep.subr.mxu0 %v5979
    %6247 = vmatpush1.msra.mxu0 %v5978
    %6248 = vmatprep.subr.mxu0 %v5981
    %6249 = vmatpush1.msra.mxu0 %v5980
    %6250 = vmatprep.subr.mxu0 %v5983
    %6251 = vmatpush1.msra.mxu0 %v5982
    %6252 = vmatprep.subr.mxu0 %v5985
    %6253 = vmatpush1.msra.mxu0 %v5984
    %6254 = vmatprep.subr.mxu0 %v5987
    %6255 = vmatpush1.msra.mxu0 %v5986
    %6256 = vmatprep.subr.mxu0 %v5989
    %6257 = vmatpush1.msra.mxu0 %v5988
    %6258 = vmatprep.subr.mxu0 %v5991
    %6259 = vmatpush1.msra.mxu0 %v5990
    %6260 = vmatprep.subr.mxu0 %v5993
    %6261 = vmatpush1.msra.mxu0 %v5992
    %6262 = vmatprep.subr.mxu0 %v5995
    %6263 = vmatpush1.msra.mxu0 %v5994
    %6264 = vmatprep.subr.mxu0 %v5997
    %6265 = vmatpush1.msra.mxu0 %v5996
    %6266 = vmatprep.subr.mxu0 %v5999
    %6267 = vmatpush1.msra.mxu0 %v5998
    %6268 = vmatprep.subr.mxu0 %v6001
    %6269 = vmatpush1.msra.mxu0 %v6000
    %6270 = vmatprep.mubr.f32.mxu0 %v5931
    %6271 = vmatmul.mubr.f32.gmra.mrb[0].mxu0 %v5930
    %v6272 = vpop.f32.mrb[0].mxu0
    %v6273 = vadd.f32 %v6199, %v6272
    %v6274 = vpop.f32.mrb[0].mxu0
    %v6275 = vadd.f32 %v6203, %v6274
    %6276 = vdwg.mxu0
    %6277 = vmatprep.subr.mxu0 %v6003
    %6278 = vmatpush1.msra.mxu0 %v6002
    %6279 = vmatprep.subr.mxu0 %v6005
    %6280 = vmatpush1.msra.mxu0 %v6004
    %6281 = vmatprep.subr.mxu0 %v6007
    %6282 = vmatpush1.msra.mxu0 %v6006
    %6283 = vmatprep.subr.mxu0 %v6009
    %6284 = vmatpush1.msra.mxu0 %v6008
    %6285 = vmatprep.subr.mxu0 %v6011
    %6286 = vmatpush1.msra.mxu0 %v6010
    %6287 = vmatprep.subr.mxu0 %v6013
    %6288 = vmatpush1.msra.mxu0 %v6012
    %6289 = vmatprep.subr.mxu0 %v6015
    %6290 = vmatpush1.msra.mxu0 %v6014
    %6291 = vmatprep.subr.mxu0 %v6017
    %6292 = vmatpush1.msra.mxu0 %v6016
    %6293 = vmatprep.subr.mxu0 %v6019
    %6294 = vmatpush1.msra.mxu0 %v6018
    %6295 = vmatprep.subr.mxu0 %v6021
    %6296 = vmatpush1.msra.mxu0 %v6020
    %6297 = vmatprep.subr.mxu0 %v6023
    %6298 = vmatpush1.msra.mxu0 %v6022
    %6299 = vmatprep.subr.mxu0 %v6025
    %6300 = vmatpush1.msra.mxu0 %v6024
    %6301 = vmatprep.subr.mxu0 %v6027
    %6302 = vmatpush1.msra.mxu0 %v6026
    %6303 = vmatprep.subr.mxu0 %v6029
    %6304 = vmatpush1.msra.mxu0 %v6028
    %6305 = vmatprep.subr.mxu0 %v6031
    %6306 = vmatpush1.msra.mxu0 %v6030
    %6307 = vmatprep.subr.mxu0 %v6033
    %6308 = vmatpush1.msra.mxu0 %v6032
    %6309 = vmatprep.subr.mxu0 %v6035
    %6310 = vmatpush1.msra.mxu0 %v6034
    %6311 = vmatprep.subr.mxu0 %v6037
    %6312 = vmatpush1.msra.mxu0 %v6036
    %6313 = vmatprep.subr.mxu0 %v6039
    %6314 = vmatpush1.msra.mxu0 %v6038
    %6315 = vmatprep.subr.mxu0 %v6041
    %6316 = vmatpush1.msra.mxu0 %v6040
    %6317 = vmatprep.subr.mxu0 %v6043
    %6318 = vmatpush1.msra.mxu0 %v6042
    %6319 = vmatprep.subr.mxu0 %v6045
    %6320 = vmatpush1.msra.mxu0 %v6044
    %6321 = vmatprep.subr.mxu0 %v6047
    %6322 = vmatpush1.msra.mxu0 %v6046
    %6323 = vmatprep.subr.mxu0 %v6049
    %6324 = vmatpush1.msra.mxu0 %v6048
    %6325 = vmatprep.subr.mxu0 %v6051
    %6326 = vmatpush1.msra.mxu0 %v6050
    %6327 = vmatprep.subr.mxu0 %v6053
    %6328 = vmatpush1.msra.mxu0 %v6052
    %6329 = vmatprep.subr.mxu0 %v6055
    %6330 = vmatpush1.msra.mxu0 %v6054
    %6331 = vmatprep.subr.mxu0 %v6057
    %6332 = vmatpush1.msra.mxu0 %v6056
    %6333 = vmatprep.subr.mxu0 %v6059
    %6334 = vmatpush1.msra.mxu0 %v6058
    %6335 = vmatprep.subr.mxu0 %v6061
    %6336 = vmatpush1.msra.mxu0 %v6060
    %6337 = vmatprep.subr.mxu0 %v6063
    %6338 = vmatpush1.msra.mxu0 %v6062
    %6339 = vmatprep.subr.mxu0 %v6065
    %6340 = vmatpush1.msra.mxu0 %v6064
    %6341 = vmatprep.mubr.f32.mxu0 %v5933
    %6342 = vmatmul.mubr.f32.gmra.mrb[0].mxu0 %v5932
    %v6343 = vpop.f32.mrb[0].mxu0
    %v6344 = vadd.f32 %v6273, %v6343
    %v6345 = vpop.f32.mrb[0].mxu0
    %v6346 = vadd.f32 %v6275, %v6345
    %6347 = vdwg.mxu0
    %6348 = vmatprep.subr.mxu0 %v6067
    %6349 = vmatpush1.msra.mxu0 %v6066
    %6350 = vmatprep.subr.mxu0 %v6069
    %6351 = vmatpush1.msra.mxu0 %v6068
    %6352 = vmatprep.subr.mxu0 %v6071
    %6353 = vmatpush1.msra.mxu0 %v6070
    %6354 = vmatprep.subr.mxu0 %v6073
    %6355 = vmatpush1.msra.mxu0 %v6072
    %6356 = vmatprep.subr.mxu0 %v6075
    %6357 = vmatpush1.msra.mxu0 %v6074
    %6358 = vmatprep.subr.mxu0 %v6077
    %6359 = vmatpush1.msra.mxu0 %v6076
    %6360 = vmatprep.subr.mxu0 %v6079
    %6361 = vmatpush1.msra.mxu0 %v6078
    %6362 = vmatprep.subr.mxu0 %v6081
    %6363 = vmatpush1.msra.mxu0 %v6080
    %6364 = vmatprep.subr.mxu0 %v6083
    %6365 = vmatpush1.msra.mxu0 %v6082
    %6366 = vmatprep.subr.mxu0 %v6085
    %6367 = vmatpush1.msra.mxu0 %v6084
    %6368 = vmatprep.subr.mxu0 %v6087
    %6369 = vmatpush1.msra.mxu0 %v6086
    %6370 = vmatprep.subr.mxu0 %v6089
    %6371 = vmatpush1.msra.mxu0 %v6088
    %6372 = vmatprep.subr.mxu0 %v6091
    %6373 = vmatpush1.msra.mxu0 %v6090
    %6374 = vmatprep.subr.mxu0 %v6093
    %6375 = vmatpush1.msra.mxu0 %v6092
    %6376 = vmatprep.subr.mxu0 %v6095
    %6377 = vmatpush1.msra.mxu0 %v6094
    %6378 = vmatprep.subr.mxu0 %v6097
    %6379 = vmatpush1.msra.mxu0 %v6096
    %6380 = vmatprep.subr.mxu0 %v6099
    %6381 = vmatpush1.msra.mxu0 %v6098
    %6382 = vmatprep.subr.mxu0 %v6101
    %6383 = vmatpush1.msra.mxu0 %v6100
    %6384 = vmatprep.subr.mxu0 %v6103
    %6385 = vmatpush1.msra.mxu0 %v6102
    %6386 = vmatprep.subr.mxu0 %v6105
    %6387 = vmatpush1.msra.mxu0 %v6104
    %6388 = vmatprep.subr.mxu0 %v6107
    %6389 = vmatpush1.msra.mxu0 %v6106
    %6390 = vmatprep.subr.mxu0 %v6109
    %6391 = vmatpush1.msra.mxu0 %v6108
    %6392 = vmatprep.subr.mxu0 %v6111
    %6393 = vmatpush1.msra.mxu0 %v6110
    %6394 = vmatprep.subr.mxu0 %v6113
    %6395 = vmatpush1.msra.mxu0 %v6112
    %6396 = vmatprep.subr.mxu0 %v6115
    %6397 = vmatpush1.msra.mxu0 %v6114
    %6398 = vmatprep.subr.mxu0 %v6117
    %6399 = vmatpush1.msra.mxu0 %v6116
    %6400 = vmatprep.subr.mxu0 %v6119
    %6401 = vmatpush1.msra.mxu0 %v6118
    %6402 = vmatprep.subr.mxu0 %v6121
    %6403 = vmatpush1.msra.mxu0 %v6120
    %6404 = vmatprep.subr.mxu0 %v6123
    %6405 = vmatpush1.msra.mxu0 %v6122
    %6406 = vmatprep.subr.mxu0 %v6125
    %6407 = vmatpush1.msra.mxu0 %v6124
    %6408 = vmatprep.subr.mxu0 %v6127
    %6409 = vmatpush1.msra.mxu0 %v6126
    %6410 = vmatprep.subr.mxu0 %v6129
    %6411 = vmatpush1.msra.mxu0 %v6128
    %6412 = vmatprep.mubr.f32.mxu0 %v5935
    %6413 = vmatmul.mubr.f32.gmra.mrb[0].mxu0 %v5934
    %v6414 = vpop.f32.mrb[0].mxu0
    %v6415 = vadd.f32 %v6344, %v6414
    %v6416 = vpop.f32.mrb[0].mxu0
    %v6417 = vadd.f32 %v6346, %v6416
    %6418 = vdwg.mxu0
    %6419 = vmatprep.subr.mxu0 %v6131
    %6420 = vmatpush1.msra.mxu0 %v6130
    %6421 = vmatprep.subr.mxu0 %v6133
    %6422 = vmatpush1.msra.mxu0 %v6132
    %6423 = vmatprep.subr.mxu0 %v6135
    %6424 = vmatpush1.msra.mxu0 %v6134
    %6425 = vmatprep.subr.mxu0 %v6137
    %6426 = vmatpush1.msra.mxu0 %v6136
    %6427 = vmatprep.subr.mxu0 %v6139
    %6428 = vmatpush1.msra.mxu0 %v6138
    %6429 = vmatprep.subr.mxu0 %v6141
    %6430 = vmatpush1.msra.mxu0 %v6140
    %6431 = vmatprep.subr.mxu0 %v6143
    %6432 = vmatpush1.msra.mxu0 %v6142
    %6433 = vmatprep.subr.mxu0 %v6145
    %6434 = vmatpush1.msra.mxu0 %v6144
    %6435 = vmatprep.subr.mxu0 %v6147
    %6436 = vmatpush1.msra.mxu0 %v6146
    %6437 = vmatprep.subr.mxu0 %v6149
    %6438 = vmatpush1.msra.mxu0 %v6148
    %6439 = vmatprep.subr.mxu0 %v6151
    %6440 = vmatpush1.msra.mxu0 %v6150
    %6441 = vmatprep.subr.mxu0 %v6153
    %6442 = vmatpush1.msra.mxu0 %v6152
    %6443 = vmatprep.subr.mxu0 %v6155
    %6444 = vmatpush1.msra.mxu0 %v6154
    %6445 = vmatprep.subr.mxu0 %v6157
    %6446 = vmatpush1.msra.mxu0 %v6156
    %6447 = vmatprep.subr.mxu0 %v6159
    %6448 = vmatpush1.msra.mxu0 %v6158
    %6449 = vmatprep.subr.mxu0 %v6161
    %6450 = vmatpush1.msra.mxu0 %v6160
    %6451 = vmatprep.subr.mxu0 %v6163
    %6452 = vmatpush1.msra.mxu0 %v6162
    %6453 = vmatprep.subr.mxu0 %v6165
    %6454 = vmatpush1.msra.mxu0 %v6164
    %6455 = vmatprep.subr.mxu0 %v6167
    %6456 = vmatpush1.msra.mxu0 %v6166
    %6457 = vmatprep.subr.mxu0 %v6169
    %6458 = vmatpush1.msra.mxu0 %v6168
    %6459 = vmatprep.subr.mxu0 %v6171
    %6460 = vmatpush1.msra.mxu0 %v6170
    %6461 = vmatprep.subr.mxu0 %v6173
    %6462 = vmatpush1.msra.mxu0 %v6172
    %6463 = vmatprep.subr.mxu0 %v6175
    %6464 = vmatpush1.msra.mxu0 %v6174
    %6465 = vmatprep.subr.mxu0 %v6177
    %6466 = vmatpush1.msra.mxu0 %v6176
    %6467 = vmatprep.subr.mxu0 %v6179
    %6468 = vmatpush1.msra.mxu0 %v6178
    %6469 = vmatprep.subr.mxu0 %v6181
    %6470 = vmatpush1.msra.mxu0 %v6180
    %6471 = vmatprep.subr.mxu0 %v6183
    %6472 = vmatpush1.msra.mxu0 %v6182
    %6473 = vmatprep.subr.mxu0 %v6185
    %6474 = vmatpush1.msra.mxu0 %v6184
    %6475 = vmatprep.subr.mxu0 %v6187
    %6476 = vmatpush1.msra.mxu0 %v6186
    %6477 = vmatprep.subr.mxu0 %v6189
    %6478 = vmatpush1.msra.mxu0 %v6188
    %6479 = vmatprep.subr.mxu0 %v6191
    %6480 = vmatpush1.msra.mxu0 %v6190
    %6481 = vmatprep.subr.mxu0 %v6193
    %6482 = vmatpush1.msra.mxu0 %v6192
    %6483 = vmatprep.mubr.f32.mxu0 %v5937
    %6484 = vmatmul.mubr.f32.gmra.mrb[0].mxu0 %v5936
    %v6485 = vpop.f32.mrb[0].mxu0
    %v6486 = vadd.f32 %v6415, %v6485
    %v6487 = vpop.f32.mrb[0].mxu0
    %v6488 = vadd.f32 %v6417, %v6487
    %6489 = vdwg.mxu0
    %v6490 = vld [vmem:[#allocation31] sm:$0x3]
    %v6492 = vlaneseq
    %v6493 = vshrl.u32 %v6492, 7
    %v6494 = vsub.s32 0, %v6493
    %v6495 = vrot.slane %v6490, %v6494
    %v6496 = vlaneseq
    %v6497 = vshrl.u32 %v6496, 7
    %v6498 = vsub.s32 1, %v6497
    %v6499 = vrot.slane %v6490, %v6498
    %v6502 = vsub.f32 %v6486, %v6495
    %v6503 = vsub.f32 %v6488, %v6499
    %v6504 = vld [vmem:[#allocation32] sm:$0x3]
    %v6505 = vadd.f32 %v6504, 1e-05
    %v6506 = vrsqrt.pop %v6505
    %v6508 = vlaneseq
    %v6509 = vshrl.u32 %v6508, 7
    %v6510 = vsub.s32 0, %v6509
    %v6511 = vrot.slane %v6506, %v6510
    %v6512 = vlaneseq
    %v6513 = vshrl.u32 %v6512, 7
    %v6514 = vsub.s32 1, %v6513
    %v6515 = vrot.slane %v6506, %v6514
    %v6518 = vmul.f32 %v6502, %v6511
    %v6519 = vmul.f32 %v6503, %v6515
    %v6520 = vld [vmem:[#allocation28] sm:$0x3]
    %v6522 = vlaneseq
    %v6523 = vshrl.u32 %v6522, 7
    %v6524 = vsub.s32 0, %v6523
    %v6525 = vrot.slane %v6520, %v6524
    %v6526 = vlaneseq
    %v6527 = vshrl.u32 %v6526, 7
    %v6528 = vsub.s32 1, %v6527
    %v6529 = vrot.slane %v6520, %v6528
    %v6532 = vmul.f32 %v6518, %v6525
    %v6533 = vmul.f32 %v6519, %v6529
    %v6534 = vld [vmem:[#allocation29] sm:$0x3]
    %v6536 = vlaneseq
    %v6537 = vshrl.u32 %v6536, 7
    %v6538 = vsub.s32 0, %v6537
    %v6539 = vrot.slane %v6534, %v6538
    %v6540 = vlaneseq
    %v6541 = vshrl.u32 %v6540, 7
    %v6542 = vsub.s32 1, %v6541
    %v6543 = vrot.slane %v6534, %v6542
    %v6546 = vadd.f32 %v6532, %v6539
    %v6547 = vadd.f32 %v6533, %v6543
    %v6548 = vmax.f32 %v6546, 0.0
    %v6549 = vmax.f32 %v6547, 0.0
    %v6550 = vld [vmem:[%s69] sm:$0xff]
    %v6551 = vld [vmem:[%s69 + $0x8] sm:$0xff]
    %v6552 = vld [vmem:[%s69 + $0x10] sm:$0xff]
    %v6553 = vld [vmem:[%s69 + $0x18] sm:$0xff]
    %v6554 = vld [vmem:[%s69 + $0x20] sm:$0xff]
    %v6555 = vld [vmem:[%s69 + $0x28] sm:$0xff]
    %v6556 = vld [vmem:[%s69 + $0x30] sm:$0xff]
    %v6557 = vld [vmem:[%s69 + $0x38] sm:$0xff]
    %v6558 = vld [vmem:[%s69 + $0x40] sm:$0xff]
    %v6559 = vld [vmem:[%s69 + $0x48] sm:$0xff]
    %v6560 = vld [vmem:[%s69 + $0x50] sm:$0xff]
    %v6561 = vld [vmem:[%s69 + $0x58] sm:$0xff]
    %v6562 = vld [vmem:[%s69 + $0x60] sm:$0xff]
    %v6563 = vld [vmem:[%s69 + $0x68] sm:$0xff]
    %v6564 = vld [vmem:[%s69 + $0x70] sm:$0xff]
    %v6565 = vld [vmem:[%s69 + $0x78] sm:$0xff]
    %v6566 = vld [vmem:[%s69 + $0x80] sm:$0xff]
    %v6567 = vld [vmem:[%s69 + $0x88] sm:$0xff]
    %v6568 = vld [vmem:[%s69 + $0x90] sm:$0xff]
    %v6569 = vld [vmem:[%s69 + $0x98] sm:$0xff]
    %v6570 = vld [vmem:[%s69 + $0xa0] sm:$0xff]
    %v6571 = vld [vmem:[%s69 + $0xa8] sm:$0xff]
    %v6572 = vld [vmem:[%s69 + $0xb0] sm:$0xff]
    %v6573 = vld [vmem:[%s69 + $0xb8] sm:$0xff]
    %v6574 = vld [vmem:[%s69 + $0xc0] sm:$0xff]
    %v6575 = vld [vmem:[%s69 + $0xc8] sm:$0xff]
    %v6576 = vld [vmem:[%s69 + $0xd0] sm:$0xff]
    %v6577 = vld [vmem:[%s69 + $0xd8] sm:$0xff]
    %v6578 = vld [vmem:[%s69 + $0xe0] sm:$0xff]
    %v6579 = vld [vmem:[%s69 + $0xe8] sm:$0xff]
    %v6580 = vld [vmem:[%s69 + $0xf0] sm:$0xff]
    %v6581 = vld [vmem:[%s69 + $0xf8] sm:$0xff]
    %v6582 = vld [vmem:[#allocation2] sm:$0x1]
    %v6584 = vlaneseq
    %v6585 = vshrl.u32 %v6584, 7
    %v6586 = vsub.s32 0, %v6585
    %v6587 = vrot.slane %v6582, %v6586
    %6589 = vmatprep.subr.mxu0 0.0
    %6590 = vmatpush1.msra.mxu0 %v6550
    %6591 = vmatprep.subr.mxu0 0.0
    %6592 = vmatpush1.msra.mxu0 %v6551
    %6593 = vmatprep.subr.mxu0 0.0
    %6594 = vmatpush1.msra.mxu0 %v6552
    %6595 = vmatprep.subr.mxu0 0.0
    %6596 = vmatpush1.msra.mxu0 %v6553
    %6597 = vmatprep.subr.mxu0 0.0
    %6598 = vmatpush1.msra.mxu0 %v6554
    %6599 = vmatprep.subr.mxu0 0.0
    %6600 = vmatpush1.msra.mxu0 %v6555
    %6601 = vmatprep.subr.mxu0 0.0
    %6602 = vmatpush1.msra.mxu0 %v6556
    %6603 = vmatprep.subr.mxu0 0.0
    %6604 = vmatpush1.msra.mxu0 %v6557
    %6605 = vmatprep.subr.mxu0 0.0
    %6606 = vmatpush1.msra.mxu0 %v6558
    %6607 = vmatprep.subr.mxu0 0.0
    %6608 = vmatpush1.msra.mxu0 %v6559
    %6609 = vmatprep.subr.mxu0 0.0
    %6610 = vmatpush1.msra.mxu0 %v6560
    %6611 = vmatprep.subr.mxu0 0.0
    %6612 = vmatpush1.msra.mxu0 %v6561
    %6613 = vmatprep.subr.mxu0 0.0
    %6614 = vmatpush1.msra.mxu0 %v6562
    %6615 = vmatprep.subr.mxu0 0.0
    %6616 = vmatpush1.msra.mxu0 %v6563
    %6617 = vmatprep.subr.mxu0 0.0
    %6618 = vmatpush1.msra.mxu0 %v6564
    %6619 = vmatprep.subr.mxu0 0.0
    %6620 = vmatpush1.msra.mxu0 %v6565
    %6621 = vmatprep.subr.mxu0 0.0
    %6622 = vmatpush1.msra.mxu0 %v6566
    %6623 = vmatprep.subr.mxu0 0.0
    %6624 = vmatpush1.msra.mxu0 %v6567
    %6625 = vmatprep.subr.mxu0 0.0
    %6626 = vmatpush1.msra.mxu0 %v6568
    %6627 = vmatprep.subr.mxu0 0.0
    %6628 = vmatpush1.msra.mxu0 %v6569
    %6629 = vmatprep.subr.mxu0 0.0
    %6630 = vmatpush1.msra.mxu0 %v6570
    %6631 = vmatprep.subr.mxu0 0.0
    %6632 = vmatpush1.msra.mxu0 %v6571
    %6633 = vmatprep.subr.mxu0 0.0
    %6634 = vmatpush1.msra.mxu0 %v6572
    %6635 = vmatprep.subr.mxu0 0.0
    %6636 = vmatpush1.msra.mxu0 %v6573
    %6637 = vmatprep.subr.mxu0 0.0
    %6638 = vmatpush1.msra.mxu0 %v6574
    %6639 = vmatprep.subr.mxu0 0.0
    %6640 = vmatpush1.msra.mxu0 %v6575
    %6641 = vmatprep.subr.mxu0 0.0
    %6642 = vmatpush1.msra.mxu0 %v6576
    %6643 = vmatprep.subr.mxu0 0.0
    %6644 = vmatpush1.msra.mxu0 %v6577
    %6645 = vmatprep.subr.mxu0 0.0
    %6646 = vmatpush1.msra.mxu0 %v6578
    %6647 = vmatprep.subr.mxu0 0.0
    %6648 = vmatpush1.msra.mxu0 %v6579
    %6649 = vmatprep.subr.mxu0 0.0
    %6650 = vmatpush1.msra.mxu0 %v6580
    %6651 = vmatprep.subr.mxu0 0.0
    %6652 = vmatpush1.msra.mxu0 %v6581
    %6653 = vmatprep.mubr.f32.mxu0 %v6549
    %6654 = vmatmul.mubr.f32.gmra.mrb[0].mxu0 %v6548
    %v6655 = vpop.f32.mrb[0].mxu0
    %v6656 = vadd.f32 %v6587, %v6655
    %v6657 = vpop.f32.mrb[0].mxu0
    %6658 = vdwg.mxu0
    %v6659 = vxor.u32 %v6656, 2147483648
    %v6660 = vmul.f32 %v6659, 1.442695
    %v6661 = vpow.pop %v6660
    %v6662 = vadd.f32 %v6661, 1.0
    %v6663 = vrcp.pop %v6662
    %v6664 = vmul.f32 1.0, %v6663
    %vm6665 = vcmask 1024
    %6666 = vst.msk [vmem:[%s73] sm:$0x3] %vm6665, %v6664
    // Predicated region
    $region226: #{baseline_forward.1} parent=1 // pred_check
      _
    $region227: #{baseline_forward.1} parent=1 // pred_check_branch
      %6668 = sbr.rel (0) target = $region229
    $region228: #{baseline_forward.1} parent=1 // pred_region
      _
    $region229: #{baseline_forward.1} parent=1 // pred_fallthru
      _
    // Predicated region
    $region230: #{baseline_forward.1} parent=1 // pred_check
      _
    $region231: #{baseline_forward.1} parent=1 // pred_check_branch
      %6670 = sbr.rel (0) target = $region233
    $region232: #{baseline_forward.1} parent=1 // pred_region
      _
    $region233: #{baseline_forward.1} parent=1 // pred_fallthru
      _
    %6671 = vsyncpa [#allocation4], 1
    %6672 = vsyncpa [#allocation6], 1
    %6673 = vsyncpa [#allocation9], 1
    %6674 = vsyncpa [#allocation12], 1
    %6675 = vsyncpa [#allocation15], 1
    %6676 = vsyncpa [#allocation18], 1
    %6677 = vsyncpa [#allocation21], 1
    %6678 = vsyncpa [#allocation24], 1
    %6679 = vsyncpa [#allocation27], 1
    %6680 = vsyncpa [#allocation30], 1
    %6681 = vsyncpa [#allocation33], 1

</llo_original>
